<compile_context>
chip_gen: v7x
topology: tpu7x:2x2x1
jax: 0.10.0
libtpu: 0.0.40
codegen_flags: <defaults>
</compile_context>

<pallas_src>
import math

import jax
import jax.numpy as jnp
from jax.experimental import pallas as pl
from jax.experimental.pallas import tpu as pltpu


# ----------------------------------------------------------------------------
# Kernel 1: one full bidirectional GRU layer in a single invocation.
# Inputs are batch-major (N, T, IN); output is batch-major (N, T, 2H).
# ----------------------------------------------------------------------------
def bigru_layer_kernel(x_ref, len_ref, wih_ref, bih_ref,
                       whh_f_ref, bhh_f_ref, whh_b_ref, bhh_b_ref, out_ref):
    N, T, IN = x_ref.shape
    H = whh_f_ref.shape[0]

    # Hoisted input projection for BOTH directions: one (N*T, IN) x (IN, 6H) matmul.
    x2d = x_ref[...].reshape(N * T, IN)
    gx = jnp.dot(x2d, wih_ref[...], preferred_element_type=jnp.float32) + bih_ref[...]
    gx = gx.reshape(N, T, 6 * H)          # [:, :, :3H] -> fwd gates, [:, :, 3H:] -> bwd gates

    lengths = len_ref[...]                # (N, 1) int32
    whh_f = whh_f_ref[...]
    bhh_f = bhh_f_ref[...]
    whh_b = whh_b_ref[...]
    bhh_b = bhh_b_ref[...]

    def cell(gx_t, h_prev, whh, bhh, m):
        # PyTorch GRU gate order: r, z, n
        gh = jnp.dot(h_prev, whh, preferred_element_type=jnp.float32) + bhh
        r = jax.nn.sigmoid(gx_t[:, 0:H] + gh[:, 0:H])
        z = jax.nn.sigmoid(gx_t[:, H:2 * H] + gh[:, H:2 * H])
        n = jnp.tanh(gx_t[:, 2 * H:3 * H] + r * gh[:, 2 * H:3 * H])
        h_new = (1.0 - z) * n + z * h_prev
        # packed-sequence semantics: padded steps do not advance the state
        return m * h_new + (1.0 - m) * h_prev

    h_f = jnp.zeros((N, H), jnp.float32)
    h_b = jnp.zeros((N, H), jnp.float32)

    # Fully unrolled static time loop (T is small and fixed): all indices are static.
    for s in range(T):
        tf = s              # forward direction walks t = 0 .. T-1
        tb = T - 1 - s      # backward direction walks t = T-1 .. 0
        m_f = (lengths > tf).astype(jnp.float32)      # (N, 1) validity mask
        m_b = (lengths > tb).astype(jnp.float32)
        h_f = cell(gx[:, tf, 0:3 * H], h_f, whh_f, bhh_f, m_f)
        h_b = cell(gx[:, tb, 3 * H:6 * H], h_b, whh_b, bhh_b, m_b)
        out_ref[:, tf, 0:H] = h_f
        out_ref[:, tb, H:2 * H] = h_b


def run_bigru_layer(x, len_n1, layer):
    N, T, _ = x.shape
    wih_f, whh_f, bih_f, bhh_f = layer["fwd"]
    wih_b, whh_b, bih_b, bhh_b = layer["bwd"]
    H = whh_f.shape[0]
    # Fuse the two directions' input-projection weights so the hoisted matmul is one op.
    wih_cat = jnp.concatenate([wih_f, wih_b], axis=1)     # (IN, 6H)
    bih_cat = jnp.concatenate([bih_f, bih_b], axis=1)     # (1, 6H)
    return pl.pallas_call(
        bigru_layer_kernel,
        out_shape=jax.ShapeDtypeStruct((N, T, 2 * H), jnp.float32),
    )(x, len_n1, wih_cat, bih_cat, whh_f, bhh_f, whh_b, bhh_b)


# ----------------------------------------------------------------------------
# Kernel 2: word attention + masked softmax + weighted pooling, whole batch at once.
# ----------------------------------------------------------------------------
def word_attention_kernel(h_ref, len_ref, watt_ref, batt_ref, wctx_ref,
                          sent_ref, alpha_ref):
    N, T, D = h_ref.shape
    A = watt_ref.shape[-1]
    h = h_ref[...]                                        # (N, T, D)

    # One big MXU matmul for the attention projection over all (sentence, word) pairs.
    u = jnp.tanh(jnp.dot(h.reshape(N * T, D), watt_ref[...],
                         preferred_element_type=jnp.float32) + batt_ref[...])   # (N*T, A)
    u3 = u.reshape(N, T, A)
    s = jnp.sum(u3 * wctx_ref[...], axis=-1, keepdims=True)          # (N, T, 1)

    # Validity mask computed in-kernel from lengths (no HBM mask tensor).
    t_iota = jax.lax.broadcasted_iota(jnp.int32, (N, T, 1), 1)
    valid_b = t_iota < len_ref[...]                                   # (N, T, 1) bool
    valid = valid_b.astype(jnp.float32)

    s = jnp.where(valid_b, s, -1e30)
    mx = jnp.max(s, axis=1, keepdims=True)                            # per-sentence max
    e = jnp.exp(s - mx) * valid
    denom = jnp.maximum(jnp.sum(e, axis=1, keepdims=True), 1e-30)     # guard length==0
    alphas = e / denom                                                # (N, T, 1)

    alpha_ref[...] = alphas
    sent_ref[...] = jnp.sum(alphas * h, axis=1, keepdims=True)[:, 0, :]   # (N, D)


def run_word_attention(h, len_n1, watt_t, batt, wctx):
    N, T, D = h.shape
    A = watt_t.shape[1]
    sent, alphas = pl.pallas_call(
        word_attention_kernel,
        out_shape=(jax.ShapeDtypeStruct((N, D), jnp.float32),
                   jax.ShapeDtypeStruct((N, T, 1), jnp.float32)),
    )(h, len_n1.reshape(N, 1, 1), watt_t, batt, wctx.reshape(1, 1, A))
    # TODO(synk): for production sizes emit alphas lane-dense (N, T) from the kernel.
    return sent, alphas[:, :, 0]


# ----------------------------------------------------------------------------
# Full forward (glue in plain JAX: embedding gather + tiny reshapes only)
# ----------------------------------------------------------------------------
def word_attention_forward(params, tokens, lengths):
    emb = jnp.take(params["embedding"], tokens, axis=0)               # (N, T, E) XLA gather
    # TODO(synk): nn.Dropout is identity in eval mode; no dropout applied.
    N, T, _ = emb.shape
    len_n1 = lengths.astype(jnp.int32).reshape(N, 1)

    x = emb
    for layer in params["gru"]:
        x = run_bigru_layer(x, len_n1, layer)                          # (N, T, 2H)

    sent, alphas = run_word_attention(
        x, len_n1, params["watt_t"], params["batt"], params["wctx"])
    return sent, alphas


# ----------------------------------------------------------------------------
# Pure-JAX reference (for correctness check against the Pallas pipeline)
# ----------------------------------------------------------------------------
def gru_dir_ref(x_tmaj, mask_tmaj, wih_t, whh_t, bih, bhh):
    H = whh_t.shape[0]

    def step(h, xm):
        x, m = xm
        gx = x @ wih_t + bih
        gh = h @ whh_t + bhh
        r = jax.nn.sigmoid(gx[:, :H] + gh[:, :H])
        z = jax.nn.sigmoid(gx[:, H:2 * H] + gh[:, H:2 * H])
        n = jnp.tanh(gx[:, 2 * H:] + r * gh[:, 2 * H:])
        h_new = (1.0 - z) * n + z * h
        h_next = m * h_new + (1.0 - m) * h
        return h_next, h_next

    h0 = jnp.zeros((x_tmaj.shape[1], H), jnp.float32)
    _, hs = jax.lax.scan(step, h0, (x_tmaj, mask_tmaj))
    return hs


def forward_ref(params, tokens, lengths):
    emb = jnp.take(params["embedding"], tokens, axis=0)
    N, T, _ = emb.shape
    t_idx = jnp.arange(T)
    valid_bt = (t_idx[None, :] < lengths[:, None]).astype(jnp.float32)
    mask_fwd = jnp.transpose(valid_bt)[:, :, None]
    mask_bwd = mask_fwd[::-1]
    x = emb
    for layer in params["gru"]:
        x_tmaj = jnp.transpose(x, (1, 0, 2))
        h_fwd = gru_dir_ref(x_tmaj, mask_fwd, *layer["fwd"])
        h_bwd = gru_dir_ref(x_tmaj[::-1], mask_bwd, *layer["bwd"])[::-1]
        x = jnp.transpose(jnp.concatenate([h_fwd, h_bwd], axis=-1), (1, 0, 2))
    watt_t, batt, wctx = params["watt_t"], params["batt"], params["wctx"]
    u = jnp.tanh(jnp.einsum("ntd,da->nta", x, watt_t) + batt[0])
    s = jnp.sum(u * wctx[0], axis=-1)
    s = jnp.where(valid_bt > 0, s, -1e30)
    mx = jnp.max(s, axis=1, keepdims=True)
    e = jnp.exp(s - mx) * valid_bt
    alphas = e / jnp.sum(e, axis=1, keepdims=True)
    sent = jnp.sum(alphas[:, :, None] * x, axis=1)
    return sent, alphas


# ----------------------------------------------------------------------------
# Deterministic parameter init (shapes follow the nn.Module __init__)
# ----------------------------------------------------------------------------
def init_params(key, vocab_size, emb_size, H, num_layers, att_size):
    keys = iter(jax.random.split(key, 4 + 8 * num_layers))

    def unif(shape, scale):
        return jax.random.uniform(next(keys), shape, jnp.float32, -scale, scale)

    params = {}
    params["embedding"] = jax.random.normal(next(keys), (vocab_size, emb_size), jnp.float32)

    sH = 1.0 / math.sqrt(H)
    gru_layers = []
    for layer in range(num_layers):
        in_size = emb_size if layer == 0 else 2 * H
        layer_p = {}
        for direction in ("fwd", "bwd"):
            wih_t = unif((in_size, 3 * H), sH)   # weight_ih (3H, in) transposed
            whh_t = unif((H, 3 * H), sH)         # weight_hh (3H, H) transposed
            bih = unif((1, 3 * H), sH)
            bhh = unif((1, 3 * H), sH)
            layer_p[direction] = (wih_t, whh_t, bih, bhh)
        gru_layers.append(layer_p)
    params["gru"] = gru_layers

    s2H = 1.0 / math.sqrt(2 * H)
    params["watt_t"] = unif((2 * H, att_size), s2H)   # word_attention.weight (A, 2H) transposed
    params["batt"] = unif((1, att_size), s2H)         # word_attention.bias
    sA = 1.0 / math.sqrt(att_size)
    params["wctx"] = unif((1, att_size), sA)          # word_context_vector.weight (1, A)
    return params


if __name__ == "__main__":
    vocab_size, emb_size = 50, 32
    word_rnn_size, word_rnn_layers, word_att_size = 32, 2, 32
    N, T = 4, 8

    key = jax.random.PRNGKey(0)
    k_par, k_tok = jax.random.split(key)
    params = init_params(k_par, vocab_size, emb_size, word_rnn_size,
                         word_rnn_layers, word_att_size)
    tokens = jax.random.randint(k_tok, (N, T), 0, vocab_size, dtype=jnp.int32)
    words_per_sentence = jnp.array([8, 5, 3, 1], dtype=jnp.int32)

    fwd = jax.jit(word_attention_forward)
    sentences_out, word_alphas = fwd(params, tokens, words_per_sentence)
    sentences_out = jax.block_until_ready(sentences_out)
    word_alphas = jax.block_until_ready(word_alphas)

    assert sentences_out.shape == (N, 2 * word_rnn_size)
    assert word_alphas.shape == (N, T)

    sent_ref, alphas_ref = forward_ref(params, tokens, words_per_sentence)
    err = max(float(jnp.max(jnp.abs(sentences_out - sent_ref))),
              float(jnp.max(jnp.abs(word_alphas - alphas_ref))))
    assert err < 1e-3, f"mismatch vs pure-JAX reference: {err}"

    print("KERNEL_OK")
</pallas_src>

<mosaic_0001>
module attributes {stable_mosaic.version = 11 : i64} {
  func.func @word_attention_kernel(%arg0: memref<4x8x64xf32, #tpu.memory_space<vmem>>, %arg1: memref<4x1x1xi32, #tpu.memory_space<vmem>>, %arg2: memref<64x32xf32, #tpu.memory_space<vmem>>, %arg3: memref<1x32xf32, #tpu.memory_space<vmem>>, %arg4: memref<1x1x32xf32, #tpu.memory_space<vmem>>, %arg5: memref<4x64xf32, #tpu.memory_space<vmem>>, %arg6: memref<4x8x1xf32, #tpu.memory_space<vmem>>) attributes {dimension_semantics = [], scalar_prefetch = 0 : i64, scratch_operands = 0 : i64, tpu.core_type = #tpu.core_type<tc>} {
    %c0 = arith.constant 0 : index
    %c0_0 = arith.constant 0 : index
    %c0_1 = arith.constant 0 : index
    %0 = vector.load %arg0[%c0, %c0_0, %c0_1] : memref<4x8x64xf32, #tpu.memory_space<vmem>>, vector<4x8x64xf32>
    %1 = vector.shape_cast %0 : vector<4x8x64xf32> to vector<32x64xf32>
    %c0_2 = arith.constant 0 : index
    %c0_3 = arith.constant 0 : index
    %2 = vector.load %arg2[%c0_2, %c0_3] : memref<64x32xf32, #tpu.memory_space<vmem>>, vector<64x32xf32>
    %cst = arith.constant dense<0.000000e+00> : vector<32x32xf32>
    %3 = tpu.matmul %1, %2, %cst {dimension_numbers = #tpu.dot_dimension_numbers<[1], [0], [0], [1], [0, 0, 1, 1], [], []>} : vector<32x64xf32>, vector<64x32xf32>, vector<32x32xf32> -> vector<32x32xf32>
    %c0_4 = arith.constant 0 : index
    %c0_5 = arith.constant 0 : index
    %4 = vector.load %arg3[%c0_4, %c0_5] : memref<1x32xf32, #tpu.memory_space<vmem>>, vector<1x32xf32>
    %5 = vector.broadcast %4 : vector<1x32xf32> to vector<32x32xf32>
    %6 = arith.addf %3, %5 : vector<32x32xf32>
    %7 = math.tanh %6 : vector<32x32xf32>
    %8 = vector.shape_cast %7 : vector<32x32xf32> to vector<4x8x32xf32>
    %c0_6 = arith.constant 0 : index
    %c0_7 = arith.constant 0 : index
    %c0_8 = arith.constant 0 : index
    %9 = vector.load %arg4[%c0_6, %c0_7, %c0_8] : memref<1x1x32xf32, #tpu.memory_space<vmem>>, vector<1x1x32xf32>
    %10 = vector.broadcast %9 : vector<1x1x32xf32> to vector<4x8x32xf32>
    %11 = arith.mulf %8, %10 : vector<4x8x32xf32>
    %cst_9 = arith.constant dense<0.000000e+00> : vector<4x8xf32>
    %12 = vector.multi_reduction <add>, %11, %cst_9 [2] : vector<4x8x32xf32> to vector<4x8xf32>
    %13 = vector.shape_cast %12 : vector<4x8xf32> to vector<4x8x1xf32>
    %14 = tpu.iota {dimensions = array<i32: 1>} : vector<4x8x1xi32>
    %c0_10 = arith.constant 0 : index
    %c0_11 = arith.constant 0 : index
    %c0_12 = arith.constant 0 : index
    %15 = vector.load %arg1[%c0_10, %c0_11, %c0_12] : memref<4x1x1xi32, #tpu.memory_space<vmem>>, vector<4x1x1xi32>
    %16 = vector.broadcast %15 : vector<4x1x1xi32> to vector<4x8x1xi32>
    %17 = arith.cmpi slt, %14, %16 : vector<4x8x1xi32>
    %18 = arith.extui %17 : vector<4x8x1xi1> to vector<4x8x1xi32>
    %19 = arith.sitofp %18 : vector<4x8x1xi32> to vector<4x8x1xf32>
    %cst_13 = arith.constant -1.000000e+30 : f32
    %20 = vector.broadcast %cst_13 : f32 to vector<4x8x1xf32>
    %21 = arith.select %17, %13, %20 : vector<4x8x1xi1>, vector<4x8x1xf32>
    %cst_14 = arith.constant dense<0xFF800000> : vector<4x1xf32>
    %22 = vector.multi_reduction <maximumf>, %21, %cst_14 [1] : vector<4x8x1xf32> to vector<4x1xf32>
    %23 = vector.shape_cast %22 : vector<4x1xf32> to vector<4x1x1xf32>
    %24 = vector.broadcast %23 : vector<4x1x1xf32> to vector<4x8x1xf32>
    %25 = arith.subf %21, %24 : vector<4x8x1xf32>
    %26 = math.exp %25 : vector<4x8x1xf32>
    %27 = arith.mulf %26, %19 : vector<4x8x1xf32>
    %cst_15 = arith.constant dense<0.000000e+00> : vector<4x1xf32>
    %28 = vector.multi_reduction <add>, %27, %cst_15 [1] : vector<4x8x1xf32> to vector<4x1xf32>
    %29 = vector.shape_cast %28 : vector<4x1xf32> to vector<4x1x1xf32>
    %cst_16 = arith.constant 1.000000e-30 : f32
    %30 = vector.broadcast %cst_16 : f32 to vector<4x1x1xf32>
    %31 = arith.maximumf %29, %30 : vector<4x1x1xf32>
    %32 = vector.broadcast %31 : vector<4x1x1xf32> to vector<4x8x1xf32>
    %33 = arith.divf %27, %32 : vector<4x8x1xf32>
    %c0_17 = arith.constant 0 : index
    %c0_18 = arith.constant 0 : index
    %c0_19 = arith.constant 0 : index
    %34 = vector.load %arg6[%c0_17, %c0_18, %c0_19] : memref<4x8x1xf32, #tpu.memory_space<vmem>>, vector<4x8x1xf32>
    tpu.vector_store %arg6[%c0_17, %c0_18, %c0_19], %33 {strides = array<i32>} : memref<4x8x1xf32, #tpu.memory_space<vmem>>, vector<4x8x1xf32>,
    %35 = vector.broadcast %33 : vector<4x8x1xf32> to vector<4x8x64xf32>
    %36 = arith.mulf %35, %0 : vector<4x8x64xf32>
    %cst_20 = arith.constant dense<0.000000e+00> : vector<4x64xf32>
    %37 = vector.multi_reduction <add>, %36, %cst_20 [1] : vector<4x8x64xf32> to vector<4x64xf32>
    %38 = vector.shape_cast %37 : vector<4x64xf32> to vector<4x1x64xf32>
    %39 = vector.shape_cast %38 : vector<4x1x64xf32> to vector<4x64xf32>
    %c0_21 = arith.constant 0 : index
    %c0_22 = arith.constant 0 : index
    %40 = vector.load %arg5[%c0_21, %c0_22] : memref<4x64xf32, #tpu.memory_space<vmem>>, vector<4x64xf32>
    tpu.vector_store %arg5[%c0_21, %c0_22], %39 {strides = array<i32>} : memref<4x64xf32, #tpu.memory_space<vmem>>, vector<4x64xf32>,
    return
  }
}

module attributes {stable_mosaic.version = 11 : i64} {
  func.func @bigru_layer_kernel(%arg0: memref<4x8x64xf32, #tpu.memory_space<vmem>>, %arg1: memref<4x1xi32, #tpu.memory_space<vmem>>, %arg2: memref<64x192xf32, #tpu.memory_space<vmem>>, %arg3: memref<1x192xf32, #tpu.memory_space<vmem>>, %arg4: memref<32x96xf32, #tpu.memory_space<vmem>>, %arg5: memref<1x96xf32, #tpu.memory_space<vmem>>, %arg6: memref<32x96xf32, #tpu.memory_space<vmem>>, %arg7: memref<1x96xf32, #tpu.memory_space<vmem>>, %arg8: memref<4x8x64xf32, #tpu.memory_space<vmem>>) attributes {dimension_semantics = [], scalar_prefetch = 0 : i64, scratch_operands = 0 : i64, tpu.core_type = #tpu.core_type<tc>} {
    %c0 = arith.constant 0 : index
    %c0_0 = arith.constant 0 : index
    %c0_1 = arith.constant 0 : index
    %0 = vector.load %arg0[%c0, %c0_0, %c0_1] : memref<4x8x64xf32, #tpu.memory_space<vmem>>, vector<4x8x64xf32>
    %1 = vector.shape_cast %0 : vector<4x8x64xf32> to vector<32x64xf32>
    %c0_2 = arith.constant 0 : index
    %c0_3 = arith.constant 0 : index
    %2 = vector.load %arg2[%c0_2, %c0_3] : memref<64x192xf32, #tpu.memory_space<vmem>>, vector<64x192xf32>
    %cst = arith.constant dense<0.000000e+00> : vector<32x192xf32>
    %3 = tpu.matmul %1, %2, %cst {dimension_numbers = #tpu.dot_dimension_numbers<[1], [0], [0], [1], [0, 0, 1, 1], [], []>} : vector<32x64xf32>, vector<64x192xf32>, vector<32x192xf32> -> vector<32x192xf32>
    %c0_4 = arith.constant 0 : index
    %c0_5 = arith.constant 0 : index
    %4 = vector.load %arg3[%c0_4, %c0_5] : memref<1x192xf32, #tpu.memory_space<vmem>>, vector<1x192xf32>
    %5 = vector.broadcast %4 : vector<1x192xf32> to vector<32x192xf32>
    %6 = arith.addf %3, %5 : vector<32x192xf32>
    %7 = vector.shape_cast %6 : vector<32x192xf32> to vector<4x8x192xf32>
    %c0_6 = arith.constant 0 : index
    %c0_7 = arith.constant 0 : index
    %8 = vector.load %arg1[%c0_6, %c0_7] : memref<4x1xi32, #tpu.memory_space<vmem>>, vector<4x1xi32>
    %c0_8 = arith.constant 0 : index
    %c0_9 = arith.constant 0 : index
    %9 = vector.load %arg4[%c0_8, %c0_9] : memref<32x96xf32, #tpu.memory_space<vmem>>, vector<32x96xf32>
    %c0_10 = arith.constant 0 : index
    %c0_11 = arith.constant 0 : index
    %10 = vector.load %arg5[%c0_10, %c0_11] : memref<1x96xf32, #tpu.memory_space<vmem>>, vector<1x96xf32>
    %c0_12 = arith.constant 0 : index
    %c0_13 = arith.constant 0 : index
    %11 = vector.load %arg6[%c0_12, %c0_13] : memref<32x96xf32, #tpu.memory_space<vmem>>, vector<32x96xf32>
    %c0_14 = arith.constant 0 : index
    %c0_15 = arith.constant 0 : index
    %12 = vector.load %arg7[%c0_14, %c0_15] : memref<1x96xf32, #tpu.memory_space<vmem>>, vector<1x96xf32>
    %cst_16 = arith.constant 0.000000e+00 : f32
    %13 = vector.broadcast %cst_16 : f32 to vector<4x32xf32>
    %cst_17 = arith.constant 0.000000e+00 : f32
    %14 = vector.broadcast %cst_17 : f32 to vector<4x32xf32>
    %c0_i32 = arith.constant 0 : i32
    %15 = vector.broadcast %c0_i32 : i32 to vector<4x1xi32>
    %16 = arith.cmpi sgt, %8, %15 : vector<4x1xi32>
    %17 = arith.extui %16 : vector<4x1xi1> to vector<4x1xi32>
    %18 = arith.sitofp %17 : vector<4x1xi32> to vector<4x1xf32>
    %c7_i32 = arith.constant 7 : i32
    %19 = vector.broadcast %c7_i32 : i32 to vector<4x1xi32>
    %20 = arith.cmpi sgt, %8, %19 : vector<4x1xi32>
    %21 = arith.extui %20 : vector<4x1xi1> to vector<4x1xi32>
    %22 = arith.sitofp %21 : vector<4x1xi32> to vector<4x1xf32>
    %23 = vector.extract_strided_slice %7 {offsets = [0, 0, 0], sizes = [4, 1, 96], strides = [1, 1, 1]} : vector<4x8x192xf32> to vector<4x1x96xf32>
    %24 = vector.shape_cast %23 : vector<4x1x96xf32> to vector<4x96xf32>
    %cst_18 = arith.constant dense<0.000000e+00> : vector<4x96xf32>
    %25 = tpu.matmul %13, %9, %cst_18 {dimension_numbers = #tpu.dot_dimension_numbers<[1], [0], [0], [1], [0, 0, 1, 1], [], []>} : vector<4x32xf32>, vector<32x96xf32>, vector<4x96xf32> -> vector<4x96xf32>
    %26 = vector.broadcast %10 : vector<1x96xf32> to vector<4x96xf32>
    %27 = arith.addf %25, %26 : vector<4x96xf32>
    %28 = vector.extract_strided_slice %24 {offsets = [0, 0], sizes = [4, 32], strides = [1, 1]} : vector<4x96xf32> to vector<4x32xf32>
    %29 = vector.extract_strided_slice %27 {offsets = [0, 0], sizes = [4, 32], strides = [1, 1]} : vector<4x96xf32> to vector<4x32xf32>
    %30 = arith.addf %28, %29 : vector<4x32xf32>
    %31 = arith.negf %30 : vector<4x32xf32>
    %32 = math.exp %31 : vector<4x32xf32>
    %cst_19 = arith.constant 1.000000e+00 : f32
    %33 = vector.broadcast %cst_19 : f32 to vector<4x32xf32>
    %34 = arith.addf %33, %32 : vector<4x32xf32>
    %35 = arith.divf %33, %34 : vector<4x32xf32>
    %36 = vector.extract_strided_slice %24 {offsets = [0, 32], sizes = [4, 32], strides = [1, 1]} : vector<4x96xf32> to vector<4x32xf32>
    %37 = vector.extract_strided_slice %27 {offsets = [0, 32], sizes = [4, 32], strides = [1, 1]} : vector<4x96xf32> to vector<4x32xf32>
    %38 = arith.addf %36, %37 : vector<4x32xf32>
    %39 = arith.negf %38 : vector<4x32xf32>
    %40 = math.exp %39 : vector<4x32xf32>
    %cst_20 = arith.constant 1.000000e+00 : f32
    %41 = vector.broadcast %cst_20 : f32 to vector<4x32xf32>
    %42 = arith.addf %41, %40 : vector<4x32xf32>
    %43 = arith.divf %41, %42 : vector<4x32xf32>
    %44 = vector.extract_strided_slice %24 {offsets = [0, 64], sizes = [4, 32], strides = [1, 1]} : vector<4x96xf32> to vector<4x32xf32>
    %45 = vector.extract_strided_slice %27 {offsets = [0, 64], sizes = [4, 32], strides = [1, 1]} : vector<4x96xf32> to vector<4x32xf32>
    %46 = arith.mulf %35, %45 : vector<4x32xf32>
    %47 = arith.addf %44, %46 : vector<4x32xf32>
    %48 = math.tanh %47 : vector<4x32xf32>
    %cst_21 = arith.constant 1.000000e+00 : f32
    %49 = vector.broadcast %cst_21 : f32 to vector<4x32xf32>
    %50 = arith.subf %49, %43 : vector<4x32xf32>
    %51 = arith.mulf %50, %48 : vector<4x32xf32>
    %52 = arith.mulf %43, %13 : vector<4x32xf32>
    %53 = arith.addf %51, %52 : vector<4x32xf32>
    %54 = vector.broadcast %18 : vector<4x1xf32> to vector<4x32xf32>
    %55 = arith.mulf %54, %53 : vector<4x32xf32>
    %cst_22 = arith.constant 1.000000e+00 : f32
    %56 = vector.broadcast %cst_22 : f32 to vector<4x1xf32>
    %57 = arith.subf %56, %18 : vector<4x1xf32>
    %58 = vector.broadcast %57 : vector<4x1xf32> to vector<4x32xf32>
    %59 = arith.mulf %58, %13 : vector<4x32xf32>
    %60 = arith.addf %55, %59 : vector<4x32xf32>
    %61 = vector.extract_strided_slice %7 {offsets = [0, 7, 96], sizes = [4, 1, 96], strides = [1, 1, 1]} : vector<4x8x192xf32> to vector<4x1x96xf32>
    %62 = vector.shape_cast %61 : vector<4x1x96xf32> to vector<4x96xf32>
    %cst_23 = arith.constant dense<0.000000e+00> : vector<4x96xf32>
    %63 = tpu.matmul %14, %11, %cst_23 {dimension_numbers = #tpu.dot_dimension_numbers<[1], [0], [0], [1], [0, 0, 1, 1], [], []>} : vector<4x32xf32>, vector<32x96xf32>, vector<4x96xf32> -> vector<4x96xf32>
    %64 = vector.broadcast %12 : vector<1x96xf32> to vector<4x96xf32>
    %65 = arith.addf %63, %64 : vector<4x96xf32>
    %66 = vector.extract_strided_slice %62 {offsets = [0, 0], sizes = [4, 32], strides = [1, 1]} : vector<4x96xf32> to vector<4x32xf32>
    %67 = vector.extract_strided_slice %65 {offsets = [0, 0], sizes = [4, 32], strides = [1, 1]} : vector<4x96xf32> to vector<4x32xf32>
    %68 = arith.addf %66, %67 : vector<4x32xf32>
    %69 = arith.negf %68 : vector<4x32xf32>
    %70 = math.exp %69 : vector<4x32xf32>
    %cst_24 = arith.constant 1.000000e+00 : f32
    %71 = vector.broadcast %cst_24 : f32 to vector<4x32xf32>
    %72 = arith.addf %71, %70 : vector<4x32xf32>
    %73 = arith.divf %71, %72 : vector<4x32xf32>
    %74 = vector.extract_strided_slice %62 {offsets = [0, 32], sizes = [4, 32], strides = [1, 1]} : vector<4x96xf32> to vector<4x32xf32>
    %75 = vector.extract_strided_slice %65 {offsets = [0, 32], sizes = [4, 32], strides = [1, 1]} : vector<4x96xf32> to vector<4x32xf32>
    %76 = arith.addf %74, %75 : vector<4x32xf32>
    %77 = arith.negf %76 : vector<4x32xf32>
    %78 = math.exp %77 : vector<4x32xf32>
    %cst_25 = arith.constant 1.000000e+00 : f32
    %79 = vector.broadcast %cst_25 : f32 to vector<4x32xf32>
    %80 = arith.addf %79, %78 : vector<4x32xf32>
    %81 = arith.divf %79, %80 : vector<4x32xf32>
    %82 = vector.extract_strided_slice %62 {offsets = [0, 64], sizes = [4, 32], strides = [1, 1]} : vector<4x96xf32> to vector<4x32xf32>
    %83 = vector.extract_strided_slice %65 {offsets = [0, 64], sizes = [4, 32], strides = [1, 1]} : vector<4x96xf32> to vector<4x32xf32>
    %84 = arith.mulf %73, %83 : vector<4x32xf32>
    %85 = arith.addf %82, %84 : vector<4x32xf32>
    %86 = math.tanh %85 : vector<4x32xf32>
    %cst_26 = arith.constant 1.000000e+00 : f32
    %87 = vector.broadcast %cst_26 : f32 to vector<4x32xf32>
    %88 = arith.subf %87, %81 : vector<4x32xf32>
    %89 = arith.mulf %88, %86 : vector<4x32xf32>
    %90 = arith.mulf %81, %14 : vector<4x32xf32>
    %91 = arith.addf %89, %90 : vector<4x32xf32>
    %92 = vector.broadcast %22 : vector<4x1xf32> to vector<4x32xf32>
    %93 = arith.mulf %92, %91 : vector<4x32xf32>
    %cst_27 = arith.constant 1.000000e+00 : f32
    %94 = vector.broadcast %cst_27 : f32 to vector<4x1xf32>
    %95 = arith.subf %94, %22 : vector<4x1xf32>
    %96 = vector.broadcast %95 : vector<4x1xf32> to vector<4x32xf32>
    %97 = arith.mulf %96, %14 : vector<4x32xf32>
    %98 = arith.addf %93, %97 : vector<4x32xf32>
    %c0_28 = arith.constant 0 : index
    %c0_29 = arith.constant 0 : index
    %c0_30 = arith.constant 0 : index
    %99 = vector.load %arg8[%c0_28, %c0_29, %c0_30] : memref<4x8x64xf32, #tpu.memory_space<vmem>>, vector<4x1x32xf32>
    %100 = vector.shape_cast %99 : vector<4x1x32xf32> to vector<4x32xf32>
    %101 = vector.shape_cast %60 : vector<4x32xf32> to vector<4x1x32xf32>
    tpu.vector_store %arg8[%c0_28, %c0_29, %c0_30], %101 {strides = array<i32>} : memref<4x8x64xf32, #tpu.memory_space<vmem>>, vector<4x1x32xf32>,
    %c0_31 = arith.constant 0 : index
    %c7 = arith.constant 7 : index
    %c32 = arith.constant 32 : index
    %102 = vector.load %arg8[%c0_31, %c7, %c32] : memref<4x8x64xf32, #tpu.memory_space<vmem>>, vector<4x1x32xf32>
    %103 = vector.shape_cast %102 : vector<4x1x32xf32> to vector<4x32xf32>
    %104 = vector.shape_cast %98 : vector<4x32xf32> to vector<4x1x32xf32>
    tpu.vector_store %arg8[%c0_31, %c7, %c32], %104 {strides = array<i32>} : memref<4x8x64xf32, #tpu.memory_space<vmem>>, vector<4x1x32xf32>,
    %c1_i32 = arith.constant 1 : i32
    %105 = vector.broadcast %c1_i32 : i32 to vector<4x1xi32>
    %106 = arith.cmpi sgt, %8, %105 : vector<4x1xi32>
    %107 = arith.extui %106 : vector<4x1xi1> to vector<4x1xi32>
    %108 = arith.sitofp %107 : vector<4x1xi32> to vector<4x1xf32>
    %c6_i32 = arith.constant 6 : i32
    %109 = vector.broadcast %c6_i32 : i32 to vector<4x1xi32>
    %110 = arith.cmpi sgt, %8, %109 : vector<4x1xi32>
    %111 = arith.extui %110 : vector<4x1xi1> to vector<4x1xi32>
    %112 = arith.sitofp %111 : vector<4x1xi32> to vector<4x1xf32>
    %113 = vector.extract_strided_slice %7 {offsets = [0, 1, 0], sizes = [4, 1, 96], strides = [1, 1, 1]} : vector<4x8x192xf32> to vector<4x1x96xf32>
    %114 = vector.shape_cast %113 : vector<4x1x96xf32> to vector<4x96xf32>
    %cst_32 = arith.constant dense<0.000000e+00> : vector<4x96xf32>
    %115 = tpu.matmul %60, %9, %cst_32 {dimension_numbers = #tpu.dot_dimension_numbers<[1], [0], [0], [1], [0, 0, 1, 1], [], []>} : vector<4x32xf32>, vector<32x96xf32>, vector<4x96xf32> -> vector<4x96xf32>
    %116 = vector.broadcast %10 : vector<1x96xf32> to vector<4x96xf32>
    %117 = arith.addf %115, %116 : vector<4x96xf32>
    %118 = vector.extract_strided_slice %114 {offsets = [0, 0], sizes = [4, 32], strides = [1, 1]} : vector<4x96xf32> to vector<4x32xf32>
    %119 = vector.extract_strided_slice %117 {offsets = [0, 0], sizes = [4, 32], strides = [1, 1]} : vector<4x96xf32> to vector<4x32xf32>
    %120 = arith.addf %118, %119 : vector<4x32xf32>
    %121 = arith.negf %120 : vector<4x32xf32>
    %122 = math.exp %121 : vector<4x32xf32>
    %cst_33 = arith.constant 1.000000e+00 : f32
    %123 = vector.broadcast %cst_33 : f32 to vector<4x32xf32>
    %124 = arith.addf %123, %122 : vector<4x32xf32>
    %125 = arith.divf %123, %124 : vector<4x32xf32>
    %126 = vector.extract_strided_slice %114 {offsets = [0, 32], sizes = [4, 32], strides = [1, 1]} : vector<4x96xf32> to vector<4x32xf32>
    %127 = vector.extract_strided_slice %117 {offsets = [0, 32], sizes = [4, 32], strides = [1, 1]} : vector<4x96xf32> to vector<4x32xf32>
    %128 = arith.addf %126, %127 : vector<4x32xf32>
    %129 = arith.negf %128 : vector<4x32xf32>
    %130 = math.exp %129 : vector<4x32xf32>
    %cst_34 = arith.constant 1.000000e+00 : f32
    %131 = vector.broadcast %cst_34 : f32 to vector<4x32xf32>
    %132 = arith.addf %131, %130 : vector<4x32xf32>
    %133 = arith.divf %131, %132 : vector<4x32xf32>
    %134 = vector.extract_strided_slice %114 {offsets = [0, 64], sizes = [4, 32], strides = [1, 1]} : vector<4x96xf32> to vector<4x32xf32>
    %135 = vector.extract_strided_slice %117 {offsets = [0, 64], sizes = [4, 32], strides = [1, 1]} : vector<4x96xf32> to vector<4x32xf32>
    %136 = arith.mulf %125, %135 : vector<4x32xf32>
    %137 = arith.addf %134, %136 : vector<4x32xf32>
    %138 = math.tanh %137 : vector<4x32xf32>
    %cst_35 = arith.constant 1.000000e+00 : f32
    %139 = vector.broadcast %cst_35 : f32 to vector<4x32xf32>
    %140 = arith.subf %139, %133 : vector<4x32xf32>
    %141 = arith.mulf %140, %138 : vector<4x32xf32>
    %142 = arith.mulf %133, %60 : vector<4x32xf32>
    %143 = arith.addf %141, %142 : vector<4x32xf32>
    %144 = vector.broadcast %108 : vector<4x1xf32> to vector<4x32xf32>
    %145 = arith.mulf %144, %143 : vector<4x32xf32>
    %cst_36 = arith.constant 1.000000e+00 : f32
    %146 = vector.broadcast %cst_36 : f32 to vector<4x1xf32>
    %147 = arith.subf %146, %108 : vector<4x1xf32>
    %148 = vector.broadcast %147 : vector<4x1xf32> to vector<4x32xf32>
    %149 = arith.mulf %148, %60 : vector<4x32xf32>
    %150 = arith.addf %145, %149 : vector<4x32xf32>
    %151 = vector.extract_strided_slice %7 {offsets = [0, 6, 96], sizes = [4, 1, 96], strides = [1, 1, 1]} : vector<4x8x192xf32> to vector<4x1x96xf32>
    %152 = vector.shape_cast %151 : vector<4x1x96xf32> to vector<4x96xf32>
    %cst_37 = arith.constant dense<0.000000e+00> : vector<4x96xf32>
    %153 = tpu.matmul %98, %11, %cst_37 {dimension_numbers = #tpu.dot_dimension_numbers<[1], [0], [0], [1], [0, 0, 1, 1], [], []>} : vector<4x32xf32>, vector<32x96xf32>, vector<4x96xf32> -> vector<4x96xf32>
    %154 = vector.broadcast %12 : vector<1x96xf32> to vector<4x96xf32>
    %155 = arith.addf %153, %154 : vector<4x96xf32>
    %156 = vector.extract_strided_slice %152 {offsets = [0, 0], sizes = [4, 32], strides = [1, 1]} : vector<4x96xf32> to vector<4x32xf32>
    %157 = vector.extract_strided_slice %155 {offsets = [0, 0], sizes = [4, 32], strides = [1, 1]} : vector<4x96xf32> to vector<4x32xf32>
    %158 = arith.addf %156, %157 : vector<4x32xf32>
    %159 = arith.negf %158 : vector<4x32xf32>
    %160 = math.exp %159 : vector<4x32xf32>
    %cst_38 = arith.constant 1.000000e+00 : f32
    %161 = vector.broadcast %cst_38 : f32 to vector<4x32xf32>
    %162 = arith.addf %161, %160 : vector<4x32xf32>
    %163 = arith.divf %161, %162 : vector<4x32xf32>
    %164 = vector.extract_strided_slice %152 {offsets = [0, 32], sizes = [4, 32], strides = [1, 1]} : vector<4x96xf32> to vector<4x32xf32>
    %165 = vector.extract_strided_slice %155 {offsets = [0, 32], sizes = [4, 32], strides = [1, 1]} : vector<4x96xf32> to vector<4x32xf32>
    %166 = arith.addf %164, %165 : vector<4x32xf32>
    %167 = arith.negf %166 : vector<4x32xf32>
    %168 = math.exp %167 : vector<4x32xf32>
    %cst_39 = arith.constant 1.000000e+00 : f32
    %169 = vector.broadcast %cst_39 : f32 to vector<4x32xf32>
    %170 = arith.addf %169, %168 : vector<4x32xf32>
    %171 = arith.divf %169, %170 : vector<4x32xf32>
    %172 = vector.extract_strided_slice %152 {offsets = [0, 64], sizes = [4, 32], strides = [1, 1]} : vector<4x96xf32> to vector<4x32xf32>
    %173 = vector.extract_strided_slice %155 {offsets = [0, 64], sizes = [4, 32], strides = [1, 1]} : vector<4x96xf32> to vector<4x32xf32>
    %174 = arith.mulf %163, %173 : vector<4x32xf32>
    %175 = arith.addf %172, %174 : vector<4x32xf32>
    %176 = math.tanh %175 : vector<4x32xf32>
    %cst_40 = arith.constant 1.000000e+00 : f32
    %177 = vector.broadcast %cst_40 : f32 to vector<4x32xf32>
    %178 = arith.subf %177, %171 : vector<4x32xf32>
    %179 = arith.mulf %178, %176 : vector<4x32xf32>
    %180 = arith.mulf %171, %98 : vector<4x32xf32>
    %181 = arith.addf %179, %180 : vector<4x32xf32>
    %182 = vector.broadcast %112 : vector<4x1xf32> to vector<4x32xf32>
    %183 = arith.mulf %182, %181 : vector<4x32xf32>
    %cst_41 = arith.constant 1.000000e+00 : f32
    %184 = vector.broadcast %cst_41 : f32 to vector<4x1xf32>
    %185 = arith.subf %184, %112 : vector<4x1xf32>
    %186 = vector.broadcast %185 : vector<4x1xf32> to vector<4x32xf32>
    %187 = arith.mulf %186, %98 : vector<4x32xf32>
    %188 = arith.addf %183, %187 : vector<4x32xf32>
    %c0_42 = arith.constant 0 : index
    %c1 = arith.constant 1 : index
    %c0_43 = arith.constant 0 : index
    %189 = vector.load %arg8[%c0_42, %c1, %c0_43] : memref<4x8x64xf32, #tpu.memory_space<vmem>>, vector<4x1x32xf32>
    %190 = vector.shape_cast %189 : vector<4x1x32xf32> to vector<4x32xf32>
    %191 = vector.shape_cast %150 : vector<4x32xf32> to vector<4x1x32xf32>
    tpu.vector_store %arg8[%c0_42, %c1, %c0_43], %191 {strides = array<i32>} : memref<4x8x64xf32, #tpu.memory_space<vmem>>, vector<4x1x32xf32>,
    %c0_44 = arith.constant 0 : index
    %c6 = arith.constant 6 : index
    %c32_45 = arith.constant 32 : index
    %192 = vector.load %arg8[%c0_44, %c6, %c32_45] : memref<4x8x64xf32, #tpu.memory_space<vmem>>, vector<4x1x32xf32>
    %193 = vector.shape_cast %192 : vector<4x1x32xf32> to vector<4x32xf32>
    %194 = vector.shape_cast %188 : vector<4x32xf32> to vector<4x1x32xf32>
    tpu.vector_store %arg8[%c0_44, %c6, %c32_45], %194 {strides = array<i32>} : memref<4x8x64xf32, #tpu.memory_space<vmem>>, vector<4x1x32xf32>,
    %c2_i32 = arith.constant 2 : i32
    %195 = vector.broadcast %c2_i32 : i32 to vector<4x1xi32>
    %196 = arith.cmpi sgt, %8, %195 : vector<4x1xi32>
    %197 = arith.extui %196 : vector<4x1xi1> to vector<4x1xi32>
    %198 = arith.sitofp %197 : vector<4x1xi32> to vector<4x1xf32>
    %c5_i32 = arith.constant 5 : i32
    %199 = vector.broadcast %c5_i32 : i32 to vector<4x1xi32>
    %200 = arith.cmpi sgt, %8, %199 : vector<4x1xi32>
    %201 = arith.extui %200 : vector<4x1xi1> to vector<4x1xi32>
    %202 = arith.sitofp %201 : vector<4x1xi32> to vector<4x1xf32>
    %203 = vector.extract_strided_slice %7 {offsets = [0, 2, 0], sizes = [4, 1, 96], strides = [1, 1, 1]} : vector<4x8x192xf32> to vector<4x1x96xf32>
    %204 = vector.shape_cast %203 : vector<4x1x96xf32> to vector<4x96xf32>
    %cst_46 = arith.constant dense<0.000000e+00> : vector<4x96xf32>
    %205 = tpu.matmul %150, %9, %cst_46 {dimension_numbers = #tpu.dot_dimension_numbers<[1], [0], [0], [1], [0, 0, 1, 1], [], []>} : vector<4x32xf32>, vector<32x96xf32>, vector<4x96xf32> -> vector<4x96xf32>
    %206 = vector.broadcast %10 : vector<1x96xf32> to vector<4x96xf32>
    %207 = arith.addf %205, %206 : vector<4x96xf32>
    %208 = vector.extract_strided_slice %204 {offsets = [0, 0], sizes = [4, 32], strides = [1, 1]} : vector<4x96xf32> to vector<4x32xf32>
    %209 = vector.extract_strided_slice %207 {offsets = [0, 0], sizes = [4, 32], strides = [1, 1]} : vector<4x96xf32> to vector<4x32xf32>
    %210 = arith.addf %208, %209 : vector<4x32xf32>
    %211 = arith.negf %210 : vector<4x32xf32>
    %212 = math.exp %211 : vector<4x32xf32>
    %cst_47 = arith.constant 1.000000e+00 : f32
    %213 = vector.broadcast %cst_47 : f32 to vector<4x32xf32>
    %214 = arith.addf %213, %212 : vector<4x32xf32>
    %215 = arith.divf %213, %214 : vector<4x32xf32>
    %216 = vector.extract_strided_slice %204 {offsets = [0, 32], sizes = [4, 32], strides = [1, 1]} : vector<4x96xf32> to vector<4x32xf32>
    %217 = vector.extract_strided_slice %207 {offsets = [0, 32], sizes = [4, 32], strides = [1, 1]} : vector<4x96xf32> to vector<4x32xf32>
    %218 = arith.addf %216, %217 : vector<4x32xf32>
    %219 = arith.negf %218 : vector<4x32xf32>
    %220 = math.exp %219 : vector<4x32xf32>
    %cst_48 = arith.constant 1.000000e+00 : f32
    %221 = vector.broadcast %cst_48 : f32 to vector<4x32xf32>
    %222 = arith.addf %221, %220 : vector<4x32xf32>
    %223 = arith.divf %221, %222 : vector<4x32xf32>
    %224 = vector.extract_strided_slice %204 {offsets = [0, 64], sizes = [4, 32], strides = [1, 1]} : vector<4x96xf32> to vector<4x32xf32>
    %225 = vector.extract_strided_slice %207 {offsets = [0, 64], sizes = [4, 32], strides = [1, 1]} : vector<4x96xf32> to vector<4x32xf32>
    %226 = arith.mulf %215, %225 : vector<4x32xf32>
    %227 = arith.addf %224, %226 : vector<4x32xf32>
    %228 = math.tanh %227 : vector<4x32xf32>
    %cst_49 = arith.constant 1.000000e+00 : f32
    %229 = vector.broadcast %cst_49 : f32 to vector<4x32xf32>
    %230 = arith.subf %229, %223 : vector<4x32xf32>
    %231 = arith.mulf %230, %228 : vector<4x32xf32>
    %232 = arith.mulf %223, %150 : vector<4x32xf32>
    %233 = arith.addf %231, %232 : vector<4x32xf32>
    %234 = vector.broadcast %198 : vector<4x1xf32> to vector<4x32xf32>
    %235 = arith.mulf %234, %233 : vector<4x32xf32>
    %cst_50 = arith.constant 1.000000e+00 : f32
    %236 = vector.broadcast %cst_50 : f32 to vector<4x1xf32>
    %237 = arith.subf %236, %198 : vector<4x1xf32>
    %238 = vector.broadcast %237 : vector<4x1xf32> to vector<4x32xf32>
    %239 = arith.mulf %238, %150 : vector<4x32xf32>
    %240 = arith.addf %235, %239 : vector<4x32xf32>
    %241 = vector.extract_strided_slice %7 {offsets = [0, 5, 96], sizes = [4, 1, 96], strides = [1, 1, 1]} : vector<4x8x192xf32> to vector<4x1x96xf32>
    %242 = vector.shape_cast %241 : vector<4x1x96xf32> to vector<4x96xf32>
    %cst_51 = arith.constant dense<0.000000e+00> : vector<4x96xf32>
    %243 = tpu.matmul %188, %11, %cst_51 {dimension_numbers = #tpu.dot_dimension_numbers<[1], [0], [0], [1], [0, 0, 1, 1], [], []>} : vector<4x32xf32>, vector<32x96xf32>, vector<4x96xf32> -> vector<4x96xf32>
    %244 = vector.broadcast %12 : vector<1x96xf32> to vector<4x96xf32>
    %245 = arith.addf %243, %244 : vector<4x96xf32>
    %246 = vector.extract_strided_slice %242 {offsets = [0, 0], sizes = [4, 32], strides = [1, 1]} : vector<4x96xf32> to vector<4x32xf32>
    %247 = vector.extract_strided_slice %245 {offsets = [0, 0], sizes = [4, 32], strides = [1, 1]} : vector<4x96xf32> to vector<4x32xf32>
    %248 = arith.addf %246, %247 : vector<4x32xf32>
    %249 = arith.negf %248 : vector<4x32xf32>
    %250 = math.exp %249 : vector<4x32xf32>
    %cst_52 = arith.constant 1.000000e+00 : f32
    %251 = vector.broadcast %cst_52 : f32 to vector<4x32xf32>
    %252 = arith.addf %251, %250 : vector<4x32xf32>
    %253 = arith.divf %251, %252 : vector<4x32xf32>
    %254 = vector.extract_strided_slice %242 {offsets = [0, 32], sizes = [4, 32], strides = [1, 1]} : vector<4x96xf32> to vector<4x32xf32>
    %255 = vector.extract_strided_slice %245 {offsets = [0, 32], sizes = [4, 32], strides = [1, 1]} : vector<4x96xf32> to vector<4x32xf32>
    %256 = arith.addf %254, %255 : vector<4x32xf32>
    %257 = arith.negf %256 : vector<4x32xf32>
    %258 = math.exp %257 : vector<4x32xf32>
    %cst_53 = arith.constant 1.000000e+00 : f32
    %259 = vector.broadcast %cst_53 : f32 to vector<4x32xf32>
    %260 = arith.addf %259, %258 : vector<4x32xf32>
    %261 = arith.divf %259, %260 : vector<4x32xf32>
    %262 = vector.extract_strided_slice %242 {offsets = [0, 64], sizes = [4, 32], strides = [1, 1]} : vector<4x96xf32> to vector<4x32xf32>
    %263 = vector.extract_strided_slice %245 {offsets = [0, 64], sizes = [4, 32], strides = [1, 1]} : vector<4x96xf32> to vector<4x32xf32>
    %264 = arith.mulf %253, %263 : vector<4x32xf32>
    %265 = arith.addf %262, %264 : vector<4x32xf32>
    %266 = math.tanh %265 : vector<4x32xf32>
    %cst_54 = arith.constant 1.000000e+00 : f32
    %267 = vector.broadcast %cst_54 : f32 to vector<4x32xf32>
    %268 = arith.subf %267, %261 : vector<4x32xf32>
    %269 = arith.mulf %268, %266 : vector<4x32xf32>
    %270 = arith.mulf %261, %188 : vector<4x32xf32>
    %271 = arith.addf %269, %270 : vector<4x32xf32>
    %272 = vector.broadcast %202 : vector<4x1xf32> to vector<4x32xf32>
    %273 = arith.mulf %272, %271 : vector<4x32xf32>
    %cst_55 = arith.constant 1.000000e+00 : f32
    %274 = vector.broadcast %cst_55 : f32 to vector<4x1xf32>
    %275 = arith.subf %274, %202 : vector<4x1xf32>
    %276 = vector.broadcast %275 : vector<4x1xf32> to vector<4x32xf32>
    %277 = arith.mulf %276, %188 : vector<4x32xf32>
    %278 = arith.addf %273, %277 : vector<4x32xf32>
    %c0_56 = arith.constant 0 : index
    %c2 = arith.constant 2 : index
    %c0_57 = arith.constant 0 : index
    %279 = vector.load %arg8[%c0_56, %c2, %c0_57] : memref<4x8x64xf32, #tpu.memory_space<vmem>>, vector<4x1x32xf32>
    %280 = vector.shape_cast %279 : vector<4x1x32xf32> to vector<4x32xf32>
    %281 = vector.shape_cast %240 : vector<4x32xf32> to vector<4x1x32xf32>
    tpu.vector_store %arg8[%c0_56, %c2, %c0_57], %281 {strides = array<i32>} : memref<4x8x64xf32, #tpu.memory_space<vmem>>, vector<4x1x32xf32>,
    %c0_58 = arith.constant 0 : index
    %c5 = arith.constant 5 : index
    %c32_59 = arith.constant 32 : index
    %282 = vector.load %arg8[%c0_58, %c5, %c32_59] : memref<4x8x64xf32, #tpu.memory_space<vmem>>, vector<4x1x32xf32>
    %283 = vector.shape_cast %282 : vector<4x1x32xf32> to vector<4x32xf32>
    %284 = vector.shape_cast %278 : vector<4x32xf32> to vector<4x1x32xf32>
    tpu.vector_store %arg8[%c0_58, %c5, %c32_59], %284 {strides = array<i32>} : memref<4x8x64xf32, #tpu.memory_space<vmem>>, vector<4x1x32xf32>,
    %c3_i32 = arith.constant 3 : i32
    %285 = vector.broadcast %c3_i32 : i32 to vector<4x1xi32>
    %286 = arith.cmpi sgt, %8, %285 : vector<4x1xi32>
    %287 = arith.extui %286 : vector<4x1xi1> to vector<4x1xi32>
    %288 = arith.sitofp %287 : vector<4x1xi32> to vector<4x1xf32>
    %c4_i32 = arith.constant 4 : i32
    %289 = vector.broadcast %c4_i32 : i32 to vector<4x1xi32>
    %290 = arith.cmpi sgt, %8, %289 : vector<4x1xi32>
    %291 = arith.extui %290 : vector<4x1xi1> to vector<4x1xi32>
    %292 = arith.sitofp %291 : vector<4x1xi32> to vector<4x1xf32>
    %293 = vector.extract_strided_slice %7 {offsets = [0, 3, 0], sizes = [4, 1, 96], strides = [1, 1, 1]} : vector<4x8x192xf32> to vector<4x1x96xf32>
    %294 = vector.shape_cast %293 : vector<4x1x96xf32> to vector<4x96xf32>
    %cst_60 = arith.constant dense<0.000000e+00> : vector<4x96xf32>
    %295 = tpu.matmul %240, %9, %cst_60 {dimension_numbers = #tpu.dot_dimension_numbers<[1], [0], [0], [1], [0, 0, 1, 1], [], []>} : vector<4x32xf32>, vector<32x96xf32>, vector<4x96xf32> -> vector<4x96xf32>
    %296 = vector.broadcast %10 : vector<1x96xf32> to vector<4x96xf32>
    %297 = arith.addf %295, %296 : vector<4x96xf32>
    %298 = vector.extract_strided_slice %294 {offsets = [0, 0], sizes = [4, 32], strides = [1, 1]} : vector<4x96xf32> to vector<4x32xf32>
    %299 = vector.extract_strided_slice %297 {offsets = [0, 0], sizes = [4, 32], strides = [1, 1]} : vector<4x96xf32> to vector<4x32xf32>
    %300 = arith.addf %298, %299 : vector<4x32xf32>
    %301 = arith.negf %300 : vector<4x32xf32>
    %302 = math.exp %301 : vector<4x32xf32>
    %cst_61 = arith.constant 1.000000e+00 : f32
    %303 = vector.broadcast %cst_61 : f32 to vector<4x32xf32>
    %304 = arith.addf %303, %302 : vector<4x32xf32>
    %305 = arith.divf %303, %304 : vector<4x32xf32>
    %306 = vector.extract_strided_slice %294 {offsets = [0, 32], sizes = [4, 32], strides = [1, 1]} : vector<4x96xf32> to vector<4x32xf32>
    %307 = vector.extract_strided_slice %297 {offsets = [0, 32], sizes = [4, 32], strides = [1, 1]} : vector<4x96xf32> to vector<4x32xf32>
    %308 = arith.addf %306, %307 : vector<4x32xf32>
    %309 = arith.negf %308 : vector<4x32xf32>
    %310 = math.exp %309 : vector<4x32xf32>
    %cst_62 = arith.constant 1.000000e+00 : f32
    %311 = vector.broadcast %cst_62 : f32 to vector<4x32xf32>
    %312 = arith.addf %311, %310 : vector<4x32xf32>
    %313 = arith.divf %311, %312 : vector<4x32xf32>
    %314 = vector.extract_strided_slice %294 {offsets = [0, 64], sizes = [4, 32], strides = [1, 1]} : vector<4x96xf32> to vector<4x32xf32>
    %315 = vector.extract_strided_slice %297 {offsets = [0, 64], sizes = [4, 32], strides = [1, 1]} : vector<4x96xf32> to vector<4x32xf32>
    %316 = arith.mulf %305, %315 : vector<4x32xf32>
    %317 = arith.addf %314, %316 : vector<4x32xf32>
    %318 = math.tanh %317 : vector<4x32xf32>
    %cst_63 = arith.constant 1.000000e+00 : f32
    %319 = vector.broadcast %cst_63 : f32 to vector<4x32xf32>
    %320 = arith.subf %319, %313 : vector<4x32xf32>
    %321 = arith.mulf %320, %318 : vector<4x32xf32>
    %322 = arith.mulf %313, %240 : vector<4x32xf32>
    %323 = arith.addf %321, %322 : vector<4x32xf32>
    %324 = vector.broadcast %288 : vector<4x1xf32> to vector<4x32xf32>
    %325 = arith.mulf %324, %323 : vector<4x32xf32>
    %cst_64 = arith.constant 1.000000e+00 : f32
    %326 = vector.broadcast %cst_64 : f32 to vector<4x1xf32>
    %327 = arith.subf %326, %288 : vector<4x1xf32>
    %328 = vector.broadcast %327 : vector<4x1xf32> to vector<4x32xf32>
    %329 = arith.mulf %328, %240 : vector<4x32xf32>
    %330 = arith.addf %325, %329 : vector<4x32xf32>
    %331 = vector.extract_strided_slice %7 {offsets = [0, 4, 96], sizes = [4, 1, 96], strides = [1, 1, 1]} : vector<4x8x192xf32> to vector<4x1x96xf32>
    %332 = vector.shape_cast %331 : vector<4x1x96xf32> to vector<4x96xf32>
    %cst_65 = arith.constant dense<0.000000e+00> : vector<4x96xf32>
    %333 = tpu.matmul %278, %11, %cst_65 {dimension_numbers = #tpu.dot_dimension_numbers<[1], [0], [0], [1], [0, 0, 1, 1], [], []>} : vector<4x32xf32>, vector<32x96xf32>, vector<4x96xf32> -> vector<4x96xf32>
    %334 = vector.broadcast %12 : vector<1x96xf32> to vector<4x96xf32>
    %335 = arith.addf %333, %334 : vector<4x96xf32>
    %336 = vector.extract_strided_slice %332 {offsets = [0, 0], sizes = [4, 32], strides = [1, 1]} : vector<4x96xf32> to vector<4x32xf32>
    %337 = vector.extract_strided_slice %335 {offsets = [0, 0], sizes = [4, 32], strides = [1, 1]} : vector<4x96xf32> to vector<4x32xf32>
    %338 = arith.addf %336, %337 : vector<4x32xf32>
    %339 = arith.negf %338 : vector<4x32xf32>
    %340 = math.exp %339 : vector<4x32xf32>
    %cst_66 = arith.constant 1.000000e+00 : f32
    %341 = vector.broadcast %cst_66 : f32 to vector<4x32xf32>
    %342 = arith.addf %341, %340 : vector<4x32xf32>
    %343 = arith.divf %341, %342 : vector<4x32xf32>
    %344 = vector.extract_strided_slice %332 {offsets = [0, 32], sizes = [4, 32], strides = [1, 1]} : vector<4x96xf32> to vector<4x32xf32>
    %345 = vector.extract_strided_slice %335 {offsets = [0, 32], sizes = [4, 32], strides = [1, 1]} : vector<4x96xf32> to vector<4x32xf32>
    %346 = arith.addf %344, %345 : vector<4x32xf32>
    %347 = arith.negf %346 : vector<4x32xf32>
    %348 = math.exp %347 : vector<4x32xf32>
    %cst_67 = arith.constant 1.000000e+00 : f32
    %349 = vector.broadcast %cst_67 : f32 to vector<4x32xf32>
    %350 = arith.addf %349, %348 : vector<4x32xf32>
    %351 = arith.divf %349, %350 : vector<4x32xf32>
    %352 = vector.extract_strided_slice %332 {offsets = [0, 64], sizes = [4, 32], strides = [1, 1]} : vector<4x96xf32> to vector<4x32xf32>
    %353 = vector.extract_strided_slice %335 {offsets = [0, 64], sizes = [4, 32], strides = [1, 1]} : vector<4x96xf32> to vector<4x32xf32>
    %354 = arith.mulf %343, %353 : vector<4x32xf32>
    %355 = arith.addf %352, %354 : vector<4x32xf32>
    %356 = math.tanh %355 : vector<4x32xf32>
    %cst_68 = arith.constant 1.000000e+00 : f32
    %357 = vector.broadcast %cst_68 : f32 to vector<4x32xf32>
    %358 = arith.subf %357, %351 : vector<4x32xf32>
    %359 = arith.mulf %358, %356 : vector<4x32xf32>
    %360 = arith.mulf %351, %278 : vector<4x32xf32>
    %361 = arith.addf %359, %360 : vector<4x32xf32>
    %362 = vector.broadcast %292 : vector<4x1xf32> to vector<4x32xf32>
    %363 = arith.mulf %362, %361 : vector<4x32xf32>
    %cst_69 = arith.constant 1.000000e+00 : f32
    %364 = vector.broadcast %cst_69 : f32 to vector<4x1xf32>
    %365 = arith.subf %364, %292 : vector<4x1xf32>
    %366 = vector.broadcast %365 : vector<4x1xf32> to vector<4x32xf32>
    %367 = arith.mulf %366, %278 : vector<4x32xf32>
    %368 = arith.addf %363, %367 : vector<4x32xf32>
    %c0_70 = arith.constant 0 : index
    %c3 = arith.constant 3 : index
    %c0_71 = arith.constant 0 : index
    %369 = vector.load %arg8[%c0_70, %c3, %c0_71] : memref<4x8x64xf32, #tpu.memory_space<vmem>>, vector<4x1x32xf32>
    %370 = vector.shape_cast %369 : vector<4x1x32xf32> to vector<4x32xf32>
    %371 = vector.shape_cast %330 : vector<4x32xf32> to vector<4x1x32xf32>
    tpu.vector_store %arg8[%c0_70, %c3, %c0_71], %371 {strides = array<i32>} : memref<4x8x64xf32, #tpu.memory_space<vmem>>, vector<4x1x32xf32>,
    %c0_72 = arith.constant 0 : index
    %c4 = arith.constant 4 : index
    %c32_73 = arith.constant 32 : index
    %372 = vector.load %arg8[%c0_72, %c4, %c32_73] : memref<4x8x64xf32, #tpu.memory_space<vmem>>, vector<4x1x32xf32>
    %373 = vector.shape_cast %372 : vector<4x1x32xf32> to vector<4x32xf32>
    %374 = vector.shape_cast %368 : vector<4x32xf32> to vector<4x1x32xf32>
    tpu.vector_store %arg8[%c0_72, %c4, %c32_73], %374 {strides = array<i32>} : memref<4x8x64xf32, #tpu.memory_space<vmem>>, vector<4x1x32xf32>,
    %c4_i32_74 = arith.constant 4 : i32
    %375 = vector.broadcast %c4_i32_74 : i32 to vector<4x1xi32>
    %376 = arith.cmpi sgt, %8, %375 : vector<4x1xi32>
    %377 = arith.extui %376 : vector<4x1xi1> to vector<4x1xi32>
    %378 = arith.sitofp %377 : vector<4x1xi32> to vector<4x1xf32>
    %c3_i32_75 = arith.constant 3 : i32
    %379 = vector.broadcast %c3_i32_75 : i32 to vector<4x1xi32>
    %380 = arith.cmpi sgt, %8, %379 : vector<4x1xi32>
    %381 = arith.extui %380 : vector<4x1xi1> to vector<4x1xi32>
    %382 = arith.sitofp %381 : vector<4x1xi32> to vector<4x1xf32>
    %383 = vector.extract_strided_slice %7 {offsets = [0, 4, 0], sizes = [4, 1, 96], strides = [1, 1, 1]} : vector<4x8x192xf32> to vector<4x1x96xf32>
    %384 = vector.shape_cast %383 : vector<4x1x96xf32> to vector<4x96xf32>
    %cst_76 = arith.constant dense<0.000000e+00> : vector<4x96xf32>
    %385 = tpu.matmul %330, %9, %cst_76 {dimension_numbers = #tpu.dot_dimension_numbers<[1], [0], [0], [1], [0, 0, 1, 1], [], []>} : vector<4x32xf32>, vector<32x96xf32>, vector<4x96xf32> -> vector<4x96xf32>
    %386 = vector.broadcast %10 : vector<1x96xf32> to vector<4x96xf32>
    %387 = arith.addf %385, %386 : vector<4x96xf32>
    %388 = vector.extract_strided_slice %384 {offsets = [0, 0], sizes = [4, 32], strides = [1, 1]} : vector<4x96xf32> to vector<4x32xf32>
    %389 = vector.extract_strided_slice %387 {offsets = [0, 0], sizes = [4, 32], strides = [1, 1]} : vector<4x96xf32> to vector<4x32xf32>
    %390 = arith.addf %388, %389 : vector<4x32xf32>
    %391 = arith.negf %390 : vector<4x32xf32>
    %392 = math.exp %391 : vector<4x32xf32>
    %cst_77 = arith.constant 1.000000e+00 : f32
    %393 = vector.broadcast %cst_77 : f32 to vector<4x32xf32>
    %394 = arith.addf %393, %392 : vector<4x32xf32>
    %395 = arith.divf %393, %394 : vector<4x32xf32>
    %396 = vector.extract_strided_slice %384 {offsets = [0, 32], sizes = [4, 32], strides = [1, 1]} : vector<4x96xf32> to vector<4x32xf32>
    %397 = vector.extract_strided_slice %387 {offsets = [0, 32], sizes = [4, 32], strides = [1, 1]} : vector<4x96xf32> to vector<4x32xf32>
    %398 = arith.addf %396, %397 : vector<4x32xf32>
    %399 = arith.negf %398 : vector<4x32xf32>
    %400 = math.exp %399 : vector<4x32xf32>
    %cst_78 = arith.constant 1.000000e+00 : f32
    %401 = vector.broadcast %cst_78 : f32 to vector<4x32xf32>
    %402 = arith.addf %401, %400 : vector<4x32xf32>
    %403 = arith.divf %401, %402 : vector<4x32xf32>
    %404 = vector.extract_strided_slice %384 {offsets = [0, 64], sizes = [4, 32], strides = [1, 1]} : vector<4x96xf32> to vector<4x32xf32>
    %405 = vector.extract_strided_slice %387 {offsets = [0, 64], sizes = [4, 32], strides = [1, 1]} : vector<4x96xf32> to vector<4x32xf32>
    %406 = arith.mulf %395, %405 : vector<4x32xf32>
    %407 = arith.addf %404, %406 : vector<4x32xf32>
    %408 = math.tanh %407 : vector<4x32xf32>
    %cst_79 = arith.constant 1.000000e+00 : f32
    %409 = vector.broadcast %cst_79 : f32 to vector<4x32xf32>
    %410 = arith.subf %409, %403 : vector<4x32xf32>
    %411 = arith.mulf %410, %408 : vector<4x32xf32>
    %412 = arith.mulf %403, %330 : vector<4x32xf32>
    %413 = arith.addf %411, %412 : vector<4x32xf32>
    %414 = vector.broadcast %378 : vector<4x1xf32> to vector<4x32xf32>
    %415 = arith.mulf %414, %413 : vector<4x32xf32>
    %cst_80 = arith.constant 1.000000e+00 : f32
    %416 = vector.broadcast %cst_80 : f32 to vector<4x1xf32>
    %417 = arith.subf %416, %378 : vector<4x1xf32>
    %418 = vector.broadcast %417 : vector<4x1xf32> to vector<4x32xf32>
    %419 = arith.mulf %418, %330 : vector<4x32xf32>
    %420 = arith.addf %415, %419 : vector<4x32xf32>
    %421 = vector.extract_strided_slice %7 {offsets = [0, 3, 96], sizes = [4, 1, 96], strides = [1, 1, 1]} : vector<4x8x192xf32> to vector<4x1x96xf32>
    %422 = vector.shape_cast %421 : vector<4x1x96xf32> to vector<4x96xf32>
    %cst_81 = arith.constant dense<0.000000e+00> : vector<4x96xf32>
    %423 = tpu.matmul %368, %11, %cst_81 {dimension_numbers = #tpu.dot_dimension_numbers<[1], [0], [0], [1], [0, 0, 1, 1], [], []>} : vector<4x32xf32>, vector<32x96xf32>, vector<4x96xf32> -> vector<4x96xf32>
    %424 = vector.broadcast %12 : vector<1x96xf32> to vector<4x96xf32>
    %425 = arith.addf %423, %424 : vector<4x96xf32>
    %426 = vector.extract_strided_slice %422 {offsets = [0, 0], sizes = [4, 32], strides = [1, 1]} : vector<4x96xf32> to vector<4x32xf32>
    %427 = vector.extract_strided_slice %425 {offsets = [0, 0], sizes = [4, 32], strides = [1, 1]} : vector<4x96xf32> to vector<4x32xf32>
    %428 = arith.addf %426, %427 : vector<4x32xf32>
    %429 = arith.negf %428 : vector<4x32xf32>
    %430 = math.exp %429 : vector<4x32xf32>
    %cst_82 = arith.constant 1.000000e+00 : f32
    %431 = vector.broadcast %cst_82 : f32 to vector<4x32xf32>
    %432 = arith.addf %431, %430 : vector<4x32xf32>
    %433 = arith.divf %431, %432 : vector<4x32xf32>
    %434 = vector.extract_strided_slice %422 {offsets = [0, 32], sizes = [4, 32], strides = [1, 1]} : vector<4x96xf32> to vector<4x32xf32>
    %435 = vector.extract_strided_slice %425 {offsets = [0, 32], sizes = [4, 32], strides = [1, 1]} : vector<4x96xf32> to vector<4x32xf32>
    %436 = arith.addf %434, %435 : vector<4x32xf32>
    %437 = arith.negf %436 : vector<4x32xf32>
    %438 = math.exp %437 : vector<4x32xf32>
    %cst_83 = arith.constant 1.000000e+00 : f32
    %439 = vector.broadcast %cst_83 : f32 to vector<4x32xf32>
    %440 = arith.addf %439, %438 : vector<4x32xf32>
    %441 = arith.divf %439, %440 : vector<4x32xf32>
    %442 = vector.extract_strided_slice %422 {offsets = [0, 64], sizes = [4, 32], strides = [1, 1]} : vector<4x96xf32> to vector<4x32xf32>
    %443 = vector.extract_strided_slice %425 {offsets = [0, 64], sizes = [4, 32], strides = [1, 1]} : vector<4x96xf32> to vector<4x32xf32>
    %444 = arith.mulf %433, %443 : vector<4x32xf32>
    %445 = arith.addf %442, %444 : vector<4x32xf32>
    %446 = math.tanh %445 : vector<4x32xf32>
    %cst_84 = arith.constant 1.000000e+00 : f32
    %447 = vector.broadcast %cst_84 : f32 to vector<4x32xf32>
    %448 = arith.subf %447, %441 : vector<4x32xf32>
    %449 = arith.mulf %448, %446 : vector<4x32xf32>
    %450 = arith.mulf %441, %368 : vector<4x32xf32>
    %451 = arith.addf %449, %450 : vector<4x32xf32>
    %452 = vector.broadcast %382 : vector<4x1xf32> to vector<4x32xf32>
    %453 = arith.mulf %452, %451 : vector<4x32xf32>
    %cst_85 = arith.constant 1.000000e+00 : f32
    %454 = vector.broadcast %cst_85 : f32 to vector<4x1xf32>
    %455 = arith.subf %454, %382 : vector<4x1xf32>
    %456 = vector.broadcast %455 : vector<4x1xf32> to vector<4x32xf32>
    %457 = arith.mulf %456, %368 : vector<4x32xf32>
    %458 = arith.addf %453, %457 : vector<4x32xf32>
    %c0_86 = arith.constant 0 : index
    %c4_87 = arith.constant 4 : index
    %c0_88 = arith.constant 0 : index
    %459 = vector.load %arg8[%c0_86, %c4_87, %c0_88] : memref<4x8x64xf32, #tpu.memory_space<vmem>>, vector<4x1x32xf32>
    %460 = vector.shape_cast %459 : vector<4x1x32xf32> to vector<4x32xf32>
    %461 = vector.shape_cast %420 : vector<4x32xf32> to vector<4x1x32xf32>
    tpu.vector_store %arg8[%c0_86, %c4_87, %c0_88], %461 {strides = array<i32>} : memref<4x8x64xf32, #tpu.memory_space<vmem>>, vector<4x1x32xf32>,
    %c0_89 = arith.constant 0 : index
    %c3_90 = arith.constant 3 : index
    %c32_91 = arith.constant 32 : index
    %462 = vector.load %arg8[%c0_89, %c3_90, %c32_91] : memref<4x8x64xf32, #tpu.memory_space<vmem>>, vector<4x1x32xf32>
    %463 = vector.shape_cast %462 : vector<4x1x32xf32> to vector<4x32xf32>
    %464 = vector.shape_cast %458 : vector<4x32xf32> to vector<4x1x32xf32>
    tpu.vector_store %arg8[%c0_89, %c3_90, %c32_91], %464 {strides = array<i32>} : memref<4x8x64xf32, #tpu.memory_space<vmem>>, vector<4x1x32xf32>,
    %c5_i32_92 = arith.constant 5 : i32
    %465 = vector.broadcast %c5_i32_92 : i32 to vector<4x1xi32>
    %466 = arith.cmpi sgt, %8, %465 : vector<4x1xi32>
    %467 = arith.extui %466 : vector<4x1xi1> to vector<4x1xi32>
    %468 = arith.sitofp %467 : vector<4x1xi32> to vector<4x1xf32>
    %c2_i32_93 = arith.constant 2 : i32
    %469 = vector.broadcast %c2_i32_93 : i32 to vector<4x1xi32>
    %470 = arith.cmpi sgt, %8, %469 : vector<4x1xi32>
    %471 = arith.extui %470 : vector<4x1xi1> to vector<4x1xi32>
    %472 = arith.sitofp %471 : vector<4x1xi32> to vector<4x1xf32>
    %473 = vector.extract_strided_slice %7 {offsets = [0, 5, 0], sizes = [4, 1, 96], strides = [1, 1, 1]} : vector<4x8x192xf32> to vector<4x1x96xf32>
    %474 = vector.shape_cast %473 : vector<4x1x96xf32> to vector<4x96xf32>
    %cst_94 = arith.constant dense<0.000000e+00> : vector<4x96xf32>
    %475 = tpu.matmul %420, %9, %cst_94 {dimension_numbers = #tpu.dot_dimension_numbers<[1], [0], [0], [1], [0, 0, 1, 1], [], []>} : vector<4x32xf32>, vector<32x96xf32>, vector<4x96xf32> -> vector<4x96xf32>
    %476 = vector.broadcast %10 : vector<1x96xf32> to vector<4x96xf32>
    %477 = arith.addf %475, %476 : vector<4x96xf32>
    %478 = vector.extract_strided_slice %474 {offsets = [0, 0], sizes = [4, 32], strides = [1, 1]} : vector<4x96xf32> to vector<4x32xf32>
    %479 = vector.extract_strided_slice %477 {offsets = [0, 0], sizes = [4, 32], strides = [1, 1]} : vector<4x96xf32> to vector<4x32xf32>
    %480 = arith.addf %478, %479 : vector<4x32xf32>
    %481 = arith.negf %480 : vector<4x32xf32>
    %482 = math.exp %481 : vector<4x32xf32>
    %cst_95 = arith.constant 1.000000e+00 : f32
    %483 = vector.broadcast %cst_95 : f32 to vector<4x32xf32>
    %484 = arith.addf %483, %482 : vector<4x32xf32>
    %485 = arith.divf %483, %484 : vector<4x32xf32>
    %486 = vector.extract_strided_slice %474 {offsets = [0, 32], sizes = [4, 32], strides = [1, 1]} : vector<4x96xf32> to vector<4x32xf32>
    %487 = vector.extract_strided_slice %477 {offsets = [0, 32], sizes = [4, 32], strides = [1, 1]} : vector<4x96xf32> to vector<4x32xf32>
    %488 = arith.addf %486, %487 : vector<4x32xf32>
    %489 = arith.negf %488 : vector<4x32xf32>
    %490 = math.exp %489 : vector<4x32xf32>
    %cst_96 = arith.constant 1.000000e+00 : f32
    %491 = vector.broadcast %cst_96 : f32 to vector<4x32xf32>
    %492 = arith.addf %491, %490 : vector<4x32xf32>
    %493 = arith.divf %491, %492 : vector<4x32xf32>
    %494 = vector.extract_strided_slice %474 {offsets = [0, 64], sizes = [4, 32], strides = [1, 1]} : vector<4x96xf32> to vector<4x32xf32>
    %495 = vector.extract_strided_slice %477 {offsets = [0, 64], sizes = [4, 32], strides = [1, 1]} : vector<4x96xf32> to vector<4x32xf32>
    %496 = arith.mulf %485, %495 : vector<4x32xf32>
    %497 = arith.addf %494, %496 : vector<4x32xf32>
    %498 = math.tanh %497 : vector<4x32xf32>
    %cst_97 = arith.constant 1.000000e+00 : f32
    %499 = vector.broadcast %cst_97 : f32 to vector<4x32xf32>
    %500 = arith.subf %499, %493 : vector<4x32xf32>
    %501 = arith.mulf %500, %498 : vector<4x32xf32>
    %502 = arith.mulf %493, %420 : vector<4x32xf32>
    %503 = arith.addf %501, %502 : vector<4x32xf32>
    %504 = vector.broadcast %468 : vector<4x1xf32> to vector<4x32xf32>
    %505 = arith.mulf %504, %503 : vector<4x32xf32>
    %cst_98 = arith.constant 1.000000e+00 : f32
    %506 = vector.broadcast %cst_98 : f32 to vector<4x1xf32>
    %507 = arith.subf %506, %468 : vector<4x1xf32>
    %508 = vector.broadcast %507 : vector<4x1xf32> to vector<4x32xf32>
    %509 = arith.mulf %508, %420 : vector<4x32xf32>
    %510 = arith.addf %505, %509 : vector<4x32xf32>
    %511 = vector.extract_strided_slice %7 {offsets = [0, 2, 96], sizes = [4, 1, 96], strides = [1, 1, 1]} : vector<4x8x192xf32> to vector<4x1x96xf32>
    %512 = vector.shape_cast %511 : vector<4x1x96xf32> to vector<4x96xf32>
    %cst_99 = arith.constant dense<0.000000e+00> : vector<4x96xf32>
    %513 = tpu.matmul %458, %11, %cst_99 {dimension_numbers = #tpu.dot_dimension_numbers<[1], [0], [0], [1], [0, 0, 1, 1], [], []>} : vector<4x32xf32>, vector<32x96xf32>, vector<4x96xf32> -> vector<4x96xf32>
    %514 = vector.broadcast %12 : vector<1x96xf32> to vector<4x96xf32>
    %515 = arith.addf %513, %514 : vector<4x96xf32>
    %516 = vector.extract_strided_slice %512 {offsets = [0, 0], sizes = [4, 32], strides = [1, 1]} : vector<4x96xf32> to vector<4x32xf32>
    %517 = vector.extract_strided_slice %515 {offsets = [0, 0], sizes = [4, 32], strides = [1, 1]} : vector<4x96xf32> to vector<4x32xf32>
    %518 = arith.addf %516, %517 : vector<4x32xf32>
    %519 = arith.negf %518 : vector<4x32xf32>
    %520 = math.exp %519 : vector<4x32xf32>
    %cst_100 = arith.constant 1.000000e+00 : f32
    %521 = vector.broadcast %cst_100 : f32 to vector<4x32xf32>
    %522 = arith.addf %521, %520 : vector<4x32xf32>
    %523 = arith.divf %521, %522 : vector<4x32xf32>
    %524 = vector.extract_strided_slice %512 {offsets = [0, 32], sizes = [4, 32], strides = [1, 1]} : vector<4x96xf32> to vector<4x32xf32>
    %525 = vector.extract_strided_slice %515 {offsets = [0, 32], sizes = [4, 32], strides = [1, 1]} : vector<4x96xf32> to vector<4x32xf32>
    %526 = arith.addf %524, %525 : vector<4x32xf32>
    %527 = arith.negf %526 : vector<4x32xf32>
    %528 = math.exp %527 : vector<4x32xf32>
    %cst_101 = arith.constant 1.000000e+00 : f32
    %529 = vector.broadcast %cst_101 : f32 to vector<4x32xf32>
    %530 = arith.addf %529, %528 : vector<4x32xf32>
    %531 = arith.divf %529, %530 : vector<4x32xf32>
    %532 = vector.extract_strided_slice %512 {offsets = [0, 64], sizes = [4, 32], strides = [1, 1]} : vector<4x96xf32> to vector<4x32xf32>
    %533 = vector.extract_strided_slice %515 {offsets = [0, 64], sizes = [4, 32], strides = [1, 1]} : vector<4x96xf32> to vector<4x32xf32>
    %534 = arith.mulf %523, %533 : vector<4x32xf32>
    %535 = arith.addf %532, %534 : vector<4x32xf32>
    %536 = math.tanh %535 : vector<4x32xf32>
    %cst_102 = arith.constant 1.000000e+00 : f32
    %537 = vector.broadcast %cst_102 : f32 to vector<4x32xf32>
    %538 = arith.subf %537, %531 : vector<4x32xf32>
    %539 = arith.mulf %538, %536 : vector<4x32xf32>
    %540 = arith.mulf %531, %458 : vector<4x32xf32>
    %541 = arith.addf %539, %540 : vector<4x32xf32>
    %542 = vector.broadcast %472 : vector<4x1xf32> to vector<4x32xf32>
    %543 = arith.mulf %542, %541 : vector<4x32xf32>
    %cst_103 = arith.constant 1.000000e+00 : f32
    %544 = vector.broadcast %cst_103 : f32 to vector<4x1xf32>
    %545 = arith.subf %544, %472 : vector<4x1xf32>
    %546 = vector.broadcast %545 : vector<4x1xf32> to vector<4x32xf32>
    %547 = arith.mulf %546, %458 : vector<4x32xf32>
    %548 = arith.addf %543, %547 : vector<4x32xf32>
    %c0_104 = arith.constant 0 : index
    %c5_105 = arith.constant 5 : index
    %c0_106 = arith.constant 0 : index
    %549 = vector.load %arg8[%c0_104, %c5_105, %c0_106] : memref<4x8x64xf32, #tpu.memory_space<vmem>>, vector<4x1x32xf32>
    %550 = vector.shape_cast %549 : vector<4x1x32xf32> to vector<4x32xf32>
    %551 = vector.shape_cast %510 : vector<4x32xf32> to vector<4x1x32xf32>
    tpu.vector_store %arg8[%c0_104, %c5_105, %c0_106], %551 {strides = array<i32>} : memref<4x8x64xf32, #tpu.memory_space<vmem>>, vector<4x1x32xf32>,
    %c0_107 = arith.constant 0 : index
    %c2_108 = arith.constant 2 : index
    %c32_109 = arith.constant 32 : index
    %552 = vector.load %arg8[%c0_107, %c2_108, %c32_109] : memref<4x8x64xf32, #tpu.memory_space<vmem>>, vector<4x1x32xf32>
    %553 = vector.shape_cast %552 : vector<4x1x32xf32> to vector<4x32xf32>
    %554 = vector.shape_cast %548 : vector<4x32xf32> to vector<4x1x32xf32>
    tpu.vector_store %arg8[%c0_107, %c2_108, %c32_109], %554 {strides = array<i32>} : memref<4x8x64xf32, #tpu.memory_space<vmem>>, vector<4x1x32xf32>,
    %c6_i32_110 = arith.constant 6 : i32
    %555 = vector.broadcast %c6_i32_110 : i32 to vector<4x1xi32>
    %556 = arith.cmpi sgt, %8, %555 : vector<4x1xi32>
    %557 = arith.extui %556 : vector<4x1xi1> to vector<4x1xi32>
    %558 = arith.sitofp %557 : vector<4x1xi32> to vector<4x1xf32>
    %c1_i32_111 = arith.constant 1 : i32
    %559 = vector.broadcast %c1_i32_111 : i32 to vector<4x1xi32>
    %560 = arith.cmpi sgt, %8, %559 : vector<4x1xi32>
    %561 = arith.extui %560 : vector<4x1xi1> to vector<4x1xi32>
    %562 = arith.sitofp %561 : vector<4x1xi32> to vector<4x1xf32>
    %563 = vector.extract_strided_slice %7 {offsets = [0, 6, 0], sizes = [4, 1, 96], strides = [1, 1, 1]} : vector<4x8x192xf32> to vector<4x1x96xf32>
    %564 = vector.shape_cast %563 : vector<4x1x96xf32> to vector<4x96xf32>
    %cst_112 = arith.constant dense<0.000000e+00> : vector<4x96xf32>
    %565 = tpu.matmul %510, %9, %cst_112 {dimension_numbers = #tpu.dot_dimension_numbers<[1], [0], [0], [1], [0, 0, 1, 1], [], []>} : vector<4x32xf32>, vector<32x96xf32>, vector<4x96xf32> -> vector<4x96xf32>
    %566 = vector.broadcast %10 : vector<1x96xf32> to vector<4x96xf32>
    %567 = arith.addf %565, %566 : vector<4x96xf32>
    %568 = vector.extract_strided_slice %564 {offsets = [0, 0], sizes = [4, 32], strides = [1, 1]} : vector<4x96xf32> to vector<4x32xf32>
    %569 = vector.extract_strided_slice %567 {offsets = [0, 0], sizes = [4, 32], strides = [1, 1]} : vector<4x96xf32> to vector<4x32xf32>
    %570 = arith.addf %568, %569 : vector<4x32xf32>
    %571 = arith.negf %570 : vector<4x32xf32>
    %572 = math.exp %571 : vector<4x32xf32>
    %cst_113 = arith.constant 1.000000e+00 : f32
    %573 = vector.broadcast %cst_113 : f32 to vector<4x32xf32>
    %574 = arith.addf %573, %572 : vector<4x32xf32>
    %575 = arith.divf %573, %574 : vector<4x32xf32>
    %576 = vector.extract_strided_slice %564 {offsets = [0, 32], sizes = [4, 32], strides = [1, 1]} : vector<4x96xf32> to vector<4x32xf32>
    %577 = vector.extract_strided_slice %567 {offsets = [0, 32], sizes = [4, 32], strides = [1, 1]} : vector<4x96xf32> to vector<4x32xf32>
    %578 = arith.addf %576, %577 : vector<4x32xf32>
    %579 = arith.negf %578 : vector<4x32xf32>
    %580 = math.exp %579 : vector<4x32xf32>
    %cst_114 = arith.constant 1.000000e+00 : f32
    %581 = vector.broadcast %cst_114 : f32 to vector<4x32xf32>
    %582 = arith.addf %581, %580 : vector<4x32xf32>
    %583 = arith.divf %581, %582 : vector<4x32xf32>
    %584 = vector.extract_strided_slice %564 {offsets = [0, 64], sizes = [4, 32], strides = [1, 1]} : vector<4x96xf32> to vector<4x32xf32>
    %585 = vector.extract_strided_slice %567 {offsets = [0, 64], sizes = [4, 32], strides = [1, 1]} : vector<4x96xf32> to vector<4x32xf32>
    %586 = arith.mulf %575, %585 : vector<4x32xf32>
    %587 = arith.addf %584, %586 : vector<4x32xf32>
    %588 = math.tanh %587 : vector<4x32xf32>
    %cst_115 = arith.constant 1.000000e+00 : f32
    %589 = vector.broadcast %cst_115 : f32 to vector<4x32xf32>
    %590 = arith.subf %589, %583 : vector<4x32xf32>
    %591 = arith.mulf %590, %588 : vector<4x32xf32>
    %592 = arith.mulf %583, %510 : vector<4x32xf32>
    %593 = arith.addf %591, %592 : vector<4x32xf32>
    %594 = vector.broadcast %558 : vector<4x1xf32> to vector<4x32xf32>
    %595 = arith.mulf %594, %593 : vector<4x32xf32>
    %cst_116 = arith.constant 1.000000e+00 : f32
    %596 = vector.broadcast %cst_116 : f32 to vector<4x1xf32>
    %597 = arith.subf %596, %558 : vector<4x1xf32>
    %598 = vector.broadcast %597 : vector<4x1xf32> to vector<4x32xf32>
    %599 = arith.mulf %598, %510 : vector<4x32xf32>
    %600 = arith.addf %595, %599 : vector<4x32xf32>
    %601 = vector.extract_strided_slice %7 {offsets = [0, 1, 96], sizes = [4, 1, 96], strides = [1, 1, 1]} : vector<4x8x192xf32> to vector<4x1x96xf32>
    %602 = vector.shape_cast %601 : vector<4x1x96xf32> to vector<4x96xf32>
    %cst_117 = arith.constant dense<0.000000e+00> : vector<4x96xf32>
    %603 = tpu.matmul %548, %11, %cst_117 {dimension_numbers = #tpu.dot_dimension_numbers<[1], [0], [0], [1], [0, 0, 1, 1], [], []>} : vector<4x32xf32>, vector<32x96xf32>, vector<4x96xf32> -> vector<4x96xf32>
    %604 = vector.broadcast %12 : vector<1x96xf32> to vector<4x96xf32>
    %605 = arith.addf %603, %604 : vector<4x96xf32>
    %606 = vector.extract_strided_slice %602 {offsets = [0, 0], sizes = [4, 32], strides = [1, 1]} : vector<4x96xf32> to vector<4x32xf32>
    %607 = vector.extract_strided_slice %605 {offsets = [0, 0], sizes = [4, 32], strides = [1, 1]} : vector<4x96xf32> to vector<4x32xf32>
    %608 = arith.addf %606, %607 : vector<4x32xf32>
    %609 = arith.negf %608 : vector<4x32xf32>
    %610 = math.exp %609 : vector<4x32xf32>
    %cst_118 = arith.constant 1.000000e+00 : f32
    %611 = vector.broadcast %cst_118 : f32 to vector<4x32xf32>
    %612 = arith.addf %611, %610 : vector<4x32xf32>
    %613 = arith.divf %611, %612 : vector<4x32xf32>
    %614 = vector.extract_strided_slice %602 {offsets = [0, 32], sizes = [4, 32], strides = [1, 1]} : vector<4x96xf32> to vector<4x32xf32>
    %615 = vector.extract_strided_slice %605 {offsets = [0, 32], sizes = [4, 32], strides = [1, 1]} : vector<4x96xf32> to vector<4x32xf32>
    %616 = arith.addf %614, %615 : vector<4x32xf32>
    %617 = arith.negf %616 : vector<4x32xf32>
    %618 = math.exp %617 : vector<4x32xf32>
    %cst_119 = arith.constant 1.000000e+00 : f32
    %619 = vector.broadcast %cst_119 : f32 to vector<4x32xf32>
    %620 = arith.addf %619, %618 : vector<4x32xf32>
    %621 = arith.divf %619, %620 : vector<4x32xf32>
    %622 = vector.extract_strided_slice %602 {offsets = [0, 64], sizes = [4, 32], strides = [1, 1]} : vector<4x96xf32> to vector<4x32xf32>
    %623 = vector.extract_strided_slice %605 {offsets = [0, 64], sizes = [4, 32], strides = [1, 1]} : vector<4x96xf32> to vector<4x32xf32>
    %624 = arith.mulf %613, %623 : vector<4x32xf32>
    %625 = arith.addf %622, %624 : vector<4x32xf32>
    %626 = math.tanh %625 : vector<4x32xf32>
    %cst_120 = arith.constant 1.000000e+00 : f32
    %627 = vector.broadcast %cst_120 : f32 to vector<4x32xf32>
    %628 = arith.subf %627, %621 : vector<4x32xf32>
    %629 = arith.mulf %628, %626 : vector<4x32xf32>
    %630 = arith.mulf %621, %548 : vector<4x32xf32>
    %631 = arith.addf %629, %630 : vector<4x32xf32>
    %632 = vector.broadcast %562 : vector<4x1xf32> to vector<4x32xf32>
    %633 = arith.mulf %632, %631 : vector<4x32xf32>
    %cst_121 = arith.constant 1.000000e+00 : f32
    %634 = vector.broadcast %cst_121 : f32 to vector<4x1xf32>
    %635 = arith.subf %634, %562 : vector<4x1xf32>
    %636 = vector.broadcast %635 : vector<4x1xf32> to vector<4x32xf32>
    %637 = arith.mulf %636, %548 : vector<4x32xf32>
    %638 = arith.addf %633, %637 : vector<4x32xf32>
    %c0_122 = arith.constant 0 : index
    %c6_123 = arith.constant 6 : index
    %c0_124 = arith.constant 0 : index
    %639 = vector.load %arg8[%c0_122, %c6_123, %c0_124] : memref<4x8x64xf32, #tpu.memory_space<vmem>>, vector<4x1x32xf32>
    %640 = vector.shape_cast %639 : vector<4x1x32xf32> to vector<4x32xf32>
    %641 = vector.shape_cast %600 : vector<4x32xf32> to vector<4x1x32xf32>
    tpu.vector_store %arg8[%c0_122, %c6_123, %c0_124], %641 {strides = array<i32>} : memref<4x8x64xf32, #tpu.memory_space<vmem>>, vector<4x1x32xf32>,
    %c0_125 = arith.constant 0 : index
    %c1_126 = arith.constant 1 : index
    %c32_127 = arith.constant 32 : index
    %642 = vector.load %arg8[%c0_125, %c1_126, %c32_127] : memref<4x8x64xf32, #tpu.memory_space<vmem>>, vector<4x1x32xf32>
    %643 = vector.shape_cast %642 : vector<4x1x32xf32> to vector<4x32xf32>
    %644 = vector.shape_cast %638 : vector<4x32xf32> to vector<4x1x32xf32>
    tpu.vector_store %arg8[%c0_125, %c1_126, %c32_127], %644 {strides = array<i32>} : memref<4x8x64xf32, #tpu.memory_space<vmem>>, vector<4x1x32xf32>,
    %c7_i32_128 = arith.constant 7 : i32
    %645 = vector.broadcast %c7_i32_128 : i32 to vector<4x1xi32>
    %646 = arith.cmpi sgt, %8, %645 : vector<4x1xi32>
    %647 = arith.extui %646 : vector<4x1xi1> to vector<4x1xi32>
    %648 = arith.sitofp %647 : vector<4x1xi32> to vector<4x1xf32>
    %c0_i32_129 = arith.constant 0 : i32
    %649 = vector.broadcast %c0_i32_129 : i32 to vector<4x1xi32>
    %650 = arith.cmpi sgt, %8, %649 : vector<4x1xi32>
    %651 = arith.extui %650 : vector<4x1xi1> to vector<4x1xi32>
    %652 = arith.sitofp %651 : vector<4x1xi32> to vector<4x1xf32>
    %653 = vector.extract_strided_slice %7 {offsets = [0, 7, 0], sizes = [4, 1, 96], strides = [1, 1, 1]} : vector<4x8x192xf32> to vector<4x1x96xf32>
    %654 = vector.shape_cast %653 : vector<4x1x96xf32> to vector<4x96xf32>
    %cst_130 = arith.constant dense<0.000000e+00> : vector<4x96xf32>
    %655 = tpu.matmul %600, %9, %cst_130 {dimension_numbers = #tpu.dot_dimension_numbers<[1], [0], [0], [1], [0, 0, 1, 1], [], []>} : vector<4x32xf32>, vector<32x96xf32>, vector<4x96xf32> -> vector<4x96xf32>
    %656 = vector.broadcast %10 : vector<1x96xf32> to vector<4x96xf32>
    %657 = arith.addf %655, %656 : vector<4x96xf32>
    %658 = vector.extract_strided_slice %654 {offsets = [0, 0], sizes = [4, 32], strides = [1, 1]} : vector<4x96xf32> to vector<4x32xf32>
    %659 = vector.extract_strided_slice %657 {offsets = [0, 0], sizes = [4, 32], strides = [1, 1]} : vector<4x96xf32> to vector<4x32xf32>
    %660 = arith.addf %658, %659 : vector<4x32xf32>
    %661 = arith.negf %660 : vector<4x32xf32>
    %662 = math.exp %661 : vector<4x32xf32>
    %cst_131 = arith.constant 1.000000e+00 : f32
    %663 = vector.broadcast %cst_131 : f32 to vector<4x32xf32>
    %664 = arith.addf %663, %662 : vector<4x32xf32>
    %665 = arith.divf %663, %664 : vector<4x32xf32>
    %666 = vector.extract_strided_slice %654 {offsets = [0, 32], sizes = [4, 32], strides = [1, 1]} : vector<4x96xf32> to vector<4x32xf32>
    %667 = vector.extract_strided_slice %657 {offsets = [0, 32], sizes = [4, 32], strides = [1, 1]} : vector<4x96xf32> to vector<4x32xf32>
    %668 = arith.addf %666, %667 : vector<4x32xf32>
    %669 = arith.negf %668 : vector<4x32xf32>
    %670 = math.exp %669 : vector<4x32xf32>
    %cst_132 = arith.constant 1.000000e+00 : f32
    %671 = vector.broadcast %cst_132 : f32 to vector<4x32xf32>
    %672 = arith.addf %671, %670 : vector<4x32xf32>
    %673 = arith.divf %671, %672 : vector<4x32xf32>
    %674 = vector.extract_strided_slice %654 {offsets = [0, 64], sizes = [4, 32], strides = [1, 1]} : vector<4x96xf32> to vector<4x32xf32>
    %675 = vector.extract_strided_slice %657 {offsets = [0, 64], sizes = [4, 32], strides = [1, 1]} : vector<4x96xf32> to vector<4x32xf32>
    %676 = arith.mulf %665, %675 : vector<4x32xf32>
    %677 = arith.addf %674, %676 : vector<4x32xf32>
    %678 = math.tanh %677 : vector<4x32xf32>
    %cst_133 = arith.constant 1.000000e+00 : f32
    %679 = vector.broadcast %cst_133 : f32 to vector<4x32xf32>
    %680 = arith.subf %679, %673 : vector<4x32xf32>
    %681 = arith.mulf %680, %678 : vector<4x32xf32>
    %682 = arith.mulf %673, %600 : vector<4x32xf32>
    %683 = arith.addf %681, %682 : vector<4x32xf32>
    %684 = vector.broadcast %648 : vector<4x1xf32> to vector<4x32xf32>
    %685 = arith.mulf %684, %683 : vector<4x32xf32>
    %cst_134 = arith.constant 1.000000e+00 : f32
    %686 = vector.broadcast %cst_134 : f32 to vector<4x1xf32>
    %687 = arith.subf %686, %648 : vector<4x1xf32>
    %688 = vector.broadcast %687 : vector<4x1xf32> to vector<4x32xf32>
    %689 = arith.mulf %688, %600 : vector<4x32xf32>
    %690 = arith.addf %685, %689 : vector<4x32xf32>
    %691 = vector.extract_strided_slice %7 {offsets = [0, 0, 96], sizes = [4, 1, 96], strides = [1, 1, 1]} : vector<4x8x192xf32> to vector<4x1x96xf32>
    %692 = vector.shape_cast %691 : vector<4x1x96xf32> to vector<4x96xf32>
    %cst_135 = arith.constant dense<0.000000e+00> : vector<4x96xf32>
    %693 = tpu.matmul %638, %11, %cst_135 {dimension_numbers = #tpu.dot_dimension_numbers<[1], [0], [0], [1], [0, 0, 1, 1], [], []>} : vector<4x32xf32>, vector<32x96xf32>, vector<4x96xf32> -> vector<4x96xf32>
    %694 = vector.broadcast %12 : vector<1x96xf32> to vector<4x96xf32>
    %695 = arith.addf %693, %694 : vector<4x96xf32>
    %696 = vector.extract_strided_slice %692 {offsets = [0, 0], sizes = [4, 32], strides = [1, 1]} : vector<4x96xf32> to vector<4x32xf32>
    %697 = vector.extract_strided_slice %695 {offsets = [0, 0], sizes = [4, 32], strides = [1, 1]} : vector<4x96xf32> to vector<4x32xf32>
    %698 = arith.addf %696, %697 : vector<4x32xf32>
    %699 = arith.negf %698 : vector<4x32xf32>
    %700 = math.exp %699 : vector<4x32xf32>
    %cst_136 = arith.constant 1.000000e+00 : f32
    %701 = vector.broadcast %cst_136 : f32 to vector<4x32xf32>
    %702 = arith.addf %701, %700 : vector<4x32xf32>
    %703 = arith.divf %701, %702 : vector<4x32xf32>
    %704 = vector.extract_strided_slice %692 {offsets = [0, 32], sizes = [4, 32], strides = [1, 1]} : vector<4x96xf32> to vector<4x32xf32>
    %705 = vector.extract_strided_slice %695 {offsets = [0, 32], sizes = [4, 32], strides = [1, 1]} : vector<4x96xf32> to vector<4x32xf32>
    %706 = arith.addf %704, %705 : vector<4x32xf32>
    %707 = arith.negf %706 : vector<4x32xf32>
    %708 = math.exp %707 : vector<4x32xf32>
    %cst_137 = arith.constant 1.000000e+00 : f32
    %709 = vector.broadcast %cst_137 : f32 to vector<4x32xf32>
    %710 = arith.addf %709, %708 : vector<4x32xf32>
    %711 = arith.divf %709, %710 : vector<4x32xf32>
    %712 = vector.extract_strided_slice %692 {offsets = [0, 64], sizes = [4, 32], strides = [1, 1]} : vector<4x96xf32> to vector<4x32xf32>
    %713 = vector.extract_strided_slice %695 {offsets = [0, 64], sizes = [4, 32], strides = [1, 1]} : vector<4x96xf32> to vector<4x32xf32>
    %714 = arith.mulf %703, %713 : vector<4x32xf32>
    %715 = arith.addf %712, %714 : vector<4x32xf32>
    %716 = math.tanh %715 : vector<4x32xf32>
    %cst_138 = arith.constant 1.000000e+00 : f32
    %717 = vector.broadcast %cst_138 : f32 to vector<4x32xf32>
    %718 = arith.subf %717, %711 : vector<4x32xf32>
    %719 = arith.mulf %718, %716 : vector<4x32xf32>
    %720 = arith.mulf %711, %638 : vector<4x32xf32>
    %721 = arith.addf %719, %720 : vector<4x32xf32>
    %722 = vector.broadcast %652 : vector<4x1xf32> to vector<4x32xf32>
    %723 = arith.mulf %722, %721 : vector<4x32xf32>
    %cst_139 = arith.constant 1.000000e+00 : f32
    %724 = vector.broadcast %cst_139 : f32 to vector<4x1xf32>
    %725 = arith.subf %724, %652 : vector<4x1xf32>
    %726 = vector.broadcast %725 : vector<4x1xf32> to vector<4x32xf32>
    %727 = arith.mulf %726, %638 : vector<4x32xf32>
    %728 = arith.addf %723, %727 : vector<4x32xf32>
    %c0_140 = arith.constant 0 : index
    %c7_141 = arith.constant 7 : index
    %c0_142 = arith.constant 0 : index
    %729 = vector.load %arg8[%c0_140, %c7_141, %c0_142] : memref<4x8x64xf32, #tpu.memory_space<vmem>>, vector<4x1x32xf32>
    %730 = vector.shape_cast %729 : vector<4x1x32xf32> to vector<4x32xf32>
    %731 = vector.shape_cast %690 : vector<4x32xf32> to vector<4x1x32xf32>
    tpu.vector_store %arg8[%c0_140, %c7_141, %c0_142], %731 {strides = array<i32>} : memref<4x8x64xf32, #tpu.memory_space<vmem>>, vector<4x1x32xf32>,
    %c0_143 = arith.constant 0 : index
    %c0_144 = arith.constant 0 : index
    %c32_145 = arith.constant 32 : index
    %732 = vector.load %arg8[%c0_143, %c0_144, %c32_145] : memref<4x8x64xf32, #tpu.memory_space<vmem>>, vector<4x1x32xf32>
    %733 = vector.shape_cast %732 : vector<4x1x32xf32> to vector<4x32xf32>
    %734 = vector.shape_cast %728 : vector<4x32xf32> to vector<4x1x32xf32>
    tpu.vector_store %arg8[%c0_143, %c0_144, %c32_145], %734 {strides = array<i32>} : memref<4x8x64xf32, #tpu.memory_space<vmem>>, vector<4x1x32xf32>,
    return
  }
}

module attributes {stable_mosaic.version = 11 : i64} {
  func.func @bigru_layer_kernel(%arg0: memref<4x8x32xf32, #tpu.memory_space<vmem>>, %arg1: memref<4x1xi32, #tpu.memory_space<vmem>>, %arg2: memref<32x192xf32, #tpu.memory_space<vmem>>, %arg3: memref<1x192xf32, #tpu.memory_space<vmem>>, %arg4: memref<32x96xf32, #tpu.memory_space<vmem>>, %arg5: memref<1x96xf32, #tpu.memory_space<vmem>>, %arg6: memref<32x96xf32, #tpu.memory_space<vmem>>, %arg7: memref<1x96xf32, #tpu.memory_space<vmem>>, %arg8: memref<4x8x64xf32, #tpu.memory_space<vmem>>) attributes {dimension_semantics = [], scalar_prefetch = 0 : i64, scratch_operands = 0 : i64, tpu.core_type = #tpu.core_type<tc>} {
    %c0 = arith.constant 0 : index
    %c0_0 = arith.constant 0 : index
    %c0_1 = arith.constant 0 : index
    %0 = vector.load %arg0[%c0, %c0_0, %c0_1] : memref<4x8x32xf32, #tpu.memory_space<vmem>>, vector<4x8x32xf32>
    %1 = vector.shape_cast %0 : vector<4x8x32xf32> to vector<32x32xf32>
    %c0_2 = arith.constant 0 : index
    %c0_3 = arith.constant 0 : index
    %2 = vector.load %arg2[%c0_2, %c0_3] : memref<32x192xf32, #tpu.memory_space<vmem>>, vector<32x192xf32>
    %cst = arith.constant dense<0.000000e+00> : vector<32x192xf32>
    %3 = tpu.matmul %1, %2, %cst {dimension_numbers = #tpu.dot_dimension_numbers<[1], [0], [0], [1], [0, 0, 1, 1], [], []>} : vector<32x32xf32>, vector<32x192xf32>, vector<32x192xf32> -> vector<32x192xf32>
    %c0_4 = arith.constant 0 : index
    %c0_5 = arith.constant 0 : index
    %4 = vector.load %arg3[%c0_4, %c0_5] : memref<1x192xf32, #tpu.memory_space<vmem>>, vector<1x192xf32>
    %5 = vector.broadcast %4 : vector<1x192xf32> to vector<32x192xf32>
    %6 = arith.addf %3, %5 : vector<32x192xf32>
    %7 = vector.shape_cast %6 : vector<32x192xf32> to vector<4x8x192xf32>
    %c0_6 = arith.constant 0 : index
    %c0_7 = arith.constant 0 : index
    %8 = vector.load %arg1[%c0_6, %c0_7] : memref<4x1xi32, #tpu.memory_space<vmem>>, vector<4x1xi32>
    %c0_8 = arith.constant 0 : index
    %c0_9 = arith.constant 0 : index
    %9 = vector.load %arg4[%c0_8, %c0_9] : memref<32x96xf32, #tpu.memory_space<vmem>>, vector<32x96xf32>
    %c0_10 = arith.constant 0 : index
    %c0_11 = arith.constant 0 : index
    %10 = vector.load %arg5[%c0_10, %c0_11] : memref<1x96xf32, #tpu.memory_space<vmem>>, vector<1x96xf32>
    %c0_12 = arith.constant 0 : index
    %c0_13 = arith.constant 0 : index
    %11 = vector.load %arg6[%c0_12, %c0_13] : memref<32x96xf32, #tpu.memory_space<vmem>>, vector<32x96xf32>
    %c0_14 = arith.constant 0 : index
    %c0_15 = arith.constant 0 : index
    %12 = vector.load %arg7[%c0_14, %c0_15] : memref<1x96xf32, #tpu.memory_space<vmem>>, vector<1x96xf32>
    %cst_16 = arith.constant 0.000000e+00 : f32
    %13 = vector.broadcast %cst_16 : f32 to vector<4x32xf32>
    %cst_17 = arith.constant 0.000000e+00 : f32
    %14 = vector.broadcast %cst_17 : f32 to vector<4x32xf32>
    %c0_i32 = arith.constant 0 : i32
    %15 = vector.broadcast %c0_i32 : i32 to vector<4x1xi32>
    %16 = arith.cmpi sgt, %8, %15 : vector<4x1xi32>
    %17 = arith.extui %16 : vector<4x1xi1> to vector<4x1xi32>
    %18 = arith.sitofp %17 : vector<4x1xi32> to vector<4x1xf32>
    %c7_i32 = arith.constant 7 : i32
    %19 = vector.broadcast %c7_i32 : i32 to vector<4x1xi32>
    %20 = arith.cmpi sgt, %8, %19 : vector<4x1xi32>
    %21 = arith.extui %20 : vector<4x1xi1> to vector<4x1xi32>
    %22 = arith.sitofp %21 : vector<4x1xi32> to vector<4x1xf32>
    %23 = vector.extract_strided_slice %7 {offsets = [0, 0, 0], sizes = [4, 1, 96], strides = [1, 1, 1]} : vector<4x8x192xf32> to vector<4x1x96xf32>
    %24 = vector.shape_cast %23 : vector<4x1x96xf32> to vector<4x96xf32>
    %cst_18 = arith.constant dense<0.000000e+00> : vector<4x96xf32>
    %25 = tpu.matmul %13, %9, %cst_18 {dimension_numbers = #tpu.dot_dimension_numbers<[1], [0], [0], [1], [0, 0, 1, 1], [], []>} : vector<4x32xf32>, vector<32x96xf32>, vector<4x96xf32> -> vector<4x96xf32>
    %26 = vector.broadcast %10 : vector<1x96xf32> to vector<4x96xf32>
    %27 = arith.addf %25, %26 : vector<4x96xf32>
    %28 = vector.extract_strided_slice %24 {offsets = [0, 0], sizes = [4, 32], strides = [1, 1]} : vector<4x96xf32> to vector<4x32xf32>
    %29 = vector.extract_strided_slice %27 {offsets = [0, 0], sizes = [4, 32], strides = [1, 1]} : vector<4x96xf32> to vector<4x32xf32>
    %30 = arith.addf %28, %29 : vector<4x32xf32>
    %31 = arith.negf %30 : vector<4x32xf32>
    %32 = math.exp %31 : vector<4x32xf32>
    %cst_19 = arith.constant 1.000000e+00 : f32
    %33 = vector.broadcast %cst_19 : f32 to vector<4x32xf32>
    %34 = arith.addf %33, %32 : vector<4x32xf32>
    %35 = arith.divf %33, %34 : vector<4x32xf32>
    %36 = vector.extract_strided_slice %24 {offsets = [0, 32], sizes = [4, 32], strides = [1, 1]} : vector<4x96xf32> to vector<4x32xf32>
    %37 = vector.extract_strided_slice %27 {offsets = [0, 32], sizes = [4, 32], strides = [1, 1]} : vector<4x96xf32> to vector<4x32xf32>
    %38 = arith.addf %36, %37 : vector<4x32xf32>
    %39 = arith.negf %38 : vector<4x32xf32>
    %40 = math.exp %39 : vector<4x32xf32>
    %cst_20 = arith.constant 1.000000e+00 : f32
    %41 = vector.broadcast %cst_20 : f32 to vector<4x32xf32>
    %42 = arith.addf %41, %40 : vector<4x32xf32>
    %43 = arith.divf %41, %42 : vector<4x32xf32>
    %44 = vector.extract_strided_slice %24 {offsets = [0, 64], sizes = [4, 32], strides = [1, 1]} : vector<4x96xf32> to vector<4x32xf32>
    %45 = vector.extract_strided_slice %27 {offsets = [0, 64], sizes = [4, 32], strides = [1, 1]} : vector<4x96xf32> to vector<4x32xf32>
    %46 = arith.mulf %35, %45 : vector<4x32xf32>
    %47 = arith.addf %44, %46 : vector<4x32xf32>
    %48 = math.tanh %47 : vector<4x32xf32>
    %cst_21 = arith.constant 1.000000e+00 : f32
    %49 = vector.broadcast %cst_21 : f32 to vector<4x32xf32>
    %50 = arith.subf %49, %43 : vector<4x32xf32>
    %51 = arith.mulf %50, %48 : vector<4x32xf32>
    %52 = arith.mulf %43, %13 : vector<4x32xf32>
    %53 = arith.addf %51, %52 : vector<4x32xf32>
    %54 = vector.broadcast %18 : vector<4x1xf32> to vector<4x32xf32>
    %55 = arith.mulf %54, %53 : vector<4x32xf32>
    %cst_22 = arith.constant 1.000000e+00 : f32
    %56 = vector.broadcast %cst_22 : f32 to vector<4x1xf32>
    %57 = arith.subf %56, %18 : vector<4x1xf32>
    %58 = vector.broadcast %57 : vector<4x1xf32> to vector<4x32xf32>
    %59 = arith.mulf %58, %13 : vector<4x32xf32>
    %60 = arith.addf %55, %59 : vector<4x32xf32>
    %61 = vector.extract_strided_slice %7 {offsets = [0, 7, 96], sizes = [4, 1, 96], strides = [1, 1, 1]} : vector<4x8x192xf32> to vector<4x1x96xf32>
    %62 = vector.shape_cast %61 : vector<4x1x96xf32> to vector<4x96xf32>
    %cst_23 = arith.constant dense<0.000000e+00> : vector<4x96xf32>
    %63 = tpu.matmul %14, %11, %cst_23 {dimension_numbers = #tpu.dot_dimension_numbers<[1], [0], [0], [1], [0, 0, 1, 1], [], []>} : vector<4x32xf32>, vector<32x96xf32>, vector<4x96xf32> -> vector<4x96xf32>
    %64 = vector.broadcast %12 : vector<1x96xf32> to vector<4x96xf32>
    %65 = arith.addf %63, %64 : vector<4x96xf32>
    %66 = vector.extract_strided_slice %62 {offsets = [0, 0], sizes = [4, 32], strides = [1, 1]} : vector<4x96xf32> to vector<4x32xf32>
    %67 = vector.extract_strided_slice %65 {offsets = [0, 0], sizes = [4, 32], strides = [1, 1]} : vector<4x96xf32> to vector<4x32xf32>
    %68 = arith.addf %66, %67 : vector<4x32xf32>
    %69 = arith.negf %68 : vector<4x32xf32>
    %70 = math.exp %69 : vector<4x32xf32>
    %cst_24 = arith.constant 1.000000e+00 : f32
    %71 = vector.broadcast %cst_24 : f32 to vector<4x32xf32>
    %72 = arith.addf %71, %70 : vector<4x32xf32>
    %73 = arith.divf %71, %72 : vector<4x32xf32>
    %74 = vector.extract_strided_slice %62 {offsets = [0, 32], sizes = [4, 32], strides = [1, 1]} : vector<4x96xf32> to vector<4x32xf32>
    %75 = vector.extract_strided_slice %65 {offsets = [0, 32], sizes = [4, 32], strides = [1, 1]} : vector<4x96xf32> to vector<4x32xf32>
    %76 = arith.addf %74, %75 : vector<4x32xf32>
    %77 = arith.negf %76 : vector<4x32xf32>
    %78 = math.exp %77 : vector<4x32xf32>
    %cst_25 = arith.constant 1.000000e+00 : f32
    %79 = vector.broadcast %cst_25 : f32 to vector<4x32xf32>
    %80 = arith.addf %79, %78 : vector<4x32xf32>
    %81 = arith.divf %79, %80 : vector<4x32xf32>
    %82 = vector.extract_strided_slice %62 {offsets = [0, 64], sizes = [4, 32], strides = [1, 1]} : vector<4x96xf32> to vector<4x32xf32>
    %83 = vector.extract_strided_slice %65 {offsets = [0, 64], sizes = [4, 32], strides = [1, 1]} : vector<4x96xf32> to vector<4x32xf32>
    %84 = arith.mulf %73, %83 : vector<4x32xf32>
    %85 = arith.addf %82, %84 : vector<4x32xf32>
    %86 = math.tanh %85 : vector<4x32xf32>
    %cst_26 = arith.constant 1.000000e+00 : f32
    %87 = vector.broadcast %cst_26 : f32 to vector<4x32xf32>
    %88 = arith.subf %87, %81 : vector<4x32xf32>
    %89 = arith.mulf %88, %86 : vector<4x32xf32>
    %90 = arith.mulf %81, %14 : vector<4x32xf32>
    %91 = arith.addf %89, %90 : vector<4x32xf32>
    %92 = vector.broadcast %22 : vector<4x1xf32> to vector<4x32xf32>
    %93 = arith.mulf %92, %91 : vector<4x32xf32>
    %cst_27 = arith.constant 1.000000e+00 : f32
    %94 = vector.broadcast %cst_27 : f32 to vector<4x1xf32>
    %95 = arith.subf %94, %22 : vector<4x1xf32>
    %96 = vector.broadcast %95 : vector<4x1xf32> to vector<4x32xf32>
    %97 = arith.mulf %96, %14 : vector<4x32xf32>
    %98 = arith.addf %93, %97 : vector<4x32xf32>
    %c0_28 = arith.constant 0 : index
    %c0_29 = arith.constant 0 : index
    %c0_30 = arith.constant 0 : index
    %99 = vector.load %arg8[%c0_28, %c0_29, %c0_30] : memref<4x8x64xf32, #tpu.memory_space<vmem>>, vector<4x1x32xf32>
    %100 = vector.shape_cast %99 : vector<4x1x32xf32> to vector<4x32xf32>
    %101 = vector.shape_cast %60 : vector<4x32xf32> to vector<4x1x32xf32>
    tpu.vector_store %arg8[%c0_28, %c0_29, %c0_30], %101 {strides = array<i32>} : memref<4x8x64xf32, #tpu.memory_space<vmem>>, vector<4x1x32xf32>,
    %c0_31 = arith.constant 0 : index
    %c7 = arith.constant 7 : index
    %c32 = arith.constant 32 : index
    %102 = vector.load %arg8[%c0_31, %c7, %c32] : memref<4x8x64xf32, #tpu.memory_space<vmem>>, vector<4x1x32xf32>
    %103 = vector.shape_cast %102 : vector<4x1x32xf32> to vector<4x32xf32>
    %104 = vector.shape_cast %98 : vector<4x32xf32> to vector<4x1x32xf32>
    tpu.vector_store %arg8[%c0_31, %c7, %c32], %104 {strides = array<i32>} : memref<4x8x64xf32, #tpu.memory_space<vmem>>, vector<4x1x32xf32>,
    %c1_i32 = arith.constant 1 : i32
    %105 = vector.broadcast %c1_i32 : i32 to vector<4x1xi32>
    %106 = arith.cmpi sgt, %8, %105 : vector<4x1xi32>
    %107 = arith.extui %106 : vector<4x1xi1> to vector<4x1xi32>
    %108 = arith.sitofp %107 : vector<4x1xi32> to vector<4x1xf32>
    %c6_i32 = arith.constant 6 : i32
    %109 = vector.broadcast %c6_i32 : i32 to vector<4x1xi32>
    %110 = arith.cmpi sgt, %8, %109 : vector<4x1xi32>
    %111 = arith.extui %110 : vector<4x1xi1> to vector<4x1xi32>
    %112 = arith.sitofp %111 : vector<4x1xi32> to vector<4x1xf32>
    %113 = vector.extract_strided_slice %7 {offsets = [0, 1, 0], sizes = [4, 1, 96], strides = [1, 1, 1]} : vector<4x8x192xf32> to vector<4x1x96xf32>
    %114 = vector.shape_cast %113 : vector<4x1x96xf32> to vector<4x96xf32>
    %cst_32 = arith.constant dense<0.000000e+00> : vector<4x96xf32>
    %115 = tpu.matmul %60, %9, %cst_32 {dimension_numbers = #tpu.dot_dimension_numbers<[1], [0], [0], [1], [0, 0, 1, 1], [], []>} : vector<4x32xf32>, vector<32x96xf32>, vector<4x96xf32> -> vector<4x96xf32>
    %116 = vector.broadcast %10 : vector<1x96xf32> to vector<4x96xf32>
    %117 = arith.addf %115, %116 : vector<4x96xf32>
    %118 = vector.extract_strided_slice %114 {offsets = [0, 0], sizes = [4, 32], strides = [1, 1]} : vector<4x96xf32> to vector<4x32xf32>
    %119 = vector.extract_strided_slice %117 {offsets = [0, 0], sizes = [4, 32], strides = [1, 1]} : vector<4x96xf32> to vector<4x32xf32>
    %120 = arith.addf %118, %119 : vector<4x32xf32>
    %121 = arith.negf %120 : vector<4x32xf32>
    %122 = math.exp %121 : vector<4x32xf32>
    %cst_33 = arith.constant 1.000000e+00 : f32
    %123 = vector.broadcast %cst_33 : f32 to vector<4x32xf32>
    %124 = arith.addf %123, %122 : vector<4x32xf32>
    %125 = arith.divf %123, %124 : vector<4x32xf32>
    %126 = vector.extract_strided_slice %114 {offsets = [0, 32], sizes = [4, 32], strides = [1, 1]} : vector<4x96xf32> to vector<4x32xf32>
    %127 = vector.extract_strided_slice %117 {offsets = [0, 32], sizes = [4, 32], strides = [1, 1]} : vector<4x96xf32> to vector<4x32xf32>
    %128 = arith.addf %126, %127 : vector<4x32xf32>
    %129 = arith.negf %128 : vector<4x32xf32>
    %130 = math.exp %129 : vector<4x32xf32>
    %cst_34 = arith.constant 1.000000e+00 : f32
    %131 = vector.broadcast %cst_34 : f32 to vector<4x32xf32>
    %132 = arith.addf %131, %130 : vector<4x32xf32>
    %133 = arith.divf %131, %132 : vector<4x32xf32>
    %134 = vector.extract_strided_slice %114 {offsets = [0, 64], sizes = [4, 32], strides = [1, 1]} : vector<4x96xf32> to vector<4x32xf32>
    %135 = vector.extract_strided_slice %117 {offsets = [0, 64], sizes = [4, 32], strides = [1, 1]} : vector<4x96xf32> to vector<4x32xf32>
    %136 = arith.mulf %125, %135 : vector<4x32xf32>
    %137 = arith.addf %134, %136 : vector<4x32xf32>
    %138 = math.tanh %137 : vector<4x32xf32>
    %cst_35 = arith.constant 1.000000e+00 : f32
    %139 = vector.broadcast %cst_35 : f32 to vector<4x32xf32>
    %140 = arith.subf %139, %133 : vector<4x32xf32>
    %141 = arith.mulf %140, %138 : vector<4x32xf32>
    %142 = arith.mulf %133, %60 : vector<4x32xf32>
    %143 = arith.addf %141, %142 : vector<4x32xf32>
    %144 = vector.broadcast %108 : vector<4x1xf32> to vector<4x32xf32>
    %145 = arith.mulf %144, %143 : vector<4x32xf32>
    %cst_36 = arith.constant 1.000000e+00 : f32
    %146 = vector.broadcast %cst_36 : f32 to vector<4x1xf32>
    %147 = arith.subf %146, %108 : vector<4x1xf32>
    %148 = vector.broadcast %147 : vector<4x1xf32> to vector<4x32xf32>
    %149 = arith.mulf %148, %60 : vector<4x32xf32>
    %150 = arith.addf %145, %149 : vector<4x32xf32>
    %151 = vector.extract_strided_slice %7 {offsets = [0, 6, 96], sizes = [4, 1, 96], strides = [1, 1, 1]} : vector<4x8x192xf32> to vector<4x1x96xf32>
    %152 = vector.shape_cast %151 : vector<4x1x96xf32> to vector<4x96xf32>
    %cst_37 = arith.constant dense<0.000000e+00> : vector<4x96xf32>
    %153 = tpu.matmul %98, %11, %cst_37 {dimension_numbers = #tpu.dot_dimension_numbers<[1], [0], [0], [1], [0, 0, 1, 1], [], []>} : vector<4x32xf32>, vector<32x96xf32>, vector<4x96xf32> -> vector<4x96xf32>
    %154 = vector.broadcast %12 : vector<1x96xf32> to vector<4x96xf32>
    %155 = arith.addf %153, %154 : vector<4x96xf32>
    %156 = vector.extract_strided_slice %152 {offsets = [0, 0], sizes = [4, 32], strides = [1, 1]} : vector<4x96xf32> to vector<4x32xf32>
    %157 = vector.extract_strided_slice %155 {offsets = [0, 0], sizes = [4, 32], strides = [1, 1]} : vector<4x96xf32> to vector<4x32xf32>
    %158 = arith.addf %156, %157 : vector<4x32xf32>
    %159 = arith.negf %158 : vector<4x32xf32>
    %160 = math.exp %159 : vector<4x32xf32>
    %cst_38 = arith.constant 1.000000e+00 : f32
    %161 = vector.broadcast %cst_38 : f32 to vector<4x32xf32>
    %162 = arith.addf %161, %160 : vector<4x32xf32>
    %163 = arith.divf %161, %162 : vector<4x32xf32>
    %164 = vector.extract_strided_slice %152 {offsets = [0, 32], sizes = [4, 32], strides = [1, 1]} : vector<4x96xf32> to vector<4x32xf32>
    %165 = vector.extract_strided_slice %155 {offsets = [0, 32], sizes = [4, 32], strides = [1, 1]} : vector<4x96xf32> to vector<4x32xf32>
    %166 = arith.addf %164, %165 : vector<4x32xf32>
    %167 = arith.negf %166 : vector<4x32xf32>
    %168 = math.exp %167 : vector<4x32xf32>
    %cst_39 = arith.constant 1.000000e+00 : f32
    %169 = vector.broadcast %cst_39 : f32 to vector<4x32xf32>
    %170 = arith.addf %169, %168 : vector<4x32xf32>
    %171 = arith.divf %169, %170 : vector<4x32xf32>
    %172 = vector.extract_strided_slice %152 {offsets = [0, 64], sizes = [4, 32], strides = [1, 1]} : vector<4x96xf32> to vector<4x32xf32>
    %173 = vector.extract_strided_slice %155 {offsets = [0, 64], sizes = [4, 32], strides = [1, 1]} : vector<4x96xf32> to vector<4x32xf32>
    %174 = arith.mulf %163, %173 : vector<4x32xf32>
    %175 = arith.addf %172, %174 : vector<4x32xf32>
    %176 = math.tanh %175 : vector<4x32xf32>
    %cst_40 = arith.constant 1.000000e+00 : f32
    %177 = vector.broadcast %cst_40 : f32 to vector<4x32xf32>
    %178 = arith.subf %177, %171 : vector<4x32xf32>
    %179 = arith.mulf %178, %176 : vector<4x32xf32>
    %180 = arith.mulf %171, %98 : vector<4x32xf32>
    %181 = arith.addf %179, %180 : vector<4x32xf32>
    %182 = vector.broadcast %112 : vector<4x1xf32> to vector<4x32xf32>
    %183 = arith.mulf %182, %181 : vector<4x32xf32>
    %cst_41 = arith.constant 1.000000e+00 : f32
    %184 = vector.broadcast %cst_41 : f32 to vector<4x1xf32>
    %185 = arith.subf %184, %112 : vector<4x1xf32>
    %186 = vector.broadcast %185 : vector<4x1xf32> to vector<4x32xf32>
    %187 = arith.mulf %186, %98 : vector<4x32xf32>
    %188 = arith.addf %183, %187 : vector<4x32xf32>
    %c0_42 = arith.constant 0 : index
    %c1 = arith.constant 1 : index
    %c0_43 = arith.constant 0 : index
    %189 = vector.load %arg8[%c0_42, %c1, %c0_43] : memref<4x8x64xf32, #tpu.memory_space<vmem>>, vector<4x1x32xf32>
    %190 = vector.shape_cast %189 : vector<4x1x32xf32> to vector<4x32xf32>
    %191 = vector.shape_cast %150 : vector<4x32xf32> to vector<4x1x32xf32>
    tpu.vector_store %arg8[%c0_42, %c1, %c0_43], %191 {strides = array<i32>} : memref<4x8x64xf32, #tpu.memory_space<vmem>>, vector<4x1x32xf32>,
    %c0_44 = arith.constant 0 : index
    %c6 = arith.constant 6 : index
    %c32_45 = arith.constant 32 : index
    %192 = vector.load %arg8[%c0_44, %c6, %c32_45] : memref<4x8x64xf32, #tpu.memory_space<vmem>>, vector<4x1x32xf32>
    %193 = vector.shape_cast %192 : vector<4x1x32xf32> to vector<4x32xf32>
    %194 = vector.shape_cast %188 : vector<4x32xf32> to vector<4x1x32xf32>
    tpu.vector_store %arg8[%c0_44, %c6, %c32_45], %194 {strides = array<i32>} : memref<4x8x64xf32, #tpu.memory_space<vmem>>, vector<4x1x32xf32>,
    %c2_i32 = arith.constant 2 : i32
    %195 = vector.broadcast %c2_i32 : i32 to vector<4x1xi32>
    %196 = arith.cmpi sgt, %8, %195 : vector<4x1xi32>
    %197 = arith.extui %196 : vector<4x1xi1> to vector<4x1xi32>
    %198 = arith.sitofp %197 : vector<4x1xi32> to vector<4x1xf32>
    %c5_i32 = arith.constant 5 : i32
    %199 = vector.broadcast %c5_i32 : i32 to vector<4x1xi32>
    %200 = arith.cmpi sgt, %8, %199 : vector<4x1xi32>
    %201 = arith.extui %200 : vector<4x1xi1> to vector<4x1xi32>
    %202 = arith.sitofp %201 : vector<4x1xi32> to vector<4x1xf32>
    %203 = vector.extract_strided_slice %7 {offsets = [0, 2, 0], sizes = [4, 1, 96], strides = [1, 1, 1]} : vector<4x8x192xf32> to vector<4x1x96xf32>
    %204 = vector.shape_cast %203 : vector<4x1x96xf32> to vector<4x96xf32>
    %cst_46 = arith.constant dense<0.000000e+00> : vector<4x96xf32>
    %205 = tpu.matmul %150, %9, %cst_46 {dimension_numbers = #tpu.dot_dimension_numbers<[1], [0], [0], [1], [0, 0, 1, 1], [], []>} : vector<4x32xf32>, vector<32x96xf32>, vector<4x96xf32> -> vector<4x96xf32>
    %206 = vector.broadcast %10 : vector<1x96xf32> to vector<4x96xf32>
    %207 = arith.addf %205, %206 : vector<4x96xf32>
    %208 = vector.extract_strided_slice %204 {offsets = [0, 0], sizes = [4, 32], strides = [1, 1]} : vector<4x96xf32> to vector<4x32xf32>
    %209 = vector.extract_strided_slice %207 {offsets = [0, 0], sizes = [4, 32], strides = [1, 1]} : vector<4x96xf32> to vector<4x32xf32>
    %210 = arith.addf %208, %209 : vector<4x32xf32>
    %211 = arith.negf %210 : vector<4x32xf32>
    %212 = math.exp %211 : vector<4x32xf32>
    %cst_47 = arith.constant 1.000000e+00 : f32
    %213 = vector.broadcast %cst_47 : f32 to vector<4x32xf32>
    %214 = arith.addf %213, %212 : vector<4x32xf32>
    %215 = arith.divf %213, %214 : vector<4x32xf32>
    %216 = vector.extract_strided_slice %204 {offsets = [0, 32], sizes = [4, 32], strides = [1, 1]} : vector<4x96xf32> to vector<4x32xf32>
    %217 = vector.extract_strided_slice %207 {offsets = [0, 32], sizes = [4, 32], strides = [1, 1]} : vector<4x96xf32> to vector<4x32xf32>
    %218 = arith.addf %216, %217 : vector<4x32xf32>
    %219 = arith.negf %218 : vector<4x32xf32>
    %220 = math.exp %219 : vector<4x32xf32>
    %cst_48 = arith.constant 1.000000e+00 : f32
    %221 = vector.broadcast %cst_48 : f32 to vector<4x32xf32>
    %222 = arith.addf %221, %220 : vector<4x32xf32>
    %223 = arith.divf %221, %222 : vector<4x32xf32>
    %224 = vector.extract_strided_slice %204 {offsets = [0, 64], sizes = [4, 32], strides = [1, 1]} : vector<4x96xf32> to vector<4x32xf32>
    %225 = vector.extract_strided_slice %207 {offsets = [0, 64], sizes = [4, 32], strides = [1, 1]} : vector<4x96xf32> to vector<4x32xf32>
    %226 = arith.mulf %215, %225 : vector<4x32xf32>
    %227 = arith.addf %224, %226 : vector<4x32xf32>
    %228 = math.tanh %227 : vector<4x32xf32>
    %cst_49 = arith.constant 1.000000e+00 : f32
    %229 = vector.broadcast %cst_49 : f32 to vector<4x32xf32>
    %230 = arith.subf %229, %223 : vector<4x32xf32>
    %231 = arith.mulf %230, %228 : vector<4x32xf32>
    %232 = arith.mulf %223, %150 : vector<4x32xf32>
    %233 = arith.addf %231, %232 : vector<4x32xf32>
    %234 = vector.broadcast %198 : vector<4x1xf32> to vector<4x32xf32>
    %235 = arith.mulf %234, %233 : vector<4x32xf32>
    %cst_50 = arith.constant 1.000000e+00 : f32
    %236 = vector.broadcast %cst_50 : f32 to vector<4x1xf32>
    %237 = arith.subf %236, %198 : vector<4x1xf32>
    %238 = vector.broadcast %237 : vector<4x1xf32> to vector<4x32xf32>
    %239 = arith.mulf %238, %150 : vector<4x32xf32>
    %240 = arith.addf %235, %239 : vector<4x32xf32>
    %241 = vector.extract_strided_slice %7 {offsets = [0, 5, 96], sizes = [4, 1, 96], strides = [1, 1, 1]} : vector<4x8x192xf32> to vector<4x1x96xf32>
    %242 = vector.shape_cast %241 : vector<4x1x96xf32> to vector<4x96xf32>
    %cst_51 = arith.constant dense<0.000000e+00> : vector<4x96xf32>
    %243 = tpu.matmul %188, %11, %cst_51 {dimension_numbers = #tpu.dot_dimension_numbers<[1], [0], [0], [1], [0, 0, 1, 1], [], []>} : vector<4x32xf32>, vector<32x96xf32>, vector<4x96xf32> -> vector<4x96xf32>
    %244 = vector.broadcast %12 : vector<1x96xf32> to vector<4x96xf32>
    %245 = arith.addf %243, %244 : vector<4x96xf32>
    %246 = vector.extract_strided_slice %242 {offsets = [0, 0], sizes = [4, 32], strides = [1, 1]} : vector<4x96xf32> to vector<4x32xf32>
    %247 = vector.extract_strided_slice %245 {offsets = [0, 0], sizes = [4, 32], strides = [1, 1]} : vector<4x96xf32> to vector<4x32xf32>
    %248 = arith.addf %246, %247 : vector<4x32xf32>
    %249 = arith.negf %248 : vector<4x32xf32>
    %250 = math.exp %249 : vector<4x32xf32>
    %cst_52 = arith.constant 1.000000e+00 : f32
    %251 = vector.broadcast %cst_52 : f32 to vector<4x32xf32>
    %252 = arith.addf %251, %250 : vector<4x32xf32>
    %253 = arith.divf %251, %252 : vector<4x32xf32>
    %254 = vector.extract_strided_slice %242 {offsets = [0, 32], sizes = [4, 32], strides = [1, 1]} : vector<4x96xf32> to vector<4x32xf32>
    %255 = vector.extract_strided_slice %245 {offsets = [0, 32], sizes = [4, 32], strides = [1, 1]} : vector<4x96xf32> to vector<4x32xf32>
    %256 = arith.addf %254, %255 : vector<4x32xf32>
    %257 = arith.negf %256 : vector<4x32xf32>
    %258 = math.exp %257 : vector<4x32xf32>
    %cst_53 = arith.constant 1.000000e+00 : f32
    %259 = vector.broadcast %cst_53 : f32 to vector<4x32xf32>
    %260 = arith.addf %259, %258 : vector<4x32xf32>
    %261 = arith.divf %259, %260 : vector<4x32xf32>
    %262 = vector.extract_strided_slice %242 {offsets = [0, 64], sizes = [4, 32], strides = [1, 1]} : vector<4x96xf32> to vector<4x32xf32>
    %263 = vector.extract_strided_slice %245 {offsets = [0, 64], sizes = [4, 32], strides = [1, 1]} : vector<4x96xf32> to vector<4x32xf32>
    %264 = arith.mulf %253, %263 : vector<4x32xf32>
    %265 = arith.addf %262, %264 : vector<4x32xf32>
    %266 = math.tanh %265 : vector<4x32xf32>
    %cst_54 = arith.constant 1.000000e+00 : f32
    %267 = vector.broadcast %cst_54 : f32 to vector<4x32xf32>
    %268 = arith.subf %267, %261 : vector<4x32xf32>
    %269 = arith.mulf %268, %266 : vector<4x32xf32>
    %270 = arith.mulf %261, %188 : vector<4x32xf32>
    %271 = arith.addf %269, %270 : vector<4x32xf32>
    %272 = vector.broadcast %202 : vector<4x1xf32> to vector<4x32xf32>
    %273 = arith.mulf %272, %271 : vector<4x32xf32>
    %cst_55 = arith.constant 1.000000e+00 : f32
    %274 = vector.broadcast %cst_55 : f32 to vector<4x1xf32>
    %275 = arith.subf %274, %202 : vector<4x1xf32>
    %276 = vector.broadcast %275 : vector<4x1xf32> to vector<4x32xf32>
    %277 = arith.mulf %276, %188 : vector<4x32xf32>
    %278 = arith.addf %273, %277 : vector<4x32xf32>
    %c0_56 = arith.constant 0 : index
    %c2 = arith.constant 2 : index
    %c0_57 = arith.constant 0 : index
    %279 = vector.load %arg8[%c0_56, %c2, %c0_57] : memref<4x8x64xf32, #tpu.memory_space<vmem>>, vector<4x1x32xf32>
    %280 = vector.shape_cast %279 : vector<4x1x32xf32> to vector<4x32xf32>
    %281 = vector.shape_cast %240 : vector<4x32xf32> to vector<4x1x32xf32>
    tpu.vector_store %arg8[%c0_56, %c2, %c0_57], %281 {strides = array<i32>} : memref<4x8x64xf32, #tpu.memory_space<vmem>>, vector<4x1x32xf32>,
    %c0_58 = arith.constant 0 : index
    %c5 = arith.constant 5 : index
    %c32_59 = arith.constant 32 : index
    %282 = vector.load %arg8[%c0_58, %c5, %c32_59] : memref<4x8x64xf32, #tpu.memory_space<vmem>>, vector<4x1x32xf32>
    %283 = vector.shape_cast %282 : vector<4x1x32xf32> to vector<4x32xf32>
    %284 = vector.shape_cast %278 : vector<4x32xf32> to vector<4x1x32xf32>
    tpu.vector_store %arg8[%c0_58, %c5, %c32_59], %284 {strides = array<i32>} : memref<4x8x64xf32, #tpu.memory_space<vmem>>, vector<4x1x32xf32>,
    %c3_i32 = arith.constant 3 : i32
    %285 = vector.broadcast %c3_i32 : i32 to vector<4x1xi32>
    %286 = arith.cmpi sgt, %8, %285 : vector<4x1xi32>
    %287 = arith.extui %286 : vector<4x1xi1> to vector<4x1xi32>
    %288 = arith.sitofp %287 : vector<4x1xi32> to vector<4x1xf32>
    %c4_i32 = arith.constant 4 : i32
    %289 = vector.broadcast %c4_i32 : i32 to vector<4x1xi32>
    %290 = arith.cmpi sgt, %8, %289 : vector<4x1xi32>
    %291 = arith.extui %290 : vector<4x1xi1> to vector<4x1xi32>
    %292 = arith.sitofp %291 : vector<4x1xi32> to vector<4x1xf32>
    %293 = vector.extract_strided_slice %7 {offsets = [0, 3, 0], sizes = [4, 1, 96], strides = [1, 1, 1]} : vector<4x8x192xf32> to vector<4x1x96xf32>
    %294 = vector.shape_cast %293 : vector<4x1x96xf32> to vector<4x96xf32>
    %cst_60 = arith.constant dense<0.000000e+00> : vector<4x96xf32>
    %295 = tpu.matmul %240, %9, %cst_60 {dimension_numbers = #tpu.dot_dimension_numbers<[1], [0], [0], [1], [0, 0, 1, 1], [], []>} : vector<4x32xf32>, vector<32x96xf32>, vector<4x96xf32> -> vector<4x96xf32>
    %296 = vector.broadcast %10 : vector<1x96xf32> to vector<4x96xf32>
    %297 = arith.addf %295, %296 : vector<4x96xf32>
    %298 = vector.extract_strided_slice %294 {offsets = [0, 0], sizes = [4, 32], strides = [1, 1]} : vector<4x96xf32> to vector<4x32xf32>
    %299 = vector.extract_strided_slice %297 {offsets = [0, 0], sizes = [4, 32], strides = [1, 1]} : vector<4x96xf32> to vector<4x32xf32>
    %300 = arith.addf %298, %299 : vector<4x32xf32>
    %301 = arith.negf %300 : vector<4x32xf32>
    %302 = math.exp %301 : vector<4x32xf32>
    %cst_61 = arith.constant 1.000000e+00 : f32
    %303 = vector.broadcast %cst_61 : f32 to vector<4x32xf32>
    %304 = arith.addf %303, %302 : vector<4x32xf32>
    %305 = arith.divf %303, %304 : vector<4x32xf32>
    %306 = vector.extract_strided_slice %294 {offsets = [0, 32], sizes = [4, 32], strides = [1, 1]} : vector<4x96xf32> to vector<4x32xf32>
    %307 = vector.extract_strided_slice %297 {offsets = [0, 32], sizes = [4, 32], strides = [1, 1]} : vector<4x96xf32> to vector<4x32xf32>
    %308 = arith.addf %306, %307 : vector<4x32xf32>
    %309 = arith.negf %308 : vector<4x32xf32>
    %310 = math.exp %309 : vector<4x32xf32>
    %cst_62 = arith.constant 1.000000e+00 : f32
    %311 = vector.broadcast %cst_62 : f32 to vector<4x32xf32>
    %312 = arith.addf %311, %310 : vector<4x32xf32>
    %313 = arith.divf %311, %312 : vector<4x32xf32>
    %314 = vector.extract_strided_slice %294 {offsets = [0, 64], sizes = [4, 32], strides = [1, 1]} : vector<4x96xf32> to vector<4x32xf32>
    %315 = vector.extract_strided_slice %297 {offsets = [0, 64], sizes = [4, 32], strides = [1, 1]} : vector<4x96xf32> to vector<4x32xf32>
    %316 = arith.mulf %305, %315 : vector<4x32xf32>
    %317 = arith.addf %314, %316 : vector<4x32xf32>
    %318 = math.tanh %317 : vector<4x32xf32>
    %cst_63 = arith.constant 1.000000e+00 : f32
    %319 = vector.broadcast %cst_63 : f32 to vector<4x32xf32>
    %320 = arith.subf %319, %313 : vector<4x32xf32>
    %321 = arith.mulf %320, %318 : vector<4x32xf32>
    %322 = arith.mulf %313, %240 : vector<4x32xf32>
    %323 = arith.addf %321, %322 : vector<4x32xf32>
    %324 = vector.broadcast %288 : vector<4x1xf32> to vector<4x32xf32>
    %325 = arith.mulf %324, %323 : vector<4x32xf32>
    %cst_64 = arith.constant 1.000000e+00 : f32
    %326 = vector.broadcast %cst_64 : f32 to vector<4x1xf32>
    %327 = arith.subf %326, %288 : vector<4x1xf32>
    %328 = vector.broadcast %327 : vector<4x1xf32> to vector<4x32xf32>
    %329 = arith.mulf %328, %240 : vector<4x32xf32>
    %330 = arith.addf %325, %329 : vector<4x32xf32>
    %331 = vector.extract_strided_slice %7 {offsets = [0, 4, 96], sizes = [4, 1, 96], strides = [1, 1, 1]} : vector<4x8x192xf32> to vector<4x1x96xf32>
    %332 = vector.shape_cast %331 : vector<4x1x96xf32> to vector<4x96xf32>
    %cst_65 = arith.constant dense<0.000000e+00> : vector<4x96xf32>
    %333 = tpu.matmul %278, %11, %cst_65 {dimension_numbers = #tpu.dot_dimension_numbers<[1], [0], [0], [1], [0, 0, 1, 1], [], []>} : vector<4x32xf32>, vector<32x96xf32>, vector<4x96xf32> -> vector<4x96xf32>
    %334 = vector.broadcast %12 : vector<1x96xf32> to vector<4x96xf32>
    %335 = arith.addf %333, %334 : vector<4x96xf32>
    %336 = vector.extract_strided_slice %332 {offsets = [0, 0], sizes = [4, 32], strides = [1, 1]} : vector<4x96xf32> to vector<4x32xf32>
    %337 = vector.extract_strided_slice %335 {offsets = [0, 0], sizes = [4, 32], strides = [1, 1]} : vector<4x96xf32> to vector<4x32xf32>
    %338 = arith.addf %336, %337 : vector<4x32xf32>
    %339 = arith.negf %338 : vector<4x32xf32>
    %340 = math.exp %339 : vector<4x32xf32>
    %cst_66 = arith.constant 1.000000e+00 : f32
    %341 = vector.broadcast %cst_66 : f32 to vector<4x32xf32>
    %342 = arith.addf %341, %340 : vector<4x32xf32>
    %343 = arith.divf %341, %342 : vector<4x32xf32>
    %344 = vector.extract_strided_slice %332 {offsets = [0, 32], sizes = [4, 32], strides = [1, 1]} : vector<4x96xf32> to vector<4x32xf32>
    %345 = vector.extract_strided_slice %335 {offsets = [0, 32], sizes = [4, 32], strides = [1, 1]} : vector<4x96xf32> to vector<4x32xf32>
    %346 = arith.addf %344, %345 : vector<4x32xf32>
    %347 = arith.negf %346 : vector<4x32xf32>
    %348 = math.exp %347 : vector<4x32xf32>
    %cst_67 = arith.constant 1.000000e+00 : f32
    %349 = vector.broadcast %cst_67 : f32 to vector<4x32xf32>
    %350 = arith.addf %349, %348 : vector<4x32xf32>
    %351 = arith.divf %349, %350 : vector<4x32xf32>
    %352 = vector.extract_strided_slice %332 {offsets = [0, 64], sizes = [4, 32], strides = [1, 1]} : vector<4x96xf32> to vector<4x32xf32>
    %353 = vector.extract_strided_slice %335 {offsets = [0, 64], sizes = [4, 32], strides = [1, 1]} : vector<4x96xf32> to vector<4x32xf32>
    %354 = arith.mulf %343, %353 : vector<4x32xf32>
    %355 = arith.addf %352, %354 : vector<4x32xf32>
    %356 = math.tanh %355 : vector<4x32xf32>
    %cst_68 = arith.constant 1.000000e+00 : f32
    %357 = vector.broadcast %cst_68 : f32 to vector<4x32xf32>
    %358 = arith.subf %357, %351 : vector<4x32xf32>
    %359 = arith.mulf %358, %356 : vector<4x32xf32>
    %360 = arith.mulf %351, %278 : vector<4x32xf32>
    %361 = arith.addf %359, %360 : vector<4x32xf32>
    %362 = vector.broadcast %292 : vector<4x1xf32> to vector<4x32xf32>
    %363 = arith.mulf %362, %361 : vector<4x32xf32>
    %cst_69 = arith.constant 1.000000e+00 : f32
    %364 = vector.broadcast %cst_69 : f32 to vector<4x1xf32>
    %365 = arith.subf %364, %292 : vector<4x1xf32>
    %366 = vector.broadcast %365 : vector<4x1xf32> to vector<4x32xf32>
    %367 = arith.mulf %366, %278 : vector<4x32xf32>
    %368 = arith.addf %363, %367 : vector<4x32xf32>
    %c0_70 = arith.constant 0 : index
    %c3 = arith.constant 3 : index
    %c0_71 = arith.constant 0 : index
    %369 = vector.load %arg8[%c0_70, %c3, %c0_71] : memref<4x8x64xf32, #tpu.memory_space<vmem>>, vector<4x1x32xf32>
    %370 = vector.shape_cast %369 : vector<4x1x32xf32> to vector<4x32xf32>
    %371 = vector.shape_cast %330 : vector<4x32xf32> to vector<4x1x32xf32>
    tpu.vector_store %arg8[%c0_70, %c3, %c0_71], %371 {strides = array<i32>} : memref<4x8x64xf32, #tpu.memory_space<vmem>>, vector<4x1x32xf32>,
    %c0_72 = arith.constant 0 : index
    %c4 = arith.constant 4 : index
    %c32_73 = arith.constant 32 : index
    %372 = vector.load %arg8[%c0_72, %c4, %c32_73] : memref<4x8x64xf32, #tpu.memory_space<vmem>>, vector<4x1x32xf32>
    %373 = vector.shape_cast %372 : vector<4x1x32xf32> to vector<4x32xf32>
    %374 = vector.shape_cast %368 : vector<4x32xf32> to vector<4x1x32xf32>
    tpu.vector_store %arg8[%c0_72, %c4, %c32_73], %374 {strides = array<i32>} : memref<4x8x64xf32, #tpu.memory_space<vmem>>, vector<4x1x32xf32>,
    %c4_i32_74 = arith.constant 4 : i32
    %375 = vector.broadcast %c4_i32_74 : i32 to vector<4x1xi32>
    %376 = arith.cmpi sgt, %8, %375 : vector<4x1xi32>
    %377 = arith.extui %376 : vector<4x1xi1> to vector<4x1xi32>
    %378 = arith.sitofp %377 : vector<4x1xi32> to vector<4x1xf32>
    %c3_i32_75 = arith.constant 3 : i32
    %379 = vector.broadcast %c3_i32_75 : i32 to vector<4x1xi32>
    %380 = arith.cmpi sgt, %8, %379 : vector<4x1xi32>
    %381 = arith.extui %380 : vector<4x1xi1> to vector<4x1xi32>
    %382 = arith.sitofp %381 : vector<4x1xi32> to vector<4x1xf32>
    %383 = vector.extract_strided_slice %7 {offsets = [0, 4, 0], sizes = [4, 1, 96], strides = [1, 1, 1]} : vector<4x8x192xf32> to vector<4x1x96xf32>
    %384 = vector.shape_cast %383 : vector<4x1x96xf32> to vector<4x96xf32>
    %cst_76 = arith.constant dense<0.000000e+00> : vector<4x96xf32>
    %385 = tpu.matmul %330, %9, %cst_76 {dimension_numbers = #tpu.dot_dimension_numbers<[1], [0], [0], [1], [0, 0, 1, 1], [], []>} : vector<4x32xf32>, vector<32x96xf32>, vector<4x96xf32> -> vector<4x96xf32>
    %386 = vector.broadcast %10 : vector<1x96xf32> to vector<4x96xf32>
    %387 = arith.addf %385, %386 : vector<4x96xf32>
    %388 = vector.extract_strided_slice %384 {offsets = [0, 0], sizes = [4, 32], strides = [1, 1]} : vector<4x96xf32> to vector<4x32xf32>
    %389 = vector.extract_strided_slice %387 {offsets = [0, 0], sizes = [4, 32], strides = [1, 1]} : vector<4x96xf32> to vector<4x32xf32>
    %390 = arith.addf %388, %389 : vector<4x32xf32>
    %391 = arith.negf %390 : vector<4x32xf32>
    %392 = math.exp %391 : vector<4x32xf32>
    %cst_77 = arith.constant 1.000000e+00 : f32
    %393 = vector.broadcast %cst_77 : f32 to vector<4x32xf32>
    %394 = arith.addf %393, %392 : vector<4x32xf32>
    %395 = arith.divf %393, %394 : vector<4x32xf32>
    %396 = vector.extract_strided_slice %384 {offsets = [0, 32], sizes = [4, 32], strides = [1, 1]} : vector<4x96xf32> to vector<4x32xf32>
    %397 = vector.extract_strided_slice %387 {offsets = [0, 32], sizes = [4, 32], strides = [1, 1]} : vector<4x96xf32> to vector<4x32xf32>
    %398 = arith.addf %396, %397 : vector<4x32xf32>
    %399 = arith.negf %398 : vector<4x32xf32>
    %400 = math.exp %399 : vector<4x32xf32>
    %cst_78 = arith.constant 1.000000e+00 : f32
    %401 = vector.broadcast %cst_78 : f32 to vector<4x32xf32>
    %402 = arith.addf %401, %400 : vector<4x32xf32>
    %403 = arith.divf %401, %402 : vector<4x32xf32>
    %404 = vector.extract_strided_slice %384 {offsets = [0, 64], sizes = [4, 32], strides = [1, 1]} : vector<4x96xf32> to vector<4x32xf32>
    %405 = vector.extract_strided_slice %387 {offsets = [0, 64], sizes = [4, 32], strides = [1, 1]} : vector<4x96xf32> to vector<4x32xf32>
    %406 = arith.mulf %395, %405 : vector<4x32xf32>
    %407 = arith.addf %404, %406 : vector<4x32xf32>
    %408 = math.tanh %407 : vector<4x32xf32>
    %cst_79 = arith.constant 1.000000e+00 : f32
    %409 = vector.broadcast %cst_79 : f32 to vector<4x32xf32>
    %410 = arith.subf %409, %403 : vector<4x32xf32>
    %411 = arith.mulf %410, %408 : vector<4x32xf32>
    %412 = arith.mulf %403, %330 : vector<4x32xf32>
    %413 = arith.addf %411, %412 : vector<4x32xf32>
    %414 = vector.broadcast %378 : vector<4x1xf32> to vector<4x32xf32>
    %415 = arith.mulf %414, %413 : vector<4x32xf32>
    %cst_80 = arith.constant 1.000000e+00 : f32
    %416 = vector.broadcast %cst_80 : f32 to vector<4x1xf32>
    %417 = arith.subf %416, %378 : vector<4x1xf32>
    %418 = vector.broadcast %417 : vector<4x1xf32> to vector<4x32xf32>
    %419 = arith.mulf %418, %330 : vector<4x32xf32>
    %420 = arith.addf %415, %419 : vector<4x32xf32>
    %421 = vector.extract_strided_slice %7 {offsets = [0, 3, 96], sizes = [4, 1, 96], strides = [1, 1, 1]} : vector<4x8x192xf32> to vector<4x1x96xf32>
    %422 = vector.shape_cast %421 : vector<4x1x96xf32> to vector<4x96xf32>
    %cst_81 = arith.constant dense<0.000000e+00> : vector<4x96xf32>
    %423 = tpu.matmul %368, %11, %cst_81 {dimension_numbers = #tpu.dot_dimension_numbers<[1], [0], [0], [1], [0, 0, 1, 1], [], []>} : vector<4x32xf32>, vector<32x96xf32>, vector<4x96xf32> -> vector<4x96xf32>
    %424 = vector.broadcast %12 : vector<1x96xf32> to vector<4x96xf32>
    %425 = arith.addf %423, %424 : vector<4x96xf32>
    %426 = vector.extract_strided_slice %422 {offsets = [0, 0], sizes = [4, 32], strides = [1, 1]} : vector<4x96xf32> to vector<4x32xf32>
    %427 = vector.extract_strided_slice %425 {offsets = [0, 0], sizes = [4, 32], strides = [1, 1]} : vector<4x96xf32> to vector<4x32xf32>
    %428 = arith.addf %426, %427 : vector<4x32xf32>
    %429 = arith.negf %428 : vector<4x32xf32>
    %430 = math.exp %429 : vector<4x32xf32>
    %cst_82 = arith.constant 1.000000e+00 : f32
    %431 = vector.broadcast %cst_82 : f32 to vector<4x32xf32>
    %432 = arith.addf %431, %430 : vector<4x32xf32>
    %433 = arith.divf %431, %432 : vector<4x32xf32>
    %434 = vector.extract_strided_slice %422 {offsets = [0, 32], sizes = [4, 32], strides = [1, 1]} : vector<4x96xf32> to vector<4x32xf32>
    %435 = vector.extract_strided_slice %425 {offsets = [0, 32], sizes = [4, 32], strides = [1, 1]} : vector<4x96xf32> to vector<4x32xf32>
    %436 = arith.addf %434, %435 : vector<4x32xf32>
    %437 = arith.negf %436 : vector<4x32xf32>
    %438 = math.exp %437 : vector<4x32xf32>
    %cst_83 = arith.constant 1.000000e+00 : f32
    %439 = vector.broadcast %cst_83 : f32 to vector<4x32xf32>
    %440 = arith.addf %439, %438 : vector<4x32xf32>
    %441 = arith.divf %439, %440 : vector<4x32xf32>
    %442 = vector.extract_strided_slice %422 {offsets = [0, 64], sizes = [4, 32], strides = [1, 1]} : vector<4x96xf32> to vector<4x32xf32>
    %443 = vector.extract_strided_slice %425 {offsets = [0, 64], sizes = [4, 32], strides = [1, 1]} : vector<4x96xf32> to vector<4x32xf32>
    %444 = arith.mulf %433, %443 : vector<4x32xf32>
    %445 = arith.addf %442, %444 : vector<4x32xf32>
    %446 = math.tanh %445 : vector<4x32xf32>
    %cst_84 = arith.constant 1.000000e+00 : f32
    %447 = vector.broadcast %cst_84 : f32 to vector<4x32xf32>
    %448 = arith.subf %447, %441 : vector<4x32xf32>
    %449 = arith.mulf %448, %446 : vector<4x32xf32>
    %450 = arith.mulf %441, %368 : vector<4x32xf32>
    %451 = arith.addf %449, %450 : vector<4x32xf32>
    %452 = vector.broadcast %382 : vector<4x1xf32> to vector<4x32xf32>
    %453 = arith.mulf %452, %451 : vector<4x32xf32>
    %cst_85 = arith.constant 1.000000e+00 : f32
    %454 = vector.broadcast %cst_85 : f32 to vector<4x1xf32>
    %455 = arith.subf %454, %382 : vector<4x1xf32>
    %456 = vector.broadcast %455 : vector<4x1xf32> to vector<4x32xf32>
    %457 = arith.mulf %456, %368 : vector<4x32xf32>
    %458 = arith.addf %453, %457 : vector<4x32xf32>
    %c0_86 = arith.constant 0 : index
    %c4_87 = arith.constant 4 : index
    %c0_88 = arith.constant 0 : index
    %459 = vector.load %arg8[%c0_86, %c4_87, %c0_88] : memref<4x8x64xf32, #tpu.memory_space<vmem>>, vector<4x1x32xf32>
    %460 = vector.shape_cast %459 : vector<4x1x32xf32> to vector<4x32xf32>
    %461 = vector.shape_cast %420 : vector<4x32xf32> to vector<4x1x32xf32>
    tpu.vector_store %arg8[%c0_86, %c4_87, %c0_88], %461 {strides = array<i32>} : memref<4x8x64xf32, #tpu.memory_space<vmem>>, vector<4x1x32xf32>,
    %c0_89 = arith.constant 0 : index
    %c3_90 = arith.constant 3 : index
    %c32_91 = arith.constant 32 : index
    %462 = vector.load %arg8[%c0_89, %c3_90, %c32_91] : memref<4x8x64xf32, #tpu.memory_space<vmem>>, vector<4x1x32xf32>
    %463 = vector.shape_cast %462 : vector<4x1x32xf32> to vector<4x32xf32>
    %464 = vector.shape_cast %458 : vector<4x32xf32> to vector<4x1x32xf32>
    tpu.vector_store %arg8[%c0_89, %c3_90, %c32_91], %464 {strides = array<i32>} : memref<4x8x64xf32, #tpu.memory_space<vmem>>, vector<4x1x32xf32>,
    %c5_i32_92 = arith.constant 5 : i32
    %465 = vector.broadcast %c5_i32_92 : i32 to vector<4x1xi32>
    %466 = arith.cmpi sgt, %8, %465 : vector<4x1xi32>
    %467 = arith.extui %466 : vector<4x1xi1> to vector<4x1xi32>
    %468 = arith.sitofp %467 : vector<4x1xi32> to vector<4x1xf32>
    %c2_i32_93 = arith.constant 2 : i32
    %469 = vector.broadcast %c2_i32_93 : i32 to vector<4x1xi32>
    %470 = arith.cmpi sgt, %8, %469 : vector<4x1xi32>
    %471 = arith.extui %470 : vector<4x1xi1> to vector<4x1xi32>
    %472 = arith.sitofp %471 : vector<4x1xi32> to vector<4x1xf32>
    %473 = vector.extract_strided_slice %7 {offsets = [0, 5, 0], sizes = [4, 1, 96], strides = [1, 1, 1]} : vector<4x8x192xf32> to vector<4x1x96xf32>
    %474 = vector.shape_cast %473 : vector<4x1x96xf32> to vector<4x96xf32>
    %cst_94 = arith.constant dense<0.000000e+00> : vector<4x96xf32>
    %475 = tpu.matmul %420, %9, %cst_94 {dimension_numbers = #tpu.dot_dimension_numbers<[1], [0], [0], [1], [0, 0, 1, 1], [], []>} : vector<4x32xf32>, vector<32x96xf32>, vector<4x96xf32> -> vector<4x96xf32>
    %476 = vector.broadcast %10 : vector<1x96xf32> to vector<4x96xf32>
    %477 = arith.addf %475, %476 : vector<4x96xf32>
    %478 = vector.extract_strided_slice %474 {offsets = [0, 0], sizes = [4, 32], strides = [1, 1]} : vector<4x96xf32> to vector<4x32xf32>
    %479 = vector.extract_strided_slice %477 {offsets = [0, 0], sizes = [4, 32], strides = [1, 1]} : vector<4x96xf32> to vector<4x32xf32>
    %480 = arith.addf %478, %479 : vector<4x32xf32>
    %481 = arith.negf %480 : vector<4x32xf32>
    %482 = math.exp %481 : vector<4x32xf32>
    %cst_95 = arith.constant 1.000000e+00 : f32
    %483 = vector.broadcast %cst_95 : f32 to vector<4x32xf32>
    %484 = arith.addf %483, %482 : vector<4x32xf32>
    %485 = arith.divf %483, %484 : vector<4x32xf32>
    %486 = vector.extract_strided_slice %474 {offsets = [0, 32], sizes = [4, 32], strides = [1, 1]} : vector<4x96xf32> to vector<4x32xf32>
    %487 = vector.extract_strided_slice %477 {offsets = [0, 32], sizes = [4, 32], strides = [1, 1]} : vector<4x96xf32> to vector<4x32xf32>
    %488 = arith.addf %486, %487 : vector<4x32xf32>
    %489 = arith.negf %488 : vector<4x32xf32>
    %490 = math.exp %489 : vector<4x32xf32>
    %cst_96 = arith.constant 1.000000e+00 : f32
    %491 = vector.broadcast %cst_96 : f32 to vector<4x32xf32>
    %492 = arith.addf %491, %490 : vector<4x32xf32>
    %493 = arith.divf %491, %492 : vector<4x32xf32>
    %494 = vector.extract_strided_slice %474 {offsets = [0, 64], sizes = [4, 32], strides = [1, 1]} : vector<4x96xf32> to vector<4x32xf32>
    %495 = vector.extract_strided_slice %477 {offsets = [0, 64], sizes = [4, 32], strides = [1, 1]} : vector<4x96xf32> to vector<4x32xf32>
    %496 = arith.mulf %485, %495 : vector<4x32xf32>
    %497 = arith.addf %494, %496 : vector<4x32xf32>
    %498 = math.tanh %497 : vector<4x32xf32>
    %cst_97 = arith.constant 1.000000e+00 : f32
    %499 = vector.broadcast %cst_97 : f32 to vector<4x32xf32>
    %500 = arith.subf %499, %493 : vector<4x32xf32>
    %501 = arith.mulf %500, %498 : vector<4x32xf32>
    %502 = arith.mulf %493, %420 : vector<4x32xf32>
    %503 = arith.addf %501, %502 : vector<4x32xf32>
    %504 = vector.broadcast %468 : vector<4x1xf32> to vector<4x32xf32>
    %505 = arith.mulf %504, %503 : vector<4x32xf32>
    %cst_98 = arith.constant 1.000000e+00 : f32
    %506 = vector.broadcast %cst_98 : f32 to vector<4x1xf32>
    %507 = arith.subf %506, %468 : vector<4x1xf32>
    %508 = vector.broadcast %507 : vector<4x1xf32> to vector<4x32xf32>
    %509 = arith.mulf %508, %420 : vector<4x32xf32>
    %510 = arith.addf %505, %509 : vector<4x32xf32>
    %511 = vector.extract_strided_slice %7 {offsets = [0, 2, 96], sizes = [4, 1, 96], strides = [1, 1, 1]} : vector<4x8x192xf32> to vector<4x1x96xf32>
    %512 = vector.shape_cast %511 : vector<4x1x96xf32> to vector<4x96xf32>
    %cst_99 = arith.constant dense<0.000000e+00> : vector<4x96xf32>
    %513 = tpu.matmul %458, %11, %cst_99 {dimension_numbers = #tpu.dot_dimension_numbers<[1], [0], [0], [1], [0, 0, 1, 1], [], []>} : vector<4x32xf32>, vector<32x96xf32>, vector<4x96xf32> -> vector<4x96xf32>
    %514 = vector.broadcast %12 : vector<1x96xf32> to vector<4x96xf32>
    %515 = arith.addf %513, %514 : vector<4x96xf32>
    %516 = vector.extract_strided_slice %512 {offsets = [0, 0], sizes = [4, 32], strides = [1, 1]} : vector<4x96xf32> to vector<4x32xf32>
    %517 = vector.extract_strided_slice %515 {offsets = [0, 0], sizes = [4, 32], strides = [1, 1]} : vector<4x96xf32> to vector<4x32xf32>
    %518 = arith.addf %516, %517 : vector<4x32xf32>
    %519 = arith.negf %518 : vector<4x32xf32>
    %520 = math.exp %519 : vector<4x32xf32>
    %cst_100 = arith.constant 1.000000e+00 : f32
    %521 = vector.broadcast %cst_100 : f32 to vector<4x32xf32>
    %522 = arith.addf %521, %520 : vector<4x32xf32>
    %523 = arith.divf %521, %522 : vector<4x32xf32>
    %524 = vector.extract_strided_slice %512 {offsets = [0, 32], sizes = [4, 32], strides = [1, 1]} : vector<4x96xf32> to vector<4x32xf32>
    %525 = vector.extract_strided_slice %515 {offsets = [0, 32], sizes = [4, 32], strides = [1, 1]} : vector<4x96xf32> to vector<4x32xf32>
    %526 = arith.addf %524, %525 : vector<4x32xf32>
    %527 = arith.negf %526 : vector<4x32xf32>
    %528 = math.exp %527 : vector<4x32xf32>
    %cst_101 = arith.constant 1.000000e+00 : f32
    %529 = vector.broadcast %cst_101 : f32 to vector<4x32xf32>
    %530 = arith.addf %529, %528 : vector<4x32xf32>
    %531 = arith.divf %529, %530 : vector<4x32xf32>
    %532 = vector.extract_strided_slice %512 {offsets = [0, 64], sizes = [4, 32], strides = [1, 1]} : vector<4x96xf32> to vector<4x32xf32>
    %533 = vector.extract_strided_slice %515 {offsets = [0, 64], sizes = [4, 32], strides = [1, 1]} : vector<4x96xf32> to vector<4x32xf32>
    %534 = arith.mulf %523, %533 : vector<4x32xf32>
    %535 = arith.addf %532, %534 : vector<4x32xf32>
    %536 = math.tanh %535 : vector<4x32xf32>
    %cst_102 = arith.constant 1.000000e+00 : f32
    %537 = vector.broadcast %cst_102 : f32 to vector<4x32xf32>
    %538 = arith.subf %537, %531 : vector<4x32xf32>
    %539 = arith.mulf %538, %536 : vector<4x32xf32>
    %540 = arith.mulf %531, %458 : vector<4x32xf32>
    %541 = arith.addf %539, %540 : vector<4x32xf32>
    %542 = vector.broadcast %472 : vector<4x1xf32> to vector<4x32xf32>
    %543 = arith.mulf %542, %541 : vector<4x32xf32>
    %cst_103 = arith.constant 1.000000e+00 : f32
    %544 = vector.broadcast %cst_103 : f32 to vector<4x1xf32>
    %545 = arith.subf %544, %472 : vector<4x1xf32>
    %546 = vector.broadcast %545 : vector<4x1xf32> to vector<4x32xf32>
    %547 = arith.mulf %546, %458 : vector<4x32xf32>
    %548 = arith.addf %543, %547 : vector<4x32xf32>
    %c0_104 = arith.constant 0 : index
    %c5_105 = arith.constant 5 : index
    %c0_106 = arith.constant 0 : index
    %549 = vector.load %arg8[%c0_104, %c5_105, %c0_106] : memref<4x8x64xf32, #tpu.memory_space<vmem>>, vector<4x1x32xf32>
    %550 = vector.shape_cast %549 : vector<4x1x32xf32> to vector<4x32xf32>
    %551 = vector.shape_cast %510 : vector<4x32xf32> to vector<4x1x32xf32>
    tpu.vector_store %arg8[%c0_104, %c5_105, %c0_106], %551 {strides = array<i32>} : memref<4x8x64xf32, #tpu.memory_space<vmem>>, vector<4x1x32xf32>,
    %c0_107 = arith.constant 0 : index
    %c2_108 = arith.constant 2 : index
    %c32_109 = arith.constant 32 : index
    %552 = vector.load %arg8[%c0_107, %c2_108, %c32_109] : memref<4x8x64xf32, #tpu.memory_space<vmem>>, vector<4x1x32xf32>
    %553 = vector.shape_cast %552 : vector<4x1x32xf32> to vector<4x32xf32>
    %554 = vector.shape_cast %548 : vector<4x32xf32> to vector<4x1x32xf32>
    tpu.vector_store %arg8[%c0_107, %c2_108, %c32_109], %554 {strides = array<i32>} : memref<4x8x64xf32, #tpu.memory_space<vmem>>, vector<4x1x32xf32>,
    %c6_i32_110 = arith.constant 6 : i32
    %555 = vector.broadcast %c6_i32_110 : i32 to vector<4x1xi32>
    %556 = arith.cmpi sgt, %8, %555 : vector<4x1xi32>
    %557 = arith.extui %556 : vector<4x1xi1> to vector<4x1xi32>
    %558 = arith.sitofp %557 : vector<4x1xi32> to vector<4x1xf32>
    %c1_i32_111 = arith.constant 1 : i32
    %559 = vector.broadcast %c1_i32_111 : i32 to vector<4x1xi32>
    %560 = arith.cmpi sgt, %8, %559 : vector<4x1xi32>
    %561 = arith.extui %560 : vector<4x1xi1> to vector<4x1xi32>
    %562 = arith.sitofp %561 : vector<4x1xi32> to vector<4x1xf32>
    %563 = vector.extract_strided_slice %7 {offsets = [0, 6, 0], sizes = [4, 1, 96], strides = [1, 1, 1]} : vector<4x8x192xf32> to vector<4x1x96xf32>
    %564 = vector.shape_cast %563 : vector<4x1x96xf32> to vector<4x96xf32>
    %cst_112 = arith.constant dense<0.000000e+00> : vector<4x96xf32>
    %565 = tpu.matmul %510, %9, %cst_112 {dimension_numbers = #tpu.dot_dimension_numbers<[1], [0], [0], [1], [0, 0, 1, 1], [], []>} : vector<4x32xf32>, vector<32x96xf32>, vector<4x96xf32> -> vector<4x96xf32>
    %566 = vector.broadcast %10 : vector<1x96xf32> to vector<4x96xf32>
    %567 = arith.addf %565, %566 : vector<4x96xf32>
    %568 = vector.extract_strided_slice %564 {offsets = [0, 0], sizes = [4, 32], strides = [1, 1]} : vector<4x96xf32> to vector<4x32xf32>
    %569 = vector.extract_strided_slice %567 {offsets = [0, 0], sizes = [4, 32], strides = [1, 1]} : vector<4x96xf32> to vector<4x32xf32>
    %570 = arith.addf %568, %569 : vector<4x32xf32>
    %571 = arith.negf %570 : vector<4x32xf32>
    %572 = math.exp %571 : vector<4x32xf32>
    %cst_113 = arith.constant 1.000000e+00 : f32
    %573 = vector.broadcast %cst_113 : f32 to vector<4x32xf32>
    %574 = arith.addf %573, %572 : vector<4x32xf32>
    %575 = arith.divf %573, %574 : vector<4x32xf32>
    %576 = vector.extract_strided_slice %564 {offsets = [0, 32], sizes = [4, 32], strides = [1, 1]} : vector<4x96xf32> to vector<4x32xf32>
    %577 = vector.extract_strided_slice %567 {offsets = [0, 32], sizes = [4, 32], strides = [1, 1]} : vector<4x96xf32> to vector<4x32xf32>
    %578 = arith.addf %576, %577 : vector<4x32xf32>
    %579 = arith.negf %578 : vector<4x32xf32>
    %580 = math.exp %579 : vector<4x32xf32>
    %cst_114 = arith.constant 1.000000e+00 : f32
    %581 = vector.broadcast %cst_114 : f32 to vector<4x32xf32>
    %582 = arith.addf %581, %580 : vector<4x32xf32>
    %583 = arith.divf %581, %582 : vector<4x32xf32>
    %584 = vector.extract_strided_slice %564 {offsets = [0, 64], sizes = [4, 32], strides = [1, 1]} : vector<4x96xf32> to vector<4x32xf32>
    %585 = vector.extract_strided_slice %567 {offsets = [0, 64], sizes = [4, 32], strides = [1, 1]} : vector<4x96xf32> to vector<4x32xf32>
    %586 = arith.mulf %575, %585 : vector<4x32xf32>
    %587 = arith.addf %584, %586 : vector<4x32xf32>
    %588 = math.tanh %587 : vector<4x32xf32>
    %cst_115 = arith.constant 1.000000e+00 : f32
    %589 = vector.broadcast %cst_115 : f32 to vector<4x32xf32>
    %590 = arith.subf %589, %583 : vector<4x32xf32>
    %591 = arith.mulf %590, %588 : vector<4x32xf32>
    %592 = arith.mulf %583, %510 : vector<4x32xf32>
    %593 = arith.addf %591, %592 : vector<4x32xf32>
    %594 = vector.broadcast %558 : vector<4x1xf32> to vector<4x32xf32>
    %595 = arith.mulf %594, %593 : vector<4x32xf32>
    %cst_116 = arith.constant 1.000000e+00 : f32
    %596 = vector.broadcast %cst_116 : f32 to vector<4x1xf32>
    %597 = arith.subf %596, %558 : vector<4x1xf32>
    %598 = vector.broadcast %597 : vector<4x1xf32> to vector<4x32xf32>
    %599 = arith.mulf %598, %510 : vector<4x32xf32>
    %600 = arith.addf %595, %599 : vector<4x32xf32>
    %601 = vector.extract_strided_slice %7 {offsets = [0, 1, 96], sizes = [4, 1, 96], strides = [1, 1, 1]} : vector<4x8x192xf32> to vector<4x1x96xf32>
    %602 = vector.shape_cast %601 : vector<4x1x96xf32> to vector<4x96xf32>
    %cst_117 = arith.constant dense<0.000000e+00> : vector<4x96xf32>
    %603 = tpu.matmul %548, %11, %cst_117 {dimension_numbers = #tpu.dot_dimension_numbers<[1], [0], [0], [1], [0, 0, 1, 1], [], []>} : vector<4x32xf32>, vector<32x96xf32>, vector<4x96xf32> -> vector<4x96xf32>
    %604 = vector.broadcast %12 : vector<1x96xf32> to vector<4x96xf32>
    %605 = arith.addf %603, %604 : vector<4x96xf32>
    %606 = vector.extract_strided_slice %602 {offsets = [0, 0], sizes = [4, 32], strides = [1, 1]} : vector<4x96xf32> to vector<4x32xf32>
    %607 = vector.extract_strided_slice %605 {offsets = [0, 0], sizes = [4, 32], strides = [1, 1]} : vector<4x96xf32> to vector<4x32xf32>
    %608 = arith.addf %606, %607 : vector<4x32xf32>
    %609 = arith.negf %608 : vector<4x32xf32>
    %610 = math.exp %609 : vector<4x32xf32>
    %cst_118 = arith.constant 1.000000e+00 : f32
    %611 = vector.broadcast %cst_118 : f32 to vector<4x32xf32>
    %612 = arith.addf %611, %610 : vector<4x32xf32>
    %613 = arith.divf %611, %612 : vector<4x32xf32>
    %614 = vector.extract_strided_slice %602 {offsets = [0, 32], sizes = [4, 32], strides = [1, 1]} : vector<4x96xf32> to vector<4x32xf32>
    %615 = vector.extract_strided_slice %605 {offsets = [0, 32], sizes = [4, 32], strides = [1, 1]} : vector<4x96xf32> to vector<4x32xf32>
    %616 = arith.addf %614, %615 : vector<4x32xf32>
    %617 = arith.negf %616 : vector<4x32xf32>
    %618 = math.exp %617 : vector<4x32xf32>
    %cst_119 = arith.constant 1.000000e+00 : f32
    %619 = vector.broadcast %cst_119 : f32 to vector<4x32xf32>
    %620 = arith.addf %619, %618 : vector<4x32xf32>
    %621 = arith.divf %619, %620 : vector<4x32xf32>
    %622 = vector.extract_strided_slice %602 {offsets = [0, 64], sizes = [4, 32], strides = [1, 1]} : vector<4x96xf32> to vector<4x32xf32>
    %623 = vector.extract_strided_slice %605 {offsets = [0, 64], sizes = [4, 32], strides = [1, 1]} : vector<4x96xf32> to vector<4x32xf32>
    %624 = arith.mulf %613, %623 : vector<4x32xf32>
    %625 = arith.addf %622, %624 : vector<4x32xf32>
    %626 = math.tanh %625 : vector<4x32xf32>
    %cst_120 = arith.constant 1.000000e+00 : f32
    %627 = vector.broadcast %cst_120 : f32 to vector<4x32xf32>
    %628 = arith.subf %627, %621 : vector<4x32xf32>
    %629 = arith.mulf %628, %626 : vector<4x32xf32>
    %630 = arith.mulf %621, %548 : vector<4x32xf32>
    %631 = arith.addf %629, %630 : vector<4x32xf32>
    %632 = vector.broadcast %562 : vector<4x1xf32> to vector<4x32xf32>
    %633 = arith.mulf %632, %631 : vector<4x32xf32>
    %cst_121 = arith.constant 1.000000e+00 : f32
    %634 = vector.broadcast %cst_121 : f32 to vector<4x1xf32>
    %635 = arith.subf %634, %562 : vector<4x1xf32>
    %636 = vector.broadcast %635 : vector<4x1xf32> to vector<4x32xf32>
    %637 = arith.mulf %636, %548 : vector<4x32xf32>
    %638 = arith.addf %633, %637 : vector<4x32xf32>
    %c0_122 = arith.constant 0 : index
    %c6_123 = arith.constant 6 : index
    %c0_124 = arith.constant 0 : index
    %639 = vector.load %arg8[%c0_122, %c6_123, %c0_124] : memref<4x8x64xf32, #tpu.memory_space<vmem>>, vector<4x1x32xf32>
    %640 = vector.shape_cast %639 : vector<4x1x32xf32> to vector<4x32xf32>
    %641 = vector.shape_cast %600 : vector<4x32xf32> to vector<4x1x32xf32>
    tpu.vector_store %arg8[%c0_122, %c6_123, %c0_124], %641 {strides = array<i32>} : memref<4x8x64xf32, #tpu.memory_space<vmem>>, vector<4x1x32xf32>,
    %c0_125 = arith.constant 0 : index
    %c1_126 = arith.constant 1 : index
    %c32_127 = arith.constant 32 : index
    %642 = vector.load %arg8[%c0_125, %c1_126, %c32_127] : memref<4x8x64xf32, #tpu.memory_space<vmem>>, vector<4x1x32xf32>
    %643 = vector.shape_cast %642 : vector<4x1x32xf32> to vector<4x32xf32>
    %644 = vector.shape_cast %638 : vector<4x32xf32> to vector<4x1x32xf32>
    tpu.vector_store %arg8[%c0_125, %c1_126, %c32_127], %644 {strides = array<i32>} : memref<4x8x64xf32, #tpu.memory_space<vmem>>, vector<4x1x32xf32>,
    %c7_i32_128 = arith.constant 7 : i32
    %645 = vector.broadcast %c7_i32_128 : i32 to vector<4x1xi32>
    %646 = arith.cmpi sgt, %8, %645 : vector<4x1xi32>
    %647 = arith.extui %646 : vector<4x1xi1> to vector<4x1xi32>
    %648 = arith.sitofp %647 : vector<4x1xi32> to vector<4x1xf32>
    %c0_i32_129 = arith.constant 0 : i32
    %649 = vector.broadcast %c0_i32_129 : i32 to vector<4x1xi32>
    %650 = arith.cmpi sgt, %8, %649 : vector<4x1xi32>
    %651 = arith.extui %650 : vector<4x1xi1> to vector<4x1xi32>
    %652 = arith.sitofp %651 : vector<4x1xi32> to vector<4x1xf32>
    %653 = vector.extract_strided_slice %7 {offsets = [0, 7, 0], sizes = [4, 1, 96], strides = [1, 1, 1]} : vector<4x8x192xf32> to vector<4x1x96xf32>
    %654 = vector.shape_cast %653 : vector<4x1x96xf32> to vector<4x96xf32>
    %cst_130 = arith.constant dense<0.000000e+00> : vector<4x96xf32>
    %655 = tpu.matmul %600, %9, %cst_130 {dimension_numbers = #tpu.dot_dimension_numbers<[1], [0], [0], [1], [0, 0, 1, 1], [], []>} : vector<4x32xf32>, vector<32x96xf32>, vector<4x96xf32> -> vector<4x96xf32>
    %656 = vector.broadcast %10 : vector<1x96xf32> to vector<4x96xf32>
    %657 = arith.addf %655, %656 : vector<4x96xf32>
    %658 = vector.extract_strided_slice %654 {offsets = [0, 0], sizes = [4, 32], strides = [1, 1]} : vector<4x96xf32> to vector<4x32xf32>
    %659 = vector.extract_strided_slice %657 {offsets = [0, 0], sizes = [4, 32], strides = [1, 1]} : vector<4x96xf32> to vector<4x32xf32>
    %660 = arith.addf %658, %659 : vector<4x32xf32>
    %661 = arith.negf %660 : vector<4x32xf32>
    %662 = math.exp %661 : vector<4x32xf32>
    %cst_131 = arith.constant 1.000000e+00 : f32
    %663 = vector.broadcast %cst_131 : f32 to vector<4x32xf32>
    %664 = arith.addf %663, %662 : vector<4x32xf32>
    %665 = arith.divf %663, %664 : vector<4x32xf32>
    %666 = vector.extract_strided_slice %654 {offsets = [0, 32], sizes = [4, 32], strides = [1, 1]} : vector<4x96xf32> to vector<4x32xf32>
    %667 = vector.extract_strided_slice %657 {offsets = [0, 32], sizes = [4, 32], strides = [1, 1]} : vector<4x96xf32> to vector<4x32xf32>
    %668 = arith.addf %666, %667 : vector<4x32xf32>
    %669 = arith.negf %668 : vector<4x32xf32>
    %670 = math.exp %669 : vector<4x32xf32>
    %cst_132 = arith.constant 1.000000e+00 : f32
    %671 = vector.broadcast %cst_132 : f32 to vector<4x32xf32>
    %672 = arith.addf %671, %670 : vector<4x32xf32>
    %673 = arith.divf %671, %672 : vector<4x32xf32>
    %674 = vector.extract_strided_slice %654 {offsets = [0, 64], sizes = [4, 32], strides = [1, 1]} : vector<4x96xf32> to vector<4x32xf32>
    %675 = vector.extract_strided_slice %657 {offsets = [0, 64], sizes = [4, 32], strides = [1, 1]} : vector<4x96xf32> to vector<4x32xf32>
    %676 = arith.mulf %665, %675 : vector<4x32xf32>
    %677 = arith.addf %674, %676 : vector<4x32xf32>
    %678 = math.tanh %677 : vector<4x32xf32>
    %cst_133 = arith.constant 1.000000e+00 : f32
    %679 = vector.broadcast %cst_133 : f32 to vector<4x32xf32>
    %680 = arith.subf %679, %673 : vector<4x32xf32>
    %681 = arith.mulf %680, %678 : vector<4x32xf32>
    %682 = arith.mulf %673, %600 : vector<4x32xf32>
    %683 = arith.addf %681, %682 : vector<4x32xf32>
    %684 = vector.broadcast %648 : vector<4x1xf32> to vector<4x32xf32>
    %685 = arith.mulf %684, %683 : vector<4x32xf32>
    %cst_134 = arith.constant 1.000000e+00 : f32
    %686 = vector.broadcast %cst_134 : f32 to vector<4x1xf32>
    %687 = arith.subf %686, %648 : vector<4x1xf32>
    %688 = vector.broadcast %687 : vector<4x1xf32> to vector<4x32xf32>
    %689 = arith.mulf %688, %600 : vector<4x32xf32>
    %690 = arith.addf %685, %689 : vector<4x32xf32>
    %691 = vector.extract_strided_slice %7 {offsets = [0, 0, 96], sizes = [4, 1, 96], strides = [1, 1, 1]} : vector<4x8x192xf32> to vector<4x1x96xf32>
    %692 = vector.shape_cast %691 : vector<4x1x96xf32> to vector<4x96xf32>
    %cst_135 = arith.constant dense<0.000000e+00> : vector<4x96xf32>
    %693 = tpu.matmul %638, %11, %cst_135 {dimension_numbers = #tpu.dot_dimension_numbers<[1], [0], [0], [1], [0, 0, 1, 1], [], []>} : vector<4x32xf32>, vector<32x96xf32>, vector<4x96xf32> -> vector<4x96xf32>
    %694 = vector.broadcast %12 : vector<1x96xf32> to vector<4x96xf32>
    %695 = arith.addf %693, %694 : vector<4x96xf32>
    %696 = vector.extract_strided_slice %692 {offsets = [0, 0], sizes = [4, 32], strides = [1, 1]} : vector<4x96xf32> to vector<4x32xf32>
    %697 = vector.extract_strided_slice %695 {offsets = [0, 0], sizes = [4, 32], strides = [1, 1]} : vector<4x96xf32> to vector<4x32xf32>
    %698 = arith.addf %696, %697 : vector<4x32xf32>
    %699 = arith.negf %698 : vector<4x32xf32>
    %700 = math.exp %699 : vector<4x32xf32>
    %cst_136 = arith.constant 1.000000e+00 : f32
    %701 = vector.broadcast %cst_136 : f32 to vector<4x32xf32>
    %702 = arith.addf %701, %700 : vector<4x32xf32>
    %703 = arith.divf %701, %702 : vector<4x32xf32>
    %704 = vector.extract_strided_slice %692 {offsets = [0, 32], sizes = [4, 32], strides = [1, 1]} : vector<4x96xf32> to vector<4x32xf32>
    %705 = vector.extract_strided_slice %695 {offsets = [0, 32], sizes = [4, 32], strides = [1, 1]} : vector<4x96xf32> to vector<4x32xf32>
    %706 = arith.addf %704, %705 : vector<4x32xf32>
    %707 = arith.negf %706 : vector<4x32xf32>
    %708 = math.exp %707 : vector<4x32xf32>
    %cst_137 = arith.constant 1.000000e+00 : f32
    %709 = vector.broadcast %cst_137 : f32 to vector<4x32xf32>
    %710 = arith.addf %709, %708 : vector<4x32xf32>
    %711 = arith.divf %709, %710 : vector<4x32xf32>
    %712 = vector.extract_strided_slice %692 {offsets = [0, 64], sizes = [4, 32], strides = [1, 1]} : vector<4x96xf32> to vector<4x32xf32>
    %713 = vector.extract_strided_slice %695 {offsets = [0, 64], sizes = [4, 32], strides = [1, 1]} : vector<4x96xf32> to vector<4x32xf32>
    %714 = arith.mulf %703, %713 : vector<4x32xf32>
    %715 = arith.addf %712, %714 : vector<4x32xf32>
    %716 = math.tanh %715 : vector<4x32xf32>
    %cst_138 = arith.constant 1.000000e+00 : f32
    %717 = vector.broadcast %cst_138 : f32 to vector<4x32xf32>
    %718 = arith.subf %717, %711 : vector<4x32xf32>
    %719 = arith.mulf %718, %716 : vector<4x32xf32>
    %720 = arith.mulf %711, %638 : vector<4x32xf32>
    %721 = arith.addf %719, %720 : vector<4x32xf32>
    %722 = vector.broadcast %652 : vector<4x1xf32> to vector<4x32xf32>
    %723 = arith.mulf %722, %721 : vector<4x32xf32>
    %cst_139 = arith.constant 1.000000e+00 : f32
    %724 = vector.broadcast %cst_139 : f32 to vector<4x1xf32>
    %725 = arith.subf %724, %652 : vector<4x1xf32>
    %726 = vector.broadcast %725 : vector<4x1xf32> to vector<4x32xf32>
    %727 = arith.mulf %726, %638 : vector<4x32xf32>
    %728 = arith.addf %723, %727 : vector<4x32xf32>
    %c0_140 = arith.constant 0 : index
    %c7_141 = arith.constant 7 : index
    %c0_142 = arith.constant 0 : index
    %729 = vector.load %arg8[%c0_140, %c7_141, %c0_142] : memref<4x8x64xf32, #tpu.memory_space<vmem>>, vector<4x1x32xf32>
    %730 = vector.shape_cast %729 : vector<4x1x32xf32> to vector<4x32xf32>
    %731 = vector.shape_cast %690 : vector<4x32xf32> to vector<4x1x32xf32>
    tpu.vector_store %arg8[%c0_140, %c7_141, %c0_142], %731 {strides = array<i32>} : memref<4x8x64xf32, #tpu.memory_space<vmem>>, vector<4x1x32xf32>,
    %c0_143 = arith.constant 0 : index
    %c0_144 = arith.constant 0 : index
    %c32_145 = arith.constant 32 : index
    %732 = vector.load %arg8[%c0_143, %c0_144, %c32_145] : memref<4x8x64xf32, #tpu.memory_space<vmem>>, vector<4x1x32xf32>
    %733 = vector.shape_cast %732 : vector<4x1x32xf32> to vector<4x32xf32>
    %734 = vector.shape_cast %728 : vector<4x32xf32> to vector<4x1x32xf32>
    tpu.vector_store %arg8[%c0_143, %c0_144, %c32_145], %734 {strides = array<i32>} : memref<4x8x64xf32, #tpu.memory_space<vmem>>, vector<4x1x32xf32>,
    return
  }
}

</mosaic_0001>

<llo_original>
// kernel: word_attention_forward.5
$region0: #{word_attention_forward.5}
  #allocation0 [shape = 'u32[]', space=smem, size = 0x4, offset = 0x4, fixed_abs, tag = 'smem constant byte address 0x4 - core index']
  #allocation1 [shape = 'u32[144,128]{1,0:T(1,128)}', space=vmem, size = 0x12000, scoped, tag = 'internal scratch']
  %s0 = inlined_call_operand.vmem [shape: f32[4,8,64], index: 0, kind: input, shape index: {}]
  %s1 = inlined_call_operand.vmem [shape: s32[4,1,1], index: 1, kind: input, shape index: {}]
  %s2 = inlined_call_operand.vmem [shape: f32[64,32], index: 2, kind: input, shape index: {}]
  %s3 = inlined_call_operand.vmem [shape: f32[1,32], index: 3, kind: input, shape index: {}]
  %s4 = inlined_call_operand.vmem [shape: f32[1,1,32], index: 4, kind: input, shape index: {}]
  %s5 = inlined_call_operand.hbm [shape: f32[4,64], index: 5, kind: output, shape index: {0}]
  %s6 = inlined_call_operand.vmem [shape: f32[4,8,1], index: 6, kind: output, shape index: {1}]
  %7 = xla_tuple %s5, %s6
  %s8 = sld [smem:[#allocation0]]
  $region38: #{word_attention_forward.5} parent=0
    _
  %s10 = ssub.s32 1, %s8
  %s11 = scalar_select 0, %s10, %s8
  $region1: #{word_attention_forward.5} parent=0
    #allocation2 [shape = 'u8[2048]{0}', space=vmem, size = 0x800, scoped, tag = 'output window, operand 0, single buffered']
    #allocation3 [shape = 's32[1]{0}', space=sflag, size = 0x4, scoped, tag = 'scoped memory for word_attention_forward.5']
    %12 = vsyncpa [#allocation3], 0
    // Predicated region
    $region2: #{word_attention_forward.5} parent=1 // pred_check
      _
    $region3: #{word_attention_forward.5} parent=1 // pred_check_branch
      %14 = sbr.rel (0) target = $region5
    $region4: #{word_attention_forward.5} parent=1 // pred_region
      _
    $region5: #{word_attention_forward.5} parent=1 // pred_fallthru
      _
    // Predicated region
    $region6: #{word_attention_forward.5} parent=1 // pred_check
      _
    $region7: #{word_attention_forward.5} parent=1 // pred_check_branch
      %16 = sbr.rel (0) target = $region9
    $region8: #{word_attention_forward.5} parent=1 // pred_region
      _
    $region9: #{word_attention_forward.5} parent=1 // pred_fallthru
      _
    // Predicated region
    $region10: #{word_attention_forward.5} parent=1 // pred_check
      _
    $region11: #{word_attention_forward.5} parent=1 // pred_check_branch
      %18 = sbr.rel (0) target = $region13
    $region12: #{word_attention_forward.5} parent=1 // pred_region
      _
    $region13: #{word_attention_forward.5} parent=1 // pred_fallthru
      _
    // Predicated region
    $region14: #{word_attention_forward.5} parent=1 // pred_check
      _
    $region15: #{word_attention_forward.5} parent=1 // pred_check_branch
      %20 = sbr.rel (0) target = $region17
    $region16: #{word_attention_forward.5} parent=1 // pred_region
      _
    $region17: #{word_attention_forward.5} parent=1 // pred_fallthru
      _
    // Predicated region
    $region18: #{word_attention_forward.5} parent=1 // pred_check
      _
    $region19: #{word_attention_forward.5} parent=1 // pred_check_branch
      %22 = sbr.rel (0) target = $region21
    $region20: #{word_attention_forward.5} parent=1 // pred_region
      _
    $region21: #{word_attention_forward.5} parent=1 // pred_fallthru
      _
    %v23 = vld [vmem:[%s0] sm:$0xff]
    %v24 = vld [vmem:[%s0 + $0x8] sm:$0xff]
    %v25 = vld [vmem:[%s0 + $0x10] sm:$0xff]
    %v26 = vld [vmem:[%s0 + $0x18] sm:$0xff]
    %v27 = vld [vmem:[%s2] sm:$0xff]
    %v28 = vld [vmem:[%s2 + $0x8] sm:$0xff]
    %v29 = vld [vmem:[%s2 + $0x10] sm:$0xff]
    %v30 = vld [vmem:[%s2 + $0x18] sm:$0xff]
    %v31 = vld [vmem:[%s2 + $0x20] sm:$0xff]
    %v32 = vld [vmem:[%s2 + $0x28] sm:$0xff]
    %v33 = vld [vmem:[%s2 + $0x30] sm:$0xff]
    %v34 = vld [vmem:[%s2 + $0x38] sm:$0xff]
    %v35 = vld [vmem:[%s3] sm:$0x1]
    %v37 = vlaneseq
    %v38 = vshrl.u32 %v37, 7
    %v39 = vsub.s32 0, %v38
    %v40 = vrot.slane %v35, %v39
    %vm42 = vcmask 523264
    %v44 = vsel %vm42, %v23, 0
    %v47 = vsel %vm42, %v24, 0
    %v50 = vsel %vm42, %v25, 0
    %v53 = vsel %vm42, %v26, 0
    %55 = vmatprep.subr.mxu0 0.0
    %56 = vmatpush1.msra.mxu0 %v27
    %57 = vmatprep.subr.mxu0 0.0
    %58 = vmatpush1.msra.mxu0 %v28
    %59 = vmatprep.subr.mxu0 0.0
    %60 = vmatpush1.msra.mxu0 %v29
    %61 = vmatprep.subr.mxu0 0.0
    %62 = vmatpush1.msra.mxu0 %v30
    %63 = vmatprep.subr.mxu0 0.0
    %64 = vmatpush1.msra.mxu0 %v31
    %65 = vmatprep.subr.mxu0 0.0
    %66 = vmatpush1.msra.mxu0 %v32
    %67 = vmatprep.subr.mxu0 0.0
    %68 = vmatpush1.msra.mxu0 %v33
    %69 = vmatprep.subr.mxu0 0.0
    %70 = vmatpush1.msra.mxu0 %v34
    %71 = vmatprep.subr.mxu0 0.0
    %72 = vmatpush1.msra.mxu0 0.0
    %73 = vmatprep.subr.mxu0 0.0
    %74 = vmatpush1.msra.mxu0 0.0
    %75 = vmatprep.subr.mxu0 0.0
    %76 = vmatpush1.msra.mxu0 0.0
    %77 = vmatprep.subr.mxu0 0.0
    %78 = vmatpush1.msra.mxu0 0.0
    %79 = vmatprep.subr.mxu0 0.0
    %80 = vmatpush1.msra.mxu0 0.0
    %81 = vmatprep.subr.mxu0 0.0
    %82 = vmatpush1.msra.mxu0 0.0
    %83 = vmatprep.subr.mxu0 0.0
    %84 = vmatpush1.msra.mxu0 0.0
    %85 = vmatprep.subr.mxu0 0.0
    %86 = vmatpush1.msra.mxu0 0.0
    %87 = vmatprep.subr.mxu0 0.0
    %88 = vmatpush1.msra.mxu0 0.0
    %89 = vmatprep.subr.mxu0 0.0
    %90 = vmatpush1.msra.mxu0 0.0
    %91 = vmatprep.subr.mxu0 0.0
    %92 = vmatpush1.msra.mxu0 0.0
    %93 = vmatprep.subr.mxu0 0.0
    %94 = vmatpush1.msra.mxu0 0.0
    %95 = vmatprep.subr.mxu0 0.0
    %96 = vmatpush1.msra.mxu0 0.0
    %97 = vmatprep.subr.mxu0 0.0
    %98 = vmatpush1.msra.mxu0 0.0
    %99 = vmatprep.subr.mxu0 0.0
    %100 = vmatpush1.msra.mxu0 0.0
    %101 = vmatprep.subr.mxu0 0.0
    %102 = vmatpush1.msra.mxu0 0.0
    %103 = vmatprep.subr.mxu0 0.0
    %104 = vmatpush1.msra.mxu0 0.0
    %105 = vmatprep.subr.mxu0 0.0
    %106 = vmatpush1.msra.mxu0 0.0
    %107 = vmatprep.subr.mxu0 0.0
    %108 = vmatpush1.msra.mxu0 0.0
    %109 = vmatprep.subr.mxu0 0.0
    %110 = vmatpush1.msra.mxu0 0.0
    %111 = vmatprep.subr.mxu0 0.0
    %112 = vmatpush1.msra.mxu0 0.0
    %113 = vmatprep.subr.mxu0 0.0
    %114 = vmatpush1.msra.mxu0 0.0
    %115 = vmatprep.subr.mxu0 0.0
    %116 = vmatpush1.msra.mxu0 0.0
    %117 = vmatprep.subr.mxu0 0.0
    %118 = vmatpush1.msra.mxu0 0.0
    %119 = vmatprep.mubr.f32.mxu0 0.0
    %120 = vmatmul.mubr.f32.gmra.mrb[0].mxu0 %v44
    %v121 = vpop.f32.mrb[0].mxu0
    %v122 = vadd.f32 %v40, %v121
    %v123 = vpop.f32.mrb[0].mxu0
    %124 = vmatprep.mubr.f32.mxu0 0.0
    %125 = vmatmul.mubr.f32.gmra.mrb[0].mxu0 %v47
    %v126 = vpop.f32.mrb[0].mxu0
    %v127 = vadd.f32 %v40, %v126
    %v128 = vpop.f32.mrb[0].mxu0
    %129 = vmatprep.mubr.f32.mxu0 0.0
    %130 = vmatmul.mubr.f32.gmra.mrb[0].mxu0 %v50
    %v131 = vpop.f32.mrb[0].mxu0
    %v132 = vadd.f32 %v40, %v131
    %v133 = vpop.f32.mrb[0].mxu0
    %134 = vmatprep.mubr.f32.mxu0 0.0
    %135 = vmatmul.mubr.f32.gmra.mrb[0].mxu0 %v53
    %v136 = vpop.f32.mrb[0].mxu0
    %v137 = vadd.f32 %v40, %v136
    %v138 = vpop.f32.mrb[0].mxu0
    %139 = vdwg.mxu0
    %v140 = vtanh.pop %v122
    %v141 = vtanh.pop %v127
    %v142 = vtanh.pop %v132
    %v143 = vtanh.pop %v137
    %v144 = vld [vmem:[%s4] sm:$0x1]
    %v146 = vlaneseq
    %v147 = vshrl.u32 %v146, 7
    %v148 = vsub.s32 0, %v147
    %v149 = vrot.slane %v144, %v148
    %v151 = vmul.f32 %v140, %v149
    %v152 = vmul.f32 %v141, %v149
    %v153 = vmul.f32 %v142, %v149
    %v154 = vmul.f32 %v143, %v149
    %vm155 = vcmask 261120
    %v156 = vsel %vm155, %v151, 0.0
    %157 = vadd.xlane.f32.xlu0 %v156
    %v158 = vpop.xlane.xlu0 %157
    %v159 = vsel %vm155, %v152, 0.0
    %160 = vadd.xlane.f32.xlu0 %v159
    %v161 = vpop.xlane.xlu0 %160
    %v162 = vsel %vm155, %v153, 0.0
    %163 = vadd.xlane.f32.xlu0 %v162
    %v164 = vpop.xlane.xlu0 %163
    %v165 = vsel %vm155, %v154, 0.0
    %166 = vadd.xlane.f32.xlu0 %v165
    %v167 = vpop.xlane.xlu0 %166
    %v168 = vlaneseq
    %v169 = vshrl.u32 %v168, 7
    %v170 = vld [vmem:[%s1] sm:$0x1]
    %v171 = vld [vmem:[%s1 + $0x1] sm:$0x1]
    %v172 = vld [vmem:[%s1 + $0x2] sm:$0x1]
    %v173 = vld [vmem:[%s1 + $0x3] sm:$0x1]
    %v174 = vlaneseq
    %v175 = vshrl.u32 %v174, 7
    %v176 = vsub.s32 0, %v175
    %v177 = vrot.slane %v170, %v176
    %v178 = vlaneseq
    %v179 = vshrl.u32 %v178, 7
    %v180 = vsub.s32 0, %v179
    %v181 = vrot.slane %v171, %v180
    %v182 = vlaneseq
    %v183 = vshrl.u32 %v182, 7
    %v184 = vsub.s32 0, %v183
    %v185 = vrot.slane %v172, %v184
    %v186 = vlaneseq
    %v187 = vshrl.u32 %v186, 7
    %v188 = vsub.s32 0, %v187
    %v189 = vrot.slane %v173, %v188
    %vm190 = vcmp.lt.s32.totalorder %v169, %v177
    %vm191 = vcmp.lt.s32.totalorder %v169, %v181
    %vm192 = vcmp.lt.s32.totalorder %v169, %v185
    %vm193 = vcmp.lt.s32.totalorder %v169, %v189
    %v194 = vsel %vm190, 1, 0
    %v195 = vsel %vm191, 1, 0
    %v196 = vsel %vm192, 1, 0
    %v197 = vsel %vm193, 1, 0
    %v198 = vcvt.s32.f32 %v194
    %v199 = vcvt.s32.f32 %v195
    %v200 = vcvt.s32.f32 %v196
    %v201 = vcvt.s32.f32 %v197
    %v202 = vsel %vm190, %v158, -1e+30
    %v203 = vsel %vm191, %v161, -1e+30
    %v204 = vsel %vm192, %v164, -1e+30
    %v205 = vsel %vm193, %v167, -1e+30
    %vm206 = vcmask 7168
    %v207 = vsel %vm206, %v202, -inf
    %v208 = vrot.slane %v207, 4
    %v209 = vmax.f32 %v207, %v208
    %v210 = vrot.slane %v209, 2
    %v211 = vmax.f32 %v209, %v210
    %v212 = vrot.slane %v211, 1
    %v213 = vmax.f32 %v211, %v212
    %v214 = vsel %vm206, %v203, -inf
    %v215 = vrot.slane %v214, 4
    %v216 = vmax.f32 %v214, %v215
    %v217 = vrot.slane %v216, 2
    %v218 = vmax.f32 %v216, %v217
    %v219 = vrot.slane %v218, 1
    %v220 = vmax.f32 %v218, %v219
    %v221 = vsel %vm206, %v204, -inf
    %v222 = vrot.slane %v221, 4
    %v223 = vmax.f32 %v221, %v222
    %v224 = vrot.slane %v223, 2
    %v225 = vmax.f32 %v223, %v224
    %v226 = vrot.slane %v225, 1
    %v227 = vmax.f32 %v225, %v226
    %v228 = vsel %vm206, %v205, -inf
    %v229 = vrot.slane %v228, 4
    %v230 = vmax.f32 %v228, %v229
    %v231 = vrot.slane %v230, 2
    %v232 = vmax.f32 %v230, %v231
    %v233 = vrot.slane %v232, 1
    %v234 = vmax.f32 %v232, %v233
    %v235 = vsub.f32 %v202, %v213
    %v236 = vsub.f32 %v203, %v220
    %v237 = vsub.f32 %v204, %v227
    %v238 = vsub.f32 %v205, %v234
    %v239 = vmul.f32 %v235, 1.442695
    %v240 = vpow.pop %v239
    %v241 = vmul.f32 %v236, 1.442695
    %v242 = vpow.pop %v241
    %v243 = vmul.f32 %v237, 1.442695
    %v244 = vpow.pop %v243
    %v245 = vmul.f32 %v238, 1.442695
    %v246 = vpow.pop %v245
    %v247 = vmul.f32 %v240, %v198
    %v248 = vmul.f32 %v242, %v199
    %v249 = vmul.f32 %v244, %v200
    %v250 = vmul.f32 %v246, %v201
    %v251 = vsel %vm206, %v247, 0.0
    %v252 = vrot.slane %v251, 4
    %v253 = vadd.f32 %v251, %v252
    %v254 = vrot.slane %v253, 2
    %v255 = vadd.f32 %v253, %v254
    %v256 = vrot.slane %v255, 1
    %v257 = vadd.f32 %v255, %v256
    %v258 = vsel %vm206, %v248, 0.0
    %v259 = vrot.slane %v258, 4
    %v260 = vadd.f32 %v258, %v259
    %v261 = vrot.slane %v260, 2
    %v262 = vadd.f32 %v260, %v261
    %v263 = vrot.slane %v262, 1
    %v264 = vadd.f32 %v262, %v263
    %v265 = vsel %vm206, %v249, 0.0
    %v266 = vrot.slane %v265, 4
    %v267 = vadd.f32 %v265, %v266
    %v268 = vrot.slane %v267, 2
    %v269 = vadd.f32 %v267, %v268
    %v270 = vrot.slane %v269, 1
    %v271 = vadd.f32 %v269, %v270
    %v272 = vsel %vm206, %v250, 0.0
    %v273 = vrot.slane %v272, 4
    %v274 = vadd.f32 %v272, %v273
    %v275 = vrot.slane %v274, 2
    %v276 = vadd.f32 %v274, %v275
    %v277 = vrot.slane %v276, 1
    %v278 = vadd.f32 %v276, %v277
    %v279 = vmax.f32 %v257, 1e-30
    %v280 = vmax.f32 %v264, 1e-30
    %v281 = vmax.f32 %v271, 1e-30
    %v282 = vmax.f32 %v278, 1e-30
    %v283 = vrcp.pop %v279
    %v284 = vmul.f32 %v247, %v283
    %v285 = vrcp.pop %v280
    %v286 = vmul.f32 %v248, %v285
    %v287 = vrcp.pop %v281
    %v288 = vmul.f32 %v249, %v287
    %v289 = vrcp.pop %v282
    %v290 = vmul.f32 %v250, %v289
    %291 = vst.msk [vmem:[%s6] sm:$0xff] %vm206, %v284
    %292 = vst.msk [vmem:[%s6 + $0x8] sm:$0xff] %vm206, %v286
    %293 = vst.msk [vmem:[%s6 + $0x10] sm:$0xff] %vm206, %v288
    %294 = vst.msk [vmem:[%s6 + $0x18] sm:$0xff] %vm206, %v290
    %296 = vset.pattern.permute.xlu0 0
    %297 = vperm.xlu0 %296, %v284
    %v298 = vpop.permute.xlu0 %297
    %301 = vset.pattern.permute.xlu0 0
    %302 = vperm.xlu0 %301, %v286
    %v303 = vpop.permute.xlu0 %302
    %306 = vset.pattern.permute.xlu0 0
    %307 = vperm.xlu0 %306, %v288
    %v308 = vpop.permute.xlu0 %307
    %311 = vset.pattern.permute.xlu0 0
    %312 = vperm.xlu0 %311, %v290
    %v313 = vpop.permute.xlu0 %312
    %v315 = vmul.f32 %v298, %v23
    %v316 = vmul.f32 %v303, %v24
    %v317 = vmul.f32 %v308, %v25
    %v318 = vmul.f32 %v313, %v26
    %v319 = vsel %vm42, %v315, 0.0
    %v320 = vrot.slane %v319, 4
    %v321 = vadd.f32 %v319, %v320
    %v322 = vrot.slane %v321, 2
    %v323 = vadd.f32 %v321, %v322
    %v324 = vrot.slane %v323, 1
    %v325 = vadd.f32 %v323, %v324
    %v326 = vsel %vm42, %v316, 0.0
    %v327 = vrot.slane %v326, 4
    %v328 = vadd.f32 %v326, %v327
    %v329 = vrot.slane %v328, 2
    %v330 = vadd.f32 %v328, %v329
    %v331 = vrot.slane %v330, 1
    %v332 = vadd.f32 %v330, %v331
    %v333 = vsel %vm42, %v317, 0.0
    %v334 = vrot.slane %v333, 4
    %v335 = vadd.f32 %v333, %v334
    %v336 = vrot.slane %v335, 2
    %v337 = vadd.f32 %v335, %v336
    %v338 = vrot.slane %v337, 1
    %v339 = vadd.f32 %v337, %v338
    %v340 = vsel %vm42, %v318, 0.0
    %v341 = vrot.slane %v340, 4
    %v342 = vadd.f32 %v340, %v341
    %v343 = vrot.slane %v342, 2
    %v344 = vadd.f32 %v342, %v343
    %v345 = vrot.slane %v344, 1
    %v346 = vadd.f32 %v344, %v345
    %vm351 = vcmask 1041409
    %v352 = vsel %vm351, %v332, %v325
    %vm353 = vcmask 1042434
    %v354 = vsel %vm353, %v339, %v352
    %vm355 = vcmask 1043459
    %v356 = vsel %vm355, %v346, %v354
    %vm358 = vcmask 519168
    %359 = vst.msk [vmem:[#allocation2] sm:$0xf] %vm358, %v356
    // Predicated region
    $region22: #{word_attention_forward.5} parent=1 // pred_check
      _
    $region23: #{word_attention_forward.5} parent=1 // pred_check_branch
      %361 = sbr.rel (0) target = $region25
    $region24: #{word_attention_forward.5} parent=1 // pred_region
      %s363 = ssub.s32 64, 64
      %364 = vsyncadd [#allocation3], %s363
      %s366 = sshll.u32 [#allocation2], 4
      %s367 = int_to_ptr.vmem [resolvable:$true] %s366
      %369 = dma.vmem_to_hbm [thread:$0]  %s367, 64, %s5, [#allocation3]
    $region25: #{word_attention_forward.5} parent=1 // pred_fallthru
      _
    // Predicated region
    $region26: #{word_attention_forward.5} parent=1 // pred_check
      _
    $region27: #{word_attention_forward.5} parent=1 // pred_check_branch
      %371 = sbr.rel (0) target = $region29
    $region28: #{word_attention_forward.5} parent=1 // pred_region
      _
    $region29: #{word_attention_forward.5} parent=1 // pred_fallthru
      _
    // Predicated region
    $region30: #{word_attention_forward.5} parent=1 // pred_check
      _
    $region31: #{word_attention_forward.5} parent=1 // pred_check_branch
      %373 = sbr.rel (0) target = $region33
    $region32: #{word_attention_forward.5} parent=1 // pred_region
      %374 = dma.done [#allocation3], 64
    $region33: #{word_attention_forward.5} parent=1 // pred_fallthru
      _
    // Predicated region
    $region34: #{word_attention_forward.5} parent=1 // pred_check
      _
    $region35: #{word_attention_forward.5} parent=1 // pred_check_branch
      %376 = sbr.rel (0) target = $region37
    $region36: #{word_attention_forward.5} parent=1 // pred_region
      _
    $region37: #{word_attention_forward.5} parent=1 // pred_fallthru
      _
    %377 = vsyncpa [#allocation3], 1

// kernel: word_attention_forward.4
$region0: #{word_attention_forward.4}
  #allocation0 [shape = 'u32[]', space=smem, size = 0x4, offset = 0x4, fixed_abs, tag = 'smem constant byte address 0x4 - core index']
  #allocation1 [shape = 'u32[144,128]{1,0:T(1,128)}', space=vmem, size = 0x12000, scoped, tag = 'internal scratch']
  %s0 = inlined_call_operand.vmem [shape: f32[4,8,64], index: 0, kind: input, shape index: {}]
  %s1 = inlined_call_operand.vmem [shape: s32[4,1], index: 1, kind: input, shape index: {}]
  %s2 = inlined_call_operand.vmem [shape: f32[64,192], index: 2, kind: input, shape index: {}]
  %s3 = inlined_call_operand.vmem [shape: f32[1,192], index: 3, kind: input, shape index: {}]
  %s4 = inlined_call_operand.vmem [shape: f32[32,96], index: 4, kind: input, shape index: {}]
  %s5 = inlined_call_operand.vmem [shape: f32[1,96], index: 5, kind: input, shape index: {}]
  %s6 = inlined_call_operand.vmem [shape: f32[32,96], index: 6, kind: input, shape index: {}]
  %s7 = inlined_call_operand.vmem [shape: f32[1,96], index: 7, kind: input, shape index: {}]
  %s8 = inlined_call_operand.vmem [shape: f32[4,8,64], index: 8, kind: output, shape index: {}]
  %s9 = sld [smem:[#allocation0]]
  $region42: #{word_attention_forward.4} parent=0
    _
  %s11 = ssub.s32 1, %s9
  %s12 = scalar_select 0, %s11, %s9
  // Predicated region
  $region2: #{word_attention_forward.4} parent=0 // pred_check
    _
  $region3: #{word_attention_forward.4} parent=0 // pred_check_branch
    %14 = sbr.rel (0) target = $region5
  $region4: #{word_attention_forward.4} parent=0 // pred_region
    _
  $region5: #{word_attention_forward.4} parent=0 // pred_fallthru
    _
  // Predicated region
  $region6: #{word_attention_forward.4} parent=0 // pred_check
    _
  $region7: #{word_attention_forward.4} parent=0 // pred_check_branch
    %16 = sbr.rel (0) target = $region9
  $region8: #{word_attention_forward.4} parent=0 // pred_region
    _
  $region9: #{word_attention_forward.4} parent=0 // pred_fallthru
    _
  // Predicated region
  $region10: #{word_attention_forward.4} parent=0 // pred_check
    _
  $region11: #{word_attention_forward.4} parent=0 // pred_check_branch
    %18 = sbr.rel (0) target = $region13
  $region12: #{word_attention_forward.4} parent=0 // pred_region
    _
  $region13: #{word_attention_forward.4} parent=0 // pred_fallthru
    _
  // Predicated region
  $region14: #{word_attention_forward.4} parent=0 // pred_check
    _
  $region15: #{word_attention_forward.4} parent=0 // pred_check_branch
    %20 = sbr.rel (0) target = $region17
  $region16: #{word_attention_forward.4} parent=0 // pred_region
    _
  $region17: #{word_attention_forward.4} parent=0 // pred_fallthru
    _
  // Predicated region
  $region18: #{word_attention_forward.4} parent=0 // pred_check
    _
  $region19: #{word_attention_forward.4} parent=0 // pred_check_branch
    %22 = sbr.rel (0) target = $region21
  $region20: #{word_attention_forward.4} parent=0 // pred_region
    _
  $region21: #{word_attention_forward.4} parent=0 // pred_fallthru
    _
  // Predicated region
  $region22: #{word_attention_forward.4} parent=0 // pred_check
    _
  $region23: #{word_attention_forward.4} parent=0 // pred_check_branch
    %24 = sbr.rel (0) target = $region25
  $region24: #{word_attention_forward.4} parent=0 // pred_region
    _
  $region25: #{word_attention_forward.4} parent=0 // pred_fallthru
    _
  // Predicated region
  $region26: #{word_attention_forward.4} parent=0 // pred_check
    _
  $region27: #{word_attention_forward.4} parent=0 // pred_check_branch
    %26 = sbr.rel (0) target = $region29
  $region28: #{word_attention_forward.4} parent=0 // pred_region
    _
  $region29: #{word_attention_forward.4} parent=0 // pred_fallthru
    _
  // Predicated region
  $region30: #{word_attention_forward.4} parent=0 // pred_check
    _
  $region31: #{word_attention_forward.4} parent=0 // pred_check_branch
    %28 = sbr.rel (0) target = $region33
  $region32: #{word_attention_forward.4} parent=0 // pred_region
    _
  $region33: #{word_attention_forward.4} parent=0 // pred_fallthru
    _
  %v29 = vld [vmem:[%s0] sm:$0xff]
  %v30 = vld [vmem:[%s0 + $0x8] sm:$0xff]
  %v31 = vld [vmem:[%s0 + $0x10] sm:$0xff]
  %v32 = vld [vmem:[%s0 + $0x18] sm:$0xff]
  %v33 = vld [vmem:[%s2] sm:$0xff]
  %v34 = vld [vmem:[%s2 + $0x8] sm:$0xff]
  %v35 = vld [vmem:[%s2 + $0x10] sm:$0xff]
  %v36 = vld [vmem:[%s2 + $0x18] sm:$0xff]
  %v37 = vld [vmem:[%s2 + $0x20] sm:$0xff]
  %v38 = vld [vmem:[%s2 + $0x28] sm:$0xff]
  %v39 = vld [vmem:[%s2 + $0x30] sm:$0xff]
  %v40 = vld [vmem:[%s2 + $0x38] sm:$0xff]
  %v41 = vld [vmem:[%s2 + $0x40] sm:$0xff]
  %v42 = vld [vmem:[%s2 + $0x48] sm:$0xff]
  %v43 = vld [vmem:[%s2 + $0x50] sm:$0xff]
  %v44 = vld [vmem:[%s2 + $0x58] sm:$0xff]
  %v45 = vld [vmem:[%s2 + $0x60] sm:$0xff]
  %v46 = vld [vmem:[%s2 + $0x68] sm:$0xff]
  %v47 = vld [vmem:[%s2 + $0x70] sm:$0xff]
  %v48 = vld [vmem:[%s2 + $0x78] sm:$0xff]
  %v49 = vld [vmem:[%s3] sm:$0x3]
  %v51 = vlaneseq
  %v52 = vshrl.u32 %v51, 7
  %v53 = vsub.s32 0, %v52
  %v54 = vrot.slane %v49, %v53
  %v55 = vlaneseq
  %v56 = vshrl.u32 %v55, 7
  %v57 = vsub.s32 1, %v56
  %v58 = vrot.slane %v49, %v57
  %vm61 = vcmask 523264
  %v63 = vsel %vm61, %v29, 0
  %v66 = vsel %vm61, %v30, 0
  %v69 = vsel %vm61, %v31, 0
  %v72 = vsel %vm61, %v32, 0
  %74 = vmatprep.subr.mxu0 %v34
  %75 = vmatpush1.msra.mxu0 %v33
  %76 = vmatprep.subr.mxu0 %v36
  %77 = vmatpush1.msra.mxu0 %v35
  %78 = vmatprep.subr.mxu0 %v38
  %79 = vmatpush1.msra.mxu0 %v37
  %80 = vmatprep.subr.mxu0 %v40
  %81 = vmatpush1.msra.mxu0 %v39
  %82 = vmatprep.subr.mxu0 %v42
  %83 = vmatpush1.msra.mxu0 %v41
  %84 = vmatprep.subr.mxu0 %v44
  %85 = vmatpush1.msra.mxu0 %v43
  %86 = vmatprep.subr.mxu0 %v46
  %87 = vmatpush1.msra.mxu0 %v45
  %88 = vmatprep.subr.mxu0 %v48
  %89 = vmatpush1.msra.mxu0 %v47
  %90 = vmatprep.subr.mxu0 0.0
  %91 = vmatpush1.msra.mxu0 0.0
  %92 = vmatprep.subr.mxu0 0.0
  %93 = vmatpush1.msra.mxu0 0.0
  %94 = vmatprep.subr.mxu0 0.0
  %95 = vmatpush1.msra.mxu0 0.0
  %96 = vmatprep.subr.mxu0 0.0
  %97 = vmatpush1.msra.mxu0 0.0
  %98 = vmatprep.subr.mxu0 0.0
  %99 = vmatpush1.msra.mxu0 0.0
  %100 = vmatprep.subr.mxu0 0.0
  %101 = vmatpush1.msra.mxu0 0.0
  %102 = vmatprep.subr.mxu0 0.0
  %103 = vmatpush1.msra.mxu0 0.0
  %104 = vmatprep.subr.mxu0 0.0
  %105 = vmatpush1.msra.mxu0 0.0
  %106 = vmatprep.subr.mxu0 0.0
  %107 = vmatpush1.msra.mxu0 0.0
  %108 = vmatprep.subr.mxu0 0.0
  %109 = vmatpush1.msra.mxu0 0.0
  %110 = vmatprep.subr.mxu0 0.0
  %111 = vmatpush1.msra.mxu0 0.0
  %112 = vmatprep.subr.mxu0 0.0
  %113 = vmatpush1.msra.mxu0 0.0
  %114 = vmatprep.subr.mxu0 0.0
  %115 = vmatpush1.msra.mxu0 0.0
  %116 = vmatprep.subr.mxu0 0.0
  %117 = vmatpush1.msra.mxu0 0.0
  %118 = vmatprep.subr.mxu0 0.0
  %119 = vmatpush1.msra.mxu0 0.0
  %120 = vmatprep.subr.mxu0 0.0
  %121 = vmatpush1.msra.mxu0 0.0
  %122 = vmatprep.subr.mxu0 0.0
  %123 = vmatpush1.msra.mxu0 0.0
  %124 = vmatprep.subr.mxu0 0.0
  %125 = vmatpush1.msra.mxu0 0.0
  %126 = vmatprep.subr.mxu0 0.0
  %127 = vmatpush1.msra.mxu0 0.0
  %128 = vmatprep.subr.mxu0 0.0
  %129 = vmatpush1.msra.mxu0 0.0
  %130 = vmatprep.subr.mxu0 0.0
  %131 = vmatpush1.msra.mxu0 0.0
  %132 = vmatprep.subr.mxu0 0.0
  %133 = vmatpush1.msra.mxu0 0.0
  %134 = vmatprep.subr.mxu0 0.0
  %135 = vmatpush1.msra.mxu0 0.0
  %136 = vmatprep.subr.mxu0 0.0
  %137 = vmatpush1.msra.mxu0 0.0
  %138 = vmatprep.mubr.f32.mxu0 0.0
  %139 = vmatmul.mubr.f32.gmra.mrb[0].mxu0 %v63
  %v140 = vpop.f32.mrb[0].mxu0
  %v141 = vadd.f32 %v54, %v140
  %v142 = vpop.f32.mrb[0].mxu0
  %v143 = vadd.f32 %v58, %v142
  %144 = vmatprep.mubr.f32.mxu0 0.0
  %145 = vmatmul.mubr.f32.gmra.mrb[0].mxu0 %v66
  %v146 = vpop.f32.mrb[0].mxu0
  %v147 = vadd.f32 %v54, %v146
  %v148 = vpop.f32.mrb[0].mxu0
  %v149 = vadd.f32 %v58, %v148
  %150 = vmatprep.mubr.f32.mxu0 0.0
  %151 = vmatmul.mubr.f32.gmra.mrb[0].mxu0 %v69
  %v152 = vpop.f32.mrb[0].mxu0
  %v153 = vadd.f32 %v54, %v152
  %v154 = vpop.f32.mrb[0].mxu0
  %v155 = vadd.f32 %v58, %v154
  %156 = vmatprep.mubr.f32.mxu0 0.0
  %157 = vmatmul.mubr.f32.gmra.mrb[0].mxu0 %v72
  %v158 = vpop.f32.mrb[0].mxu0
  %v159 = vadd.f32 %v54, %v158
  %v160 = vpop.f32.mrb[0].mxu0
  %v161 = vadd.f32 %v58, %v160
  %162 = vdwg.mxu0
  %v163 = vld [vmem:[%s1] sm:$0xf]
  %v164 = vld [vmem:[%s4] sm:$0xff]
  %v165 = vld [vmem:[%s4 + $0x8] sm:$0xff]
  %v166 = vld [vmem:[%s4 + $0x10] sm:$0xff]
  %v167 = vld [vmem:[%s4 + $0x18] sm:$0xff]
  %v168 = vld [vmem:[%s5] sm:$0x1]
  %v169 = vld [vmem:[%s6] sm:$0xff]
  %v170 = vld [vmem:[%s6 + $0x8] sm:$0xff]
  %v171 = vld [vmem:[%s6 + $0x10] sm:$0xff]
  %v172 = vld [vmem:[%s6 + $0x18] sm:$0xff]
  %v173 = vld [vmem:[%s7] sm:$0x1]
  %vm174 = vcmp.gt.s32.totalorder %v163, 0
  %v175 = vsel %vm174, 1, 0
  %v176 = vcvt.s32.f32 %v175
  %vm177 = vcmp.gt.s32.totalorder %v163, 7
  %v178 = vsel %vm177, 1, 0
  %v179 = vcvt.s32.f32 %v178
  %v181 = vlaneseq
  %v182 = vshrl.u32 %v181, 7
  %v183 = vsub.s32 0, %v182
  %v184 = vrot.slane %v168, %v183
  %vm186 = vcmask 261120
  %v188 = vsel %vm186, 0.0, 0
  %190 = vmatprep.subr.mxu0 0.0
  %191 = vmatpush1.msra.mxu0 %v164
  %192 = vmatprep.subr.mxu0 0.0
  %193 = vmatpush1.msra.mxu0 %v165
  %194 = vmatprep.subr.mxu0 0.0
  %195 = vmatpush1.msra.mxu0 %v166
  %196 = vmatprep.subr.mxu0 0.0
  %197 = vmatpush1.msra.mxu0 %v167
  %198 = vmatprep.subr.mxu0 0.0
  %199 = vmatpush1.msra.mxu0 0.0
  %200 = vmatprep.subr.mxu0 0.0
  %201 = vmatpush1.msra.mxu0 0.0
  %202 = vmatprep.subr.mxu0 0.0
  %203 = vmatpush1.msra.mxu0 0.0
  %204 = vmatprep.subr.mxu0 0.0
  %205 = vmatpush1.msra.mxu0 0.0
  %206 = vmatprep.subr.mxu0 0.0
  %207 = vmatpush1.msra.mxu0 0.0
  %208 = vmatprep.subr.mxu0 0.0
  %209 = vmatpush1.msra.mxu0 0.0
  %210 = vmatprep.subr.mxu0 0.0
  %211 = vmatpush1.msra.mxu0 0.0
  %212 = vmatprep.subr.mxu0 0.0
  %213 = vmatpush1.msra.mxu0 0.0
  %214 = vmatprep.subr.mxu0 0.0
  %215 = vmatpush1.msra.mxu0 0.0
  %216 = vmatprep.subr.mxu0 0.0
  %217 = vmatpush1.msra.mxu0 0.0
  %218 = vmatprep.subr.mxu0 0.0
  %219 = vmatpush1.msra.mxu0 0.0
  %220 = vmatprep.subr.mxu0 0.0
  %221 = vmatpush1.msra.mxu0 0.0
  %222 = vmatprep.subr.mxu0 0.0
  %223 = vmatpush1.msra.mxu0 0.0
  %224 = vmatprep.subr.mxu0 0.0
  %225 = vmatpush1.msra.mxu0 0.0
  %226 = vmatprep.subr.mxu0 0.0
  %227 = vmatpush1.msra.mxu0 0.0
  %228 = vmatprep.subr.mxu0 0.0
  %229 = vmatpush1.msra.mxu0 0.0
  %230 = vmatprep.subr.mxu0 0.0
  %231 = vmatpush1.msra.mxu0 0.0
  %232 = vmatprep.subr.mxu0 0.0
  %233 = vmatpush1.msra.mxu0 0.0
  %234 = vmatprep.subr.mxu0 0.0
  %235 = vmatpush1.msra.mxu0 0.0
  %236 = vmatprep.subr.mxu0 0.0
  %237 = vmatpush1.msra.mxu0 0.0
  %238 = vmatprep.subr.mxu0 0.0
  %239 = vmatpush1.msra.mxu0 0.0
  %240 = vmatprep.subr.mxu0 0.0
  %241 = vmatpush1.msra.mxu0 0.0
  %242 = vmatprep.subr.mxu0 0.0
  %243 = vmatpush1.msra.mxu0 0.0
  %244 = vmatprep.subr.mxu0 0.0
  %245 = vmatpush1.msra.mxu0 0.0
  %246 = vmatprep.subr.mxu0 0.0
  %247 = vmatpush1.msra.mxu0 0.0
  %248 = vmatprep.subr.mxu0 0.0
  %249 = vmatpush1.msra.mxu0 0.0
  %250 = vmatprep.subr.mxu0 0.0
  %251 = vmatpush1.msra.mxu0 0.0
  %252 = vmatprep.subr.mxu0 0.0
  %253 = vmatpush1.msra.mxu0 0.0
  %254 = vmatprep.mubr.f32.mxu0 0.0
  %255 = vmatmul.mubr.f32.gmra.mrb[0].mxu0 %v188
  %v256 = vpop.f32.mrb[0].mxu0
  %v257 = vadd.f32 %v184, %v256
  %v258 = vpop.f32.mrb[0].mxu0
  %259 = vdwg.mxu0
  %v261 = vrot.slane %v257, 1
  %v262 = vrot.slane %v257, 2
  %v263 = vrot.slane %v257, 3
  %v268 = vadd.f32 %v141, %v257
  %v269 = vadd.f32 %v147, %v261
  %v270 = vadd.f32 %v153, %v262
  %v271 = vadd.f32 %v159, %v263
  %v272 = vxor.u32 %v268, 2147483648
  %v273 = vxor.u32 %v269, 2147483648
  %v274 = vxor.u32 %v270, 2147483648
  %v275 = vxor.u32 %v271, 2147483648
  %v276 = vmul.f32 %v272, 1.442695
  %v277 = vpow.pop %v276
  %v278 = vmul.f32 %v273, 1.442695
  %v279 = vpow.pop %v278
  %v280 = vmul.f32 %v274, 1.442695
  %v281 = vpow.pop %v280
  %v282 = vmul.f32 %v275, 1.442695
  %v283 = vpow.pop %v282
  %v284 = vadd.f32 %v277, 1.0
  %v285 = vadd.f32 %v279, 1.0
  %v286 = vadd.f32 %v281, 1.0
  %v287 = vadd.f32 %v283, 1.0
  %v288 = vrcp.pop %v284
  %v289 = vmul.f32 1.0, %v288
  %v290 = vrcp.pop %v285
  %v291 = vmul.f32 1.0, %v290
  %v292 = vrcp.pop %v286
  %v293 = vmul.f32 1.0, %v292
  %v294 = vrcp.pop %v287
  %v295 = vmul.f32 1.0, %v294
  %296 = vrot.lane.b32.xlu0 %v257, 64
  %v297 = vpop.permute.xlu0 %296
  %298 = vrot.lane.b32.xlu0 %v261, 64
  %v299 = vpop.permute.xlu0 %298
  %300 = vrot.lane.b32.xlu0 %v262, 64
  %v301 = vpop.permute.xlu0 %300
  %302 = vrot.lane.b32.xlu0 %v263, 64
  %v303 = vpop.permute.xlu0 %302
  %v308 = vmul.f32 %v289, %v297
  %v309 = vmul.f32 %v291, %v299
  %v310 = vmul.f32 %v293, %v301
  %v311 = vmul.f32 %v295, %v303
  %316 = vrot.lane.b32.xlu0 %v308, 64
  %v317 = vpop.permute.xlu0 %316
  %318 = vrot.lane.b32.xlu0 %v309, 64
  %v319 = vpop.permute.xlu0 %318
  %320 = vrot.lane.b32.xlu0 %v310, 64
  %v321 = vpop.permute.xlu0 %320
  %322 = vrot.lane.b32.xlu0 %v311, 64
  %v323 = vpop.permute.xlu0 %322
  %v328 = vadd.f32 %v141, %v317
  %v329 = vadd.f32 %v147, %v319
  %v330 = vadd.f32 %v153, %v321
  %v331 = vadd.f32 %v159, %v323
  %v332 = vtanh.pop %v328
  %v333 = vtanh.pop %v329
  %v334 = vtanh.pop %v330
  %v335 = vtanh.pop %v331
  %v336 = vsub.f32 1.0, %v289
  %v337 = vsub.f32 1.0, %v291
  %v338 = vsub.f32 1.0, %v293
  %v339 = vsub.f32 1.0, %v295
  %344 = vrot.lane.b32.xlu0 %v332, 96
  %v345 = vpop.permute.xlu0 %344
  %346 = vrot.lane.b32.xlu0 %v333, 96
  %v347 = vpop.permute.xlu0 %346
  %348 = vrot.lane.b32.xlu0 %v334, 96
  %v349 = vpop.permute.xlu0 %348
  %350 = vrot.lane.b32.xlu0 %v335, 96
  %v351 = vpop.permute.xlu0 %350
  %v356 = vmul.f32 %v336, %v345
  %v357 = vmul.f32 %v337, %v347
  %v358 = vmul.f32 %v338, %v349
  %v359 = vmul.f32 %v339, %v351
  %v360 = vmul.f32 %v289, 0.0
  %v361 = vmul.f32 %v291, 0.0
  %v362 = vmul.f32 %v293, 0.0
  %v363 = vmul.f32 %v295, 0.0
  %v364 = vadd.f32 %v356, %v360
  %v365 = vadd.f32 %v357, %v361
  %v366 = vadd.f32 %v358, %v362
  %v367 = vadd.f32 %v359, %v363
  %369 = vset.pattern.permute.xlu0 0
  %370 = vperm.xlu0 %369, %v176
  %v371 = vpop.permute.xlu0 %370
  %v377 = vrot.slane %v365, 7
  %vm378 = vcmask 1041409
  %v379 = vsel %vm378, %v377, %v364
  %v380 = vrot.slane %v366, 6
  %vm381 = vcmask 1042434
  %v382 = vsel %vm381, %v380, %v379
  %v383 = vrot.slane %v367, 5
  %vm384 = vcmask 1043459
  %v385 = vsel %vm384, %v383, %v382
  %386 = vrot.lane.b32.xlu0 %v385, 96
  %v387 = vpop.permute.xlu0 %386
  %v389 = vmul.f32 %v371, %v387
  %v390 = vsub.f32 1.0, %v176
  %392 = vset.pattern.permute.xlu0 0
  %393 = vperm.xlu0 %392, %v390
  %v394 = vpop.permute.xlu0 %393
  %v396 = vmul.f32 %v394, 0.0
  %v397 = vadd.f32 %v389, %v396
  %v399 = vlaneseq
  %v400 = vshrl.u32 %v399, 7
  %v401 = vsub.s32 0, %v400
  %v402 = vrot.slane %v173, %v401
  %404 = vmatprep.subr.mxu0 0.0
  %405 = vmatpush1.msra.mxu0 %v169
  %406 = vmatprep.subr.mxu0 0.0
  %407 = vmatpush1.msra.mxu0 %v170
  %408 = vmatprep.subr.mxu0 0.0
  %409 = vmatpush1.msra.mxu0 %v171
  %410 = vmatprep.subr.mxu0 0.0
  %411 = vmatpush1.msra.mxu0 %v172
  %412 = vmatprep.subr.mxu0 0.0
  %413 = vmatpush1.msra.mxu0 0.0
  %414 = vmatprep.subr.mxu0 0.0
  %415 = vmatpush1.msra.mxu0 0.0
  %416 = vmatprep.subr.mxu0 0.0
  %417 = vmatpush1.msra.mxu0 0.0
  %418 = vmatprep.subr.mxu0 0.0
  %419 = vmatpush1.msra.mxu0 0.0
  %420 = vmatprep.subr.mxu0 0.0
  %421 = vmatpush1.msra.mxu0 0.0
  %422 = vmatprep.subr.mxu0 0.0
  %423 = vmatpush1.msra.mxu0 0.0
  %424 = vmatprep.subr.mxu0 0.0
  %425 = vmatpush1.msra.mxu0 0.0
  %426 = vmatprep.subr.mxu0 0.0
  %427 = vmatpush1.msra.mxu0 0.0
  %428 = vmatprep.subr.mxu0 0.0
  %429 = vmatpush1.msra.mxu0 0.0
  %430 = vmatprep.subr.mxu0 0.0
  %431 = vmatpush1.msra.mxu0 0.0
  %432 = vmatprep.subr.mxu0 0.0
  %433 = vmatpush1.msra.mxu0 0.0
  %434 = vmatprep.subr.mxu0 0.0
  %435 = vmatpush1.msra.mxu0 0.0
  %436 = vmatprep.subr.mxu0 0.0
  %437 = vmatpush1.msra.mxu0 0.0
  %438 = vmatprep.subr.mxu0 0.0
  %439 = vmatpush1.msra.mxu0 0.0
  %440 = vmatprep.subr.mxu0 0.0
  %441 = vmatpush1.msra.mxu0 0.0
  %442 = vmatprep.subr.mxu0 0.0
  %443 = vmatpush1.msra.mxu0 0.0
  %444 = vmatprep.subr.mxu0 0.0
  %445 = vmatpush1.msra.mxu0 0.0
  %446 = vmatprep.subr.mxu0 0.0
  %447 = vmatpush1.msra.mxu0 0.0
  %448 = vmatprep.subr.mxu0 0.0
  %449 = vmatpush1.msra.mxu0 0.0
  %450 = vmatprep.subr.mxu0 0.0
  %451 = vmatpush1.msra.mxu0 0.0
  %452 = vmatprep.subr.mxu0 0.0
  %453 = vmatpush1.msra.mxu0 0.0
  %454 = vmatprep.subr.mxu0 0.0
  %455 = vmatpush1.msra.mxu0 0.0
  %456 = vmatprep.subr.mxu0 0.0
  %457 = vmatpush1.msra.mxu0 0.0
  %458 = vmatprep.subr.mxu0 0.0
  %459 = vmatpush1.msra.mxu0 0.0
  %460 = vmatprep.subr.mxu0 0.0
  %461 = vmatpush1.msra.mxu0 0.0
  %462 = vmatprep.subr.mxu0 0.0
  %463 = vmatpush1.msra.mxu0 0.0
  %464 = vmatprep.subr.mxu0 0.0
  %465 = vmatpush1.msra.mxu0 0.0
  %466 = vmatprep.subr.mxu0 0.0
  %467 = vmatpush1.msra.mxu0 0.0
  %468 = vmatprep.mubr.f32.mxu0 0.0
  %469 = vmatmul.mubr.f32.gmra.mrb[0].mxu0 %v188
  %v470 = vpop.f32.mrb[0].mxu0
  %v471 = vadd.f32 %v402, %v470
  %v472 = vpop.f32.mrb[0].mxu0
  %473 = vdwg.mxu0
  %v475 = vrot.slane %v471, 1
  %v476 = vrot.slane %v471, 2
  %v477 = vrot.slane %v471, 3
  %v478 = vrot.slane %v471, 4
  %479 = vrot.lane.b32.xlu0 %v475, 96
  %v480 = vpop.permute.xlu0 %479
  %481 = vrot.lane.b32.xlu0 %v476, 96
  %v482 = vpop.permute.xlu0 %481
  %483 = vrot.lane.b32.xlu0 %v477, 96
  %v484 = vpop.permute.xlu0 %483
  %485 = vrot.lane.b32.xlu0 %v478, 96
  %v486 = vpop.permute.xlu0 %485
  %v491 = vadd.f32 %v141, %v480
  %v492 = vadd.f32 %v147, %v482
  %v493 = vadd.f32 %v153, %v484
  %v494 = vadd.f32 %v159, %v486
  %v495 = vxor.u32 %v491, 2147483648
  %v496 = vxor.u32 %v492, 2147483648
  %v497 = vxor.u32 %v493, 2147483648
  %v498 = vxor.u32 %v494, 2147483648
  %v499 = vmul.f32 %v495, 1.442695
  %v500 = vpow.pop %v499
  %v501 = vmul.f32 %v496, 1.442695
  %v502 = vpow.pop %v501
  %v503 = vmul.f32 %v497, 1.442695
  %v504 = vpow.pop %v503
  %v505 = vmul.f32 %v498, 1.442695
  %v506 = vpow.pop %v505
  %v507 = vadd.f32 %v500, 1.0
  %v508 = vadd.f32 %v502, 1.0
  %v509 = vadd.f32 %v504, 1.0
  %v510 = vadd.f32 %v506, 1.0
  %v511 = vrcp.pop %v507
  %v512 = vmul.f32 1.0, %v511
  %v513 = vrcp.pop %v508
  %v514 = vmul.f32 1.0, %v513
  %v515 = vrcp.pop %v509
  %v516 = vmul.f32 1.0, %v515
  %v517 = vrcp.pop %v510
  %v518 = vmul.f32 1.0, %v517
  %v519 = vadd.f32 %v143, %v480
  %v520 = vadd.f32 %v149, %v482
  %v521 = vadd.f32 %v155, %v484
  %v522 = vadd.f32 %v161, %v486
  %v523 = vxor.u32 %v519, 2147483648
  %v524 = vxor.u32 %v520, 2147483648
  %v525 = vxor.u32 %v521, 2147483648
  %v526 = vxor.u32 %v522, 2147483648
  %v527 = vmul.f32 %v523, 1.442695
  %v528 = vpow.pop %v527
  %v529 = vmul.f32 %v524, 1.442695
  %v530 = vpow.pop %v529
  %v531 = vmul.f32 %v525, 1.442695
  %v532 = vpow.pop %v531
  %v533 = vmul.f32 %v526, 1.442695
  %v534 = vpow.pop %v533
  %v535 = vadd.f32 %v528, 1.0
  %v536 = vadd.f32 %v530, 1.0
  %v537 = vadd.f32 %v532, 1.0
  %v538 = vadd.f32 %v534, 1.0
  %v539 = vrcp.pop %v535
  %v540 = vmul.f32 1.0, %v539
  %v541 = vrcp.pop %v536
  %v542 = vmul.f32 1.0, %v541
  %v543 = vrcp.pop %v537
  %v544 = vmul.f32 1.0, %v543
  %v545 = vrcp.pop %v538
  %v546 = vmul.f32 1.0, %v545
  %547 = vrot.lane.b32.xlu0 %v475, 32
  %v548 = vpop.permute.xlu0 %547
  %549 = vrot.lane.b32.xlu0 %v476, 32
  %v550 = vpop.permute.xlu0 %549
  %551 = vrot.lane.b32.xlu0 %v477, 32
  %v552 = vpop.permute.xlu0 %551
  %553 = vrot.lane.b32.xlu0 %v478, 32
  %v554 = vpop.permute.xlu0 %553
  %v559 = vmul.f32 %v512, %v548
  %v560 = vmul.f32 %v514, %v550
  %v561 = vmul.f32 %v516, %v552
  %v562 = vmul.f32 %v518, %v554
  %567 = vrot.lane.b32.xlu0 %v559, 64
  %v568 = vpop.permute.xlu0 %567
  %569 = vrot.lane.b32.xlu0 %v560, 64
  %v570 = vpop.permute.xlu0 %569
  %571 = vrot.lane.b32.xlu0 %v561, 64
  %v572 = vpop.permute.xlu0 %571
  %573 = vrot.lane.b32.xlu0 %v562, 64
  %v574 = vpop.permute.xlu0 %573
  %v579 = vadd.f32 %v143, %v568
  %v580 = vadd.f32 %v149, %v570
  %v581 = vadd.f32 %v155, %v572
  %v582 = vadd.f32 %v161, %v574
  %v583 = vtanh.pop %v579
  %v584 = vtanh.pop %v580
  %v585 = vtanh.pop %v581
  %v586 = vtanh.pop %v582
  %v587 = vsub.f32 1.0, %v540
  %v588 = vsub.f32 1.0, %v542
  %v589 = vsub.f32 1.0, %v544
  %v590 = vsub.f32 1.0, %v546
  %595 = vrot.lane.b32.xlu0 %v583, 96
  %v596 = vpop.permute.xlu0 %595
  %597 = vrot.lane.b32.xlu0 %v584, 96
  %v598 = vpop.permute.xlu0 %597
  %599 = vrot.lane.b32.xlu0 %v585, 96
  %v600 = vpop.permute.xlu0 %599
  %601 = vrot.lane.b32.xlu0 %v586, 96
  %v602 = vpop.permute.xlu0 %601
  %v607 = vmul.f32 %v587, %v596
  %v608 = vmul.f32 %v588, %v598
  %v609 = vmul.f32 %v589, %v600
  %v610 = vmul.f32 %v590, %v602
  %v611 = vmul.f32 %v540, 0.0
  %v612 = vmul.f32 %v542, 0.0
  %v613 = vmul.f32 %v544, 0.0
  %v614 = vmul.f32 %v546, 0.0
  %v615 = vadd.f32 %v607, %v611
  %v616 = vadd.f32 %v608, %v612
  %v617 = vadd.f32 %v609, %v613
  %v618 = vadd.f32 %v610, %v614
  %620 = vset.pattern.permute.xlu0 0
  %621 = vperm.xlu0 %620, %v179
  %v622 = vpop.permute.xlu0 %621
  %v628 = vrot.slane %v615, 7
  %v629 = vrot.slane %v616, 6
  %v630 = vsel %vm378, %v629, %v628
  %v631 = vrot.slane %v617, 5
  %v632 = vsel %vm381, %v631, %v630
  %v633 = vrot.slane %v618, 4
  %v634 = vsel %vm384, %v633, %v632
  %v636 = vmul.f32 %v622, %v634
  %v637 = vsub.f32 1.0, %v179
  %639 = vset.pattern.permute.xlu0 0
  %640 = vperm.xlu0 %639, %v637
  %v641 = vpop.permute.xlu0 %640
  %v643 = vmul.f32 %v641, 0.0
  %v644 = vadd.f32 %v636, %v643
  %v647 = vunpack.c.l.s4 1966171168
  %v648 = vunpack.c.0.s8 %v647
  %v649 = vlaneseq
  %v650 = vshrl.u32 %v649, 7
  %v651 = vsub.s32 %v648, %v650
  %v652 = vrot.slane %v397, %v651
  %v653 = vcombine.high %v652, %v652
  %v655 = vunpack.c.l.s4 1966171168
  %v656 = vunpack.c.0.s8 %v655
  %v657 = vlaneseq
  %v658 = vshrl.u32 %v657, 7
  %v659 = vsub.s32 %v656, %v658
  %v660 = vrot.slane %v652, %v659
  %v662 = vunpack.c.l.s4 1966171168
  %v663 = vunpack.c.0.s8 %v662
  %v664 = vlaneseq
  %v665 = vshrl.u32 %v664, 7
  %v666 = vsub.s32 %v663, %v665
  %v667 = vrot.slane %v653, %v666
  %v668 = vcombine.high %v660, %v660
  %v669 = vcombine.high %v667, %v667
  %vm674 = vcmask 253952
  %675 = vst.msk [vmem:[%s8] sm:$0x1] %vm674, %v660
  %676 = vst.msk [vmem:[%s8 + $0x8] sm:$0x1] %vm674, %v667
  %677 = vst.msk [vmem:[%s8 + $0x10] sm:$0x1] %vm674, %v668
  %678 = vst.msk [vmem:[%s8 + $0x18] sm:$0x1] %vm674, %v669
  %v681 = vunpack.c.l.s4 1966171168
  %v682 = vunpack.c.0.s8 %v681
  %v683 = vlaneseq
  %v684 = vshrl.u32 %v683, 7
  %v685 = vsub.s32 %v682, %v684
  %v686 = vrot.slane %v644, %v685
  %v687 = vcombine.high %v686, %v686
  %v689 = vunpack.c.l.s4 1966171168
  %v690 = vunpack.c.0.s8 %v689
  %v691 = vlaneseq
  %v692 = vshrl.u32 %v691, 7
  %v693 = vsub.s32 %v690, %v692
  %v694 = vrot.slane %v686, %v693
  %v696 = vunpack.c.l.s4 1966171168
  %v697 = vunpack.c.0.s8 %v696
  %v698 = vlaneseq
  %v699 = vshrl.u32 %v698, 7
  %v700 = vsub.s32 %v697, %v699
  %v701 = vrot.slane %v687, %v700
  %v702 = vcombine.high %v694, %v694
  %v703 = vcombine.high %v701, %v701
  %v704 = vlaneseq
  %v705 = vshrl.u32 %v704, 7
  %v706 = vsub.s32 0, %v705
  %v707 = vrot.slane %v694, %v706
  %v708 = vlaneseq
  %v709 = vshrl.u32 %v708, 7
  %v710 = vsub.s32 0, %v709
  %v711 = vrot.slane %v701, %v710
  %v712 = vlaneseq
  %v713 = vshrl.u32 %v712, 7
  %v714 = vsub.s32 0, %v713
  %v715 = vrot.slane %v702, %v714
  %v716 = vlaneseq
  %v717 = vshrl.u32 %v716, 7
  %v718 = vsub.s32 0, %v717
  %v719 = vrot.slane %v703, %v718
  %720 = vrot.lane.b32.xlu0 %v707, 32
  %v721 = vpop.permute.xlu0 %720
  %722 = vrot.lane.b32.xlu0 %v711, 32
  %v723 = vpop.permute.xlu0 %722
  %724 = vrot.lane.b32.xlu0 %v715, 32
  %v725 = vpop.permute.xlu0 %724
  %726 = vrot.lane.b32.xlu0 %v719, 32
  %v727 = vpop.permute.xlu0 %726
  %vm732 = vcmask 516352
  %733 = vst.msk [vmem:[%s8 + $0x7] sm:$0x1] %vm732, %v721
  %734 = vst.msk [vmem:[%s8 + $0xf] sm:$0x1] %vm732, %v723
  %735 = vst.msk [vmem:[%s8 + $0x17] sm:$0x1] %vm732, %v725
  %736 = vst.msk [vmem:[%s8 + $0x1f] sm:$0x1] %vm732, %v727
  %vm737 = vcmp.gt.s32.totalorder %v163, 1
  %v738 = vsel %vm737, 1, 0
  %v739 = vcvt.s32.f32 %v738
  %vm740 = vcmp.gt.s32.totalorder %v163, 6
  %v741 = vsel %vm740, 1, 0
  %v742 = vcvt.s32.f32 %v741
  %v743 = vsel %vm186, %v397, 0
  %745 = vmatprep.subr.mxu0 0.0
  %746 = vmatpush1.msra.mxu0 %v164
  %747 = vmatprep.subr.mxu0 0.0
  %748 = vmatpush1.msra.mxu0 %v165
  %749 = vmatprep.subr.mxu0 0.0
  %750 = vmatpush1.msra.mxu0 %v166
  %751 = vmatprep.subr.mxu0 0.0
  %752 = vmatpush1.msra.mxu0 %v167
  %753 = vmatprep.subr.mxu0 0.0
  %754 = vmatpush1.msra.mxu0 0.0
  %755 = vmatprep.subr.mxu0 0.0
  %756 = vmatpush1.msra.mxu0 0.0
  %757 = vmatprep.subr.mxu0 0.0
  %758 = vmatpush1.msra.mxu0 0.0
  %759 = vmatprep.subr.mxu0 0.0
  %760 = vmatpush1.msra.mxu0 0.0
  %761 = vmatprep.subr.mxu0 0.0
  %762 = vmatpush1.msra.mxu0 0.0
  %763 = vmatprep.subr.mxu0 0.0
  %764 = vmatpush1.msra.mxu0 0.0
  %765 = vmatprep.subr.mxu0 0.0
  %766 = vmatpush1.msra.mxu0 0.0
  %767 = vmatprep.subr.mxu0 0.0
  %768 = vmatpush1.msra.mxu0 0.0
  %769 = vmatprep.subr.mxu0 0.0
  %770 = vmatpush1.msra.mxu0 0.0
  %771 = vmatprep.subr.mxu0 0.0
  %772 = vmatpush1.msra.mxu0 0.0
  %773 = vmatprep.subr.mxu0 0.0
  %774 = vmatpush1.msra.mxu0 0.0
  %775 = vmatprep.subr.mxu0 0.0
  %776 = vmatpush1.msra.mxu0 0.0
  %777 = vmatprep.subr.mxu0 0.0
  %778 = vmatpush1.msra.mxu0 0.0
  %779 = vmatprep.subr.mxu0 0.0
  %780 = vmatpush1.msra.mxu0 0.0
  %781 = vmatprep.subr.mxu0 0.0
  %782 = vmatpush1.msra.mxu0 0.0
  %783 = vmatprep.subr.mxu0 0.0
  %784 = vmatpush1.msra.mxu0 0.0
  %785 = vmatprep.subr.mxu0 0.0
  %786 = vmatpush1.msra.mxu0 0.0
  %787 = vmatprep.subr.mxu0 0.0
  %788 = vmatpush1.msra.mxu0 0.0
  %789 = vmatprep.subr.mxu0 0.0
  %790 = vmatpush1.msra.mxu0 0.0
  %791 = vmatprep.subr.mxu0 0.0
  %792 = vmatpush1.msra.mxu0 0.0
  %793 = vmatprep.subr.mxu0 0.0
  %794 = vmatpush1.msra.mxu0 0.0
  %795 = vmatprep.subr.mxu0 0.0
  %796 = vmatpush1.msra.mxu0 0.0
  %797 = vmatprep.subr.mxu0 0.0
  %798 = vmatpush1.msra.mxu0 0.0
  %799 = vmatprep.subr.mxu0 0.0
  %800 = vmatpush1.msra.mxu0 0.0
  %801 = vmatprep.subr.mxu0 0.0
  %802 = vmatpush1.msra.mxu0 0.0
  %803 = vmatprep.subr.mxu0 0.0
  %804 = vmatpush1.msra.mxu0 0.0
  %805 = vmatprep.subr.mxu0 0.0
  %806 = vmatpush1.msra.mxu0 0.0
  %807 = vmatprep.subr.mxu0 0.0
  %808 = vmatpush1.msra.mxu0 0.0
  %809 = vmatprep.mubr.f32.mxu0 0.0
  %810 = vmatmul.mubr.f32.gmra.mrb[0].mxu0 %v743
  %v811 = vpop.f32.mrb[0].mxu0
  %v812 = vadd.f32 %v184, %v811
  %v813 = vpop.f32.mrb[0].mxu0
  %814 = vdwg.mxu0
  %v816 = vrot.slane %v812, 7
  %v817 = vrot.slane %v812, 1
  %v818 = vrot.slane %v812, 2
  %v823 = vadd.f32 %v141, %v816
  %v824 = vadd.f32 %v147, %v812
  %v825 = vadd.f32 %v153, %v817
  %v826 = vadd.f32 %v159, %v818
  %v827 = vxor.u32 %v823, 2147483648
  %v828 = vxor.u32 %v824, 2147483648
  %v829 = vxor.u32 %v825, 2147483648
  %v830 = vxor.u32 %v826, 2147483648
  %v831 = vmul.f32 %v827, 1.442695
  %v832 = vpow.pop %v831
  %v833 = vmul.f32 %v828, 1.442695
  %v834 = vpow.pop %v833
  %v835 = vmul.f32 %v829, 1.442695
  %v836 = vpow.pop %v835
  %v837 = vmul.f32 %v830, 1.442695
  %v838 = vpow.pop %v837
  %v839 = vadd.f32 %v832, 1.0
  %v840 = vadd.f32 %v834, 1.0
  %v841 = vadd.f32 %v836, 1.0
  %v842 = vadd.f32 %v838, 1.0
  %v843 = vrcp.pop %v839
  %v844 = vmul.f32 1.0, %v843
  %v845 = vrcp.pop %v840
  %v846 = vmul.f32 1.0, %v845
  %v847 = vrcp.pop %v841
  %v848 = vmul.f32 1.0, %v847
  %v849 = vrcp.pop %v842
  %v850 = vmul.f32 1.0, %v849
  %851 = vrot.lane.b32.xlu0 %v816, 64
  %v852 = vpop.permute.xlu0 %851
  %853 = vrot.lane.b32.xlu0 %v812, 64
  %v854 = vpop.permute.xlu0 %853
  %855 = vrot.lane.b32.xlu0 %v817, 64
  %v856 = vpop.permute.xlu0 %855
  %857 = vrot.lane.b32.xlu0 %v818, 64
  %v858 = vpop.permute.xlu0 %857
  %v863 = vmul.f32 %v844, %v852
  %v864 = vmul.f32 %v846, %v854
  %v865 = vmul.f32 %v848, %v856
  %v866 = vmul.f32 %v850, %v858
  %871 = vrot.lane.b32.xlu0 %v863, 64
  %v872 = vpop.permute.xlu0 %871
  %873 = vrot.lane.b32.xlu0 %v864, 64
  %v874 = vpop.permute.xlu0 %873
  %875 = vrot.lane.b32.xlu0 %v865, 64
  %v876 = vpop.permute.xlu0 %875
  %877 = vrot.lane.b32.xlu0 %v866, 64
  %v878 = vpop.permute.xlu0 %877
  %v883 = vadd.f32 %v141, %v872
  %v884 = vadd.f32 %v147, %v874
  %v885 = vadd.f32 %v153, %v876
  %v886 = vadd.f32 %v159, %v878
  %v887 = vtanh.pop %v883
  %v888 = vtanh.pop %v884
  %v889 = vtanh.pop %v885
  %v890 = vtanh.pop %v886
  %v891 = vsub.f32 1.0, %v844
  %v892 = vsub.f32 1.0, %v846
  %v893 = vsub.f32 1.0, %v848
  %v894 = vsub.f32 1.0, %v850
  %899 = vrot.lane.b32.xlu0 %v887, 96
  %v900 = vpop.permute.xlu0 %899
  %901 = vrot.lane.b32.xlu0 %v888, 96
  %v902 = vpop.permute.xlu0 %901
  %903 = vrot.lane.b32.xlu0 %v889, 96
  %v904 = vpop.permute.xlu0 %903
  %905 = vrot.lane.b32.xlu0 %v890, 96
  %v906 = vpop.permute.xlu0 %905
  %v911 = vmul.f32 %v891, %v900
  %v912 = vmul.f32 %v892, %v902
  %v913 = vmul.f32 %v893, %v904
  %v914 = vmul.f32 %v894, %v906
  %v915 = vrot.slane %v397, 7
  %v916 = vrot.slane %v397, 1
  %v917 = vrot.slane %v397, 2
  %918 = vrot.lane.b32.xlu0 %v915, 32
  %v919 = vpop.permute.xlu0 %918
  %920 = vrot.lane.b32.xlu0 %v397, 32
  %v921 = vpop.permute.xlu0 %920
  %922 = vrot.lane.b32.xlu0 %v916, 32
  %v923 = vpop.permute.xlu0 %922
  %924 = vrot.lane.b32.xlu0 %v917, 32
  %v925 = vpop.permute.xlu0 %924
  %v930 = vmul.f32 %v844, %v919
  %v931 = vmul.f32 %v846, %v921
  %v932 = vmul.f32 %v848, %v923
  %v933 = vmul.f32 %v850, %v925
  %v934 = vadd.f32 %v911, %v930
  %v935 = vadd.f32 %v912, %v931
  %v936 = vadd.f32 %v913, %v932
  %v937 = vadd.f32 %v914, %v933
  %939 = vset.pattern.permute.xlu0 0
  %940 = vperm.xlu0 %939, %v739
  %v941 = vpop.permute.xlu0 %940
  %v947 = vrot.slane %v934, 1
  %v948 = vsel %vm378, %v935, %v947
  %v949 = vrot.slane %v936, 7
  %v950 = vsel %vm381, %v949, %v948
  %v951 = vrot.slane %v937, 6
  %v952 = vsel %vm384, %v951, %v950
  %953 = vrot.lane.b32.xlu0 %v952, 96
  %v954 = vpop.permute.xlu0 %953
  %v956 = vmul.f32 %v941, %v954
  %v957 = vsub.f32 1.0, %v739
  %959 = vset.pattern.permute.xlu0 0
  %960 = vperm.xlu0 %959, %v957
  %v961 = vpop.permute.xlu0 %960
  %v963 = vmul.f32 %v961, %v397
  %v964 = vadd.f32 %v956, %v963
  %v965 = vsel %vm186, %v644, 0
  %967 = vmatprep.subr.mxu0 0.0
  %968 = vmatpush1.msra.mxu0 %v169
  %969 = vmatprep.subr.mxu0 0.0
  %970 = vmatpush1.msra.mxu0 %v170
  %971 = vmatprep.subr.mxu0 0.0
  %972 = vmatpush1.msra.mxu0 %v171
  %973 = vmatprep.subr.mxu0 0.0
  %974 = vmatpush1.msra.mxu0 %v172
  %975 = vmatprep.subr.mxu0 0.0
  %976 = vmatpush1.msra.mxu0 0.0
  %977 = vmatprep.subr.mxu0 0.0
  %978 = vmatpush1.msra.mxu0 0.0
  %979 = vmatprep.subr.mxu0 0.0
  %980 = vmatpush1.msra.mxu0 0.0
  %981 = vmatprep.subr.mxu0 0.0
  %982 = vmatpush1.msra.mxu0 0.0
  %983 = vmatprep.subr.mxu0 0.0
  %984 = vmatpush1.msra.mxu0 0.0
  %985 = vmatprep.subr.mxu0 0.0
  %986 = vmatpush1.msra.mxu0 0.0
  %987 = vmatprep.subr.mxu0 0.0
  %988 = vmatpush1.msra.mxu0 0.0
  %989 = vmatprep.subr.mxu0 0.0
  %990 = vmatpush1.msra.mxu0 0.0
  %991 = vmatprep.subr.mxu0 0.0
  %992 = vmatpush1.msra.mxu0 0.0
  %993 = vmatprep.subr.mxu0 0.0
  %994 = vmatpush1.msra.mxu0 0.0
  %995 = vmatprep.subr.mxu0 0.0
  %996 = vmatpush1.msra.mxu0 0.0
  %997 = vmatprep.subr.mxu0 0.0
  %998 = vmatpush1.msra.mxu0 0.0
  %999 = vmatprep.subr.mxu0 0.0
  %1000 = vmatpush1.msra.mxu0 0.0
  %1001 = vmatprep.subr.mxu0 0.0
  %1002 = vmatpush1.msra.mxu0 0.0
  %1003 = vmatprep.subr.mxu0 0.0
  %1004 = vmatpush1.msra.mxu0 0.0
  %1005 = vmatprep.subr.mxu0 0.0
  %1006 = vmatpush1.msra.mxu0 0.0
  %1007 = vmatprep.subr.mxu0 0.0
  %1008 = vmatpush1.msra.mxu0 0.0
  %1009 = vmatprep.subr.mxu0 0.0
  %1010 = vmatpush1.msra.mxu0 0.0
  %1011 = vmatprep.subr.mxu0 0.0
  %1012 = vmatpush1.msra.mxu0 0.0
  %1013 = vmatprep.subr.mxu0 0.0
  %1014 = vmatpush1.msra.mxu0 0.0
  %1015 = vmatprep.subr.mxu0 0.0
  %1016 = vmatpush1.msra.mxu0 0.0
  %1017 = vmatprep.subr.mxu0 0.0
  %1018 = vmatpush1.msra.mxu0 0.0
  %1019 = vmatprep.subr.mxu0 0.0
  %1020 = vmatpush1.msra.mxu0 0.0
  %1021 = vmatprep.subr.mxu0 0.0
  %1022 = vmatpush1.msra.mxu0 0.0
  %1023 = vmatprep.subr.mxu0 0.0
  %1024 = vmatpush1.msra.mxu0 0.0
  %1025 = vmatprep.subr.mxu0 0.0
  %1026 = vmatpush1.msra.mxu0 0.0
  %1027 = vmatprep.subr.mxu0 0.0
  %1028 = vmatpush1.msra.mxu0 0.0
  %1029 = vmatprep.subr.mxu0 0.0
  %1030 = vmatpush1.msra.mxu0 0.0
  %1031 = vmatprep.mubr.f32.mxu0 0.0
  %1032 = vmatmul.mubr.f32.gmra.mrb[0].mxu0 %v965
  %v1033 = vpop.f32.mrb[0].mxu0
  %v1034 = vadd.f32 %v402, %v1033
  %v1035 = vpop.f32.mrb[0].mxu0
  %1036 = vdwg.mxu0
  %v1038 = vrot.slane %v1034, 2
  %v1039 = vrot.slane %v1034, 3
  %v1040 = vrot.slane %v1034, 4
  %v1041 = vrot.slane %v1034, 5
  %1042 = vrot.lane.b32.xlu0 %v1038, 96
  %v1043 = vpop.permute.xlu0 %1042
  %1044 = vrot.lane.b32.xlu0 %v1039, 96
  %v1045 = vpop.permute.xlu0 %1044
  %1046 = vrot.lane.b32.xlu0 %v1040, 96
  %v1047 = vpop.permute.xlu0 %1046
  %1048 = vrot.lane.b32.xlu0 %v1041, 96
  %v1049 = vpop.permute.xlu0 %1048
  %v1054 = vadd.f32 %v141, %v1043
  %v1055 = vadd.f32 %v147, %v1045
  %v1056 = vadd.f32 %v153, %v1047
  %v1057 = vadd.f32 %v159, %v1049
  %v1058 = vxor.u32 %v1054, 2147483648
  %v1059 = vxor.u32 %v1055, 2147483648
  %v1060 = vxor.u32 %v1056, 2147483648
  %v1061 = vxor.u32 %v1057, 2147483648
  %v1062 = vmul.f32 %v1058, 1.442695
  %v1063 = vpow.pop %v1062
  %v1064 = vmul.f32 %v1059, 1.442695
  %v1065 = vpow.pop %v1064
  %v1066 = vmul.f32 %v1060, 1.442695
  %v1067 = vpow.pop %v1066
  %v1068 = vmul.f32 %v1061, 1.442695
  %v1069 = vpow.pop %v1068
  %v1070 = vadd.f32 %v1063, 1.0
  %v1071 = vadd.f32 %v1065, 1.0
  %v1072 = vadd.f32 %v1067, 1.0
  %v1073 = vadd.f32 %v1069, 1.0
  %v1074 = vrcp.pop %v1070
  %v1075 = vmul.f32 1.0, %v1074
  %v1076 = vrcp.pop %v1071
  %v1077 = vmul.f32 1.0, %v1076
  %v1078 = vrcp.pop %v1072
  %v1079 = vmul.f32 1.0, %v1078
  %v1080 = vrcp.pop %v1073
  %v1081 = vmul.f32 1.0, %v1080
  %v1082 = vadd.f32 %v143, %v1043
  %v1083 = vadd.f32 %v149, %v1045
  %v1084 = vadd.f32 %v155, %v1047
  %v1085 = vadd.f32 %v161, %v1049
  %v1086 = vxor.u32 %v1082, 2147483648
  %v1087 = vxor.u32 %v1083, 2147483648
  %v1088 = vxor.u32 %v1084, 2147483648
  %v1089 = vxor.u32 %v1085, 2147483648
  %v1090 = vmul.f32 %v1086, 1.442695
  %v1091 = vpow.pop %v1090
  %v1092 = vmul.f32 %v1087, 1.442695
  %v1093 = vpow.pop %v1092
  %v1094 = vmul.f32 %v1088, 1.442695
  %v1095 = vpow.pop %v1094
  %v1096 = vmul.f32 %v1089, 1.442695
  %v1097 = vpow.pop %v1096
  %v1098 = vadd.f32 %v1091, 1.0
  %v1099 = vadd.f32 %v1093, 1.0
  %v1100 = vadd.f32 %v1095, 1.0
  %v1101 = vadd.f32 %v1097, 1.0
  %v1102 = vrcp.pop %v1098
  %v1103 = vmul.f32 1.0, %v1102
  %v1104 = vrcp.pop %v1099
  %v1105 = vmul.f32 1.0, %v1104
  %v1106 = vrcp.pop %v1100
  %v1107 = vmul.f32 1.0, %v1106
  %v1108 = vrcp.pop %v1101
  %v1109 = vmul.f32 1.0, %v1108
  %1110 = vrot.lane.b32.xlu0 %v1038, 32
  %v1111 = vpop.permute.xlu0 %1110
  %1112 = vrot.lane.b32.xlu0 %v1039, 32
  %v1113 = vpop.permute.xlu0 %1112
  %1114 = vrot.lane.b32.xlu0 %v1040, 32
  %v1115 = vpop.permute.xlu0 %1114
  %1116 = vrot.lane.b32.xlu0 %v1041, 32
  %v1117 = vpop.permute.xlu0 %1116
  %v1122 = vmul.f32 %v1075, %v1111
  %v1123 = vmul.f32 %v1077, %v1113
  %v1124 = vmul.f32 %v1079, %v1115
  %v1125 = vmul.f32 %v1081, %v1117
  %1130 = vrot.lane.b32.xlu0 %v1122, 64
  %v1131 = vpop.permute.xlu0 %1130
  %1132 = vrot.lane.b32.xlu0 %v1123, 64
  %v1133 = vpop.permute.xlu0 %1132
  %1134 = vrot.lane.b32.xlu0 %v1124, 64
  %v1135 = vpop.permute.xlu0 %1134
  %1136 = vrot.lane.b32.xlu0 %v1125, 64
  %v1137 = vpop.permute.xlu0 %1136
  %v1142 = vadd.f32 %v143, %v1131
  %v1143 = vadd.f32 %v149, %v1133
  %v1144 = vadd.f32 %v155, %v1135
  %v1145 = vadd.f32 %v161, %v1137
  %v1146 = vtanh.pop %v1142
  %v1147 = vtanh.pop %v1143
  %v1148 = vtanh.pop %v1144
  %v1149 = vtanh.pop %v1145
  %v1150 = vsub.f32 1.0, %v1103
  %v1151 = vsub.f32 1.0, %v1105
  %v1152 = vsub.f32 1.0, %v1107
  %v1153 = vsub.f32 1.0, %v1109
  %1158 = vrot.lane.b32.xlu0 %v1146, 96
  %v1159 = vpop.permute.xlu0 %1158
  %1160 = vrot.lane.b32.xlu0 %v1147, 96
  %v1161 = vpop.permute.xlu0 %1160
  %1162 = vrot.lane.b32.xlu0 %v1148, 96
  %v1163 = vpop.permute.xlu0 %1162
  %1164 = vrot.lane.b32.xlu0 %v1149, 96
  %v1165 = vpop.permute.xlu0 %1164
  %v1170 = vmul.f32 %v1150, %v1159
  %v1171 = vmul.f32 %v1151, %v1161
  %v1172 = vmul.f32 %v1152, %v1163
  %v1173 = vmul.f32 %v1153, %v1165
  %v1174 = vrot.slane %v644, 2
  %v1175 = vrot.slane %v644, 3
  %v1176 = vrot.slane %v644, 4
  %v1177 = vrot.slane %v644, 5
  %v1182 = vmul.f32 %v1103, %v1174
  %v1183 = vmul.f32 %v1105, %v1175
  %v1184 = vmul.f32 %v1107, %v1176
  %v1185 = vmul.f32 %v1109, %v1177
  %v1186 = vadd.f32 %v1170, %v1182
  %v1187 = vadd.f32 %v1171, %v1183
  %v1188 = vadd.f32 %v1172, %v1184
  %v1189 = vadd.f32 %v1173, %v1185
  %1191 = vset.pattern.permute.xlu0 0
  %1192 = vperm.xlu0 %1191, %v742
  %v1193 = vpop.permute.xlu0 %1192
  %v1199 = vrot.slane %v1186, 6
  %v1200 = vrot.slane %v1187, 5
  %v1201 = vsel %vm378, %v1200, %v1199
  %v1202 = vrot.slane %v1188, 4
  %v1203 = vsel %vm381, %v1202, %v1201
  %v1204 = vrot.slane %v1189, 3
  %v1205 = vsel %vm384, %v1204, %v1203
  %v1207 = vmul.f32 %v1193, %v1205
  %v1208 = vsub.f32 1.0, %v742
  %1210 = vset.pattern.permute.xlu0 0
  %1211 = vperm.xlu0 %1210, %v1208
  %v1212 = vpop.permute.xlu0 %1211
  %v1214 = vmul.f32 %v1212, %v644
  %v1215 = vadd.f32 %v1207, %v1214
  %v1218 = vunpack.c.l.s4 1966171168
  %v1219 = vunpack.c.0.s8 %v1218
  %v1220 = vlaneseq
  %v1221 = vshrl.u32 %v1220, 7
  %v1222 = vsub.s32 %v1219, %v1221
  %v1223 = vrot.slane %v964, %v1222
  %v1224 = vcombine.high %v1223, %v1223
  %v1226 = vunpack.c.l.s4 1966171168
  %v1227 = vunpack.c.0.s8 %v1226
  %v1228 = vlaneseq
  %v1229 = vshrl.u32 %v1228, 7
  %v1230 = vsub.s32 %v1227, %v1229
  %v1231 = vrot.slane %v1223, %v1230
  %v1233 = vunpack.c.l.s4 1966171168
  %v1234 = vunpack.c.0.s8 %v1233
  %v1235 = vlaneseq
  %v1236 = vshrl.u32 %v1235, 7
  %v1237 = vsub.s32 %v1234, %v1236
  %v1238 = vrot.slane %v1224, %v1237
  %v1239 = vcombine.high %v1231, %v1231
  %v1240 = vcombine.high %v1238, %v1238
  %1245 = vst.msk [vmem:[%s8 + $0x1] sm:$0x1] %vm674, %v1231
  %1246 = vst.msk [vmem:[%s8 + $0x9] sm:$0x1] %vm674, %v1238
  %1247 = vst.msk [vmem:[%s8 + $0x11] sm:$0x1] %vm674, %v1239
  %1248 = vst.msk [vmem:[%s8 + $0x19] sm:$0x1] %vm674, %v1240
  %v1251 = vunpack.c.l.s4 1966171168
  %v1252 = vunpack.c.0.s8 %v1251
  %v1253 = vlaneseq
  %v1254 = vshrl.u32 %v1253, 7
  %v1255 = vsub.s32 %v1252, %v1254
  %v1256 = vrot.slane %v1215, %v1255
  %v1257 = vcombine.high %v1256, %v1256
  %v1259 = vunpack.c.l.s4 1966171168
  %v1260 = vunpack.c.0.s8 %v1259
  %v1261 = vlaneseq
  %v1262 = vshrl.u32 %v1261, 7
  %v1263 = vsub.s32 %v1260, %v1262
  %v1264 = vrot.slane %v1256, %v1263
  %v1266 = vunpack.c.l.s4 1966171168
  %v1267 = vunpack.c.0.s8 %v1266
  %v1268 = vlaneseq
  %v1269 = vshrl.u32 %v1268, 7
  %v1270 = vsub.s32 %v1267, %v1269
  %v1271 = vrot.slane %v1257, %v1270
  %v1272 = vcombine.high %v1264, %v1264
  %v1273 = vcombine.high %v1271, %v1271
  %v1274 = vlaneseq
  %v1275 = vshrl.u32 %v1274, 7
  %v1276 = vsub.s32 0, %v1275
  %v1277 = vrot.slane %v1264, %v1276
  %v1278 = vlaneseq
  %v1279 = vshrl.u32 %v1278, 7
  %v1280 = vsub.s32 0, %v1279
  %v1281 = vrot.slane %v1271, %v1280
  %v1282 = vlaneseq
  %v1283 = vshrl.u32 %v1282, 7
  %v1284 = vsub.s32 0, %v1283
  %v1285 = vrot.slane %v1272, %v1284
  %v1286 = vlaneseq
  %v1287 = vshrl.u32 %v1286, 7
  %v1288 = vsub.s32 0, %v1287
  %v1289 = vrot.slane %v1273, %v1288
  %1290 = vrot.lane.b32.xlu0 %v1277, 32
  %v1291 = vpop.permute.xlu0 %1290
  %1292 = vrot.lane.b32.xlu0 %v1281, 32
  %v1293 = vpop.permute.xlu0 %1292
  %1294 = vrot.lane.b32.xlu0 %v1285, 32
  %v1295 = vpop.permute.xlu0 %1294
  %1296 = vrot.lane.b32.xlu0 %v1289, 32
  %v1297 = vpop.permute.xlu0 %1296
  %1302 = vst.msk [vmem:[%s8 + $0x6] sm:$0x1] %vm732, %v1291
  %1303 = vst.msk [vmem:[%s8 + $0xe] sm:$0x1] %vm732, %v1293
  %1304 = vst.msk [vmem:[%s8 + $0x16] sm:$0x1] %vm732, %v1295
  %1305 = vst.msk [vmem:[%s8 + $0x1e] sm:$0x1] %vm732, %v1297
  %vm1306 = vcmp.gt.s32.totalorder %v163, 2
  %v1307 = vsel %vm1306, 1, 0
  %v1308 = vcvt.s32.f32 %v1307
  %vm1309 = vcmp.gt.s32.totalorder %v163, 5
  %v1310 = vsel %vm1309, 1, 0
  %v1311 = vcvt.s32.f32 %v1310
  %v1312 = vsel %vm186, %v964, 0
  %1314 = vmatprep.subr.mxu0 0.0
  %1315 = vmatpush1.msra.mxu0 %v164
  %1316 = vmatprep.subr.mxu0 0.0
  %1317 = vmatpush1.msra.mxu0 %v165
  %1318 = vmatprep.subr.mxu0 0.0
  %1319 = vmatpush1.msra.mxu0 %v166
  %1320 = vmatprep.subr.mxu0 0.0
  %1321 = vmatpush1.msra.mxu0 %v167
  %1322 = vmatprep.subr.mxu0 0.0
  %1323 = vmatpush1.msra.mxu0 0.0
  %1324 = vmatprep.subr.mxu0 0.0
  %1325 = vmatpush1.msra.mxu0 0.0
  %1326 = vmatprep.subr.mxu0 0.0
  %1327 = vmatpush1.msra.mxu0 0.0
  %1328 = vmatprep.subr.mxu0 0.0
  %1329 = vmatpush1.msra.mxu0 0.0
  %1330 = vmatprep.subr.mxu0 0.0
  %1331 = vmatpush1.msra.mxu0 0.0
  %1332 = vmatprep.subr.mxu0 0.0
  %1333 = vmatpush1.msra.mxu0 0.0
  %1334 = vmatprep.subr.mxu0 0.0
  %1335 = vmatpush1.msra.mxu0 0.0
  %1336 = vmatprep.subr.mxu0 0.0
  %1337 = vmatpush1.msra.mxu0 0.0
  %1338 = vmatprep.subr.mxu0 0.0
  %1339 = vmatpush1.msra.mxu0 0.0
  %1340 = vmatprep.subr.mxu0 0.0
  %1341 = vmatpush1.msra.mxu0 0.0
  %1342 = vmatprep.subr.mxu0 0.0
  %1343 = vmatpush1.msra.mxu0 0.0
  %1344 = vmatprep.subr.mxu0 0.0
  %1345 = vmatpush1.msra.mxu0 0.0
  %1346 = vmatprep.subr.mxu0 0.0
  %1347 = vmatpush1.msra.mxu0 0.0
  %1348 = vmatprep.subr.mxu0 0.0
  %1349 = vmatpush1.msra.mxu0 0.0
  %1350 = vmatprep.subr.mxu0 0.0
  %1351 = vmatpush1.msra.mxu0 0.0
  %1352 = vmatprep.subr.mxu0 0.0
  %1353 = vmatpush1.msra.mxu0 0.0
  %1354 = vmatprep.subr.mxu0 0.0
  %1355 = vmatpush1.msra.mxu0 0.0
  %1356 = vmatprep.subr.mxu0 0.0
  %1357 = vmatpush1.msra.mxu0 0.0
  %1358 = vmatprep.subr.mxu0 0.0
  %1359 = vmatpush1.msra.mxu0 0.0
  %1360 = vmatprep.subr.mxu0 0.0
  %1361 = vmatpush1.msra.mxu0 0.0
  %1362 = vmatprep.subr.mxu0 0.0
  %1363 = vmatpush1.msra.mxu0 0.0
  %1364 = vmatprep.subr.mxu0 0.0
  %1365 = vmatpush1.msra.mxu0 0.0
  %1366 = vmatprep.subr.mxu0 0.0
  %1367 = vmatpush1.msra.mxu0 0.0
  %1368 = vmatprep.subr.mxu0 0.0
  %1369 = vmatpush1.msra.mxu0 0.0
  %1370 = vmatprep.subr.mxu0 0.0
  %1371 = vmatpush1.msra.mxu0 0.0
  %1372 = vmatprep.subr.mxu0 0.0
  %1373 = vmatpush1.msra.mxu0 0.0
  %1374 = vmatprep.subr.mxu0 0.0
  %1375 = vmatpush1.msra.mxu0 0.0
  %1376 = vmatprep.subr.mxu0 0.0
  %1377 = vmatpush1.msra.mxu0 0.0
  %1378 = vmatprep.mubr.f32.mxu0 0.0
  %1379 = vmatmul.mubr.f32.gmra.mrb[0].mxu0 %v1312
  %v1380 = vpop.f32.mrb[0].mxu0
  %v1381 = vadd.f32 %v184, %v1380
  %v1382 = vpop.f32.mrb[0].mxu0
  %1383 = vdwg.mxu0
  %v1385 = vrot.slane %v1381, 6
  %v1386 = vrot.slane %v1381, 7
  %v1387 = vrot.slane %v1381, 1
  %v1392 = vadd.f32 %v141, %v1385
  %v1393 = vadd.f32 %v147, %v1386
  %v1394 = vadd.f32 %v153, %v1381
  %v1395 = vadd.f32 %v159, %v1387
  %v1396 = vxor.u32 %v1392, 2147483648
  %v1397 = vxor.u32 %v1393, 2147483648
  %v1398 = vxor.u32 %v1394, 2147483648
  %v1399 = vxor.u32 %v1395, 2147483648
  %v1400 = vmul.f32 %v1396, 1.442695
  %v1401 = vpow.pop %v1400
  %v1402 = vmul.f32 %v1397, 1.442695
  %v1403 = vpow.pop %v1402
  %v1404 = vmul.f32 %v1398, 1.442695
  %v1405 = vpow.pop %v1404
  %v1406 = vmul.f32 %v1399, 1.442695
  %v1407 = vpow.pop %v1406
  %v1408 = vadd.f32 %v1401, 1.0
  %v1409 = vadd.f32 %v1403, 1.0
  %v1410 = vadd.f32 %v1405, 1.0
  %v1411 = vadd.f32 %v1407, 1.0
  %v1412 = vrcp.pop %v1408
  %v1413 = vmul.f32 1.0, %v1412
  %v1414 = vrcp.pop %v1409
  %v1415 = vmul.f32 1.0, %v1414
  %v1416 = vrcp.pop %v1410
  %v1417 = vmul.f32 1.0, %v1416
  %v1418 = vrcp.pop %v1411
  %v1419 = vmul.f32 1.0, %v1418
  %1420 = vrot.lane.b32.xlu0 %v1385, 64
  %v1421 = vpop.permute.xlu0 %1420
  %1422 = vrot.lane.b32.xlu0 %v1386, 64
  %v1423 = vpop.permute.xlu0 %1422
  %1424 = vrot.lane.b32.xlu0 %v1381, 64
  %v1425 = vpop.permute.xlu0 %1424
  %1426 = vrot.lane.b32.xlu0 %v1387, 64
  %v1427 = vpop.permute.xlu0 %1426
  %v1432 = vmul.f32 %v1413, %v1421
  %v1433 = vmul.f32 %v1415, %v1423
  %v1434 = vmul.f32 %v1417, %v1425
  %v1435 = vmul.f32 %v1419, %v1427
  %1440 = vrot.lane.b32.xlu0 %v1432, 64
  %v1441 = vpop.permute.xlu0 %1440
  %1442 = vrot.lane.b32.xlu0 %v1433, 64
  %v1443 = vpop.permute.xlu0 %1442
  %1444 = vrot.lane.b32.xlu0 %v1434, 64
  %v1445 = vpop.permute.xlu0 %1444
  %1446 = vrot.lane.b32.xlu0 %v1435, 64
  %v1447 = vpop.permute.xlu0 %1446
  %v1452 = vadd.f32 %v141, %v1441
  %v1453 = vadd.f32 %v147, %v1443
  %v1454 = vadd.f32 %v153, %v1445
  %v1455 = vadd.f32 %v159, %v1447
  %v1456 = vtanh.pop %v1452
  %v1457 = vtanh.pop %v1453
  %v1458 = vtanh.pop %v1454
  %v1459 = vtanh.pop %v1455
  %v1460 = vsub.f32 1.0, %v1413
  %v1461 = vsub.f32 1.0, %v1415
  %v1462 = vsub.f32 1.0, %v1417
  %v1463 = vsub.f32 1.0, %v1419
  %1468 = vrot.lane.b32.xlu0 %v1456, 96
  %v1469 = vpop.permute.xlu0 %1468
  %1470 = vrot.lane.b32.xlu0 %v1457, 96
  %v1471 = vpop.permute.xlu0 %1470
  %1472 = vrot.lane.b32.xlu0 %v1458, 96
  %v1473 = vpop.permute.xlu0 %1472
  %1474 = vrot.lane.b32.xlu0 %v1459, 96
  %v1475 = vpop.permute.xlu0 %1474
  %v1480 = vmul.f32 %v1460, %v1469
  %v1481 = vmul.f32 %v1461, %v1471
  %v1482 = vmul.f32 %v1462, %v1473
  %v1483 = vmul.f32 %v1463, %v1475
  %v1484 = vrot.slane %v964, 6
  %v1485 = vrot.slane %v964, 7
  %v1486 = vrot.slane %v964, 1
  %1487 = vrot.lane.b32.xlu0 %v1484, 32
  %v1488 = vpop.permute.xlu0 %1487
  %1489 = vrot.lane.b32.xlu0 %v1485, 32
  %v1490 = vpop.permute.xlu0 %1489
  %1491 = vrot.lane.b32.xlu0 %v964, 32
  %v1492 = vpop.permute.xlu0 %1491
  %1493 = vrot.lane.b32.xlu0 %v1486, 32
  %v1494 = vpop.permute.xlu0 %1493
  %v1499 = vmul.f32 %v1413, %v1488
  %v1500 = vmul.f32 %v1415, %v1490
  %v1501 = vmul.f32 %v1417, %v1492
  %v1502 = vmul.f32 %v1419, %v1494
  %v1503 = vadd.f32 %v1480, %v1499
  %v1504 = vadd.f32 %v1481, %v1500
  %v1505 = vadd.f32 %v1482, %v1501
  %v1506 = vadd.f32 %v1483, %v1502
  %1508 = vset.pattern.permute.xlu0 0
  %1509 = vperm.xlu0 %1508, %v1308
  %v1510 = vpop.permute.xlu0 %1509
  %v1516 = vrot.slane %v1503, 2
  %v1517 = vrot.slane %v1504, 1
  %v1518 = vsel %vm378, %v1517, %v1516
  %v1519 = vsel %vm381, %v1505, %v1518
  %v1520 = vrot.slane %v1506, 7
  %v1521 = vsel %vm384, %v1520, %v1519
  %1522 = vrot.lane.b32.xlu0 %v1521, 96
  %v1523 = vpop.permute.xlu0 %1522
  %v1525 = vmul.f32 %v1510, %v1523
  %v1526 = vsub.f32 1.0, %v1308
  %1528 = vset.pattern.permute.xlu0 0
  %1529 = vperm.xlu0 %1528, %v1526
  %v1530 = vpop.permute.xlu0 %1529
  %v1532 = vmul.f32 %v1530, %v964
  %v1533 = vadd.f32 %v1525, %v1532
  %v1534 = vsel %vm186, %v1215, 0
  %1536 = vmatprep.subr.mxu0 0.0
  %1537 = vmatpush1.msra.mxu0 %v169
  %1538 = vmatprep.subr.mxu0 0.0
  %1539 = vmatpush1.msra.mxu0 %v170
  %1540 = vmatprep.subr.mxu0 0.0
  %1541 = vmatpush1.msra.mxu0 %v171
  %1542 = vmatprep.subr.mxu0 0.0
  %1543 = vmatpush1.msra.mxu0 %v172
  %1544 = vmatprep.subr.mxu0 0.0
  %1545 = vmatpush1.msra.mxu0 0.0
  %1546 = vmatprep.subr.mxu0 0.0
  %1547 = vmatpush1.msra.mxu0 0.0
  %1548 = vmatprep.subr.mxu0 0.0
  %1549 = vmatpush1.msra.mxu0 0.0
  %1550 = vmatprep.subr.mxu0 0.0
  %1551 = vmatpush1.msra.mxu0 0.0
  %1552 = vmatprep.subr.mxu0 0.0
  %1553 = vmatpush1.msra.mxu0 0.0
  %1554 = vmatprep.subr.mxu0 0.0
  %1555 = vmatpush1.msra.mxu0 0.0
  %1556 = vmatprep.subr.mxu0 0.0
  %1557 = vmatpush1.msra.mxu0 0.0
  %1558 = vmatprep.subr.mxu0 0.0
  %1559 = vmatpush1.msra.mxu0 0.0
  %1560 = vmatprep.subr.mxu0 0.0
  %1561 = vmatpush1.msra.mxu0 0.0
  %1562 = vmatprep.subr.mxu0 0.0
  %1563 = vmatpush1.msra.mxu0 0.0
  %1564 = vmatprep.subr.mxu0 0.0
  %1565 = vmatpush1.msra.mxu0 0.0
  %1566 = vmatprep.subr.mxu0 0.0
  %1567 = vmatpush1.msra.mxu0 0.0
  %1568 = vmatprep.subr.mxu0 0.0
  %1569 = vmatpush1.msra.mxu0 0.0
  %1570 = vmatprep.subr.mxu0 0.0
  %1571 = vmatpush1.msra.mxu0 0.0
  %1572 = vmatprep.subr.mxu0 0.0
  %1573 = vmatpush1.msra.mxu0 0.0
  %1574 = vmatprep.subr.mxu0 0.0
  %1575 = vmatpush1.msra.mxu0 0.0
  %1576 = vmatprep.subr.mxu0 0.0
  %1577 = vmatpush1.msra.mxu0 0.0
  %1578 = vmatprep.subr.mxu0 0.0
  %1579 = vmatpush1.msra.mxu0 0.0
  %1580 = vmatprep.subr.mxu0 0.0
  %1581 = vmatpush1.msra.mxu0 0.0
  %1582 = vmatprep.subr.mxu0 0.0
  %1583 = vmatpush1.msra.mxu0 0.0
  %1584 = vmatprep.subr.mxu0 0.0
  %1585 = vmatpush1.msra.mxu0 0.0
  %1586 = vmatprep.subr.mxu0 0.0
  %1587 = vmatpush1.msra.mxu0 0.0
  %1588 = vmatprep.subr.mxu0 0.0
  %1589 = vmatpush1.msra.mxu0 0.0
  %1590 = vmatprep.subr.mxu0 0.0
  %1591 = vmatpush1.msra.mxu0 0.0
  %1592 = vmatprep.subr.mxu0 0.0
  %1593 = vmatpush1.msra.mxu0 0.0
  %1594 = vmatprep.subr.mxu0 0.0
  %1595 = vmatpush1.msra.mxu0 0.0
  %1596 = vmatprep.subr.mxu0 0.0
  %1597 = vmatpush1.msra.mxu0 0.0
  %1598 = vmatprep.subr.mxu0 0.0
  %1599 = vmatpush1.msra.mxu0 0.0
  %1600 = vmatprep.mubr.f32.mxu0 0.0
  %1601 = vmatmul.mubr.f32.gmra.mrb[0].mxu0 %v1534
  %v1602 = vpop.f32.mrb[0].mxu0
  %v1603 = vadd.f32 %v402, %v1602
  %v1604 = vpop.f32.mrb[0].mxu0
  %1605 = vdwg.mxu0
  %v1607 = vrot.slane %v1603, 3
  %v1608 = vrot.slane %v1603, 4
  %v1609 = vrot.slane %v1603, 5
  %v1610 = vrot.slane %v1603, 6
  %1611 = vrot.lane.b32.xlu0 %v1607, 96
  %v1612 = vpop.permute.xlu0 %1611
  %1613 = vrot.lane.b32.xlu0 %v1608, 96
  %v1614 = vpop.permute.xlu0 %1613
  %1615 = vrot.lane.b32.xlu0 %v1609, 96
  %v1616 = vpop.permute.xlu0 %1615
  %1617 = vrot.lane.b32.xlu0 %v1610, 96
  %v1618 = vpop.permute.xlu0 %1617
  %v1623 = vadd.f32 %v141, %v1612
  %v1624 = vadd.f32 %v147, %v1614
  %v1625 = vadd.f32 %v153, %v1616
  %v1626 = vadd.f32 %v159, %v1618
  %v1627 = vxor.u32 %v1623, 2147483648
  %v1628 = vxor.u32 %v1624, 2147483648
  %v1629 = vxor.u32 %v1625, 2147483648
  %v1630 = vxor.u32 %v1626, 2147483648
  %v1631 = vmul.f32 %v1627, 1.442695
  %v1632 = vpow.pop %v1631
  %v1633 = vmul.f32 %v1628, 1.442695
  %v1634 = vpow.pop %v1633
  %v1635 = vmul.f32 %v1629, 1.442695
  %v1636 = vpow.pop %v1635
  %v1637 = vmul.f32 %v1630, 1.442695
  %v1638 = vpow.pop %v1637
  %v1639 = vadd.f32 %v1632, 1.0
  %v1640 = vadd.f32 %v1634, 1.0
  %v1641 = vadd.f32 %v1636, 1.0
  %v1642 = vadd.f32 %v1638, 1.0
  %v1643 = vrcp.pop %v1639
  %v1644 = vmul.f32 1.0, %v1643
  %v1645 = vrcp.pop %v1640
  %v1646 = vmul.f32 1.0, %v1645
  %v1647 = vrcp.pop %v1641
  %v1648 = vmul.f32 1.0, %v1647
  %v1649 = vrcp.pop %v1642
  %v1650 = vmul.f32 1.0, %v1649
  %v1651 = vadd.f32 %v143, %v1612
  %v1652 = vadd.f32 %v149, %v1614
  %v1653 = vadd.f32 %v155, %v1616
  %v1654 = vadd.f32 %v161, %v1618
  %v1655 = vxor.u32 %v1651, 2147483648
  %v1656 = vxor.u32 %v1652, 2147483648
  %v1657 = vxor.u32 %v1653, 2147483648
  %v1658 = vxor.u32 %v1654, 2147483648
  %v1659 = vmul.f32 %v1655, 1.442695
  %v1660 = vpow.pop %v1659
  %v1661 = vmul.f32 %v1656, 1.442695
  %v1662 = vpow.pop %v1661
  %v1663 = vmul.f32 %v1657, 1.442695
  %v1664 = vpow.pop %v1663
  %v1665 = vmul.f32 %v1658, 1.442695
  %v1666 = vpow.pop %v1665
  %v1667 = vadd.f32 %v1660, 1.0
  %v1668 = vadd.f32 %v1662, 1.0
  %v1669 = vadd.f32 %v1664, 1.0
  %v1670 = vadd.f32 %v1666, 1.0
  %v1671 = vrcp.pop %v1667
  %v1672 = vmul.f32 1.0, %v1671
  %v1673 = vrcp.pop %v1668
  %v1674 = vmul.f32 1.0, %v1673
  %v1675 = vrcp.pop %v1669
  %v1676 = vmul.f32 1.0, %v1675
  %v1677 = vrcp.pop %v1670
  %v1678 = vmul.f32 1.0, %v1677
  %1679 = vrot.lane.b32.xlu0 %v1607, 32
  %v1680 = vpop.permute.xlu0 %1679
  %1681 = vrot.lane.b32.xlu0 %v1608, 32
  %v1682 = vpop.permute.xlu0 %1681
  %1683 = vrot.lane.b32.xlu0 %v1609, 32
  %v1684 = vpop.permute.xlu0 %1683
  %1685 = vrot.lane.b32.xlu0 %v1610, 32
  %v1686 = vpop.permute.xlu0 %1685
  %v1691 = vmul.f32 %v1644, %v1680
  %v1692 = vmul.f32 %v1646, %v1682
  %v1693 = vmul.f32 %v1648, %v1684
  %v1694 = vmul.f32 %v1650, %v1686
  %1699 = vrot.lane.b32.xlu0 %v1691, 64
  %v1700 = vpop.permute.xlu0 %1699
  %1701 = vrot.lane.b32.xlu0 %v1692, 64
  %v1702 = vpop.permute.xlu0 %1701
  %1703 = vrot.lane.b32.xlu0 %v1693, 64
  %v1704 = vpop.permute.xlu0 %1703
  %1705 = vrot.lane.b32.xlu0 %v1694, 64
  %v1706 = vpop.permute.xlu0 %1705
  %v1711 = vadd.f32 %v143, %v1700
  %v1712 = vadd.f32 %v149, %v1702
  %v1713 = vadd.f32 %v155, %v1704
  %v1714 = vadd.f32 %v161, %v1706
  %v1715 = vtanh.pop %v1711
  %v1716 = vtanh.pop %v1712
  %v1717 = vtanh.pop %v1713
  %v1718 = vtanh.pop %v1714
  %v1719 = vsub.f32 1.0, %v1672
  %v1720 = vsub.f32 1.0, %v1674
  %v1721 = vsub.f32 1.0, %v1676
  %v1722 = vsub.f32 1.0, %v1678
  %1727 = vrot.lane.b32.xlu0 %v1715, 96
  %v1728 = vpop.permute.xlu0 %1727
  %1729 = vrot.lane.b32.xlu0 %v1716, 96
  %v1730 = vpop.permute.xlu0 %1729
  %1731 = vrot.lane.b32.xlu0 %v1717, 96
  %v1732 = vpop.permute.xlu0 %1731
  %1733 = vrot.lane.b32.xlu0 %v1718, 96
  %v1734 = vpop.permute.xlu0 %1733
  %v1739 = vmul.f32 %v1719, %v1728
  %v1740 = vmul.f32 %v1720, %v1730
  %v1741 = vmul.f32 %v1721, %v1732
  %v1742 = vmul.f32 %v1722, %v1734
  %v1743 = vrot.slane %v1215, 3
  %v1744 = vrot.slane %v1215, 4
  %v1745 = vrot.slane %v1215, 5
  %v1746 = vrot.slane %v1215, 6
  %v1751 = vmul.f32 %v1672, %v1743
  %v1752 = vmul.f32 %v1674, %v1744
  %v1753 = vmul.f32 %v1676, %v1745
  %v1754 = vmul.f32 %v1678, %v1746
  %v1755 = vadd.f32 %v1739, %v1751
  %v1756 = vadd.f32 %v1740, %v1752
  %v1757 = vadd.f32 %v1741, %v1753
  %v1758 = vadd.f32 %v1742, %v1754
  %1760 = vset.pattern.permute.xlu0 0
  %1761 = vperm.xlu0 %1760, %v1311
  %v1762 = vpop.permute.xlu0 %1761
  %v1768 = vrot.slane %v1755, 5
  %v1769 = vrot.slane %v1756, 4
  %v1770 = vsel %vm378, %v1769, %v1768
  %v1771 = vrot.slane %v1757, 3
  %v1772 = vsel %vm381, %v1771, %v1770
  %v1773 = vrot.slane %v1758, 2
  %v1774 = vsel %vm384, %v1773, %v1772
  %v1776 = vmul.f32 %v1762, %v1774
  %v1777 = vsub.f32 1.0, %v1311
  %1779 = vset.pattern.permute.xlu0 0
  %1780 = vperm.xlu0 %1779, %v1777
  %v1781 = vpop.permute.xlu0 %1780
  %v1783 = vmul.f32 %v1781, %v1215
  %v1784 = vadd.f32 %v1776, %v1783
  %v1787 = vunpack.c.l.s4 1966171168
  %v1788 = vunpack.c.0.s8 %v1787
  %v1789 = vlaneseq
  %v1790 = vshrl.u32 %v1789, 7
  %v1791 = vsub.s32 %v1788, %v1790
  %v1792 = vrot.slane %v1533, %v1791
  %v1793 = vcombine.high %v1792, %v1792
  %v1795 = vunpack.c.l.s4 1966171168
  %v1796 = vunpack.c.0.s8 %v1795
  %v1797 = vlaneseq
  %v1798 = vshrl.u32 %v1797, 7
  %v1799 = vsub.s32 %v1796, %v1798
  %v1800 = vrot.slane %v1792, %v1799
  %v1802 = vunpack.c.l.s4 1966171168
  %v1803 = vunpack.c.0.s8 %v1802
  %v1804 = vlaneseq
  %v1805 = vshrl.u32 %v1804, 7
  %v1806 = vsub.s32 %v1803, %v1805
  %v1807 = vrot.slane %v1793, %v1806
  %v1808 = vcombine.high %v1800, %v1800
  %v1809 = vcombine.high %v1807, %v1807
  %1814 = vst.msk [vmem:[%s8 + $0x2] sm:$0x1] %vm674, %v1800
  %1815 = vst.msk [vmem:[%s8 + $0xa] sm:$0x1] %vm674, %v1807
  %1816 = vst.msk [vmem:[%s8 + $0x12] sm:$0x1] %vm674, %v1808
  %1817 = vst.msk [vmem:[%s8 + $0x1a] sm:$0x1] %vm674, %v1809
  %v1820 = vunpack.c.l.s4 1966171168
  %v1821 = vunpack.c.0.s8 %v1820
  %v1822 = vlaneseq
  %v1823 = vshrl.u32 %v1822, 7
  %v1824 = vsub.s32 %v1821, %v1823
  %v1825 = vrot.slane %v1784, %v1824
  %v1826 = vcombine.high %v1825, %v1825
  %v1828 = vunpack.c.l.s4 1966171168
  %v1829 = vunpack.c.0.s8 %v1828
  %v1830 = vlaneseq
  %v1831 = vshrl.u32 %v1830, 7
  %v1832 = vsub.s32 %v1829, %v1831
  %v1833 = vrot.slane %v1825, %v1832
  %v1835 = vunpack.c.l.s4 1966171168
  %v1836 = vunpack.c.0.s8 %v1835
  %v1837 = vlaneseq
  %v1838 = vshrl.u32 %v1837, 7
  %v1839 = vsub.s32 %v1836, %v1838
  %v1840 = vrot.slane %v1826, %v1839
  %v1841 = vcombine.high %v1833, %v1833
  %v1842 = vcombine.high %v1840, %v1840
  %v1843 = vlaneseq
  %v1844 = vshrl.u32 %v1843, 7
  %v1845 = vsub.s32 0, %v1844
  %v1846 = vrot.slane %v1833, %v1845
  %v1847 = vlaneseq
  %v1848 = vshrl.u32 %v1847, 7
  %v1849 = vsub.s32 0, %v1848
  %v1850 = vrot.slane %v1840, %v1849
  %v1851 = vlaneseq
  %v1852 = vshrl.u32 %v1851, 7
  %v1853 = vsub.s32 0, %v1852
  %v1854 = vrot.slane %v1841, %v1853
  %v1855 = vlaneseq
  %v1856 = vshrl.u32 %v1855, 7
  %v1857 = vsub.s32 0, %v1856
  %v1858 = vrot.slane %v1842, %v1857
  %1859 = vrot.lane.b32.xlu0 %v1846, 32
  %v1860 = vpop.permute.xlu0 %1859
  %1861 = vrot.lane.b32.xlu0 %v1850, 32
  %v1862 = vpop.permute.xlu0 %1861
  %1863 = vrot.lane.b32.xlu0 %v1854, 32
  %v1864 = vpop.permute.xlu0 %1863
  %1865 = vrot.lane.b32.xlu0 %v1858, 32
  %v1866 = vpop.permute.xlu0 %1865
  %1871 = vst.msk [vmem:[%s8 + $0x5] sm:$0x1] %vm732, %v1860
  %1872 = vst.msk [vmem:[%s8 + $0xd] sm:$0x1] %vm732, %v1862
  %1873 = vst.msk [vmem:[%s8 + $0x15] sm:$0x1] %vm732, %v1864
  %1874 = vst.msk [vmem:[%s8 + $0x1d] sm:$0x1] %vm732, %v1866
  %vm1875 = vcmp.gt.s32.totalorder %v163, 3
  %v1876 = vsel %vm1875, 1, 0
  %v1877 = vcvt.s32.f32 %v1876
  %vm1878 = vcmp.gt.s32.totalorder %v163, 4
  %v1879 = vsel %vm1878, 1, 0
  %v1880 = vcvt.s32.f32 %v1879
  %v1881 = vsel %vm186, %v1533, 0
  %1883 = vmatprep.subr.mxu0 0.0
  %1884 = vmatpush1.msra.mxu0 %v164
  %1885 = vmatprep.subr.mxu0 0.0
  %1886 = vmatpush1.msra.mxu0 %v165
  %1887 = vmatprep.subr.mxu0 0.0
  %1888 = vmatpush1.msra.mxu0 %v166
  %1889 = vmatprep.subr.mxu0 0.0
  %1890 = vmatpush1.msra.mxu0 %v167
  %1891 = vmatprep.subr.mxu0 0.0
  %1892 = vmatpush1.msra.mxu0 0.0
  %1893 = vmatprep.subr.mxu0 0.0
  %1894 = vmatpush1.msra.mxu0 0.0
  %1895 = vmatprep.subr.mxu0 0.0
  %1896 = vmatpush1.msra.mxu0 0.0
  %1897 = vmatprep.subr.mxu0 0.0
  %1898 = vmatpush1.msra.mxu0 0.0
  %1899 = vmatprep.subr.mxu0 0.0
  %1900 = vmatpush1.msra.mxu0 0.0
  %1901 = vmatprep.subr.mxu0 0.0
  %1902 = vmatpush1.msra.mxu0 0.0
  %1903 = vmatprep.subr.mxu0 0.0
  %1904 = vmatpush1.msra.mxu0 0.0
  %1905 = vmatprep.subr.mxu0 0.0
  %1906 = vmatpush1.msra.mxu0 0.0
  %1907 = vmatprep.subr.mxu0 0.0
  %1908 = vmatpush1.msra.mxu0 0.0
  %1909 = vmatprep.subr.mxu0 0.0
  %1910 = vmatpush1.msra.mxu0 0.0
  %1911 = vmatprep.subr.mxu0 0.0
  %1912 = vmatpush1.msra.mxu0 0.0
  %1913 = vmatprep.subr.mxu0 0.0
  %1914 = vmatpush1.msra.mxu0 0.0
  %1915 = vmatprep.subr.mxu0 0.0
  %1916 = vmatpush1.msra.mxu0 0.0
  %1917 = vmatprep.subr.mxu0 0.0
  %1918 = vmatpush1.msra.mxu0 0.0
  %1919 = vmatprep.subr.mxu0 0.0
  %1920 = vmatpush1.msra.mxu0 0.0
  %1921 = vmatprep.subr.mxu0 0.0
  %1922 = vmatpush1.msra.mxu0 0.0
  %1923 = vmatprep.subr.mxu0 0.0
  %1924 = vmatpush1.msra.mxu0 0.0
  %1925 = vmatprep.subr.mxu0 0.0
  %1926 = vmatpush1.msra.mxu0 0.0
  %1927 = vmatprep.subr.mxu0 0.0
  %1928 = vmatpush1.msra.mxu0 0.0
  %1929 = vmatprep.subr.mxu0 0.0
  %1930 = vmatpush1.msra.mxu0 0.0
  %1931 = vmatprep.subr.mxu0 0.0
  %1932 = vmatpush1.msra.mxu0 0.0
  %1933 = vmatprep.subr.mxu0 0.0
  %1934 = vmatpush1.msra.mxu0 0.0
  %1935 = vmatprep.subr.mxu0 0.0
  %1936 = vmatpush1.msra.mxu0 0.0
  %1937 = vmatprep.subr.mxu0 0.0
  %1938 = vmatpush1.msra.mxu0 0.0
  %1939 = vmatprep.subr.mxu0 0.0
  %1940 = vmatpush1.msra.mxu0 0.0
  %1941 = vmatprep.subr.mxu0 0.0
  %1942 = vmatpush1.msra.mxu0 0.0
  %1943 = vmatprep.subr.mxu0 0.0
  %1944 = vmatpush1.msra.mxu0 0.0
  %1945 = vmatprep.subr.mxu0 0.0
  %1946 = vmatpush1.msra.mxu0 0.0
  %1947 = vmatprep.mubr.f32.mxu0 0.0
  %1948 = vmatmul.mubr.f32.gmra.mrb[0].mxu0 %v1881
  %v1949 = vpop.f32.mrb[0].mxu0
  %v1950 = vadd.f32 %v184, %v1949
  %v1951 = vpop.f32.mrb[0].mxu0
  %1952 = vdwg.mxu0
  %v1954 = vrot.slane %v1950, 5
  %v1955 = vrot.slane %v1950, 6
  %v1956 = vrot.slane %v1950, 7
  %v1961 = vadd.f32 %v141, %v1954
  %v1962 = vadd.f32 %v147, %v1955
  %v1963 = vadd.f32 %v153, %v1956
  %v1964 = vadd.f32 %v159, %v1950
  %v1965 = vxor.u32 %v1961, 2147483648
  %v1966 = vxor.u32 %v1962, 2147483648
  %v1967 = vxor.u32 %v1963, 2147483648
  %v1968 = vxor.u32 %v1964, 2147483648
  %v1969 = vmul.f32 %v1965, 1.442695
  %v1970 = vpow.pop %v1969
  %v1971 = vmul.f32 %v1966, 1.442695
  %v1972 = vpow.pop %v1971
  %v1973 = vmul.f32 %v1967, 1.442695
  %v1974 = vpow.pop %v1973
  %v1975 = vmul.f32 %v1968, 1.442695
  %v1976 = vpow.pop %v1975
  %v1977 = vadd.f32 %v1970, 1.0
  %v1978 = vadd.f32 %v1972, 1.0
  %v1979 = vadd.f32 %v1974, 1.0
  %v1980 = vadd.f32 %v1976, 1.0
  %v1981 = vrcp.pop %v1977
  %v1982 = vmul.f32 1.0, %v1981
  %v1983 = vrcp.pop %v1978
  %v1984 = vmul.f32 1.0, %v1983
  %v1985 = vrcp.pop %v1979
  %v1986 = vmul.f32 1.0, %v1985
  %v1987 = vrcp.pop %v1980
  %v1988 = vmul.f32 1.0, %v1987
  %1989 = vrot.lane.b32.xlu0 %v1954, 64
  %v1990 = vpop.permute.xlu0 %1989
  %1991 = vrot.lane.b32.xlu0 %v1955, 64
  %v1992 = vpop.permute.xlu0 %1991
  %1993 = vrot.lane.b32.xlu0 %v1956, 64
  %v1994 = vpop.permute.xlu0 %1993
  %1995 = vrot.lane.b32.xlu0 %v1950, 64
  %v1996 = vpop.permute.xlu0 %1995
  %v2001 = vmul.f32 %v1982, %v1990
  %v2002 = vmul.f32 %v1984, %v1992
  %v2003 = vmul.f32 %v1986, %v1994
  %v2004 = vmul.f32 %v1988, %v1996
  %2009 = vrot.lane.b32.xlu0 %v2001, 64
  %v2010 = vpop.permute.xlu0 %2009
  %2011 = vrot.lane.b32.xlu0 %v2002, 64
  %v2012 = vpop.permute.xlu0 %2011
  %2013 = vrot.lane.b32.xlu0 %v2003, 64
  %v2014 = vpop.permute.xlu0 %2013
  %2015 = vrot.lane.b32.xlu0 %v2004, 64
  %v2016 = vpop.permute.xlu0 %2015
  %v2021 = vadd.f32 %v141, %v2010
  %v2022 = vadd.f32 %v147, %v2012
  %v2023 = vadd.f32 %v153, %v2014
  %v2024 = vadd.f32 %v159, %v2016
  %v2025 = vtanh.pop %v2021
  %v2026 = vtanh.pop %v2022
  %v2027 = vtanh.pop %v2023
  %v2028 = vtanh.pop %v2024
  %v2029 = vsub.f32 1.0, %v1982
  %v2030 = vsub.f32 1.0, %v1984
  %v2031 = vsub.f32 1.0, %v1986
  %v2032 = vsub.f32 1.0, %v1988
  %2037 = vrot.lane.b32.xlu0 %v2025, 96
  %v2038 = vpop.permute.xlu0 %2037
  %2039 = vrot.lane.b32.xlu0 %v2026, 96
  %v2040 = vpop.permute.xlu0 %2039
  %2041 = vrot.lane.b32.xlu0 %v2027, 96
  %v2042 = vpop.permute.xlu0 %2041
  %2043 = vrot.lane.b32.xlu0 %v2028, 96
  %v2044 = vpop.permute.xlu0 %2043
  %v2049 = vmul.f32 %v2029, %v2038
  %v2050 = vmul.f32 %v2030, %v2040
  %v2051 = vmul.f32 %v2031, %v2042
  %v2052 = vmul.f32 %v2032, %v2044
  %v2053 = vrot.slane %v1533, 5
  %v2054 = vrot.slane %v1533, 6
  %v2055 = vrot.slane %v1533, 7
  %2056 = vrot.lane.b32.xlu0 %v2053, 32
  %v2057 = vpop.permute.xlu0 %2056
  %2058 = vrot.lane.b32.xlu0 %v2054, 32
  %v2059 = vpop.permute.xlu0 %2058
  %2060 = vrot.lane.b32.xlu0 %v2055, 32
  %v2061 = vpop.permute.xlu0 %2060
  %2062 = vrot.lane.b32.xlu0 %v1533, 32
  %v2063 = vpop.permute.xlu0 %2062
  %v2068 = vmul.f32 %v1982, %v2057
  %v2069 = vmul.f32 %v1984, %v2059
  %v2070 = vmul.f32 %v1986, %v2061
  %v2071 = vmul.f32 %v1988, %v2063
  %v2072 = vadd.f32 %v2049, %v2068
  %v2073 = vadd.f32 %v2050, %v2069
  %v2074 = vadd.f32 %v2051, %v2070
  %v2075 = vadd.f32 %v2052, %v2071
  %2077 = vset.pattern.permute.xlu0 0
  %2078 = vperm.xlu0 %2077, %v1877
  %v2079 = vpop.permute.xlu0 %2078
  %v2085 = vrot.slane %v2072, 3
  %v2086 = vrot.slane %v2073, 2
  %v2087 = vsel %vm378, %v2086, %v2085
  %v2088 = vrot.slane %v2074, 1
  %v2089 = vsel %vm381, %v2088, %v2087
  %v2090 = vsel %vm384, %v2075, %v2089
  %2091 = vrot.lane.b32.xlu0 %v2090, 96
  %v2092 = vpop.permute.xlu0 %2091
  %v2094 = vmul.f32 %v2079, %v2092
  %v2095 = vsub.f32 1.0, %v1877
  %2097 = vset.pattern.permute.xlu0 0
  %2098 = vperm.xlu0 %2097, %v2095
  %v2099 = vpop.permute.xlu0 %2098
  %v2101 = vmul.f32 %v2099, %v1533
  %v2102 = vadd.f32 %v2094, %v2101
  %v2103 = vsel %vm186, %v1784, 0
  %2105 = vmatprep.subr.mxu0 0.0
  %2106 = vmatpush1.msra.mxu0 %v169
  %2107 = vmatprep.subr.mxu0 0.0
  %2108 = vmatpush1.msra.mxu0 %v170
  %2109 = vmatprep.subr.mxu0 0.0
  %2110 = vmatpush1.msra.mxu0 %v171
  %2111 = vmatprep.subr.mxu0 0.0
  %2112 = vmatpush1.msra.mxu0 %v172
  %2113 = vmatprep.subr.mxu0 0.0
  %2114 = vmatpush1.msra.mxu0 0.0
  %2115 = vmatprep.subr.mxu0 0.0
  %2116 = vmatpush1.msra.mxu0 0.0
  %2117 = vmatprep.subr.mxu0 0.0
  %2118 = vmatpush1.msra.mxu0 0.0
  %2119 = vmatprep.subr.mxu0 0.0
  %2120 = vmatpush1.msra.mxu0 0.0
  %2121 = vmatprep.subr.mxu0 0.0
  %2122 = vmatpush1.msra.mxu0 0.0
  %2123 = vmatprep.subr.mxu0 0.0
  %2124 = vmatpush1.msra.mxu0 0.0
  %2125 = vmatprep.subr.mxu0 0.0
  %2126 = vmatpush1.msra.mxu0 0.0
  %2127 = vmatprep.subr.mxu0 0.0
  %2128 = vmatpush1.msra.mxu0 0.0
  %2129 = vmatprep.subr.mxu0 0.0
  %2130 = vmatpush1.msra.mxu0 0.0
  %2131 = vmatprep.subr.mxu0 0.0
  %2132 = vmatpush1.msra.mxu0 0.0
  %2133 = vmatprep.subr.mxu0 0.0
  %2134 = vmatpush1.msra.mxu0 0.0
  %2135 = vmatprep.subr.mxu0 0.0
  %2136 = vmatpush1.msra.mxu0 0.0
  %2137 = vmatprep.subr.mxu0 0.0
  %2138 = vmatpush1.msra.mxu0 0.0
  %2139 = vmatprep.subr.mxu0 0.0
  %2140 = vmatpush1.msra.mxu0 0.0
  %2141 = vmatprep.subr.mxu0 0.0
  %2142 = vmatpush1.msra.mxu0 0.0
  %2143 = vmatprep.subr.mxu0 0.0
  %2144 = vmatpush1.msra.mxu0 0.0
  %2145 = vmatprep.subr.mxu0 0.0
  %2146 = vmatpush1.msra.mxu0 0.0
  %2147 = vmatprep.subr.mxu0 0.0
  %2148 = vmatpush1.msra.mxu0 0.0
  %2149 = vmatprep.subr.mxu0 0.0
  %2150 = vmatpush1.msra.mxu0 0.0
  %2151 = vmatprep.subr.mxu0 0.0
  %2152 = vmatpush1.msra.mxu0 0.0
  %2153 = vmatprep.subr.mxu0 0.0
  %2154 = vmatpush1.msra.mxu0 0.0
  %2155 = vmatprep.subr.mxu0 0.0
  %2156 = vmatpush1.msra.mxu0 0.0
  %2157 = vmatprep.subr.mxu0 0.0
  %2158 = vmatpush1.msra.mxu0 0.0
  %2159 = vmatprep.subr.mxu0 0.0
  %2160 = vmatpush1.msra.mxu0 0.0
  %2161 = vmatprep.subr.mxu0 0.0
  %2162 = vmatpush1.msra.mxu0 0.0
  %2163 = vmatprep.subr.mxu0 0.0
  %2164 = vmatpush1.msra.mxu0 0.0
  %2165 = vmatprep.subr.mxu0 0.0
  %2166 = vmatpush1.msra.mxu0 0.0
  %2167 = vmatprep.subr.mxu0 0.0
  %2168 = vmatpush1.msra.mxu0 0.0
  %2169 = vmatprep.mubr.f32.mxu0 0.0
  %2170 = vmatmul.mubr.f32.gmra.mrb[0].mxu0 %v2103
  %v2171 = vpop.f32.mrb[0].mxu0
  %v2172 = vadd.f32 %v402, %v2171
  %v2173 = vpop.f32.mrb[0].mxu0
  %2174 = vdwg.mxu0
  %v2176 = vrot.slane %v2172, 4
  %v2177 = vrot.slane %v2172, 5
  %v2178 = vrot.slane %v2172, 6
  %v2179 = vrot.slane %v2172, 7
  %2180 = vrot.lane.b32.xlu0 %v2176, 96
  %v2181 = vpop.permute.xlu0 %2180
  %2182 = vrot.lane.b32.xlu0 %v2177, 96
  %v2183 = vpop.permute.xlu0 %2182
  %2184 = vrot.lane.b32.xlu0 %v2178, 96
  %v2185 = vpop.permute.xlu0 %2184
  %2186 = vrot.lane.b32.xlu0 %v2179, 96
  %v2187 = vpop.permute.xlu0 %2186
  %v2192 = vadd.f32 %v141, %v2181
  %v2193 = vadd.f32 %v147, %v2183
  %v2194 = vadd.f32 %v153, %v2185
  %v2195 = vadd.f32 %v159, %v2187
  %v2196 = vxor.u32 %v2192, 2147483648
  %v2197 = vxor.u32 %v2193, 2147483648
  %v2198 = vxor.u32 %v2194, 2147483648
  %v2199 = vxor.u32 %v2195, 2147483648
  %v2200 = vmul.f32 %v2196, 1.442695
  %v2201 = vpow.pop %v2200
  %v2202 = vmul.f32 %v2197, 1.442695
  %v2203 = vpow.pop %v2202
  %v2204 = vmul.f32 %v2198, 1.442695
  %v2205 = vpow.pop %v2204
  %v2206 = vmul.f32 %v2199, 1.442695
  %v2207 = vpow.pop %v2206
  %v2208 = vadd.f32 %v2201, 1.0
  %v2209 = vadd.f32 %v2203, 1.0
  %v2210 = vadd.f32 %v2205, 1.0
  %v2211 = vadd.f32 %v2207, 1.0
  %v2212 = vrcp.pop %v2208
  %v2213 = vmul.f32 1.0, %v2212
  %v2214 = vrcp.pop %v2209
  %v2215 = vmul.f32 1.0, %v2214
  %v2216 = vrcp.pop %v2210
  %v2217 = vmul.f32 1.0, %v2216
  %v2218 = vrcp.pop %v2211
  %v2219 = vmul.f32 1.0, %v2218
  %v2220 = vadd.f32 %v143, %v2181
  %v2221 = vadd.f32 %v149, %v2183
  %v2222 = vadd.f32 %v155, %v2185
  %v2223 = vadd.f32 %v161, %v2187
  %v2224 = vxor.u32 %v2220, 2147483648
  %v2225 = vxor.u32 %v2221, 2147483648
  %v2226 = vxor.u32 %v2222, 2147483648
  %v2227 = vxor.u32 %v2223, 2147483648
  %v2228 = vmul.f32 %v2224, 1.442695
  %v2229 = vpow.pop %v2228
  %v2230 = vmul.f32 %v2225, 1.442695
  %v2231 = vpow.pop %v2230
  %v2232 = vmul.f32 %v2226, 1.442695
  %v2233 = vpow.pop %v2232
  %v2234 = vmul.f32 %v2227, 1.442695
  %v2235 = vpow.pop %v2234
  %v2236 = vadd.f32 %v2229, 1.0
  %v2237 = vadd.f32 %v2231, 1.0
  %v2238 = vadd.f32 %v2233, 1.0
  %v2239 = vadd.f32 %v2235, 1.0
  %v2240 = vrcp.pop %v2236
  %v2241 = vmul.f32 1.0, %v2240
  %v2242 = vrcp.pop %v2237
  %v2243 = vmul.f32 1.0, %v2242
  %v2244 = vrcp.pop %v2238
  %v2245 = vmul.f32 1.0, %v2244
  %v2246 = vrcp.pop %v2239
  %v2247 = vmul.f32 1.0, %v2246
  %2248 = vrot.lane.b32.xlu0 %v2176, 32
  %v2249 = vpop.permute.xlu0 %2248
  %2250 = vrot.lane.b32.xlu0 %v2177, 32
  %v2251 = vpop.permute.xlu0 %2250
  %2252 = vrot.lane.b32.xlu0 %v2178, 32
  %v2253 = vpop.permute.xlu0 %2252
  %2254 = vrot.lane.b32.xlu0 %v2179, 32
  %v2255 = vpop.permute.xlu0 %2254
  %v2260 = vmul.f32 %v2213, %v2249
  %v2261 = vmul.f32 %v2215, %v2251
  %v2262 = vmul.f32 %v2217, %v2253
  %v2263 = vmul.f32 %v2219, %v2255
  %2268 = vrot.lane.b32.xlu0 %v2260, 64
  %v2269 = vpop.permute.xlu0 %2268
  %2270 = vrot.lane.b32.xlu0 %v2261, 64
  %v2271 = vpop.permute.xlu0 %2270
  %2272 = vrot.lane.b32.xlu0 %v2262, 64
  %v2273 = vpop.permute.xlu0 %2272
  %2274 = vrot.lane.b32.xlu0 %v2263, 64
  %v2275 = vpop.permute.xlu0 %2274
  %v2280 = vadd.f32 %v143, %v2269
  %v2281 = vadd.f32 %v149, %v2271
  %v2282 = vadd.f32 %v155, %v2273
  %v2283 = vadd.f32 %v161, %v2275
  %v2284 = vtanh.pop %v2280
  %v2285 = vtanh.pop %v2281
  %v2286 = vtanh.pop %v2282
  %v2287 = vtanh.pop %v2283
  %v2288 = vsub.f32 1.0, %v2241
  %v2289 = vsub.f32 1.0, %v2243
  %v2290 = vsub.f32 1.0, %v2245
  %v2291 = vsub.f32 1.0, %v2247
  %2296 = vrot.lane.b32.xlu0 %v2284, 96
  %v2297 = vpop.permute.xlu0 %2296
  %2298 = vrot.lane.b32.xlu0 %v2285, 96
  %v2299 = vpop.permute.xlu0 %2298
  %2300 = vrot.lane.b32.xlu0 %v2286, 96
  %v2301 = vpop.permute.xlu0 %2300
  %2302 = vrot.lane.b32.xlu0 %v2287, 96
  %v2303 = vpop.permute.xlu0 %2302
  %v2308 = vmul.f32 %v2288, %v2297
  %v2309 = vmul.f32 %v2289, %v2299
  %v2310 = vmul.f32 %v2290, %v2301
  %v2311 = vmul.f32 %v2291, %v2303
  %v2312 = vrot.slane %v1784, 4
  %v2313 = vrot.slane %v1784, 5
  %v2314 = vrot.slane %v1784, 6
  %v2315 = vrot.slane %v1784, 7
  %v2320 = vmul.f32 %v2241, %v2312
  %v2321 = vmul.f32 %v2243, %v2313
  %v2322 = vmul.f32 %v2245, %v2314
  %v2323 = vmul.f32 %v2247, %v2315
  %v2324 = vadd.f32 %v2308, %v2320
  %v2325 = vadd.f32 %v2309, %v2321
  %v2326 = vadd.f32 %v2310, %v2322
  %v2327 = vadd.f32 %v2311, %v2323
  %2329 = vset.pattern.permute.xlu0 0
  %2330 = vperm.xlu0 %2329, %v1880
  %v2331 = vpop.permute.xlu0 %2330
  %v2337 = vrot.slane %v2324, 4
  %v2338 = vrot.slane %v2325, 3
  %v2339 = vsel %vm378, %v2338, %v2337
  %v2340 = vrot.slane %v2326, 2
  %v2341 = vsel %vm381, %v2340, %v2339
  %v2342 = vrot.slane %v2327, 1
  %v2343 = vsel %vm384, %v2342, %v2341
  %v2345 = vmul.f32 %v2331, %v2343
  %v2346 = vsub.f32 1.0, %v1880
  %2348 = vset.pattern.permute.xlu0 0
  %2349 = vperm.xlu0 %2348, %v2346
  %v2350 = vpop.permute.xlu0 %2349
  %v2352 = vmul.f32 %v2350, %v1784
  %v2353 = vadd.f32 %v2345, %v2352
  %v2356 = vunpack.c.l.s4 1966171168
  %v2357 = vunpack.c.0.s8 %v2356
  %v2358 = vlaneseq
  %v2359 = vshrl.u32 %v2358, 7
  %v2360 = vsub.s32 %v2357, %v2359
  %v2361 = vrot.slane %v2102, %v2360
  %v2362 = vcombine.high %v2361, %v2361
  %v2364 = vunpack.c.l.s4 1966171168
  %v2365 = vunpack.c.0.s8 %v2364
  %v2366 = vlaneseq
  %v2367 = vshrl.u32 %v2366, 7
  %v2368 = vsub.s32 %v2365, %v2367
  %v2369 = vrot.slane %v2361, %v2368
  %v2371 = vunpack.c.l.s4 1966171168
  %v2372 = vunpack.c.0.s8 %v2371
  %v2373 = vlaneseq
  %v2374 = vshrl.u32 %v2373, 7
  %v2375 = vsub.s32 %v2372, %v2374
  %v2376 = vrot.slane %v2362, %v2375
  %v2377 = vcombine.high %v2369, %v2369
  %v2378 = vcombine.high %v2376, %v2376
  %2383 = vst.msk [vmem:[%s8 + $0x3] sm:$0x1] %vm674, %v2369
  %2384 = vst.msk [vmem:[%s8 + $0xb] sm:$0x1] %vm674, %v2376
  %2385 = vst.msk [vmem:[%s8 + $0x13] sm:$0x1] %vm674, %v2377
  %2386 = vst.msk [vmem:[%s8 + $0x1b] sm:$0x1] %vm674, %v2378
  %v2389 = vunpack.c.l.s4 1966171168
  %v2390 = vunpack.c.0.s8 %v2389
  %v2391 = vlaneseq
  %v2392 = vshrl.u32 %v2391, 7
  %v2393 = vsub.s32 %v2390, %v2392
  %v2394 = vrot.slane %v2353, %v2393
  %v2395 = vcombine.high %v2394, %v2394
  %v2397 = vunpack.c.l.s4 1966171168
  %v2398 = vunpack.c.0.s8 %v2397
  %v2399 = vlaneseq
  %v2400 = vshrl.u32 %v2399, 7
  %v2401 = vsub.s32 %v2398, %v2400
  %v2402 = vrot.slane %v2394, %v2401
  %v2404 = vunpack.c.l.s4 1966171168
  %v2405 = vunpack.c.0.s8 %v2404
  %v2406 = vlaneseq
  %v2407 = vshrl.u32 %v2406, 7
  %v2408 = vsub.s32 %v2405, %v2407
  %v2409 = vrot.slane %v2395, %v2408
  %v2410 = vcombine.high %v2402, %v2402
  %v2411 = vcombine.high %v2409, %v2409
  %v2412 = vlaneseq
  %v2413 = vshrl.u32 %v2412, 7
  %v2414 = vsub.s32 0, %v2413
  %v2415 = vrot.slane %v2402, %v2414
  %v2416 = vlaneseq
  %v2417 = vshrl.u32 %v2416, 7
  %v2418 = vsub.s32 0, %v2417
  %v2419 = vrot.slane %v2409, %v2418
  %v2420 = vlaneseq
  %v2421 = vshrl.u32 %v2420, 7
  %v2422 = vsub.s32 0, %v2421
  %v2423 = vrot.slane %v2410, %v2422
  %v2424 = vlaneseq
  %v2425 = vshrl.u32 %v2424, 7
  %v2426 = vsub.s32 0, %v2425
  %v2427 = vrot.slane %v2411, %v2426
  %2428 = vrot.lane.b32.xlu0 %v2415, 32
  %v2429 = vpop.permute.xlu0 %2428
  %2430 = vrot.lane.b32.xlu0 %v2419, 32
  %v2431 = vpop.permute.xlu0 %2430
  %2432 = vrot.lane.b32.xlu0 %v2423, 32
  %v2433 = vpop.permute.xlu0 %2432
  %2434 = vrot.lane.b32.xlu0 %v2427, 32
  %v2435 = vpop.permute.xlu0 %2434
  %2440 = vst.msk [vmem:[%s8 + $0x4] sm:$0x1] %vm732, %v2429
  %2441 = vst.msk [vmem:[%s8 + $0xc] sm:$0x1] %vm732, %v2431
  %2442 = vst.msk [vmem:[%s8 + $0x14] sm:$0x1] %vm732, %v2433
  %2443 = vst.msk [vmem:[%s8 + $0x1c] sm:$0x1] %vm732, %v2435
  %v2444 = vsel %vm186, %v2102, 0
  %2446 = vmatprep.subr.mxu0 0.0
  %2447 = vmatpush1.msra.mxu0 %v164
  %2448 = vmatprep.subr.mxu0 0.0
  %2449 = vmatpush1.msra.mxu0 %v165
  %2450 = vmatprep.subr.mxu0 0.0
  %2451 = vmatpush1.msra.mxu0 %v166
  %2452 = vmatprep.subr.mxu0 0.0
  %2453 = vmatpush1.msra.mxu0 %v167
  %2454 = vmatprep.subr.mxu0 0.0
  %2455 = vmatpush1.msra.mxu0 0.0
  %2456 = vmatprep.subr.mxu0 0.0
  %2457 = vmatpush1.msra.mxu0 0.0
  %2458 = vmatprep.subr.mxu0 0.0
  %2459 = vmatpush1.msra.mxu0 0.0
  %2460 = vmatprep.subr.mxu0 0.0
  %2461 = vmatpush1.msra.mxu0 0.0
  %2462 = vmatprep.subr.mxu0 0.0
  %2463 = vmatpush1.msra.mxu0 0.0
  %2464 = vmatprep.subr.mxu0 0.0
  %2465 = vmatpush1.msra.mxu0 0.0
  %2466 = vmatprep.subr.mxu0 0.0
  %2467 = vmatpush1.msra.mxu0 0.0
  %2468 = vmatprep.subr.mxu0 0.0
  %2469 = vmatpush1.msra.mxu0 0.0
  %2470 = vmatprep.subr.mxu0 0.0
  %2471 = vmatpush1.msra.mxu0 0.0
  %2472 = vmatprep.subr.mxu0 0.0
  %2473 = vmatpush1.msra.mxu0 0.0
  %2474 = vmatprep.subr.mxu0 0.0
  %2475 = vmatpush1.msra.mxu0 0.0
  %2476 = vmatprep.subr.mxu0 0.0
  %2477 = vmatpush1.msra.mxu0 0.0
  %2478 = vmatprep.subr.mxu0 0.0
  %2479 = vmatpush1.msra.mxu0 0.0
  %2480 = vmatprep.subr.mxu0 0.0
  %2481 = vmatpush1.msra.mxu0 0.0
  %2482 = vmatprep.subr.mxu0 0.0
  %2483 = vmatpush1.msra.mxu0 0.0
  %2484 = vmatprep.subr.mxu0 0.0
  %2485 = vmatpush1.msra.mxu0 0.0
  %2486 = vmatprep.subr.mxu0 0.0
  %2487 = vmatpush1.msra.mxu0 0.0
  %2488 = vmatprep.subr.mxu0 0.0
  %2489 = vmatpush1.msra.mxu0 0.0
  %2490 = vmatprep.subr.mxu0 0.0
  %2491 = vmatpush1.msra.mxu0 0.0
  %2492 = vmatprep.subr.mxu0 0.0
  %2493 = vmatpush1.msra.mxu0 0.0
  %2494 = vmatprep.subr.mxu0 0.0
  %2495 = vmatpush1.msra.mxu0 0.0
  %2496 = vmatprep.subr.mxu0 0.0
  %2497 = vmatpush1.msra.mxu0 0.0
  %2498 = vmatprep.subr.mxu0 0.0
  %2499 = vmatpush1.msra.mxu0 0.0
  %2500 = vmatprep.subr.mxu0 0.0
  %2501 = vmatpush1.msra.mxu0 0.0
  %2502 = vmatprep.subr.mxu0 0.0
  %2503 = vmatpush1.msra.mxu0 0.0
  %2504 = vmatprep.subr.mxu0 0.0
  %2505 = vmatpush1.msra.mxu0 0.0
  %2506 = vmatprep.subr.mxu0 0.0
  %2507 = vmatpush1.msra.mxu0 0.0
  %2508 = vmatprep.subr.mxu0 0.0
  %2509 = vmatpush1.msra.mxu0 0.0
  %2510 = vmatprep.mubr.f32.mxu0 0.0
  %2511 = vmatmul.mubr.f32.gmra.mrb[0].mxu0 %v2444
  %v2512 = vpop.f32.mrb[0].mxu0
  %v2513 = vadd.f32 %v184, %v2512
  %v2514 = vpop.f32.mrb[0].mxu0
  %2515 = vdwg.mxu0
  %v2517 = vrot.slane %v2513, 4
  %v2518 = vrot.slane %v2513, 5
  %v2519 = vrot.slane %v2513, 6
  %v2520 = vrot.slane %v2513, 7
  %v2525 = vadd.f32 %v141, %v2517
  %v2526 = vadd.f32 %v147, %v2518
  %v2527 = vadd.f32 %v153, %v2519
  %v2528 = vadd.f32 %v159, %v2520
  %v2529 = vxor.u32 %v2525, 2147483648
  %v2530 = vxor.u32 %v2526, 2147483648
  %v2531 = vxor.u32 %v2527, 2147483648
  %v2532 = vxor.u32 %v2528, 2147483648
  %v2533 = vmul.f32 %v2529, 1.442695
  %v2534 = vpow.pop %v2533
  %v2535 = vmul.f32 %v2530, 1.442695
  %v2536 = vpow.pop %v2535
  %v2537 = vmul.f32 %v2531, 1.442695
  %v2538 = vpow.pop %v2537
  %v2539 = vmul.f32 %v2532, 1.442695
  %v2540 = vpow.pop %v2539
  %v2541 = vadd.f32 %v2534, 1.0
  %v2542 = vadd.f32 %v2536, 1.0
  %v2543 = vadd.f32 %v2538, 1.0
  %v2544 = vadd.f32 %v2540, 1.0
  %v2545 = vrcp.pop %v2541
  %v2546 = vmul.f32 1.0, %v2545
  %v2547 = vrcp.pop %v2542
  %v2548 = vmul.f32 1.0, %v2547
  %v2549 = vrcp.pop %v2543
  %v2550 = vmul.f32 1.0, %v2549
  %v2551 = vrcp.pop %v2544
  %v2552 = vmul.f32 1.0, %v2551
  %2553 = vrot.lane.b32.xlu0 %v2517, 64
  %v2554 = vpop.permute.xlu0 %2553
  %2555 = vrot.lane.b32.xlu0 %v2518, 64
  %v2556 = vpop.permute.xlu0 %2555
  %2557 = vrot.lane.b32.xlu0 %v2519, 64
  %v2558 = vpop.permute.xlu0 %2557
  %2559 = vrot.lane.b32.xlu0 %v2520, 64
  %v2560 = vpop.permute.xlu0 %2559
  %v2565 = vmul.f32 %v2546, %v2554
  %v2566 = vmul.f32 %v2548, %v2556
  %v2567 = vmul.f32 %v2550, %v2558
  %v2568 = vmul.f32 %v2552, %v2560
  %2573 = vrot.lane.b32.xlu0 %v2565, 64
  %v2574 = vpop.permute.xlu0 %2573
  %2575 = vrot.lane.b32.xlu0 %v2566, 64
  %v2576 = vpop.permute.xlu0 %2575
  %2577 = vrot.lane.b32.xlu0 %v2567, 64
  %v2578 = vpop.permute.xlu0 %2577
  %2579 = vrot.lane.b32.xlu0 %v2568, 64
  %v2580 = vpop.permute.xlu0 %2579
  %v2585 = vadd.f32 %v141, %v2574
  %v2586 = vadd.f32 %v147, %v2576
  %v2587 = vadd.f32 %v153, %v2578
  %v2588 = vadd.f32 %v159, %v2580
  %v2589 = vtanh.pop %v2585
  %v2590 = vtanh.pop %v2586
  %v2591 = vtanh.pop %v2587
  %v2592 = vtanh.pop %v2588
  %v2593 = vsub.f32 1.0, %v2546
  %v2594 = vsub.f32 1.0, %v2548
  %v2595 = vsub.f32 1.0, %v2550
  %v2596 = vsub.f32 1.0, %v2552
  %2601 = vrot.lane.b32.xlu0 %v2589, 96
  %v2602 = vpop.permute.xlu0 %2601
  %2603 = vrot.lane.b32.xlu0 %v2590, 96
  %v2604 = vpop.permute.xlu0 %2603
  %2605 = vrot.lane.b32.xlu0 %v2591, 96
  %v2606 = vpop.permute.xlu0 %2605
  %2607 = vrot.lane.b32.xlu0 %v2592, 96
  %v2608 = vpop.permute.xlu0 %2607
  %v2613 = vmul.f32 %v2593, %v2602
  %v2614 = vmul.f32 %v2594, %v2604
  %v2615 = vmul.f32 %v2595, %v2606
  %v2616 = vmul.f32 %v2596, %v2608
  %v2617 = vrot.slane %v2102, 4
  %v2618 = vrot.slane %v2102, 5
  %v2619 = vrot.slane %v2102, 6
  %v2620 = vrot.slane %v2102, 7
  %2621 = vrot.lane.b32.xlu0 %v2617, 32
  %v2622 = vpop.permute.xlu0 %2621
  %2623 = vrot.lane.b32.xlu0 %v2618, 32
  %v2624 = vpop.permute.xlu0 %2623
  %2625 = vrot.lane.b32.xlu0 %v2619, 32
  %v2626 = vpop.permute.xlu0 %2625
  %2627 = vrot.lane.b32.xlu0 %v2620, 32
  %v2628 = vpop.permute.xlu0 %2627
  %v2633 = vmul.f32 %v2546, %v2622
  %v2634 = vmul.f32 %v2548, %v2624
  %v2635 = vmul.f32 %v2550, %v2626
  %v2636 = vmul.f32 %v2552, %v2628
  %v2637 = vadd.f32 %v2613, %v2633
  %v2638 = vadd.f32 %v2614, %v2634
  %v2639 = vadd.f32 %v2615, %v2635
  %v2640 = vadd.f32 %v2616, %v2636
  %v2645 = vrot.slane %v2637, 4
  %v2646 = vrot.slane %v2638, 3
  %v2647 = vsel %vm378, %v2646, %v2645
  %v2648 = vrot.slane %v2639, 2
  %v2649 = vsel %vm381, %v2648, %v2647
  %v2650 = vrot.slane %v2640, 1
  %v2651 = vsel %vm384, %v2650, %v2649
  %2652 = vrot.lane.b32.xlu0 %v2651, 96
  %v2653 = vpop.permute.xlu0 %2652
  %v2655 = vmul.f32 %v2331, %v2653
  %v2656 = vmul.f32 %v2350, %v2102
  %v2657 = vadd.f32 %v2655, %v2656
  %v2658 = vsel %vm186, %v2353, 0
  %2660 = vmatprep.subr.mxu0 0.0
  %2661 = vmatpush1.msra.mxu0 %v169
  %2662 = vmatprep.subr.mxu0 0.0
  %2663 = vmatpush1.msra.mxu0 %v170
  %2664 = vmatprep.subr.mxu0 0.0
  %2665 = vmatpush1.msra.mxu0 %v171
  %2666 = vmatprep.subr.mxu0 0.0
  %2667 = vmatpush1.msra.mxu0 %v172
  %2668 = vmatprep.subr.mxu0 0.0
  %2669 = vmatpush1.msra.mxu0 0.0
  %2670 = vmatprep.subr.mxu0 0.0
  %2671 = vmatpush1.msra.mxu0 0.0
  %2672 = vmatprep.subr.mxu0 0.0
  %2673 = vmatpush1.msra.mxu0 0.0
  %2674 = vmatprep.subr.mxu0 0.0
  %2675 = vmatpush1.msra.mxu0 0.0
  %2676 = vmatprep.subr.mxu0 0.0
  %2677 = vmatpush1.msra.mxu0 0.0
  %2678 = vmatprep.subr.mxu0 0.0
  %2679 = vmatpush1.msra.mxu0 0.0
  %2680 = vmatprep.subr.mxu0 0.0
  %2681 = vmatpush1.msra.mxu0 0.0
  %2682 = vmatprep.subr.mxu0 0.0
  %2683 = vmatpush1.msra.mxu0 0.0
  %2684 = vmatprep.subr.mxu0 0.0
  %2685 = vmatpush1.msra.mxu0 0.0
  %2686 = vmatprep.subr.mxu0 0.0
  %2687 = vmatpush1.msra.mxu0 0.0
  %2688 = vmatprep.subr.mxu0 0.0
  %2689 = vmatpush1.msra.mxu0 0.0
  %2690 = vmatprep.subr.mxu0 0.0
  %2691 = vmatpush1.msra.mxu0 0.0
  %2692 = vmatprep.subr.mxu0 0.0
  %2693 = vmatpush1.msra.mxu0 0.0
  %2694 = vmatprep.subr.mxu0 0.0
  %2695 = vmatpush1.msra.mxu0 0.0
  %2696 = vmatprep.subr.mxu0 0.0
  %2697 = vmatpush1.msra.mxu0 0.0
  %2698 = vmatprep.subr.mxu0 0.0
  %2699 = vmatpush1.msra.mxu0 0.0
  %2700 = vmatprep.subr.mxu0 0.0
  %2701 = vmatpush1.msra.mxu0 0.0
  %2702 = vmatprep.subr.mxu0 0.0
  %2703 = vmatpush1.msra.mxu0 0.0
  %2704 = vmatprep.subr.mxu0 0.0
  %2705 = vmatpush1.msra.mxu0 0.0
  %2706 = vmatprep.subr.mxu0 0.0
  %2707 = vmatpush1.msra.mxu0 0.0
  %2708 = vmatprep.subr.mxu0 0.0
  %2709 = vmatpush1.msra.mxu0 0.0
  %2710 = vmatprep.subr.mxu0 0.0
  %2711 = vmatpush1.msra.mxu0 0.0
  %2712 = vmatprep.subr.mxu0 0.0
  %2713 = vmatpush1.msra.mxu0 0.0
  %2714 = vmatprep.subr.mxu0 0.0
  %2715 = vmatpush1.msra.mxu0 0.0
  %2716 = vmatprep.subr.mxu0 0.0
  %2717 = vmatpush1.msra.mxu0 0.0
  %2718 = vmatprep.subr.mxu0 0.0
  %2719 = vmatpush1.msra.mxu0 0.0
  %2720 = vmatprep.subr.mxu0 0.0
  %2721 = vmatpush1.msra.mxu0 0.0
  %2722 = vmatprep.subr.mxu0 0.0
  %2723 = vmatpush1.msra.mxu0 0.0
  %2724 = vmatprep.mubr.f32.mxu0 0.0
  %2725 = vmatmul.mubr.f32.gmra.mrb[0].mxu0 %v2658
  %v2726 = vpop.f32.mrb[0].mxu0
  %v2727 = vadd.f32 %v402, %v2726
  %v2728 = vpop.f32.mrb[0].mxu0
  %2729 = vdwg.mxu0
  %v2731 = vrot.slane %v2727, 5
  %v2732 = vrot.slane %v2727, 6
  %v2733 = vrot.slane %v2727, 7
  %2734 = vrot.lane.b32.xlu0 %v2731, 96
  %v2735 = vpop.permute.xlu0 %2734
  %2736 = vrot.lane.b32.xlu0 %v2732, 96
  %v2737 = vpop.permute.xlu0 %2736
  %2738 = vrot.lane.b32.xlu0 %v2733, 96
  %v2739 = vpop.permute.xlu0 %2738
  %2740 = vrot.lane.b32.xlu0 %v2727, 96
  %v2741 = vpop.permute.xlu0 %2740
  %v2746 = vadd.f32 %v141, %v2735
  %v2747 = vadd.f32 %v147, %v2737
  %v2748 = vadd.f32 %v153, %v2739
  %v2749 = vadd.f32 %v159, %v2741
  %v2750 = vxor.u32 %v2746, 2147483648
  %v2751 = vxor.u32 %v2747, 2147483648
  %v2752 = vxor.u32 %v2748, 2147483648
  %v2753 = vxor.u32 %v2749, 2147483648
  %v2754 = vmul.f32 %v2750, 1.442695
  %v2755 = vpow.pop %v2754
  %v2756 = vmul.f32 %v2751, 1.442695
  %v2757 = vpow.pop %v2756
  %v2758 = vmul.f32 %v2752, 1.442695
  %v2759 = vpow.pop %v2758
  %v2760 = vmul.f32 %v2753, 1.442695
  %v2761 = vpow.pop %v2760
  %v2762 = vadd.f32 %v2755, 1.0
  %v2763 = vadd.f32 %v2757, 1.0
  %v2764 = vadd.f32 %v2759, 1.0
  %v2765 = vadd.f32 %v2761, 1.0
  %v2766 = vrcp.pop %v2762
  %v2767 = vmul.f32 1.0, %v2766
  %v2768 = vrcp.pop %v2763
  %v2769 = vmul.f32 1.0, %v2768
  %v2770 = vrcp.pop %v2764
  %v2771 = vmul.f32 1.0, %v2770
  %v2772 = vrcp.pop %v2765
  %v2773 = vmul.f32 1.0, %v2772
  %v2774 = vadd.f32 %v143, %v2735
  %v2775 = vadd.f32 %v149, %v2737
  %v2776 = vadd.f32 %v155, %v2739
  %v2777 = vadd.f32 %v161, %v2741
  %v2778 = vxor.u32 %v2774, 2147483648
  %v2779 = vxor.u32 %v2775, 2147483648
  %v2780 = vxor.u32 %v2776, 2147483648
  %v2781 = vxor.u32 %v2777, 2147483648
  %v2782 = vmul.f32 %v2778, 1.442695
  %v2783 = vpow.pop %v2782
  %v2784 = vmul.f32 %v2779, 1.442695
  %v2785 = vpow.pop %v2784
  %v2786 = vmul.f32 %v2780, 1.442695
  %v2787 = vpow.pop %v2786
  %v2788 = vmul.f32 %v2781, 1.442695
  %v2789 = vpow.pop %v2788
  %v2790 = vadd.f32 %v2783, 1.0
  %v2791 = vadd.f32 %v2785, 1.0
  %v2792 = vadd.f32 %v2787, 1.0
  %v2793 = vadd.f32 %v2789, 1.0
  %v2794 = vrcp.pop %v2790
  %v2795 = vmul.f32 1.0, %v2794
  %v2796 = vrcp.pop %v2791
  %v2797 = vmul.f32 1.0, %v2796
  %v2798 = vrcp.pop %v2792
  %v2799 = vmul.f32 1.0, %v2798
  %v2800 = vrcp.pop %v2793
  %v2801 = vmul.f32 1.0, %v2800
  %2802 = vrot.lane.b32.xlu0 %v2731, 32
  %v2803 = vpop.permute.xlu0 %2802
  %2804 = vrot.lane.b32.xlu0 %v2732, 32
  %v2805 = vpop.permute.xlu0 %2804
  %2806 = vrot.lane.b32.xlu0 %v2733, 32
  %v2807 = vpop.permute.xlu0 %2806
  %2808 = vrot.lane.b32.xlu0 %v2727, 32
  %v2809 = vpop.permute.xlu0 %2808
  %v2814 = vmul.f32 %v2767, %v2803
  %v2815 = vmul.f32 %v2769, %v2805
  %v2816 = vmul.f32 %v2771, %v2807
  %v2817 = vmul.f32 %v2773, %v2809
  %2822 = vrot.lane.b32.xlu0 %v2814, 64
  %v2823 = vpop.permute.xlu0 %2822
  %2824 = vrot.lane.b32.xlu0 %v2815, 64
  %v2825 = vpop.permute.xlu0 %2824
  %2826 = vrot.lane.b32.xlu0 %v2816, 64
  %v2827 = vpop.permute.xlu0 %2826
  %2828 = vrot.lane.b32.xlu0 %v2817, 64
  %v2829 = vpop.permute.xlu0 %2828
  %v2834 = vadd.f32 %v143, %v2823
  %v2835 = vadd.f32 %v149, %v2825
  %v2836 = vadd.f32 %v155, %v2827
  %v2837 = vadd.f32 %v161, %v2829
  %v2838 = vtanh.pop %v2834
  %v2839 = vtanh.pop %v2835
  %v2840 = vtanh.pop %v2836
  %v2841 = vtanh.pop %v2837
  %v2842 = vsub.f32 1.0, %v2795
  %v2843 = vsub.f32 1.0, %v2797
  %v2844 = vsub.f32 1.0, %v2799
  %v2845 = vsub.f32 1.0, %v2801
  %2850 = vrot.lane.b32.xlu0 %v2838, 96
  %v2851 = vpop.permute.xlu0 %2850
  %2852 = vrot.lane.b32.xlu0 %v2839, 96
  %v2853 = vpop.permute.xlu0 %2852
  %2854 = vrot.lane.b32.xlu0 %v2840, 96
  %v2855 = vpop.permute.xlu0 %2854
  %2856 = vrot.lane.b32.xlu0 %v2841, 96
  %v2857 = vpop.permute.xlu0 %2856
  %v2862 = vmul.f32 %v2842, %v2851
  %v2863 = vmul.f32 %v2843, %v2853
  %v2864 = vmul.f32 %v2844, %v2855
  %v2865 = vmul.f32 %v2845, %v2857
  %v2866 = vrot.slane %v2353, 5
  %v2867 = vrot.slane %v2353, 6
  %v2868 = vrot.slane %v2353, 7
  %v2873 = vmul.f32 %v2795, %v2866
  %v2874 = vmul.f32 %v2797, %v2867
  %v2875 = vmul.f32 %v2799, %v2868
  %v2876 = vmul.f32 %v2801, %v2353
  %v2877 = vadd.f32 %v2862, %v2873
  %v2878 = vadd.f32 %v2863, %v2874
  %v2879 = vadd.f32 %v2864, %v2875
  %v2880 = vadd.f32 %v2865, %v2876
  %v2885 = vrot.slane %v2877, 3
  %v2886 = vrot.slane %v2878, 2
  %v2887 = vsel %vm378, %v2886, %v2885
  %v2888 = vrot.slane %v2879, 1
  %v2889 = vsel %vm381, %v2888, %v2887
  %v2890 = vsel %vm384, %v2880, %v2889
  %v2892 = vmul.f32 %v2079, %v2890
  %v2893 = vmul.f32 %v2099, %v2353
  %v2894 = vadd.f32 %v2892, %v2893
  %v2897 = vunpack.c.l.s4 1966171168
  %v2898 = vunpack.c.0.s8 %v2897
  %v2899 = vlaneseq
  %v2900 = vshrl.u32 %v2899, 7
  %v2901 = vsub.s32 %v2898, %v2900
  %v2902 = vrot.slane %v2657, %v2901
  %v2903 = vcombine.high %v2902, %v2902
  %v2905 = vunpack.c.l.s4 1966171168
  %v2906 = vunpack.c.0.s8 %v2905
  %v2907 = vlaneseq
  %v2908 = vshrl.u32 %v2907, 7
  %v2909 = vsub.s32 %v2906, %v2908
  %v2910 = vrot.slane %v2902, %v2909
  %v2912 = vunpack.c.l.s4 1966171168
  %v2913 = vunpack.c.0.s8 %v2912
  %v2914 = vlaneseq
  %v2915 = vshrl.u32 %v2914, 7
  %v2916 = vsub.s32 %v2913, %v2915
  %v2917 = vrot.slane %v2903, %v2916
  %v2918 = vcombine.high %v2910, %v2910
  %v2919 = vcombine.high %v2917, %v2917
  %2924 = vst.msk [vmem:[%s8 + $0x4] sm:$0x1] %vm674, %v2910
  %2925 = vst.msk [vmem:[%s8 + $0xc] sm:$0x1] %vm674, %v2917
  %2926 = vst.msk [vmem:[%s8 + $0x14] sm:$0x1] %vm674, %v2918
  %2927 = vst.msk [vmem:[%s8 + $0x1c] sm:$0x1] %vm674, %v2919
  %v2930 = vunpack.c.l.s4 1966171168
  %v2931 = vunpack.c.0.s8 %v2930
  %v2932 = vlaneseq
  %v2933 = vshrl.u32 %v2932, 7
  %v2934 = vsub.s32 %v2931, %v2933
  %v2935 = vrot.slane %v2894, %v2934
  %v2936 = vcombine.high %v2935, %v2935
  %v2938 = vunpack.c.l.s4 1966171168
  %v2939 = vunpack.c.0.s8 %v2938
  %v2940 = vlaneseq
  %v2941 = vshrl.u32 %v2940, 7
  %v2942 = vsub.s32 %v2939, %v2941
  %v2943 = vrot.slane %v2935, %v2942
  %v2945 = vunpack.c.l.s4 1966171168
  %v2946 = vunpack.c.0.s8 %v2945
  %v2947 = vlaneseq
  %v2948 = vshrl.u32 %v2947, 7
  %v2949 = vsub.s32 %v2946, %v2948
  %v2950 = vrot.slane %v2936, %v2949
  %v2951 = vcombine.high %v2943, %v2943
  %v2952 = vcombine.high %v2950, %v2950
  %v2953 = vlaneseq
  %v2954 = vshrl.u32 %v2953, 7
  %v2955 = vsub.s32 0, %v2954
  %v2956 = vrot.slane %v2943, %v2955
  %v2957 = vlaneseq
  %v2958 = vshrl.u32 %v2957, 7
  %v2959 = vsub.s32 0, %v2958
  %v2960 = vrot.slane %v2950, %v2959
  %v2961 = vlaneseq
  %v2962 = vshrl.u32 %v2961, 7
  %v2963 = vsub.s32 0, %v2962
  %v2964 = vrot.slane %v2951, %v2963
  %v2965 = vlaneseq
  %v2966 = vshrl.u32 %v2965, 7
  %v2967 = vsub.s32 0, %v2966
  %v2968 = vrot.slane %v2952, %v2967
  %2969 = vrot.lane.b32.xlu0 %v2956, 32
  %v2970 = vpop.permute.xlu0 %2969
  %2971 = vrot.lane.b32.xlu0 %v2960, 32
  %v2972 = vpop.permute.xlu0 %2971
  %2973 = vrot.lane.b32.xlu0 %v2964, 32
  %v2974 = vpop.permute.xlu0 %2973
  %2975 = vrot.lane.b32.xlu0 %v2968, 32
  %v2976 = vpop.permute.xlu0 %2975
  %2981 = vst.msk [vmem:[%s8 + $0x3] sm:$0x1] %vm732, %v2970
  %2982 = vst.msk [vmem:[%s8 + $0xb] sm:$0x1] %vm732, %v2972
  %2983 = vst.msk [vmem:[%s8 + $0x13] sm:$0x1] %vm732, %v2974
  %2984 = vst.msk [vmem:[%s8 + $0x1b] sm:$0x1] %vm732, %v2976
  %v2985 = vsel %vm186, %v2657, 0
  %2987 = vmatprep.subr.mxu0 0.0
  %2988 = vmatpush1.msra.mxu0 %v164
  %2989 = vmatprep.subr.mxu0 0.0
  %2990 = vmatpush1.msra.mxu0 %v165
  %2991 = vmatprep.subr.mxu0 0.0
  %2992 = vmatpush1.msra.mxu0 %v166
  %2993 = vmatprep.subr.mxu0 0.0
  %2994 = vmatpush1.msra.mxu0 %v167
  %2995 = vmatprep.subr.mxu0 0.0
  %2996 = vmatpush1.msra.mxu0 0.0
  %2997 = vmatprep.subr.mxu0 0.0
  %2998 = vmatpush1.msra.mxu0 0.0
  %2999 = vmatprep.subr.mxu0 0.0
  %3000 = vmatpush1.msra.mxu0 0.0
  %3001 = vmatprep.subr.mxu0 0.0
  %3002 = vmatpush1.msra.mxu0 0.0
  %3003 = vmatprep.subr.mxu0 0.0
  %3004 = vmatpush1.msra.mxu0 0.0
  %3005 = vmatprep.subr.mxu0 0.0
  %3006 = vmatpush1.msra.mxu0 0.0
  %3007 = vmatprep.subr.mxu0 0.0
  %3008 = vmatpush1.msra.mxu0 0.0
  %3009 = vmatprep.subr.mxu0 0.0
  %3010 = vmatpush1.msra.mxu0 0.0
  %3011 = vmatprep.subr.mxu0 0.0
  %3012 = vmatpush1.msra.mxu0 0.0
  %3013 = vmatprep.subr.mxu0 0.0
  %3014 = vmatpush1.msra.mxu0 0.0
  %3015 = vmatprep.subr.mxu0 0.0
  %3016 = vmatpush1.msra.mxu0 0.0
  %3017 = vmatprep.subr.mxu0 0.0
  %3018 = vmatpush1.msra.mxu0 0.0
  %3019 = vmatprep.subr.mxu0 0.0
  %3020 = vmatpush1.msra.mxu0 0.0
  %3021 = vmatprep.subr.mxu0 0.0
  %3022 = vmatpush1.msra.mxu0 0.0
  %3023 = vmatprep.subr.mxu0 0.0
  %3024 = vmatpush1.msra.mxu0 0.0
  %3025 = vmatprep.subr.mxu0 0.0
  %3026 = vmatpush1.msra.mxu0 0.0
  %3027 = vmatprep.subr.mxu0 0.0
  %3028 = vmatpush1.msra.mxu0 0.0
  %3029 = vmatprep.subr.mxu0 0.0
  %3030 = vmatpush1.msra.mxu0 0.0
  %3031 = vmatprep.subr.mxu0 0.0
  %3032 = vmatpush1.msra.mxu0 0.0
  %3033 = vmatprep.subr.mxu0 0.0
  %3034 = vmatpush1.msra.mxu0 0.0
  %3035 = vmatprep.subr.mxu0 0.0
  %3036 = vmatpush1.msra.mxu0 0.0
  %3037 = vmatprep.subr.mxu0 0.0
  %3038 = vmatpush1.msra.mxu0 0.0
  %3039 = vmatprep.subr.mxu0 0.0
  %3040 = vmatpush1.msra.mxu0 0.0
  %3041 = vmatprep.subr.mxu0 0.0
  %3042 = vmatpush1.msra.mxu0 0.0
  %3043 = vmatprep.subr.mxu0 0.0
  %3044 = vmatpush1.msra.mxu0 0.0
  %3045 = vmatprep.subr.mxu0 0.0
  %3046 = vmatpush1.msra.mxu0 0.0
  %3047 = vmatprep.subr.mxu0 0.0
  %3048 = vmatpush1.msra.mxu0 0.0
  %3049 = vmatprep.subr.mxu0 0.0
  %3050 = vmatpush1.msra.mxu0 0.0
  %3051 = vmatprep.mubr.f32.mxu0 0.0
  %3052 = vmatmul.mubr.f32.gmra.mrb[0].mxu0 %v2985
  %v3053 = vpop.f32.mrb[0].mxu0
  %v3054 = vadd.f32 %v184, %v3053
  %v3055 = vpop.f32.mrb[0].mxu0
  %3056 = vdwg.mxu0
  %v3058 = vrot.slane %v3054, 3
  %v3059 = vrot.slane %v3054, 4
  %v3060 = vrot.slane %v3054, 5
  %v3061 = vrot.slane %v3054, 6
  %v3066 = vadd.f32 %v141, %v3058
  %v3067 = vadd.f32 %v147, %v3059
  %v3068 = vadd.f32 %v153, %v3060
  %v3069 = vadd.f32 %v159, %v3061
  %v3070 = vxor.u32 %v3066, 2147483648
  %v3071 = vxor.u32 %v3067, 2147483648
  %v3072 = vxor.u32 %v3068, 2147483648
  %v3073 = vxor.u32 %v3069, 2147483648
  %v3074 = vmul.f32 %v3070, 1.442695
  %v3075 = vpow.pop %v3074
  %v3076 = vmul.f32 %v3071, 1.442695
  %v3077 = vpow.pop %v3076
  %v3078 = vmul.f32 %v3072, 1.442695
  %v3079 = vpow.pop %v3078
  %v3080 = vmul.f32 %v3073, 1.442695
  %v3081 = vpow.pop %v3080
  %v3082 = vadd.f32 %v3075, 1.0
  %v3083 = vadd.f32 %v3077, 1.0
  %v3084 = vadd.f32 %v3079, 1.0
  %v3085 = vadd.f32 %v3081, 1.0
  %v3086 = vrcp.pop %v3082
  %v3087 = vmul.f32 1.0, %v3086
  %v3088 = vrcp.pop %v3083
  %v3089 = vmul.f32 1.0, %v3088
  %v3090 = vrcp.pop %v3084
  %v3091 = vmul.f32 1.0, %v3090
  %v3092 = vrcp.pop %v3085
  %v3093 = vmul.f32 1.0, %v3092
  %3094 = vrot.lane.b32.xlu0 %v3058, 64
  %v3095 = vpop.permute.xlu0 %3094
  %3096 = vrot.lane.b32.xlu0 %v3059, 64
  %v3097 = vpop.permute.xlu0 %3096
  %3098 = vrot.lane.b32.xlu0 %v3060, 64
  %v3099 = vpop.permute.xlu0 %3098
  %3100 = vrot.lane.b32.xlu0 %v3061, 64
  %v3101 = vpop.permute.xlu0 %3100
  %v3106 = vmul.f32 %v3087, %v3095
  %v3107 = vmul.f32 %v3089, %v3097
  %v3108 = vmul.f32 %v3091, %v3099
  %v3109 = vmul.f32 %v3093, %v3101
  %3114 = vrot.lane.b32.xlu0 %v3106, 64
  %v3115 = vpop.permute.xlu0 %3114
  %3116 = vrot.lane.b32.xlu0 %v3107, 64
  %v3117 = vpop.permute.xlu0 %3116
  %3118 = vrot.lane.b32.xlu0 %v3108, 64
  %v3119 = vpop.permute.xlu0 %3118
  %3120 = vrot.lane.b32.xlu0 %v3109, 64
  %v3121 = vpop.permute.xlu0 %3120
  %v3126 = vadd.f32 %v141, %v3115
  %v3127 = vadd.f32 %v147, %v3117
  %v3128 = vadd.f32 %v153, %v3119
  %v3129 = vadd.f32 %v159, %v3121
  %v3130 = vtanh.pop %v3126
  %v3131 = vtanh.pop %v3127
  %v3132 = vtanh.pop %v3128
  %v3133 = vtanh.pop %v3129
  %v3134 = vsub.f32 1.0, %v3087
  %v3135 = vsub.f32 1.0, %v3089
  %v3136 = vsub.f32 1.0, %v3091
  %v3137 = vsub.f32 1.0, %v3093
  %3142 = vrot.lane.b32.xlu0 %v3130, 96
  %v3143 = vpop.permute.xlu0 %3142
  %3144 = vrot.lane.b32.xlu0 %v3131, 96
  %v3145 = vpop.permute.xlu0 %3144
  %3146 = vrot.lane.b32.xlu0 %v3132, 96
  %v3147 = vpop.permute.xlu0 %3146
  %3148 = vrot.lane.b32.xlu0 %v3133, 96
  %v3149 = vpop.permute.xlu0 %3148
  %v3154 = vmul.f32 %v3134, %v3143
  %v3155 = vmul.f32 %v3135, %v3145
  %v3156 = vmul.f32 %v3136, %v3147
  %v3157 = vmul.f32 %v3137, %v3149
  %v3158 = vrot.slane %v2657, 3
  %v3159 = vrot.slane %v2657, 4
  %v3160 = vrot.slane %v2657, 5
  %v3161 = vrot.slane %v2657, 6
  %3162 = vrot.lane.b32.xlu0 %v3158, 32
  %v3163 = vpop.permute.xlu0 %3162
  %3164 = vrot.lane.b32.xlu0 %v3159, 32
  %v3165 = vpop.permute.xlu0 %3164
  %3166 = vrot.lane.b32.xlu0 %v3160, 32
  %v3167 = vpop.permute.xlu0 %3166
  %3168 = vrot.lane.b32.xlu0 %v3161, 32
  %v3169 = vpop.permute.xlu0 %3168
  %v3174 = vmul.f32 %v3087, %v3163
  %v3175 = vmul.f32 %v3089, %v3165
  %v3176 = vmul.f32 %v3091, %v3167
  %v3177 = vmul.f32 %v3093, %v3169
  %v3178 = vadd.f32 %v3154, %v3174
  %v3179 = vadd.f32 %v3155, %v3175
  %v3180 = vadd.f32 %v3156, %v3176
  %v3181 = vadd.f32 %v3157, %v3177
  %v3186 = vrot.slane %v3178, 5
  %v3187 = vrot.slane %v3179, 4
  %v3188 = vsel %vm378, %v3187, %v3186
  %v3189 = vrot.slane %v3180, 3
  %v3190 = vsel %vm381, %v3189, %v3188
  %v3191 = vrot.slane %v3181, 2
  %v3192 = vsel %vm384, %v3191, %v3190
  %3193 = vrot.lane.b32.xlu0 %v3192, 96
  %v3194 = vpop.permute.xlu0 %3193
  %v3196 = vmul.f32 %v1762, %v3194
  %v3197 = vmul.f32 %v1781, %v2657
  %v3198 = vadd.f32 %v3196, %v3197
  %v3199 = vsel %vm186, %v2894, 0
  %3201 = vmatprep.subr.mxu0 0.0
  %3202 = vmatpush1.msra.mxu0 %v169
  %3203 = vmatprep.subr.mxu0 0.0
  %3204 = vmatpush1.msra.mxu0 %v170
  %3205 = vmatprep.subr.mxu0 0.0
  %3206 = vmatpush1.msra.mxu0 %v171
  %3207 = vmatprep.subr.mxu0 0.0
  %3208 = vmatpush1.msra.mxu0 %v172
  %3209 = vmatprep.subr.mxu0 0.0
  %3210 = vmatpush1.msra.mxu0 0.0
  %3211 = vmatprep.subr.mxu0 0.0
  %3212 = vmatpush1.msra.mxu0 0.0
  %3213 = vmatprep.subr.mxu0 0.0
  %3214 = vmatpush1.msra.mxu0 0.0
  %3215 = vmatprep.subr.mxu0 0.0
  %3216 = vmatpush1.msra.mxu0 0.0
  %3217 = vmatprep.subr.mxu0 0.0
  %3218 = vmatpush1.msra.mxu0 0.0
  %3219 = vmatprep.subr.mxu0 0.0
  %3220 = vmatpush1.msra.mxu0 0.0
  %3221 = vmatprep.subr.mxu0 0.0
  %3222 = vmatpush1.msra.mxu0 0.0
  %3223 = vmatprep.subr.mxu0 0.0
  %3224 = vmatpush1.msra.mxu0 0.0
  %3225 = vmatprep.subr.mxu0 0.0
  %3226 = vmatpush1.msra.mxu0 0.0
  %3227 = vmatprep.subr.mxu0 0.0
  %3228 = vmatpush1.msra.mxu0 0.0
  %3229 = vmatprep.subr.mxu0 0.0
  %3230 = vmatpush1.msra.mxu0 0.0
  %3231 = vmatprep.subr.mxu0 0.0
  %3232 = vmatpush1.msra.mxu0 0.0
  %3233 = vmatprep.subr.mxu0 0.0
  %3234 = vmatpush1.msra.mxu0 0.0
  %3235 = vmatprep.subr.mxu0 0.0
  %3236 = vmatpush1.msra.mxu0 0.0
  %3237 = vmatprep.subr.mxu0 0.0
  %3238 = vmatpush1.msra.mxu0 0.0
  %3239 = vmatprep.subr.mxu0 0.0
  %3240 = vmatpush1.msra.mxu0 0.0
  %3241 = vmatprep.subr.mxu0 0.0
  %3242 = vmatpush1.msra.mxu0 0.0
  %3243 = vmatprep.subr.mxu0 0.0
  %3244 = vmatpush1.msra.mxu0 0.0
  %3245 = vmatprep.subr.mxu0 0.0
  %3246 = vmatpush1.msra.mxu0 0.0
  %3247 = vmatprep.subr.mxu0 0.0
  %3248 = vmatpush1.msra.mxu0 0.0
  %3249 = vmatprep.subr.mxu0 0.0
  %3250 = vmatpush1.msra.mxu0 0.0
  %3251 = vmatprep.subr.mxu0 0.0
  %3252 = vmatpush1.msra.mxu0 0.0
  %3253 = vmatprep.subr.mxu0 0.0
  %3254 = vmatpush1.msra.mxu0 0.0
  %3255 = vmatprep.subr.mxu0 0.0
  %3256 = vmatpush1.msra.mxu0 0.0
  %3257 = vmatprep.subr.mxu0 0.0
  %3258 = vmatpush1.msra.mxu0 0.0
  %3259 = vmatprep.subr.mxu0 0.0
  %3260 = vmatpush1.msra.mxu0 0.0
  %3261 = vmatprep.subr.mxu0 0.0
  %3262 = vmatpush1.msra.mxu0 0.0
  %3263 = vmatprep.subr.mxu0 0.0
  %3264 = vmatpush1.msra.mxu0 0.0
  %3265 = vmatprep.mubr.f32.mxu0 0.0
  %3266 = vmatmul.mubr.f32.gmra.mrb[0].mxu0 %v3199
  %v3267 = vpop.f32.mrb[0].mxu0
  %v3268 = vadd.f32 %v402, %v3267
  %v3269 = vpop.f32.mrb[0].mxu0
  %3270 = vdwg.mxu0
  %v3272 = vrot.slane %v3268, 6
  %v3273 = vrot.slane %v3268, 7
  %v3274 = vrot.slane %v3268, 1
  %3275 = vrot.lane.b32.xlu0 %v3272, 96
  %v3276 = vpop.permute.xlu0 %3275
  %3277 = vrot.lane.b32.xlu0 %v3273, 96
  %v3278 = vpop.permute.xlu0 %3277
  %3279 = vrot.lane.b32.xlu0 %v3268, 96
  %v3280 = vpop.permute.xlu0 %3279
  %3281 = vrot.lane.b32.xlu0 %v3274, 96
  %v3282 = vpop.permute.xlu0 %3281
  %v3287 = vadd.f32 %v141, %v3276
  %v3288 = vadd.f32 %v147, %v3278
  %v3289 = vadd.f32 %v153, %v3280
  %v3290 = vadd.f32 %v159, %v3282
  %v3291 = vxor.u32 %v3287, 2147483648
  %v3292 = vxor.u32 %v3288, 2147483648
  %v3293 = vxor.u32 %v3289, 2147483648
  %v3294 = vxor.u32 %v3290, 2147483648
  %v3295 = vmul.f32 %v3291, 1.442695
  %v3296 = vpow.pop %v3295
  %v3297 = vmul.f32 %v3292, 1.442695
  %v3298 = vpow.pop %v3297
  %v3299 = vmul.f32 %v3293, 1.442695
  %v3300 = vpow.pop %v3299
  %v3301 = vmul.f32 %v3294, 1.442695
  %v3302 = vpow.pop %v3301
  %v3303 = vadd.f32 %v3296, 1.0
  %v3304 = vadd.f32 %v3298, 1.0
  %v3305 = vadd.f32 %v3300, 1.0
  %v3306 = vadd.f32 %v3302, 1.0
  %v3307 = vrcp.pop %v3303
  %v3308 = vmul.f32 1.0, %v3307
  %v3309 = vrcp.pop %v3304
  %v3310 = vmul.f32 1.0, %v3309
  %v3311 = vrcp.pop %v3305
  %v3312 = vmul.f32 1.0, %v3311
  %v3313 = vrcp.pop %v3306
  %v3314 = vmul.f32 1.0, %v3313
  %v3315 = vadd.f32 %v143, %v3276
  %v3316 = vadd.f32 %v149, %v3278
  %v3317 = vadd.f32 %v155, %v3280
  %v3318 = vadd.f32 %v161, %v3282
  %v3319 = vxor.u32 %v3315, 2147483648
  %v3320 = vxor.u32 %v3316, 2147483648
  %v3321 = vxor.u32 %v3317, 2147483648
  %v3322 = vxor.u32 %v3318, 2147483648
  %v3323 = vmul.f32 %v3319, 1.442695
  %v3324 = vpow.pop %v3323
  %v3325 = vmul.f32 %v3320, 1.442695
  %v3326 = vpow.pop %v3325
  %v3327 = vmul.f32 %v3321, 1.442695
  %v3328 = vpow.pop %v3327
  %v3329 = vmul.f32 %v3322, 1.442695
  %v3330 = vpow.pop %v3329
  %v3331 = vadd.f32 %v3324, 1.0
  %v3332 = vadd.f32 %v3326, 1.0
  %v3333 = vadd.f32 %v3328, 1.0
  %v3334 = vadd.f32 %v3330, 1.0
  %v3335 = vrcp.pop %v3331
  %v3336 = vmul.f32 1.0, %v3335
  %v3337 = vrcp.pop %v3332
  %v3338 = vmul.f32 1.0, %v3337
  %v3339 = vrcp.pop %v3333
  %v3340 = vmul.f32 1.0, %v3339
  %v3341 = vrcp.pop %v3334
  %v3342 = vmul.f32 1.0, %v3341
  %3343 = vrot.lane.b32.xlu0 %v3272, 32
  %v3344 = vpop.permute.xlu0 %3343
  %3345 = vrot.lane.b32.xlu0 %v3273, 32
  %v3346 = vpop.permute.xlu0 %3345
  %3347 = vrot.lane.b32.xlu0 %v3268, 32
  %v3348 = vpop.permute.xlu0 %3347
  %3349 = vrot.lane.b32.xlu0 %v3274, 32
  %v3350 = vpop.permute.xlu0 %3349
  %v3355 = vmul.f32 %v3308, %v3344
  %v3356 = vmul.f32 %v3310, %v3346
  %v3357 = vmul.f32 %v3312, %v3348
  %v3358 = vmul.f32 %v3314, %v3350
  %3363 = vrot.lane.b32.xlu0 %v3355, 64
  %v3364 = vpop.permute.xlu0 %3363
  %3365 = vrot.lane.b32.xlu0 %v3356, 64
  %v3366 = vpop.permute.xlu0 %3365
  %3367 = vrot.lane.b32.xlu0 %v3357, 64
  %v3368 = vpop.permute.xlu0 %3367
  %3369 = vrot.lane.b32.xlu0 %v3358, 64
  %v3370 = vpop.permute.xlu0 %3369
  %v3375 = vadd.f32 %v143, %v3364
  %v3376 = vadd.f32 %v149, %v3366
  %v3377 = vadd.f32 %v155, %v3368
  %v3378 = vadd.f32 %v161, %v3370
  %v3379 = vtanh.pop %v3375
  %v3380 = vtanh.pop %v3376
  %v3381 = vtanh.pop %v3377
  %v3382 = vtanh.pop %v3378
  %v3383 = vsub.f32 1.0, %v3336
  %v3384 = vsub.f32 1.0, %v3338
  %v3385 = vsub.f32 1.0, %v3340
  %v3386 = vsub.f32 1.0, %v3342
  %3391 = vrot.lane.b32.xlu0 %v3379, 96
  %v3392 = vpop.permute.xlu0 %3391
  %3393 = vrot.lane.b32.xlu0 %v3380, 96
  %v3394 = vpop.permute.xlu0 %3393
  %3395 = vrot.lane.b32.xlu0 %v3381, 96
  %v3396 = vpop.permute.xlu0 %3395
  %3397 = vrot.lane.b32.xlu0 %v3382, 96
  %v3398 = vpop.permute.xlu0 %3397
  %v3403 = vmul.f32 %v3383, %v3392
  %v3404 = vmul.f32 %v3384, %v3394
  %v3405 = vmul.f32 %v3385, %v3396
  %v3406 = vmul.f32 %v3386, %v3398
  %v3407 = vrot.slane %v2894, 6
  %v3408 = vrot.slane %v2894, 7
  %v3409 = vrot.slane %v2894, 1
  %v3414 = vmul.f32 %v3336, %v3407
  %v3415 = vmul.f32 %v3338, %v3408
  %v3416 = vmul.f32 %v3340, %v2894
  %v3417 = vmul.f32 %v3342, %v3409
  %v3418 = vadd.f32 %v3403, %v3414
  %v3419 = vadd.f32 %v3404, %v3415
  %v3420 = vadd.f32 %v3405, %v3416
  %v3421 = vadd.f32 %v3406, %v3417
  %v3426 = vrot.slane %v3418, 2
  %v3427 = vrot.slane %v3419, 1
  %v3428 = vsel %vm378, %v3427, %v3426
  %v3429 = vsel %vm381, %v3420, %v3428
  %v3430 = vrot.slane %v3421, 7
  %v3431 = vsel %vm384, %v3430, %v3429
  %v3433 = vmul.f32 %v1510, %v3431
  %v3434 = vmul.f32 %v1530, %v2894
  %v3435 = vadd.f32 %v3433, %v3434
  %v3438 = vunpack.c.l.s4 1966171168
  %v3439 = vunpack.c.0.s8 %v3438
  %v3440 = vlaneseq
  %v3441 = vshrl.u32 %v3440, 7
  %v3442 = vsub.s32 %v3439, %v3441
  %v3443 = vrot.slane %v3198, %v3442
  %v3444 = vcombine.high %v3443, %v3443
  %v3446 = vunpack.c.l.s4 1966171168
  %v3447 = vunpack.c.0.s8 %v3446
  %v3448 = vlaneseq
  %v3449 = vshrl.u32 %v3448, 7
  %v3450 = vsub.s32 %v3447, %v3449
  %v3451 = vrot.slane %v3443, %v3450
  %v3453 = vunpack.c.l.s4 1966171168
  %v3454 = vunpack.c.0.s8 %v3453
  %v3455 = vlaneseq
  %v3456 = vshrl.u32 %v3455, 7
  %v3457 = vsub.s32 %v3454, %v3456
  %v3458 = vrot.slane %v3444, %v3457
  %v3459 = vcombine.high %v3451, %v3451
  %v3460 = vcombine.high %v3458, %v3458
  %3465 = vst.msk [vmem:[%s8 + $0x5] sm:$0x1] %vm674, %v3451
  %3466 = vst.msk [vmem:[%s8 + $0xd] sm:$0x1] %vm674, %v3458
  %3467 = vst.msk [vmem:[%s8 + $0x15] sm:$0x1] %vm674, %v3459
  %3468 = vst.msk [vmem:[%s8 + $0x1d] sm:$0x1] %vm674, %v3460
  %v3471 = vunpack.c.l.s4 1966171168
  %v3472 = vunpack.c.0.s8 %v3471
  %v3473 = vlaneseq
  %v3474 = vshrl.u32 %v3473, 7
  %v3475 = vsub.s32 %v3472, %v3474
  %v3476 = vrot.slane %v3435, %v3475
  %v3477 = vcombine.high %v3476, %v3476
  %v3479 = vunpack.c.l.s4 1966171168
  %v3480 = vunpack.c.0.s8 %v3479
  %v3481 = vlaneseq
  %v3482 = vshrl.u32 %v3481, 7
  %v3483 = vsub.s32 %v3480, %v3482
  %v3484 = vrot.slane %v3476, %v3483
  %v3486 = vunpack.c.l.s4 1966171168
  %v3487 = vunpack.c.0.s8 %v3486
  %v3488 = vlaneseq
  %v3489 = vshrl.u32 %v3488, 7
  %v3490 = vsub.s32 %v3487, %v3489
  %v3491 = vrot.slane %v3477, %v3490
  %v3492 = vcombine.high %v3484, %v3484
  %v3493 = vcombine.high %v3491, %v3491
  %v3494 = vlaneseq
  %v3495 = vshrl.u32 %v3494, 7
  %v3496 = vsub.s32 0, %v3495
  %v3497 = vrot.slane %v3484, %v3496
  %v3498 = vlaneseq
  %v3499 = vshrl.u32 %v3498, 7
  %v3500 = vsub.s32 0, %v3499
  %v3501 = vrot.slane %v3491, %v3500
  %v3502 = vlaneseq
  %v3503 = vshrl.u32 %v3502, 7
  %v3504 = vsub.s32 0, %v3503
  %v3505 = vrot.slane %v3492, %v3504
  %v3506 = vlaneseq
  %v3507 = vshrl.u32 %v3506, 7
  %v3508 = vsub.s32 0, %v3507
  %v3509 = vrot.slane %v3493, %v3508
  %3510 = vrot.lane.b32.xlu0 %v3497, 32
  %v3511 = vpop.permute.xlu0 %3510
  %3512 = vrot.lane.b32.xlu0 %v3501, 32
  %v3513 = vpop.permute.xlu0 %3512
  %3514 = vrot.lane.b32.xlu0 %v3505, 32
  %v3515 = vpop.permute.xlu0 %3514
  %3516 = vrot.lane.b32.xlu0 %v3509, 32
  %v3517 = vpop.permute.xlu0 %3516
  %3522 = vst.msk [vmem:[%s8 + $0x2] sm:$0x1] %vm732, %v3511
  %3523 = vst.msk [vmem:[%s8 + $0xa] sm:$0x1] %vm732, %v3513
  %3524 = vst.msk [vmem:[%s8 + $0x12] sm:$0x1] %vm732, %v3515
  %3525 = vst.msk [vmem:[%s8 + $0x1a] sm:$0x1] %vm732, %v3517
  %v3526 = vsel %vm186, %v3198, 0
  %3528 = vmatprep.subr.mxu0 0.0
  %3529 = vmatpush1.msra.mxu0 %v164
  %3530 = vmatprep.subr.mxu0 0.0
  %3531 = vmatpush1.msra.mxu0 %v165
  %3532 = vmatprep.subr.mxu0 0.0
  %3533 = vmatpush1.msra.mxu0 %v166
  %3534 = vmatprep.subr.mxu0 0.0
  %3535 = vmatpush1.msra.mxu0 %v167
  %3536 = vmatprep.subr.mxu0 0.0
  %3537 = vmatpush1.msra.mxu0 0.0
  %3538 = vmatprep.subr.mxu0 0.0
  %3539 = vmatpush1.msra.mxu0 0.0
  %3540 = vmatprep.subr.mxu0 0.0
  %3541 = vmatpush1.msra.mxu0 0.0
  %3542 = vmatprep.subr.mxu0 0.0
  %3543 = vmatpush1.msra.mxu0 0.0
  %3544 = vmatprep.subr.mxu0 0.0
  %3545 = vmatpush1.msra.mxu0 0.0
  %3546 = vmatprep.subr.mxu0 0.0
  %3547 = vmatpush1.msra.mxu0 0.0
  %3548 = vmatprep.subr.mxu0 0.0
  %3549 = vmatpush1.msra.mxu0 0.0
  %3550 = vmatprep.subr.mxu0 0.0
  %3551 = vmatpush1.msra.mxu0 0.0
  %3552 = vmatprep.subr.mxu0 0.0
  %3553 = vmatpush1.msra.mxu0 0.0
  %3554 = vmatprep.subr.mxu0 0.0
  %3555 = vmatpush1.msra.mxu0 0.0
  %3556 = vmatprep.subr.mxu0 0.0
  %3557 = vmatpush1.msra.mxu0 0.0
  %3558 = vmatprep.subr.mxu0 0.0
  %3559 = vmatpush1.msra.mxu0 0.0
  %3560 = vmatprep.subr.mxu0 0.0
  %3561 = vmatpush1.msra.mxu0 0.0
  %3562 = vmatprep.subr.mxu0 0.0
  %3563 = vmatpush1.msra.mxu0 0.0
  %3564 = vmatprep.subr.mxu0 0.0
  %3565 = vmatpush1.msra.mxu0 0.0
  %3566 = vmatprep.subr.mxu0 0.0
  %3567 = vmatpush1.msra.mxu0 0.0
  %3568 = vmatprep.subr.mxu0 0.0
  %3569 = vmatpush1.msra.mxu0 0.0
  %3570 = vmatprep.subr.mxu0 0.0
  %3571 = vmatpush1.msra.mxu0 0.0
  %3572 = vmatprep.subr.mxu0 0.0
  %3573 = vmatpush1.msra.mxu0 0.0
  %3574 = vmatprep.subr.mxu0 0.0
  %3575 = vmatpush1.msra.mxu0 0.0
  %3576 = vmatprep.subr.mxu0 0.0
  %3577 = vmatpush1.msra.mxu0 0.0
  %3578 = vmatprep.subr.mxu0 0.0
  %3579 = vmatpush1.msra.mxu0 0.0
  %3580 = vmatprep.subr.mxu0 0.0
  %3581 = vmatpush1.msra.mxu0 0.0
  %3582 = vmatprep.subr.mxu0 0.0
  %3583 = vmatpush1.msra.mxu0 0.0
  %3584 = vmatprep.subr.mxu0 0.0
  %3585 = vmatpush1.msra.mxu0 0.0
  %3586 = vmatprep.subr.mxu0 0.0
  %3587 = vmatpush1.msra.mxu0 0.0
  %3588 = vmatprep.subr.mxu0 0.0
  %3589 = vmatpush1.msra.mxu0 0.0
  %3590 = vmatprep.subr.mxu0 0.0
  %3591 = vmatpush1.msra.mxu0 0.0
  %3592 = vmatprep.mubr.f32.mxu0 0.0
  %3593 = vmatmul.mubr.f32.gmra.mrb[0].mxu0 %v3526
  %v3594 = vpop.f32.mrb[0].mxu0
  %v3595 = vadd.f32 %v184, %v3594
  %v3596 = vpop.f32.mrb[0].mxu0
  %3597 = vdwg.mxu0
  %v3599 = vrot.slane %v3595, 2
  %v3600 = vrot.slane %v3595, 3
  %v3601 = vrot.slane %v3595, 4
  %v3602 = vrot.slane %v3595, 5
  %v3607 = vadd.f32 %v141, %v3599
  %v3608 = vadd.f32 %v147, %v3600
  %v3609 = vadd.f32 %v153, %v3601
  %v3610 = vadd.f32 %v159, %v3602
  %v3611 = vxor.u32 %v3607, 2147483648
  %v3612 = vxor.u32 %v3608, 2147483648
  %v3613 = vxor.u32 %v3609, 2147483648
  %v3614 = vxor.u32 %v3610, 2147483648
  %v3615 = vmul.f32 %v3611, 1.442695
  %v3616 = vpow.pop %v3615
  %v3617 = vmul.f32 %v3612, 1.442695
  %v3618 = vpow.pop %v3617
  %v3619 = vmul.f32 %v3613, 1.442695
  %v3620 = vpow.pop %v3619
  %v3621 = vmul.f32 %v3614, 1.442695
  %v3622 = vpow.pop %v3621
  %v3623 = vadd.f32 %v3616, 1.0
  %v3624 = vadd.f32 %v3618, 1.0
  %v3625 = vadd.f32 %v3620, 1.0
  %v3626 = vadd.f32 %v3622, 1.0
  %v3627 = vrcp.pop %v3623
  %v3628 = vmul.f32 1.0, %v3627
  %v3629 = vrcp.pop %v3624
  %v3630 = vmul.f32 1.0, %v3629
  %v3631 = vrcp.pop %v3625
  %v3632 = vmul.f32 1.0, %v3631
  %v3633 = vrcp.pop %v3626
  %v3634 = vmul.f32 1.0, %v3633
  %3635 = vrot.lane.b32.xlu0 %v3599, 64
  %v3636 = vpop.permute.xlu0 %3635
  %3637 = vrot.lane.b32.xlu0 %v3600, 64
  %v3638 = vpop.permute.xlu0 %3637
  %3639 = vrot.lane.b32.xlu0 %v3601, 64
  %v3640 = vpop.permute.xlu0 %3639
  %3641 = vrot.lane.b32.xlu0 %v3602, 64
  %v3642 = vpop.permute.xlu0 %3641
  %v3647 = vmul.f32 %v3628, %v3636
  %v3648 = vmul.f32 %v3630, %v3638
  %v3649 = vmul.f32 %v3632, %v3640
  %v3650 = vmul.f32 %v3634, %v3642
  %3655 = vrot.lane.b32.xlu0 %v3647, 64
  %v3656 = vpop.permute.xlu0 %3655
  %3657 = vrot.lane.b32.xlu0 %v3648, 64
  %v3658 = vpop.permute.xlu0 %3657
  %3659 = vrot.lane.b32.xlu0 %v3649, 64
  %v3660 = vpop.permute.xlu0 %3659
  %3661 = vrot.lane.b32.xlu0 %v3650, 64
  %v3662 = vpop.permute.xlu0 %3661
  %v3667 = vadd.f32 %v141, %v3656
  %v3668 = vadd.f32 %v147, %v3658
  %v3669 = vadd.f32 %v153, %v3660
  %v3670 = vadd.f32 %v159, %v3662
  %v3671 = vtanh.pop %v3667
  %v3672 = vtanh.pop %v3668
  %v3673 = vtanh.pop %v3669
  %v3674 = vtanh.pop %v3670
  %v3675 = vsub.f32 1.0, %v3628
  %v3676 = vsub.f32 1.0, %v3630
  %v3677 = vsub.f32 1.0, %v3632
  %v3678 = vsub.f32 1.0, %v3634
  %3683 = vrot.lane.b32.xlu0 %v3671, 96
  %v3684 = vpop.permute.xlu0 %3683
  %3685 = vrot.lane.b32.xlu0 %v3672, 96
  %v3686 = vpop.permute.xlu0 %3685
  %3687 = vrot.lane.b32.xlu0 %v3673, 96
  %v3688 = vpop.permute.xlu0 %3687
  %3689 = vrot.lane.b32.xlu0 %v3674, 96
  %v3690 = vpop.permute.xlu0 %3689
  %v3695 = vmul.f32 %v3675, %v3684
  %v3696 = vmul.f32 %v3676, %v3686
  %v3697 = vmul.f32 %v3677, %v3688
  %v3698 = vmul.f32 %v3678, %v3690
  %v3699 = vrot.slane %v3198, 2
  %v3700 = vrot.slane %v3198, 3
  %v3701 = vrot.slane %v3198, 4
  %v3702 = vrot.slane %v3198, 5
  %3703 = vrot.lane.b32.xlu0 %v3699, 32
  %v3704 = vpop.permute.xlu0 %3703
  %3705 = vrot.lane.b32.xlu0 %v3700, 32
  %v3706 = vpop.permute.xlu0 %3705
  %3707 = vrot.lane.b32.xlu0 %v3701, 32
  %v3708 = vpop.permute.xlu0 %3707
  %3709 = vrot.lane.b32.xlu0 %v3702, 32
  %v3710 = vpop.permute.xlu0 %3709
  %v3715 = vmul.f32 %v3628, %v3704
  %v3716 = vmul.f32 %v3630, %v3706
  %v3717 = vmul.f32 %v3632, %v3708
  %v3718 = vmul.f32 %v3634, %v3710
  %v3719 = vadd.f32 %v3695, %v3715
  %v3720 = vadd.f32 %v3696, %v3716
  %v3721 = vadd.f32 %v3697, %v3717
  %v3722 = vadd.f32 %v3698, %v3718
  %v3727 = vrot.slane %v3719, 6
  %v3728 = vrot.slane %v3720, 5
  %v3729 = vsel %vm378, %v3728, %v3727
  %v3730 = vrot.slane %v3721, 4
  %v3731 = vsel %vm381, %v3730, %v3729
  %v3732 = vrot.slane %v3722, 3
  %v3733 = vsel %vm384, %v3732, %v3731
  %3734 = vrot.lane.b32.xlu0 %v3733, 96
  %v3735 = vpop.permute.xlu0 %3734
  %v3737 = vmul.f32 %v1193, %v3735
  %v3738 = vmul.f32 %v1212, %v3198
  %v3739 = vadd.f32 %v3737, %v3738
  %v3740 = vsel %vm186, %v3435, 0
  %3742 = vmatprep.subr.mxu0 0.0
  %3743 = vmatpush1.msra.mxu0 %v169
  %3744 = vmatprep.subr.mxu0 0.0
  %3745 = vmatpush1.msra.mxu0 %v170
  %3746 = vmatprep.subr.mxu0 0.0
  %3747 = vmatpush1.msra.mxu0 %v171
  %3748 = vmatprep.subr.mxu0 0.0
  %3749 = vmatpush1.msra.mxu0 %v172
  %3750 = vmatprep.subr.mxu0 0.0
  %3751 = vmatpush1.msra.mxu0 0.0
  %3752 = vmatprep.subr.mxu0 0.0
  %3753 = vmatpush1.msra.mxu0 0.0
  %3754 = vmatprep.subr.mxu0 0.0
  %3755 = vmatpush1.msra.mxu0 0.0
  %3756 = vmatprep.subr.mxu0 0.0
  %3757 = vmatpush1.msra.mxu0 0.0
  %3758 = vmatprep.subr.mxu0 0.0
  %3759 = vmatpush1.msra.mxu0 0.0
  %3760 = vmatprep.subr.mxu0 0.0
  %3761 = vmatpush1.msra.mxu0 0.0
  %3762 = vmatprep.subr.mxu0 0.0
  %3763 = vmatpush1.msra.mxu0 0.0
  %3764 = vmatprep.subr.mxu0 0.0
  %3765 = vmatpush1.msra.mxu0 0.0
  %3766 = vmatprep.subr.mxu0 0.0
  %3767 = vmatpush1.msra.mxu0 0.0
  %3768 = vmatprep.subr.mxu0 0.0
  %3769 = vmatpush1.msra.mxu0 0.0
  %3770 = vmatprep.subr.mxu0 0.0
  %3771 = vmatpush1.msra.mxu0 0.0
  %3772 = vmatprep.subr.mxu0 0.0
  %3773 = vmatpush1.msra.mxu0 0.0
  %3774 = vmatprep.subr.mxu0 0.0
  %3775 = vmatpush1.msra.mxu0 0.0
  %3776 = vmatprep.subr.mxu0 0.0
  %3777 = vmatpush1.msra.mxu0 0.0
  %3778 = vmatprep.subr.mxu0 0.0
  %3779 = vmatpush1.msra.mxu0 0.0
  %3780 = vmatprep.subr.mxu0 0.0
  %3781 = vmatpush1.msra.mxu0 0.0
  %3782 = vmatprep.subr.mxu0 0.0
  %3783 = vmatpush1.msra.mxu0 0.0
  %3784 = vmatprep.subr.mxu0 0.0
  %3785 = vmatpush1.msra.mxu0 0.0
  %3786 = vmatprep.subr.mxu0 0.0
  %3787 = vmatpush1.msra.mxu0 0.0
  %3788 = vmatprep.subr.mxu0 0.0
  %3789 = vmatpush1.msra.mxu0 0.0
  %3790 = vmatprep.subr.mxu0 0.0
  %3791 = vmatpush1.msra.mxu0 0.0
  %3792 = vmatprep.subr.mxu0 0.0
  %3793 = vmatpush1.msra.mxu0 0.0
  %3794 = vmatprep.subr.mxu0 0.0
  %3795 = vmatpush1.msra.mxu0 0.0
  %3796 = vmatprep.subr.mxu0 0.0
  %3797 = vmatpush1.msra.mxu0 0.0
  %3798 = vmatprep.subr.mxu0 0.0
  %3799 = vmatpush1.msra.mxu0 0.0
  %3800 = vmatprep.subr.mxu0 0.0
  %3801 = vmatpush1.msra.mxu0 0.0
  %3802 = vmatprep.subr.mxu0 0.0
  %3803 = vmatpush1.msra.mxu0 0.0
  %3804 = vmatprep.subr.mxu0 0.0
  %3805 = vmatpush1.msra.mxu0 0.0
  %3806 = vmatprep.mubr.f32.mxu0 0.0
  %3807 = vmatmul.mubr.f32.gmra.mrb[0].mxu0 %v3740
  %v3808 = vpop.f32.mrb[0].mxu0
  %v3809 = vadd.f32 %v402, %v3808
  %v3810 = vpop.f32.mrb[0].mxu0
  %3811 = vdwg.mxu0
  %v3813 = vrot.slane %v3809, 7
  %v3814 = vrot.slane %v3809, 1
  %v3815 = vrot.slane %v3809, 2
  %3816 = vrot.lane.b32.xlu0 %v3813, 96
  %v3817 = vpop.permute.xlu0 %3816
  %3818 = vrot.lane.b32.xlu0 %v3809, 96
  %v3819 = vpop.permute.xlu0 %3818
  %3820 = vrot.lane.b32.xlu0 %v3814, 96
  %v3821 = vpop.permute.xlu0 %3820
  %3822 = vrot.lane.b32.xlu0 %v3815, 96
  %v3823 = vpop.permute.xlu0 %3822
  %v3828 = vadd.f32 %v141, %v3817
  %v3829 = vadd.f32 %v147, %v3819
  %v3830 = vadd.f32 %v153, %v3821
  %v3831 = vadd.f32 %v159, %v3823
  %v3832 = vxor.u32 %v3828, 2147483648
  %v3833 = vxor.u32 %v3829, 2147483648
  %v3834 = vxor.u32 %v3830, 2147483648
  %v3835 = vxor.u32 %v3831, 2147483648
  %v3836 = vmul.f32 %v3832, 1.442695
  %v3837 = vpow.pop %v3836
  %v3838 = vmul.f32 %v3833, 1.442695
  %v3839 = vpow.pop %v3838
  %v3840 = vmul.f32 %v3834, 1.442695
  %v3841 = vpow.pop %v3840
  %v3842 = vmul.f32 %v3835, 1.442695
  %v3843 = vpow.pop %v3842
  %v3844 = vadd.f32 %v3837, 1.0
  %v3845 = vadd.f32 %v3839, 1.0
  %v3846 = vadd.f32 %v3841, 1.0
  %v3847 = vadd.f32 %v3843, 1.0
  %v3848 = vrcp.pop %v3844
  %v3849 = vmul.f32 1.0, %v3848
  %v3850 = vrcp.pop %v3845
  %v3851 = vmul.f32 1.0, %v3850
  %v3852 = vrcp.pop %v3846
  %v3853 = vmul.f32 1.0, %v3852
  %v3854 = vrcp.pop %v3847
  %v3855 = vmul.f32 1.0, %v3854
  %v3856 = vadd.f32 %v143, %v3817
  %v3857 = vadd.f32 %v149, %v3819
  %v3858 = vadd.f32 %v155, %v3821
  %v3859 = vadd.f32 %v161, %v3823
  %v3860 = vxor.u32 %v3856, 2147483648
  %v3861 = vxor.u32 %v3857, 2147483648
  %v3862 = vxor.u32 %v3858, 2147483648
  %v3863 = vxor.u32 %v3859, 2147483648
  %v3864 = vmul.f32 %v3860, 1.442695
  %v3865 = vpow.pop %v3864
  %v3866 = vmul.f32 %v3861, 1.442695
  %v3867 = vpow.pop %v3866
  %v3868 = vmul.f32 %v3862, 1.442695
  %v3869 = vpow.pop %v3868
  %v3870 = vmul.f32 %v3863, 1.442695
  %v3871 = vpow.pop %v3870
  %v3872 = vadd.f32 %v3865, 1.0
  %v3873 = vadd.f32 %v3867, 1.0
  %v3874 = vadd.f32 %v3869, 1.0
  %v3875 = vadd.f32 %v3871, 1.0
  %v3876 = vrcp.pop %v3872
  %v3877 = vmul.f32 1.0, %v3876
  %v3878 = vrcp.pop %v3873
  %v3879 = vmul.f32 1.0, %v3878
  %v3880 = vrcp.pop %v3874
  %v3881 = vmul.f32 1.0, %v3880
  %v3882 = vrcp.pop %v3875
  %v3883 = vmul.f32 1.0, %v3882
  %3884 = vrot.lane.b32.xlu0 %v3813, 32
  %v3885 = vpop.permute.xlu0 %3884
  %3886 = vrot.lane.b32.xlu0 %v3809, 32
  %v3887 = vpop.permute.xlu0 %3886
  %3888 = vrot.lane.b32.xlu0 %v3814, 32
  %v3889 = vpop.permute.xlu0 %3888
  %3890 = vrot.lane.b32.xlu0 %v3815, 32
  %v3891 = vpop.permute.xlu0 %3890
  %v3896 = vmul.f32 %v3849, %v3885
  %v3897 = vmul.f32 %v3851, %v3887
  %v3898 = vmul.f32 %v3853, %v3889
  %v3899 = vmul.f32 %v3855, %v3891
  %3904 = vrot.lane.b32.xlu0 %v3896, 64
  %v3905 = vpop.permute.xlu0 %3904
  %3906 = vrot.lane.b32.xlu0 %v3897, 64
  %v3907 = vpop.permute.xlu0 %3906
  %3908 = vrot.lane.b32.xlu0 %v3898, 64
  %v3909 = vpop.permute.xlu0 %3908
  %3910 = vrot.lane.b32.xlu0 %v3899, 64
  %v3911 = vpop.permute.xlu0 %3910
  %v3916 = vadd.f32 %v143, %v3905
  %v3917 = vadd.f32 %v149, %v3907
  %v3918 = vadd.f32 %v155, %v3909
  %v3919 = vadd.f32 %v161, %v3911
  %v3920 = vtanh.pop %v3916
  %v3921 = vtanh.pop %v3917
  %v3922 = vtanh.pop %v3918
  %v3923 = vtanh.pop %v3919
  %v3924 = vsub.f32 1.0, %v3877
  %v3925 = vsub.f32 1.0, %v3879
  %v3926 = vsub.f32 1.0, %v3881
  %v3927 = vsub.f32 1.0, %v3883
  %3932 = vrot.lane.b32.xlu0 %v3920, 96
  %v3933 = vpop.permute.xlu0 %3932
  %3934 = vrot.lane.b32.xlu0 %v3921, 96
  %v3935 = vpop.permute.xlu0 %3934
  %3936 = vrot.lane.b32.xlu0 %v3922, 96
  %v3937 = vpop.permute.xlu0 %3936
  %3938 = vrot.lane.b32.xlu0 %v3923, 96
  %v3939 = vpop.permute.xlu0 %3938
  %v3944 = vmul.f32 %v3924, %v3933
  %v3945 = vmul.f32 %v3925, %v3935
  %v3946 = vmul.f32 %v3926, %v3937
  %v3947 = vmul.f32 %v3927, %v3939
  %v3948 = vrot.slane %v3435, 7
  %v3949 = vrot.slane %v3435, 1
  %v3950 = vrot.slane %v3435, 2
  %v3955 = vmul.f32 %v3877, %v3948
  %v3956 = vmul.f32 %v3879, %v3435
  %v3957 = vmul.f32 %v3881, %v3949
  %v3958 = vmul.f32 %v3883, %v3950
  %v3959 = vadd.f32 %v3944, %v3955
  %v3960 = vadd.f32 %v3945, %v3956
  %v3961 = vadd.f32 %v3946, %v3957
  %v3962 = vadd.f32 %v3947, %v3958
  %v3967 = vrot.slane %v3959, 1
  %v3968 = vsel %vm378, %v3960, %v3967
  %v3969 = vrot.slane %v3961, 7
  %v3970 = vsel %vm381, %v3969, %v3968
  %v3971 = vrot.slane %v3962, 6
  %v3972 = vsel %vm384, %v3971, %v3970
  %v3974 = vmul.f32 %v941, %v3972
  %v3975 = vmul.f32 %v961, %v3435
  %v3976 = vadd.f32 %v3974, %v3975
  %v3979 = vunpack.c.l.s4 1966171168
  %v3980 = vunpack.c.0.s8 %v3979
  %v3981 = vlaneseq
  %v3982 = vshrl.u32 %v3981, 7
  %v3983 = vsub.s32 %v3980, %v3982
  %v3984 = vrot.slane %v3739, %v3983
  %v3985 = vcombine.high %v3984, %v3984
  %v3987 = vunpack.c.l.s4 1966171168
  %v3988 = vunpack.c.0.s8 %v3987
  %v3989 = vlaneseq
  %v3990 = vshrl.u32 %v3989, 7
  %v3991 = vsub.s32 %v3988, %v3990
  %v3992 = vrot.slane %v3984, %v3991
  %v3994 = vunpack.c.l.s4 1966171168
  %v3995 = vunpack.c.0.s8 %v3994
  %v3996 = vlaneseq
  %v3997 = vshrl.u32 %v3996, 7
  %v3998 = vsub.s32 %v3995, %v3997
  %v3999 = vrot.slane %v3985, %v3998
  %v4000 = vcombine.high %v3992, %v3992
  %v4001 = vcombine.high %v3999, %v3999
  %4006 = vst.msk [vmem:[%s8 + $0x6] sm:$0x1] %vm674, %v3992
  %4007 = vst.msk [vmem:[%s8 + $0xe] sm:$0x1] %vm674, %v3999
  %4008 = vst.msk [vmem:[%s8 + $0x16] sm:$0x1] %vm674, %v4000
  %4009 = vst.msk [vmem:[%s8 + $0x1e] sm:$0x1] %vm674, %v4001
  %v4012 = vunpack.c.l.s4 1966171168
  %v4013 = vunpack.c.0.s8 %v4012
  %v4014 = vlaneseq
  %v4015 = vshrl.u32 %v4014, 7
  %v4016 = vsub.s32 %v4013, %v4015
  %v4017 = vrot.slane %v3976, %v4016
  %v4018 = vcombine.high %v4017, %v4017
  %v4020 = vunpack.c.l.s4 1966171168
  %v4021 = vunpack.c.0.s8 %v4020
  %v4022 = vlaneseq
  %v4023 = vshrl.u32 %v4022, 7
  %v4024 = vsub.s32 %v4021, %v4023
  %v4025 = vrot.slane %v4017, %v4024
  %v4027 = vunpack.c.l.s4 1966171168
  %v4028 = vunpack.c.0.s8 %v4027
  %v4029 = vlaneseq
  %v4030 = vshrl.u32 %v4029, 7
  %v4031 = vsub.s32 %v4028, %v4030
  %v4032 = vrot.slane %v4018, %v4031
  %v4033 = vcombine.high %v4025, %v4025
  %v4034 = vcombine.high %v4032, %v4032
  %v4035 = vlaneseq
  %v4036 = vshrl.u32 %v4035, 7
  %v4037 = vsub.s32 0, %v4036
  %v4038 = vrot.slane %v4025, %v4037
  %v4039 = vlaneseq
  %v4040 = vshrl.u32 %v4039, 7
  %v4041 = vsub.s32 0, %v4040
  %v4042 = vrot.slane %v4032, %v4041
  %v4043 = vlaneseq
  %v4044 = vshrl.u32 %v4043, 7
  %v4045 = vsub.s32 0, %v4044
  %v4046 = vrot.slane %v4033, %v4045
  %v4047 = vlaneseq
  %v4048 = vshrl.u32 %v4047, 7
  %v4049 = vsub.s32 0, %v4048
  %v4050 = vrot.slane %v4034, %v4049
  %4051 = vrot.lane.b32.xlu0 %v4038, 32
  %v4052 = vpop.permute.xlu0 %4051
  %4053 = vrot.lane.b32.xlu0 %v4042, 32
  %v4054 = vpop.permute.xlu0 %4053
  %4055 = vrot.lane.b32.xlu0 %v4046, 32
  %v4056 = vpop.permute.xlu0 %4055
  %4057 = vrot.lane.b32.xlu0 %v4050, 32
  %v4058 = vpop.permute.xlu0 %4057
  %4063 = vst.msk [vmem:[%s8 + $0x1] sm:$0x1] %vm732, %v4052
  %4064 = vst.msk [vmem:[%s8 + $0x9] sm:$0x1] %vm732, %v4054
  %4065 = vst.msk [vmem:[%s8 + $0x11] sm:$0x1] %vm732, %v4056
  %4066 = vst.msk [vmem:[%s8 + $0x19] sm:$0x1] %vm732, %v4058
  %v4067 = vsel %vm186, %v3739, 0
  %4069 = vmatprep.subr.mxu0 0.0
  %4070 = vmatpush1.msra.mxu0 %v164
  %4071 = vmatprep.subr.mxu0 0.0
  %4072 = vmatpush1.msra.mxu0 %v165
  %4073 = vmatprep.subr.mxu0 0.0
  %4074 = vmatpush1.msra.mxu0 %v166
  %4075 = vmatprep.subr.mxu0 0.0
  %4076 = vmatpush1.msra.mxu0 %v167
  %4077 = vmatprep.subr.mxu0 0.0
  %4078 = vmatpush1.msra.mxu0 0.0
  %4079 = vmatprep.subr.mxu0 0.0
  %4080 = vmatpush1.msra.mxu0 0.0
  %4081 = vmatprep.subr.mxu0 0.0
  %4082 = vmatpush1.msra.mxu0 0.0
  %4083 = vmatprep.subr.mxu0 0.0
  %4084 = vmatpush1.msra.mxu0 0.0
  %4085 = vmatprep.subr.mxu0 0.0
  %4086 = vmatpush1.msra.mxu0 0.0
  %4087 = vmatprep.subr.mxu0 0.0
  %4088 = vmatpush1.msra.mxu0 0.0
  %4089 = vmatprep.subr.mxu0 0.0
  %4090 = vmatpush1.msra.mxu0 0.0
  %4091 = vmatprep.subr.mxu0 0.0
  %4092 = vmatpush1.msra.mxu0 0.0
  %4093 = vmatprep.subr.mxu0 0.0
  %4094 = vmatpush1.msra.mxu0 0.0
  %4095 = vmatprep.subr.mxu0 0.0
  %4096 = vmatpush1.msra.mxu0 0.0
  %4097 = vmatprep.subr.mxu0 0.0
  %4098 = vmatpush1.msra.mxu0 0.0
  %4099 = vmatprep.subr.mxu0 0.0
  %4100 = vmatpush1.msra.mxu0 0.0
  %4101 = vmatprep.subr.mxu0 0.0
  %4102 = vmatpush1.msra.mxu0 0.0
  %4103 = vmatprep.subr.mxu0 0.0
  %4104 = vmatpush1.msra.mxu0 0.0
  %4105 = vmatprep.subr.mxu0 0.0
  %4106 = vmatpush1.msra.mxu0 0.0
  %4107 = vmatprep.subr.mxu0 0.0
  %4108 = vmatpush1.msra.mxu0 0.0
  %4109 = vmatprep.subr.mxu0 0.0
  %4110 = vmatpush1.msra.mxu0 0.0
  %4111 = vmatprep.subr.mxu0 0.0
  %4112 = vmatpush1.msra.mxu0 0.0
  %4113 = vmatprep.subr.mxu0 0.0
  %4114 = vmatpush1.msra.mxu0 0.0
  %4115 = vmatprep.subr.mxu0 0.0
  %4116 = vmatpush1.msra.mxu0 0.0
  %4117 = vmatprep.subr.mxu0 0.0
  %4118 = vmatpush1.msra.mxu0 0.0
  %4119 = vmatprep.subr.mxu0 0.0
  %4120 = vmatpush1.msra.mxu0 0.0
  %4121 = vmatprep.subr.mxu0 0.0
  %4122 = vmatpush1.msra.mxu0 0.0
  %4123 = vmatprep.subr.mxu0 0.0
  %4124 = vmatpush1.msra.mxu0 0.0
  %4125 = vmatprep.subr.mxu0 0.0
  %4126 = vmatpush1.msra.mxu0 0.0
  %4127 = vmatprep.subr.mxu0 0.0
  %4128 = vmatpush1.msra.mxu0 0.0
  %4129 = vmatprep.subr.mxu0 0.0
  %4130 = vmatpush1.msra.mxu0 0.0
  %4131 = vmatprep.subr.mxu0 0.0
  %4132 = vmatpush1.msra.mxu0 0.0
  %4133 = vmatprep.mubr.f32.mxu0 0.0
  %4134 = vmatmul.mubr.f32.gmra.mrb[0].mxu0 %v4067
  %v4135 = vpop.f32.mrb[0].mxu0
  %v4136 = vadd.f32 %v184, %v4135
  %v4137 = vpop.f32.mrb[0].mxu0
  %4138 = vdwg.mxu0
  %v4140 = vrot.slane %v4136, 1
  %v4141 = vrot.slane %v4136, 2
  %v4142 = vrot.slane %v4136, 3
  %v4143 = vrot.slane %v4136, 4
  %v4148 = vadd.f32 %v141, %v4140
  %v4149 = vadd.f32 %v147, %v4141
  %v4150 = vadd.f32 %v153, %v4142
  %v4151 = vadd.f32 %v159, %v4143
  %v4152 = vxor.u32 %v4148, 2147483648
  %v4153 = vxor.u32 %v4149, 2147483648
  %v4154 = vxor.u32 %v4150, 2147483648
  %v4155 = vxor.u32 %v4151, 2147483648
  %v4156 = vmul.f32 %v4152, 1.442695
  %v4157 = vpow.pop %v4156
  %v4158 = vmul.f32 %v4153, 1.442695
  %v4159 = vpow.pop %v4158
  %v4160 = vmul.f32 %v4154, 1.442695
  %v4161 = vpow.pop %v4160
  %v4162 = vmul.f32 %v4155, 1.442695
  %v4163 = vpow.pop %v4162
  %v4164 = vadd.f32 %v4157, 1.0
  %v4165 = vadd.f32 %v4159, 1.0
  %v4166 = vadd.f32 %v4161, 1.0
  %v4167 = vadd.f32 %v4163, 1.0
  %v4168 = vrcp.pop %v4164
  %v4169 = vmul.f32 1.0, %v4168
  %v4170 = vrcp.pop %v4165
  %v4171 = vmul.f32 1.0, %v4170
  %v4172 = vrcp.pop %v4166
  %v4173 = vmul.f32 1.0, %v4172
  %v4174 = vrcp.pop %v4167
  %v4175 = vmul.f32 1.0, %v4174
  %4176 = vrot.lane.b32.xlu0 %v4140, 64
  %v4177 = vpop.permute.xlu0 %4176
  %4178 = vrot.lane.b32.xlu0 %v4141, 64
  %v4179 = vpop.permute.xlu0 %4178
  %4180 = vrot.lane.b32.xlu0 %v4142, 64
  %v4181 = vpop.permute.xlu0 %4180
  %4182 = vrot.lane.b32.xlu0 %v4143, 64
  %v4183 = vpop.permute.xlu0 %4182
  %v4188 = vmul.f32 %v4169, %v4177
  %v4189 = vmul.f32 %v4171, %v4179
  %v4190 = vmul.f32 %v4173, %v4181
  %v4191 = vmul.f32 %v4175, %v4183
  %4196 = vrot.lane.b32.xlu0 %v4188, 64
  %v4197 = vpop.permute.xlu0 %4196
  %4198 = vrot.lane.b32.xlu0 %v4189, 64
  %v4199 = vpop.permute.xlu0 %4198
  %4200 = vrot.lane.b32.xlu0 %v4190, 64
  %v4201 = vpop.permute.xlu0 %4200
  %4202 = vrot.lane.b32.xlu0 %v4191, 64
  %v4203 = vpop.permute.xlu0 %4202
  %v4208 = vadd.f32 %v141, %v4197
  %v4209 = vadd.f32 %v147, %v4199
  %v4210 = vadd.f32 %v153, %v4201
  %v4211 = vadd.f32 %v159, %v4203
  %v4212 = vtanh.pop %v4208
  %v4213 = vtanh.pop %v4209
  %v4214 = vtanh.pop %v4210
  %v4215 = vtanh.pop %v4211
  %v4216 = vsub.f32 1.0, %v4169
  %v4217 = vsub.f32 1.0, %v4171
  %v4218 = vsub.f32 1.0, %v4173
  %v4219 = vsub.f32 1.0, %v4175
  %4224 = vrot.lane.b32.xlu0 %v4212, 96
  %v4225 = vpop.permute.xlu0 %4224
  %4226 = vrot.lane.b32.xlu0 %v4213, 96
  %v4227 = vpop.permute.xlu0 %4226
  %4228 = vrot.lane.b32.xlu0 %v4214, 96
  %v4229 = vpop.permute.xlu0 %4228
  %4230 = vrot.lane.b32.xlu0 %v4215, 96
  %v4231 = vpop.permute.xlu0 %4230
  %v4236 = vmul.f32 %v4216, %v4225
  %v4237 = vmul.f32 %v4217, %v4227
  %v4238 = vmul.f32 %v4218, %v4229
  %v4239 = vmul.f32 %v4219, %v4231
  %v4240 = vrot.slane %v3739, 1
  %v4241 = vrot.slane %v3739, 2
  %v4242 = vrot.slane %v3739, 3
  %v4243 = vrot.slane %v3739, 4
  %4244 = vrot.lane.b32.xlu0 %v4240, 32
  %v4245 = vpop.permute.xlu0 %4244
  %4246 = vrot.lane.b32.xlu0 %v4241, 32
  %v4247 = vpop.permute.xlu0 %4246
  %4248 = vrot.lane.b32.xlu0 %v4242, 32
  %v4249 = vpop.permute.xlu0 %4248
  %4250 = vrot.lane.b32.xlu0 %v4243, 32
  %v4251 = vpop.permute.xlu0 %4250
  %v4256 = vmul.f32 %v4169, %v4245
  %v4257 = vmul.f32 %v4171, %v4247
  %v4258 = vmul.f32 %v4173, %v4249
  %v4259 = vmul.f32 %v4175, %v4251
  %v4260 = vadd.f32 %v4236, %v4256
  %v4261 = vadd.f32 %v4237, %v4257
  %v4262 = vadd.f32 %v4238, %v4258
  %v4263 = vadd.f32 %v4239, %v4259
  %v4268 = vrot.slane %v4260, 7
  %v4269 = vrot.slane %v4261, 6
  %v4270 = vsel %vm378, %v4269, %v4268
  %v4271 = vrot.slane %v4262, 5
  %v4272 = vsel %vm381, %v4271, %v4270
  %v4273 = vrot.slane %v4263, 4
  %v4274 = vsel %vm384, %v4273, %v4272
  %4275 = vrot.lane.b32.xlu0 %v4274, 96
  %v4276 = vpop.permute.xlu0 %4275
  %v4278 = vmul.f32 %v622, %v4276
  %v4279 = vmul.f32 %v641, %v3739
  %v4280 = vadd.f32 %v4278, %v4279
  %v4281 = vsel %vm186, %v3976, 0
  %4283 = vmatprep.subr.mxu0 0.0
  %4284 = vmatpush1.msra.mxu0 %v169
  %4285 = vmatprep.subr.mxu0 0.0
  %4286 = vmatpush1.msra.mxu0 %v170
  %4287 = vmatprep.subr.mxu0 0.0
  %4288 = vmatpush1.msra.mxu0 %v171
  %4289 = vmatprep.subr.mxu0 0.0
  %4290 = vmatpush1.msra.mxu0 %v172
  %4291 = vmatprep.subr.mxu0 0.0
  %4292 = vmatpush1.msra.mxu0 0.0
  %4293 = vmatprep.subr.mxu0 0.0
  %4294 = vmatpush1.msra.mxu0 0.0
  %4295 = vmatprep.subr.mxu0 0.0
  %4296 = vmatpush1.msra.mxu0 0.0
  %4297 = vmatprep.subr.mxu0 0.0
  %4298 = vmatpush1.msra.mxu0 0.0
  %4299 = vmatprep.subr.mxu0 0.0
  %4300 = vmatpush1.msra.mxu0 0.0
  %4301 = vmatprep.subr.mxu0 0.0
  %4302 = vmatpush1.msra.mxu0 0.0
  %4303 = vmatprep.subr.mxu0 0.0
  %4304 = vmatpush1.msra.mxu0 0.0
  %4305 = vmatprep.subr.mxu0 0.0
  %4306 = vmatpush1.msra.mxu0 0.0
  %4307 = vmatprep.subr.mxu0 0.0
  %4308 = vmatpush1.msra.mxu0 0.0
  %4309 = vmatprep.subr.mxu0 0.0
  %4310 = vmatpush1.msra.mxu0 0.0
  %4311 = vmatprep.subr.mxu0 0.0
  %4312 = vmatpush1.msra.mxu0 0.0
  %4313 = vmatprep.subr.mxu0 0.0
  %4314 = vmatpush1.msra.mxu0 0.0
  %4315 = vmatprep.subr.mxu0 0.0
  %4316 = vmatpush1.msra.mxu0 0.0
  %4317 = vmatprep.subr.mxu0 0.0
  %4318 = vmatpush1.msra.mxu0 0.0
  %4319 = vmatprep.subr.mxu0 0.0
  %4320 = vmatpush1.msra.mxu0 0.0
  %4321 = vmatprep.subr.mxu0 0.0
  %4322 = vmatpush1.msra.mxu0 0.0
  %4323 = vmatprep.subr.mxu0 0.0
  %4324 = vmatpush1.msra.mxu0 0.0
  %4325 = vmatprep.subr.mxu0 0.0
  %4326 = vmatpush1.msra.mxu0 0.0
  %4327 = vmatprep.subr.mxu0 0.0
  %4328 = vmatpush1.msra.mxu0 0.0
  %4329 = vmatprep.subr.mxu0 0.0
  %4330 = vmatpush1.msra.mxu0 0.0
  %4331 = vmatprep.subr.mxu0 0.0
  %4332 = vmatpush1.msra.mxu0 0.0
  %4333 = vmatprep.subr.mxu0 0.0
  %4334 = vmatpush1.msra.mxu0 0.0
  %4335 = vmatprep.subr.mxu0 0.0
  %4336 = vmatpush1.msra.mxu0 0.0
  %4337 = vmatprep.subr.mxu0 0.0
  %4338 = vmatpush1.msra.mxu0 0.0
  %4339 = vmatprep.subr.mxu0 0.0
  %4340 = vmatpush1.msra.mxu0 0.0
  %4341 = vmatprep.subr.mxu0 0.0
  %4342 = vmatpush1.msra.mxu0 0.0
  %4343 = vmatprep.subr.mxu0 0.0
  %4344 = vmatpush1.msra.mxu0 0.0
  %4345 = vmatprep.subr.mxu0 0.0
  %4346 = vmatpush1.msra.mxu0 0.0
  %4347 = vmatprep.mubr.f32.mxu0 0.0
  %4348 = vmatmul.mubr.f32.gmra.mrb[0].mxu0 %v4281
  %v4349 = vpop.f32.mrb[0].mxu0
  %v4350 = vadd.f32 %v402, %v4349
  %v4351 = vpop.f32.mrb[0].mxu0
  %4352 = vdwg.mxu0
  %v4354 = vrot.slane %v4350, 1
  %v4355 = vrot.slane %v4350, 2
  %v4356 = vrot.slane %v4350, 3
  %4357 = vrot.lane.b32.xlu0 %v4350, 96
  %v4358 = vpop.permute.xlu0 %4357
  %4359 = vrot.lane.b32.xlu0 %v4354, 96
  %v4360 = vpop.permute.xlu0 %4359
  %4361 = vrot.lane.b32.xlu0 %v4355, 96
  %v4362 = vpop.permute.xlu0 %4361
  %4363 = vrot.lane.b32.xlu0 %v4356, 96
  %v4364 = vpop.permute.xlu0 %4363
  %v4369 = vadd.f32 %v141, %v4358
  %v4370 = vadd.f32 %v147, %v4360
  %v4371 = vadd.f32 %v153, %v4362
  %v4372 = vadd.f32 %v159, %v4364
  %v4373 = vxor.u32 %v4369, 2147483648
  %v4374 = vxor.u32 %v4370, 2147483648
  %v4375 = vxor.u32 %v4371, 2147483648
  %v4376 = vxor.u32 %v4372, 2147483648
  %v4377 = vmul.f32 %v4373, 1.442695
  %v4378 = vpow.pop %v4377
  %v4379 = vmul.f32 %v4374, 1.442695
  %v4380 = vpow.pop %v4379
  %v4381 = vmul.f32 %v4375, 1.442695
  %v4382 = vpow.pop %v4381
  %v4383 = vmul.f32 %v4376, 1.442695
  %v4384 = vpow.pop %v4383
  %v4385 = vadd.f32 %v4378, 1.0
  %v4386 = vadd.f32 %v4380, 1.0
  %v4387 = vadd.f32 %v4382, 1.0
  %v4388 = vadd.f32 %v4384, 1.0
  %v4389 = vrcp.pop %v4385
  %v4390 = vmul.f32 1.0, %v4389
  %v4391 = vrcp.pop %v4386
  %v4392 = vmul.f32 1.0, %v4391
  %v4393 = vrcp.pop %v4387
  %v4394 = vmul.f32 1.0, %v4393
  %v4395 = vrcp.pop %v4388
  %v4396 = vmul.f32 1.0, %v4395
  %v4397 = vadd.f32 %v143, %v4358
  %v4398 = vadd.f32 %v149, %v4360
  %v4399 = vadd.f32 %v155, %v4362
  %v4400 = vadd.f32 %v161, %v4364
  %v4401 = vxor.u32 %v4397, 2147483648
  %v4402 = vxor.u32 %v4398, 2147483648
  %v4403 = vxor.u32 %v4399, 2147483648
  %v4404 = vxor.u32 %v4400, 2147483648
  %v4405 = vmul.f32 %v4401, 1.442695
  %v4406 = vpow.pop %v4405
  %v4407 = vmul.f32 %v4402, 1.442695
  %v4408 = vpow.pop %v4407
  %v4409 = vmul.f32 %v4403, 1.442695
  %v4410 = vpow.pop %v4409
  %v4411 = vmul.f32 %v4404, 1.442695
  %v4412 = vpow.pop %v4411
  %v4413 = vadd.f32 %v4406, 1.0
  %v4414 = vadd.f32 %v4408, 1.0
  %v4415 = vadd.f32 %v4410, 1.0
  %v4416 = vadd.f32 %v4412, 1.0
  %v4417 = vrcp.pop %v4413
  %v4418 = vmul.f32 1.0, %v4417
  %v4419 = vrcp.pop %v4414
  %v4420 = vmul.f32 1.0, %v4419
  %v4421 = vrcp.pop %v4415
  %v4422 = vmul.f32 1.0, %v4421
  %v4423 = vrcp.pop %v4416
  %v4424 = vmul.f32 1.0, %v4423
  %4425 = vrot.lane.b32.xlu0 %v4350, 32
  %v4426 = vpop.permute.xlu0 %4425
  %4427 = vrot.lane.b32.xlu0 %v4354, 32
  %v4428 = vpop.permute.xlu0 %4427
  %4429 = vrot.lane.b32.xlu0 %v4355, 32
  %v4430 = vpop.permute.xlu0 %4429
  %4431 = vrot.lane.b32.xlu0 %v4356, 32
  %v4432 = vpop.permute.xlu0 %4431
  %v4437 = vmul.f32 %v4390, %v4426
  %v4438 = vmul.f32 %v4392, %v4428
  %v4439 = vmul.f32 %v4394, %v4430
  %v4440 = vmul.f32 %v4396, %v4432
  %4445 = vrot.lane.b32.xlu0 %v4437, 64
  %v4446 = vpop.permute.xlu0 %4445
  %4447 = vrot.lane.b32.xlu0 %v4438, 64
  %v4448 = vpop.permute.xlu0 %4447
  %4449 = vrot.lane.b32.xlu0 %v4439, 64
  %v4450 = vpop.permute.xlu0 %4449
  %4451 = vrot.lane.b32.xlu0 %v4440, 64
  %v4452 = vpop.permute.xlu0 %4451
  %v4457 = vadd.f32 %v143, %v4446
  %v4458 = vadd.f32 %v149, %v4448
  %v4459 = vadd.f32 %v155, %v4450
  %v4460 = vadd.f32 %v161, %v4452
  %v4461 = vtanh.pop %v4457
  %v4462 = vtanh.pop %v4458
  %v4463 = vtanh.pop %v4459
  %v4464 = vtanh.pop %v4460
  %v4465 = vsub.f32 1.0, %v4418
  %v4466 = vsub.f32 1.0, %v4420
  %v4467 = vsub.f32 1.0, %v4422
  %v4468 = vsub.f32 1.0, %v4424
  %4473 = vrot.lane.b32.xlu0 %v4461, 96
  %v4474 = vpop.permute.xlu0 %4473
  %4475 = vrot.lane.b32.xlu0 %v4462, 96
  %v4476 = vpop.permute.xlu0 %4475
  %4477 = vrot.lane.b32.xlu0 %v4463, 96
  %v4478 = vpop.permute.xlu0 %4477
  %4479 = vrot.lane.b32.xlu0 %v4464, 96
  %v4480 = vpop.permute.xlu0 %4479
  %v4485 = vmul.f32 %v4465, %v4474
  %v4486 = vmul.f32 %v4466, %v4476
  %v4487 = vmul.f32 %v4467, %v4478
  %v4488 = vmul.f32 %v4468, %v4480
  %v4489 = vrot.slane %v3976, 1
  %v4490 = vrot.slane %v3976, 2
  %v4491 = vrot.slane %v3976, 3
  %v4496 = vmul.f32 %v4418, %v3976
  %v4497 = vmul.f32 %v4420, %v4489
  %v4498 = vmul.f32 %v4422, %v4490
  %v4499 = vmul.f32 %v4424, %v4491
  %v4500 = vadd.f32 %v4485, %v4496
  %v4501 = vadd.f32 %v4486, %v4497
  %v4502 = vadd.f32 %v4487, %v4498
  %v4503 = vadd.f32 %v4488, %v4499
  %v4508 = vrot.slane %v4501, 7
  %v4509 = vsel %vm378, %v4508, %v4500
  %v4510 = vrot.slane %v4502, 6
  %v4511 = vsel %vm381, %v4510, %v4509
  %v4512 = vrot.slane %v4503, 5
  %v4513 = vsel %vm384, %v4512, %v4511
  %v4515 = vmul.f32 %v371, %v4513
  %v4516 = vmul.f32 %v394, %v3976
  %v4517 = vadd.f32 %v4515, %v4516
  %v4520 = vunpack.c.l.s4 1966171168
  %v4521 = vunpack.c.0.s8 %v4520
  %v4522 = vlaneseq
  %v4523 = vshrl.u32 %v4522, 7
  %v4524 = vsub.s32 %v4521, %v4523
  %v4525 = vrot.slane %v4280, %v4524
  %v4526 = vcombine.high %v4525, %v4525
  %v4528 = vunpack.c.l.s4 1966171168
  %v4529 = vunpack.c.0.s8 %v4528
  %v4530 = vlaneseq
  %v4531 = vshrl.u32 %v4530, 7
  %v4532 = vsub.s32 %v4529, %v4531
  %v4533 = vrot.slane %v4525, %v4532
  %v4535 = vunpack.c.l.s4 1966171168
  %v4536 = vunpack.c.0.s8 %v4535
  %v4537 = vlaneseq
  %v4538 = vshrl.u32 %v4537, 7
  %v4539 = vsub.s32 %v4536, %v4538
  %v4540 = vrot.slane %v4526, %v4539
  %v4541 = vcombine.high %v4533, %v4533
  %v4542 = vcombine.high %v4540, %v4540
  %4547 = vst.msk [vmem:[%s8 + $0x7] sm:$0x1] %vm674, %v4533
  %4548 = vst.msk [vmem:[%s8 + $0xf] sm:$0x1] %vm674, %v4540
  %4549 = vst.msk [vmem:[%s8 + $0x17] sm:$0x1] %vm674, %v4541
  %4550 = vst.msk [vmem:[%s8 + $0x1f] sm:$0x1] %vm674, %v4542
  %v4553 = vunpack.c.l.s4 1966171168
  %v4554 = vunpack.c.0.s8 %v4553
  %v4555 = vlaneseq
  %v4556 = vshrl.u32 %v4555, 7
  %v4557 = vsub.s32 %v4554, %v4556
  %v4558 = vrot.slane %v4517, %v4557
  %v4559 = vcombine.high %v4558, %v4558
  %v4561 = vunpack.c.l.s4 1966171168
  %v4562 = vunpack.c.0.s8 %v4561
  %v4563 = vlaneseq
  %v4564 = vshrl.u32 %v4563, 7
  %v4565 = vsub.s32 %v4562, %v4564
  %v4566 = vrot.slane %v4558, %v4565
  %v4568 = vunpack.c.l.s4 1966171168
  %v4569 = vunpack.c.0.s8 %v4568
  %v4570 = vlaneseq
  %v4571 = vshrl.u32 %v4570, 7
  %v4572 = vsub.s32 %v4569, %v4571
  %v4573 = vrot.slane %v4559, %v4572
  %v4574 = vcombine.high %v4566, %v4566
  %v4575 = vcombine.high %v4573, %v4573
  %v4576 = vlaneseq
  %v4577 = vshrl.u32 %v4576, 7
  %v4578 = vsub.s32 0, %v4577
  %v4579 = vrot.slane %v4566, %v4578
  %v4580 = vlaneseq
  %v4581 = vshrl.u32 %v4580, 7
  %v4582 = vsub.s32 0, %v4581
  %v4583 = vrot.slane %v4573, %v4582
  %v4584 = vlaneseq
  %v4585 = vshrl.u32 %v4584, 7
  %v4586 = vsub.s32 0, %v4585
  %v4587 = vrot.slane %v4574, %v4586
  %v4588 = vlaneseq
  %v4589 = vshrl.u32 %v4588, 7
  %v4590 = vsub.s32 0, %v4589
  %v4591 = vrot.slane %v4575, %v4590
  %4592 = vrot.lane.b32.xlu0 %v4579, 32
  %v4593 = vpop.permute.xlu0 %4592
  %4594 = vrot.lane.b32.xlu0 %v4583, 32
  %v4595 = vpop.permute.xlu0 %4594
  %4596 = vrot.lane.b32.xlu0 %v4587, 32
  %v4597 = vpop.permute.xlu0 %4596
  %4598 = vrot.lane.b32.xlu0 %v4591, 32
  %v4599 = vpop.permute.xlu0 %4598
  %4604 = vst.msk [vmem:[%s8] sm:$0x1] %vm732, %v4593
  %4605 = vst.msk [vmem:[%s8 + $0x8] sm:$0x1] %vm732, %v4595
  %4606 = vst.msk [vmem:[%s8 + $0x10] sm:$0x1] %vm732, %v4597
  %4607 = vst.msk [vmem:[%s8 + $0x18] sm:$0x1] %vm732, %v4599
  // Predicated region
  $region34: #{word_attention_forward.4} parent=0 // pred_check
    _
  $region35: #{word_attention_forward.4} parent=0 // pred_check_branch
    %4609 = sbr.rel (0) target = $region37
  $region36: #{word_attention_forward.4} parent=0 // pred_region
    _
  $region37: #{word_attention_forward.4} parent=0 // pred_fallthru
    _
  // Predicated region
  $region38: #{word_attention_forward.4} parent=0 // pred_check
    _
  $region39: #{word_attention_forward.4} parent=0 // pred_check_branch
    %4611 = sbr.rel (0) target = $region41
  $region40: #{word_attention_forward.4} parent=0 // pred_region
    _
  $region41: #{word_attention_forward.4} parent=0 // pred_fallthru
    _

// kernel: word_attention_forward.3
$region0: #{word_attention_forward.3}
  #allocation0 [shape = 'u32[]', space=smem, size = 0x4, offset = 0x4, fixed_abs, tag = 'smem constant byte address 0x4 - core index']
  #allocation1 [shape = 'u32[144,128]{1,0:T(1,128)}', space=vmem, size = 0x12000, scoped, tag = 'internal scratch']
  %s0 = inlined_call_operand.vmem [shape: f32[4,8,32], index: 0, kind: input, shape index: {}]
  %s1 = inlined_call_operand.vmem [shape: s32[4,1], index: 1, kind: input, shape index: {}]
  %s2 = inlined_call_operand.vmem [shape: f32[32,192], index: 2, kind: input, shape index: {}]
  %s3 = inlined_call_operand.vmem [shape: f32[1,192], index: 3, kind: input, shape index: {}]
  %s4 = inlined_call_operand.vmem [shape: f32[32,96], index: 4, kind: input, shape index: {}]
  %s5 = inlined_call_operand.vmem [shape: f32[1,96], index: 5, kind: input, shape index: {}]
  %s6 = inlined_call_operand.vmem [shape: f32[32,96], index: 6, kind: input, shape index: {}]
  %s7 = inlined_call_operand.vmem [shape: f32[1,96], index: 7, kind: input, shape index: {}]
  %s8 = inlined_call_operand.vmem [shape: f32[4,8,64], index: 8, kind: output, shape index: {}]
  %s9 = sld [smem:[#allocation0]]
  $region42: #{word_attention_forward.3} parent=0
    _
  %s11 = ssub.s32 1, %s9
  %s12 = scalar_select 0, %s11, %s9
  // Predicated region
  $region2: #{word_attention_forward.3} parent=0 // pred_check
    _
  $region3: #{word_attention_forward.3} parent=0 // pred_check_branch
    %14 = sbr.rel (0) target = $region5
  $region4: #{word_attention_forward.3} parent=0 // pred_region
    _
  $region5: #{word_attention_forward.3} parent=0 // pred_fallthru
    _
  // Predicated region
  $region6: #{word_attention_forward.3} parent=0 // pred_check
    _
  $region7: #{word_attention_forward.3} parent=0 // pred_check_branch
    %16 = sbr.rel (0) target = $region9
  $region8: #{word_attention_forward.3} parent=0 // pred_region
    _
  $region9: #{word_attention_forward.3} parent=0 // pred_fallthru
    _
  // Predicated region
  $region10: #{word_attention_forward.3} parent=0 // pred_check
    _
  $region11: #{word_attention_forward.3} parent=0 // pred_check_branch
    %18 = sbr.rel (0) target = $region13
  $region12: #{word_attention_forward.3} parent=0 // pred_region
    _
  $region13: #{word_attention_forward.3} parent=0 // pred_fallthru
    _
  // Predicated region
  $region14: #{word_attention_forward.3} parent=0 // pred_check
    _
  $region15: #{word_attention_forward.3} parent=0 // pred_check_branch
    %20 = sbr.rel (0) target = $region17
  $region16: #{word_attention_forward.3} parent=0 // pred_region
    _
  $region17: #{word_attention_forward.3} parent=0 // pred_fallthru
    _
  // Predicated region
  $region18: #{word_attention_forward.3} parent=0 // pred_check
    _
  $region19: #{word_attention_forward.3} parent=0 // pred_check_branch
    %22 = sbr.rel (0) target = $region21
  $region20: #{word_attention_forward.3} parent=0 // pred_region
    _
  $region21: #{word_attention_forward.3} parent=0 // pred_fallthru
    _
  // Predicated region
  $region22: #{word_attention_forward.3} parent=0 // pred_check
    _
  $region23: #{word_attention_forward.3} parent=0 // pred_check_branch
    %24 = sbr.rel (0) target = $region25
  $region24: #{word_attention_forward.3} parent=0 // pred_region
    _
  $region25: #{word_attention_forward.3} parent=0 // pred_fallthru
    _
  // Predicated region
  $region26: #{word_attention_forward.3} parent=0 // pred_check
    _
  $region27: #{word_attention_forward.3} parent=0 // pred_check_branch
    %26 = sbr.rel (0) target = $region29
  $region28: #{word_attention_forward.3} parent=0 // pred_region
    _
  $region29: #{word_attention_forward.3} parent=0 // pred_fallthru
    _
  // Predicated region
  $region30: #{word_attention_forward.3} parent=0 // pred_check
    _
  $region31: #{word_attention_forward.3} parent=0 // pred_check_branch
    %28 = sbr.rel (0) target = $region33
  $region32: #{word_attention_forward.3} parent=0 // pred_region
    _
  $region33: #{word_attention_forward.3} parent=0 // pred_fallthru
    _
  %v29 = vld [vmem:[%s0] sm:$0xff]
  %v30 = vld [vmem:[%s0 + $0x8] sm:$0xff]
  %v31 = vld [vmem:[%s0 + $0x10] sm:$0xff]
  %v32 = vld [vmem:[%s0 + $0x18] sm:$0xff]
  %v33 = vld [vmem:[%s2] sm:$0xff]
  %v34 = vld [vmem:[%s2 + $0x8] sm:$0xff]
  %v35 = vld [vmem:[%s2 + $0x10] sm:$0xff]
  %v36 = vld [vmem:[%s2 + $0x18] sm:$0xff]
  %v37 = vld [vmem:[%s2 + $0x20] sm:$0xff]
  %v38 = vld [vmem:[%s2 + $0x28] sm:$0xff]
  %v39 = vld [vmem:[%s2 + $0x30] sm:$0xff]
  %v40 = vld [vmem:[%s2 + $0x38] sm:$0xff]
  %v41 = vld [vmem:[%s3] sm:$0x3]
  %v43 = vlaneseq
  %v44 = vshrl.u32 %v43, 7
  %v45 = vsub.s32 0, %v44
  %v46 = vrot.slane %v41, %v45
  %v47 = vlaneseq
  %v48 = vshrl.u32 %v47, 7
  %v49 = vsub.s32 1, %v48
  %v50 = vrot.slane %v41, %v49
  %vm53 = vcmask 261120
  %v55 = vsel %vm53, %v29, 0
  %v58 = vsel %vm53, %v30, 0
  %v61 = vsel %vm53, %v31, 0
  %v64 = vsel %vm53, %v32, 0
  %66 = vmatprep.subr.mxu0 %v34
  %67 = vmatpush1.msra.mxu0 %v33
  %68 = vmatprep.subr.mxu0 %v36
  %69 = vmatpush1.msra.mxu0 %v35
  %70 = vmatprep.subr.mxu0 %v38
  %71 = vmatpush1.msra.mxu0 %v37
  %72 = vmatprep.subr.mxu0 %v40
  %73 = vmatpush1.msra.mxu0 %v39
  %74 = vmatprep.subr.mxu0 0.0
  %75 = vmatpush1.msra.mxu0 0.0
  %76 = vmatprep.subr.mxu0 0.0
  %77 = vmatpush1.msra.mxu0 0.0
  %78 = vmatprep.subr.mxu0 0.0
  %79 = vmatpush1.msra.mxu0 0.0
  %80 = vmatprep.subr.mxu0 0.0
  %81 = vmatpush1.msra.mxu0 0.0
  %82 = vmatprep.subr.mxu0 0.0
  %83 = vmatpush1.msra.mxu0 0.0
  %84 = vmatprep.subr.mxu0 0.0
  %85 = vmatpush1.msra.mxu0 0.0
  %86 = vmatprep.subr.mxu0 0.0
  %87 = vmatpush1.msra.mxu0 0.0
  %88 = vmatprep.subr.mxu0 0.0
  %89 = vmatpush1.msra.mxu0 0.0
  %90 = vmatprep.subr.mxu0 0.0
  %91 = vmatpush1.msra.mxu0 0.0
  %92 = vmatprep.subr.mxu0 0.0
  %93 = vmatpush1.msra.mxu0 0.0
  %94 = vmatprep.subr.mxu0 0.0
  %95 = vmatpush1.msra.mxu0 0.0
  %96 = vmatprep.subr.mxu0 0.0
  %97 = vmatpush1.msra.mxu0 0.0
  %98 = vmatprep.subr.mxu0 0.0
  %99 = vmatpush1.msra.mxu0 0.0
  %100 = vmatprep.subr.mxu0 0.0
  %101 = vmatpush1.msra.mxu0 0.0
  %102 = vmatprep.subr.mxu0 0.0
  %103 = vmatpush1.msra.mxu0 0.0
  %104 = vmatprep.subr.mxu0 0.0
  %105 = vmatpush1.msra.mxu0 0.0
  %106 = vmatprep.subr.mxu0 0.0
  %107 = vmatpush1.msra.mxu0 0.0
  %108 = vmatprep.subr.mxu0 0.0
  %109 = vmatpush1.msra.mxu0 0.0
  %110 = vmatprep.subr.mxu0 0.0
  %111 = vmatpush1.msra.mxu0 0.0
  %112 = vmatprep.subr.mxu0 0.0
  %113 = vmatpush1.msra.mxu0 0.0
  %114 = vmatprep.subr.mxu0 0.0
  %115 = vmatpush1.msra.mxu0 0.0
  %116 = vmatprep.subr.mxu0 0.0
  %117 = vmatpush1.msra.mxu0 0.0
  %118 = vmatprep.subr.mxu0 0.0
  %119 = vmatpush1.msra.mxu0 0.0
  %120 = vmatprep.subr.mxu0 0.0
  %121 = vmatpush1.msra.mxu0 0.0
  %122 = vmatprep.subr.mxu0 0.0
  %123 = vmatpush1.msra.mxu0 0.0
  %124 = vmatprep.subr.mxu0 0.0
  %125 = vmatpush1.msra.mxu0 0.0
  %126 = vmatprep.subr.mxu0 0.0
  %127 = vmatpush1.msra.mxu0 0.0
  %128 = vmatprep.subr.mxu0 0.0
  %129 = vmatpush1.msra.mxu0 0.0
  %130 = vmatprep.mubr.f32.mxu0 0.0
  %131 = vmatmul.mubr.f32.gmra.mrb[0].mxu0 %v55
  %v132 = vpop.f32.mrb[0].mxu0
  %v133 = vadd.f32 %v46, %v132
  %v134 = vpop.f32.mrb[0].mxu0
  %v135 = vadd.f32 %v50, %v134
  %136 = vmatprep.mubr.f32.mxu0 0.0
  %137 = vmatmul.mubr.f32.gmra.mrb[0].mxu0 %v58
  %v138 = vpop.f32.mrb[0].mxu0
  %v139 = vadd.f32 %v46, %v138
  %v140 = vpop.f32.mrb[0].mxu0
  %v141 = vadd.f32 %v50, %v140
  %142 = vmatprep.mubr.f32.mxu0 0.0
  %143 = vmatmul.mubr.f32.gmra.mrb[0].mxu0 %v61
  %v144 = vpop.f32.mrb[0].mxu0
  %v145 = vadd.f32 %v46, %v144
  %v146 = vpop.f32.mrb[0].mxu0
  %v147 = vadd.f32 %v50, %v146
  %148 = vmatprep.mubr.f32.mxu0 0.0
  %149 = vmatmul.mubr.f32.gmra.mrb[0].mxu0 %v64
  %v150 = vpop.f32.mrb[0].mxu0
  %v151 = vadd.f32 %v46, %v150
  %v152 = vpop.f32.mrb[0].mxu0
  %v153 = vadd.f32 %v50, %v152
  %154 = vdwg.mxu0
  %v155 = vld [vmem:[%s1] sm:$0xf]
  %v156 = vld [vmem:[%s4] sm:$0xff]
  %v157 = vld [vmem:[%s4 + $0x8] sm:$0xff]
  %v158 = vld [vmem:[%s4 + $0x10] sm:$0xff]
  %v159 = vld [vmem:[%s4 + $0x18] sm:$0xff]
  %v160 = vld [vmem:[%s5] sm:$0x1]
  %v161 = vld [vmem:[%s6] sm:$0xff]
  %v162 = vld [vmem:[%s6 + $0x8] sm:$0xff]
  %v163 = vld [vmem:[%s6 + $0x10] sm:$0xff]
  %v164 = vld [vmem:[%s6 + $0x18] sm:$0xff]
  %v165 = vld [vmem:[%s7] sm:$0x1]
  %vm166 = vcmp.gt.s32.totalorder %v155, 0
  %v167 = vsel %vm166, 1, 0
  %v168 = vcvt.s32.f32 %v167
  %vm169 = vcmp.gt.s32.totalorder %v155, 7
  %v170 = vsel %vm169, 1, 0
  %v171 = vcvt.s32.f32 %v170
  %v173 = vlaneseq
  %v174 = vshrl.u32 %v173, 7
  %v175 = vsub.s32 0, %v174
  %v176 = vrot.slane %v160, %v175
  %v179 = vsel %vm53, 0.0, 0
  %181 = vmatprep.subr.mxu0 0.0
  %182 = vmatpush1.msra.mxu0 %v156
  %183 = vmatprep.subr.mxu0 0.0
  %184 = vmatpush1.msra.mxu0 %v157
  %185 = vmatprep.subr.mxu0 0.0
  %186 = vmatpush1.msra.mxu0 %v158
  %187 = vmatprep.subr.mxu0 0.0
  %188 = vmatpush1.msra.mxu0 %v159
  %189 = vmatprep.subr.mxu0 0.0
  %190 = vmatpush1.msra.mxu0 0.0
  %191 = vmatprep.subr.mxu0 0.0
  %192 = vmatpush1.msra.mxu0 0.0
  %193 = vmatprep.subr.mxu0 0.0
  %194 = vmatpush1.msra.mxu0 0.0
  %195 = vmatprep.subr.mxu0 0.0
  %196 = vmatpush1.msra.mxu0 0.0
  %197 = vmatprep.subr.mxu0 0.0
  %198 = vmatpush1.msra.mxu0 0.0
  %199 = vmatprep.subr.mxu0 0.0
  %200 = vmatpush1.msra.mxu0 0.0
  %201 = vmatprep.subr.mxu0 0.0
  %202 = vmatpush1.msra.mxu0 0.0
  %203 = vmatprep.subr.mxu0 0.0
  %204 = vmatpush1.msra.mxu0 0.0
  %205 = vmatprep.subr.mxu0 0.0
  %206 = vmatpush1.msra.mxu0 0.0
  %207 = vmatprep.subr.mxu0 0.0
  %208 = vmatpush1.msra.mxu0 0.0
  %209 = vmatprep.subr.mxu0 0.0
  %210 = vmatpush1.msra.mxu0 0.0
  %211 = vmatprep.subr.mxu0 0.0
  %212 = vmatpush1.msra.mxu0 0.0
  %213 = vmatprep.subr.mxu0 0.0
  %214 = vmatpush1.msra.mxu0 0.0
  %215 = vmatprep.subr.mxu0 0.0
  %216 = vmatpush1.msra.mxu0 0.0
  %217 = vmatprep.subr.mxu0 0.0
  %218 = vmatpush1.msra.mxu0 0.0
  %219 = vmatprep.subr.mxu0 0.0
  %220 = vmatpush1.msra.mxu0 0.0
  %221 = vmatprep.subr.mxu0 0.0
  %222 = vmatpush1.msra.mxu0 0.0
  %223 = vmatprep.subr.mxu0 0.0
  %224 = vmatpush1.msra.mxu0 0.0
  %225 = vmatprep.subr.mxu0 0.0
  %226 = vmatpush1.msra.mxu0 0.0
  %227 = vmatprep.subr.mxu0 0.0
  %228 = vmatpush1.msra.mxu0 0.0
  %229 = vmatprep.subr.mxu0 0.0
  %230 = vmatpush1.msra.mxu0 0.0
  %231 = vmatprep.subr.mxu0 0.0
  %232 = vmatpush1.msra.mxu0 0.0
  %233 = vmatprep.subr.mxu0 0.0
  %234 = vmatpush1.msra.mxu0 0.0
  %235 = vmatprep.subr.mxu0 0.0
  %236 = vmatpush1.msra.mxu0 0.0
  %237 = vmatprep.subr.mxu0 0.0
  %238 = vmatpush1.msra.mxu0 0.0
  %239 = vmatprep.subr.mxu0 0.0
  %240 = vmatpush1.msra.mxu0 0.0
  %241 = vmatprep.subr.mxu0 0.0
  %242 = vmatpush1.msra.mxu0 0.0
  %243 = vmatprep.subr.mxu0 0.0
  %244 = vmatpush1.msra.mxu0 0.0
  %245 = vmatprep.mubr.f32.mxu0 0.0
  %246 = vmatmul.mubr.f32.gmra.mrb[0].mxu0 %v179
  %v247 = vpop.f32.mrb[0].mxu0
  %v248 = vadd.f32 %v176, %v247
  %v249 = vpop.f32.mrb[0].mxu0
  %250 = vdwg.mxu0
  %v252 = vrot.slane %v248, 1
  %v253 = vrot.slane %v248, 2
  %v254 = vrot.slane %v248, 3
  %v259 = vadd.f32 %v133, %v248
  %v260 = vadd.f32 %v139, %v252
  %v261 = vadd.f32 %v145, %v253
  %v262 = vadd.f32 %v151, %v254
  %v263 = vxor.u32 %v259, 2147483648
  %v264 = vxor.u32 %v260, 2147483648
  %v265 = vxor.u32 %v261, 2147483648
  %v266 = vxor.u32 %v262, 2147483648
  %v267 = vmul.f32 %v263, 1.442695
  %v268 = vpow.pop %v267
  %v269 = vmul.f32 %v264, 1.442695
  %v270 = vpow.pop %v269
  %v271 = vmul.f32 %v265, 1.442695
  %v272 = vpow.pop %v271
  %v273 = vmul.f32 %v266, 1.442695
  %v274 = vpow.pop %v273
  %v275 = vadd.f32 %v268, 1.0
  %v276 = vadd.f32 %v270, 1.0
  %v277 = vadd.f32 %v272, 1.0
  %v278 = vadd.f32 %v274, 1.0
  %v279 = vrcp.pop %v275
  %v280 = vmul.f32 1.0, %v279
  %v281 = vrcp.pop %v276
  %v282 = vmul.f32 1.0, %v281
  %v283 = vrcp.pop %v277
  %v284 = vmul.f32 1.0, %v283
  %v285 = vrcp.pop %v278
  %v286 = vmul.f32 1.0, %v285
  %287 = vrot.lane.b32.xlu0 %v248, 64
  %v288 = vpop.permute.xlu0 %287
  %289 = vrot.lane.b32.xlu0 %v252, 64
  %v290 = vpop.permute.xlu0 %289
  %291 = vrot.lane.b32.xlu0 %v253, 64
  %v292 = vpop.permute.xlu0 %291
  %293 = vrot.lane.b32.xlu0 %v254, 64
  %v294 = vpop.permute.xlu0 %293
  %v299 = vmul.f32 %v280, %v288
  %v300 = vmul.f32 %v282, %v290
  %v301 = vmul.f32 %v284, %v292
  %v302 = vmul.f32 %v286, %v294
  %307 = vrot.lane.b32.xlu0 %v299, 64
  %v308 = vpop.permute.xlu0 %307
  %309 = vrot.lane.b32.xlu0 %v300, 64
  %v310 = vpop.permute.xlu0 %309
  %311 = vrot.lane.b32.xlu0 %v301, 64
  %v312 = vpop.permute.xlu0 %311
  %313 = vrot.lane.b32.xlu0 %v302, 64
  %v314 = vpop.permute.xlu0 %313
  %v319 = vadd.f32 %v133, %v308
  %v320 = vadd.f32 %v139, %v310
  %v321 = vadd.f32 %v145, %v312
  %v322 = vadd.f32 %v151, %v314
  %v323 = vtanh.pop %v319
  %v324 = vtanh.pop %v320
  %v325 = vtanh.pop %v321
  %v326 = vtanh.pop %v322
  %v327 = vsub.f32 1.0, %v280
  %v328 = vsub.f32 1.0, %v282
  %v329 = vsub.f32 1.0, %v284
  %v330 = vsub.f32 1.0, %v286
  %335 = vrot.lane.b32.xlu0 %v323, 96
  %v336 = vpop.permute.xlu0 %335
  %337 = vrot.lane.b32.xlu0 %v324, 96
  %v338 = vpop.permute.xlu0 %337
  %339 = vrot.lane.b32.xlu0 %v325, 96
  %v340 = vpop.permute.xlu0 %339
  %341 = vrot.lane.b32.xlu0 %v326, 96
  %v342 = vpop.permute.xlu0 %341
  %v347 = vmul.f32 %v327, %v336
  %v348 = vmul.f32 %v328, %v338
  %v349 = vmul.f32 %v329, %v340
  %v350 = vmul.f32 %v330, %v342
  %v351 = vmul.f32 %v280, 0.0
  %v352 = vmul.f32 %v282, 0.0
  %v353 = vmul.f32 %v284, 0.0
  %v354 = vmul.f32 %v286, 0.0
  %v355 = vadd.f32 %v347, %v351
  %v356 = vadd.f32 %v348, %v352
  %v357 = vadd.f32 %v349, %v353
  %v358 = vadd.f32 %v350, %v354
  %360 = vset.pattern.permute.xlu0 0
  %361 = vperm.xlu0 %360, %v168
  %v362 = vpop.permute.xlu0 %361
  %v368 = vrot.slane %v356, 7
  %vm369 = vcmask 1041409
  %v370 = vsel %vm369, %v368, %v355
  %v371 = vrot.slane %v357, 6
  %vm372 = vcmask 1042434
  %v373 = vsel %vm372, %v371, %v370
  %v374 = vrot.slane %v358, 5
  %vm375 = vcmask 1043459
  %v376 = vsel %vm375, %v374, %v373
  %377 = vrot.lane.b32.xlu0 %v376, 96
  %v378 = vpop.permute.xlu0 %377
  %v380 = vmul.f32 %v362, %v378
  %v381 = vsub.f32 1.0, %v168
  %383 = vset.pattern.permute.xlu0 0
  %384 = vperm.xlu0 %383, %v381
  %v385 = vpop.permute.xlu0 %384
  %v387 = vmul.f32 %v385, 0.0
  %v388 = vadd.f32 %v380, %v387
  %v390 = vlaneseq
  %v391 = vshrl.u32 %v390, 7
  %v392 = vsub.s32 0, %v391
  %v393 = vrot.slane %v165, %v392
  %395 = vmatprep.subr.mxu0 0.0
  %396 = vmatpush1.msra.mxu0 %v161
  %397 = vmatprep.subr.mxu0 0.0
  %398 = vmatpush1.msra.mxu0 %v162
  %399 = vmatprep.subr.mxu0 0.0
  %400 = vmatpush1.msra.mxu0 %v163
  %401 = vmatprep.subr.mxu0 0.0
  %402 = vmatpush1.msra.mxu0 %v164
  %403 = vmatprep.subr.mxu0 0.0
  %404 = vmatpush1.msra.mxu0 0.0
  %405 = vmatprep.subr.mxu0 0.0
  %406 = vmatpush1.msra.mxu0 0.0
  %407 = vmatprep.subr.mxu0 0.0
  %408 = vmatpush1.msra.mxu0 0.0
  %409 = vmatprep.subr.mxu0 0.0
  %410 = vmatpush1.msra.mxu0 0.0
  %411 = vmatprep.subr.mxu0 0.0
  %412 = vmatpush1.msra.mxu0 0.0
  %413 = vmatprep.subr.mxu0 0.0
  %414 = vmatpush1.msra.mxu0 0.0
  %415 = vmatprep.subr.mxu0 0.0
  %416 = vmatpush1.msra.mxu0 0.0
  %417 = vmatprep.subr.mxu0 0.0
  %418 = vmatpush1.msra.mxu0 0.0
  %419 = vmatprep.subr.mxu0 0.0
  %420 = vmatpush1.msra.mxu0 0.0
  %421 = vmatprep.subr.mxu0 0.0
  %422 = vmatpush1.msra.mxu0 0.0
  %423 = vmatprep.subr.mxu0 0.0
  %424 = vmatpush1.msra.mxu0 0.0
  %425 = vmatprep.subr.mxu0 0.0
  %426 = vmatpush1.msra.mxu0 0.0
  %427 = vmatprep.subr.mxu0 0.0
  %428 = vmatpush1.msra.mxu0 0.0
  %429 = vmatprep.subr.mxu0 0.0
  %430 = vmatpush1.msra.mxu0 0.0
  %431 = vmatprep.subr.mxu0 0.0
  %432 = vmatpush1.msra.mxu0 0.0
  %433 = vmatprep.subr.mxu0 0.0
  %434 = vmatpush1.msra.mxu0 0.0
  %435 = vmatprep.subr.mxu0 0.0
  %436 = vmatpush1.msra.mxu0 0.0
  %437 = vmatprep.subr.mxu0 0.0
  %438 = vmatpush1.msra.mxu0 0.0
  %439 = vmatprep.subr.mxu0 0.0
  %440 = vmatpush1.msra.mxu0 0.0
  %441 = vmatprep.subr.mxu0 0.0
  %442 = vmatpush1.msra.mxu0 0.0
  %443 = vmatprep.subr.mxu0 0.0
  %444 = vmatpush1.msra.mxu0 0.0
  %445 = vmatprep.subr.mxu0 0.0
  %446 = vmatpush1.msra.mxu0 0.0
  %447 = vmatprep.subr.mxu0 0.0
  %448 = vmatpush1.msra.mxu0 0.0
  %449 = vmatprep.subr.mxu0 0.0
  %450 = vmatpush1.msra.mxu0 0.0
  %451 = vmatprep.subr.mxu0 0.0
  %452 = vmatpush1.msra.mxu0 0.0
  %453 = vmatprep.subr.mxu0 0.0
  %454 = vmatpush1.msra.mxu0 0.0
  %455 = vmatprep.subr.mxu0 0.0
  %456 = vmatpush1.msra.mxu0 0.0
  %457 = vmatprep.subr.mxu0 0.0
  %458 = vmatpush1.msra.mxu0 0.0
  %459 = vmatprep.mubr.f32.mxu0 0.0
  %460 = vmatmul.mubr.f32.gmra.mrb[0].mxu0 %v179
  %v461 = vpop.f32.mrb[0].mxu0
  %v462 = vadd.f32 %v393, %v461
  %v463 = vpop.f32.mrb[0].mxu0
  %464 = vdwg.mxu0
  %v466 = vrot.slane %v462, 1
  %v467 = vrot.slane %v462, 2
  %v468 = vrot.slane %v462, 3
  %v469 = vrot.slane %v462, 4
  %470 = vrot.lane.b32.xlu0 %v466, 96
  %v471 = vpop.permute.xlu0 %470
  %472 = vrot.lane.b32.xlu0 %v467, 96
  %v473 = vpop.permute.xlu0 %472
  %474 = vrot.lane.b32.xlu0 %v468, 96
  %v475 = vpop.permute.xlu0 %474
  %476 = vrot.lane.b32.xlu0 %v469, 96
  %v477 = vpop.permute.xlu0 %476
  %v482 = vadd.f32 %v133, %v471
  %v483 = vadd.f32 %v139, %v473
  %v484 = vadd.f32 %v145, %v475
  %v485 = vadd.f32 %v151, %v477
  %v486 = vxor.u32 %v482, 2147483648
  %v487 = vxor.u32 %v483, 2147483648
  %v488 = vxor.u32 %v484, 2147483648
  %v489 = vxor.u32 %v485, 2147483648
  %v490 = vmul.f32 %v486, 1.442695
  %v491 = vpow.pop %v490
  %v492 = vmul.f32 %v487, 1.442695
  %v493 = vpow.pop %v492
  %v494 = vmul.f32 %v488, 1.442695
  %v495 = vpow.pop %v494
  %v496 = vmul.f32 %v489, 1.442695
  %v497 = vpow.pop %v496
  %v498 = vadd.f32 %v491, 1.0
  %v499 = vadd.f32 %v493, 1.0
  %v500 = vadd.f32 %v495, 1.0
  %v501 = vadd.f32 %v497, 1.0
  %v502 = vrcp.pop %v498
  %v503 = vmul.f32 1.0, %v502
  %v504 = vrcp.pop %v499
  %v505 = vmul.f32 1.0, %v504
  %v506 = vrcp.pop %v500
  %v507 = vmul.f32 1.0, %v506
  %v508 = vrcp.pop %v501
  %v509 = vmul.f32 1.0, %v508
  %v510 = vadd.f32 %v135, %v471
  %v511 = vadd.f32 %v141, %v473
  %v512 = vadd.f32 %v147, %v475
  %v513 = vadd.f32 %v153, %v477
  %v514 = vxor.u32 %v510, 2147483648
  %v515 = vxor.u32 %v511, 2147483648
  %v516 = vxor.u32 %v512, 2147483648
  %v517 = vxor.u32 %v513, 2147483648
  %v518 = vmul.f32 %v514, 1.442695
  %v519 = vpow.pop %v518
  %v520 = vmul.f32 %v515, 1.442695
  %v521 = vpow.pop %v520
  %v522 = vmul.f32 %v516, 1.442695
  %v523 = vpow.pop %v522
  %v524 = vmul.f32 %v517, 1.442695
  %v525 = vpow.pop %v524
  %v526 = vadd.f32 %v519, 1.0
  %v527 = vadd.f32 %v521, 1.0
  %v528 = vadd.f32 %v523, 1.0
  %v529 = vadd.f32 %v525, 1.0
  %v530 = vrcp.pop %v526
  %v531 = vmul.f32 1.0, %v530
  %v532 = vrcp.pop %v527
  %v533 = vmul.f32 1.0, %v532
  %v534 = vrcp.pop %v528
  %v535 = vmul.f32 1.0, %v534
  %v536 = vrcp.pop %v529
  %v537 = vmul.f32 1.0, %v536
  %538 = vrot.lane.b32.xlu0 %v466, 32
  %v539 = vpop.permute.xlu0 %538
  %540 = vrot.lane.b32.xlu0 %v467, 32
  %v541 = vpop.permute.xlu0 %540
  %542 = vrot.lane.b32.xlu0 %v468, 32
  %v543 = vpop.permute.xlu0 %542
  %544 = vrot.lane.b32.xlu0 %v469, 32
  %v545 = vpop.permute.xlu0 %544
  %v550 = vmul.f32 %v503, %v539
  %v551 = vmul.f32 %v505, %v541
  %v552 = vmul.f32 %v507, %v543
  %v553 = vmul.f32 %v509, %v545
  %558 = vrot.lane.b32.xlu0 %v550, 64
  %v559 = vpop.permute.xlu0 %558
  %560 = vrot.lane.b32.xlu0 %v551, 64
  %v561 = vpop.permute.xlu0 %560
  %562 = vrot.lane.b32.xlu0 %v552, 64
  %v563 = vpop.permute.xlu0 %562
  %564 = vrot.lane.b32.xlu0 %v553, 64
  %v565 = vpop.permute.xlu0 %564
  %v570 = vadd.f32 %v135, %v559
  %v571 = vadd.f32 %v141, %v561
  %v572 = vadd.f32 %v147, %v563
  %v573 = vadd.f32 %v153, %v565
  %v574 = vtanh.pop %v570
  %v575 = vtanh.pop %v571
  %v576 = vtanh.pop %v572
  %v577 = vtanh.pop %v573
  %v578 = vsub.f32 1.0, %v531
  %v579 = vsub.f32 1.0, %v533
  %v580 = vsub.f32 1.0, %v535
  %v581 = vsub.f32 1.0, %v537
  %586 = vrot.lane.b32.xlu0 %v574, 96
  %v587 = vpop.permute.xlu0 %586
  %588 = vrot.lane.b32.xlu0 %v575, 96
  %v589 = vpop.permute.xlu0 %588
  %590 = vrot.lane.b32.xlu0 %v576, 96
  %v591 = vpop.permute.xlu0 %590
  %592 = vrot.lane.b32.xlu0 %v577, 96
  %v593 = vpop.permute.xlu0 %592
  %v598 = vmul.f32 %v578, %v587
  %v599 = vmul.f32 %v579, %v589
  %v600 = vmul.f32 %v580, %v591
  %v601 = vmul.f32 %v581, %v593
  %v602 = vmul.f32 %v531, 0.0
  %v603 = vmul.f32 %v533, 0.0
  %v604 = vmul.f32 %v535, 0.0
  %v605 = vmul.f32 %v537, 0.0
  %v606 = vadd.f32 %v598, %v602
  %v607 = vadd.f32 %v599, %v603
  %v608 = vadd.f32 %v600, %v604
  %v609 = vadd.f32 %v601, %v605
  %611 = vset.pattern.permute.xlu0 0
  %612 = vperm.xlu0 %611, %v171
  %v613 = vpop.permute.xlu0 %612
  %v619 = vrot.slane %v606, 7
  %v620 = vrot.slane %v607, 6
  %v621 = vsel %vm369, %v620, %v619
  %v622 = vrot.slane %v608, 5
  %v623 = vsel %vm372, %v622, %v621
  %v624 = vrot.slane %v609, 4
  %v625 = vsel %vm375, %v624, %v623
  %v627 = vmul.f32 %v613, %v625
  %v628 = vsub.f32 1.0, %v171
  %630 = vset.pattern.permute.xlu0 0
  %631 = vperm.xlu0 %630, %v628
  %v632 = vpop.permute.xlu0 %631
  %v634 = vmul.f32 %v632, 0.0
  %v635 = vadd.f32 %v627, %v634
  %v638 = vunpack.c.l.s4 1966171168
  %v639 = vunpack.c.0.s8 %v638
  %v640 = vlaneseq
  %v641 = vshrl.u32 %v640, 7
  %v642 = vsub.s32 %v639, %v641
  %v643 = vrot.slane %v388, %v642
  %v644 = vcombine.high %v643, %v643
  %v646 = vunpack.c.l.s4 1966171168
  %v647 = vunpack.c.0.s8 %v646
  %v648 = vlaneseq
  %v649 = vshrl.u32 %v648, 7
  %v650 = vsub.s32 %v647, %v649
  %v651 = vrot.slane %v643, %v650
  %v653 = vunpack.c.l.s4 1966171168
  %v654 = vunpack.c.0.s8 %v653
  %v655 = vlaneseq
  %v656 = vshrl.u32 %v655, 7
  %v657 = vsub.s32 %v654, %v656
  %v658 = vrot.slane %v644, %v657
  %v659 = vcombine.high %v651, %v651
  %v660 = vcombine.high %v658, %v658
  %vm665 = vcmask 253952
  %666 = vst.msk [vmem:[%s8] sm:$0x1] %vm665, %v651
  %667 = vst.msk [vmem:[%s8 + $0x8] sm:$0x1] %vm665, %v658
  %668 = vst.msk [vmem:[%s8 + $0x10] sm:$0x1] %vm665, %v659
  %669 = vst.msk [vmem:[%s8 + $0x18] sm:$0x1] %vm665, %v660
  %v672 = vunpack.c.l.s4 1966171168
  %v673 = vunpack.c.0.s8 %v672
  %v674 = vlaneseq
  %v675 = vshrl.u32 %v674, 7
  %v676 = vsub.s32 %v673, %v675
  %v677 = vrot.slane %v635, %v676
  %v678 = vcombine.high %v677, %v677
  %v680 = vunpack.c.l.s4 1966171168
  %v681 = vunpack.c.0.s8 %v680
  %v682 = vlaneseq
  %v683 = vshrl.u32 %v682, 7
  %v684 = vsub.s32 %v681, %v683
  %v685 = vrot.slane %v677, %v684
  %v687 = vunpack.c.l.s4 1966171168
  %v688 = vunpack.c.0.s8 %v687
  %v689 = vlaneseq
  %v690 = vshrl.u32 %v689, 7
  %v691 = vsub.s32 %v688, %v690
  %v692 = vrot.slane %v678, %v691
  %v693 = vcombine.high %v685, %v685
  %v694 = vcombine.high %v692, %v692
  %v695 = vlaneseq
  %v696 = vshrl.u32 %v695, 7
  %v697 = vsub.s32 0, %v696
  %v698 = vrot.slane %v685, %v697
  %v699 = vlaneseq
  %v700 = vshrl.u32 %v699, 7
  %v701 = vsub.s32 0, %v700
  %v702 = vrot.slane %v692, %v701
  %v703 = vlaneseq
  %v704 = vshrl.u32 %v703, 7
  %v705 = vsub.s32 0, %v704
  %v706 = vrot.slane %v693, %v705
  %v707 = vlaneseq
  %v708 = vshrl.u32 %v707, 7
  %v709 = vsub.s32 0, %v708
  %v710 = vrot.slane %v694, %v709
  %711 = vrot.lane.b32.xlu0 %v698, 32
  %v712 = vpop.permute.xlu0 %711
  %713 = vrot.lane.b32.xlu0 %v702, 32
  %v714 = vpop.permute.xlu0 %713
  %715 = vrot.lane.b32.xlu0 %v706, 32
  %v716 = vpop.permute.xlu0 %715
  %717 = vrot.lane.b32.xlu0 %v710, 32
  %v718 = vpop.permute.xlu0 %717
  %vm723 = vcmask 516352
  %724 = vst.msk [vmem:[%s8 + $0x7] sm:$0x1] %vm723, %v712
  %725 = vst.msk [vmem:[%s8 + $0xf] sm:$0x1] %vm723, %v714
  %726 = vst.msk [vmem:[%s8 + $0x17] sm:$0x1] %vm723, %v716
  %727 = vst.msk [vmem:[%s8 + $0x1f] sm:$0x1] %vm723, %v718
  %vm728 = vcmp.gt.s32.totalorder %v155, 1
  %v729 = vsel %vm728, 1, 0
  %v730 = vcvt.s32.f32 %v729
  %vm731 = vcmp.gt.s32.totalorder %v155, 6
  %v732 = vsel %vm731, 1, 0
  %v733 = vcvt.s32.f32 %v732
  %v734 = vsel %vm53, %v388, 0
  %736 = vmatprep.subr.mxu0 0.0
  %737 = vmatpush1.msra.mxu0 %v156
  %738 = vmatprep.subr.mxu0 0.0
  %739 = vmatpush1.msra.mxu0 %v157
  %740 = vmatprep.subr.mxu0 0.0
  %741 = vmatpush1.msra.mxu0 %v158
  %742 = vmatprep.subr.mxu0 0.0
  %743 = vmatpush1.msra.mxu0 %v159
  %744 = vmatprep.subr.mxu0 0.0
  %745 = vmatpush1.msra.mxu0 0.0
  %746 = vmatprep.subr.mxu0 0.0
  %747 = vmatpush1.msra.mxu0 0.0
  %748 = vmatprep.subr.mxu0 0.0
  %749 = vmatpush1.msra.mxu0 0.0
  %750 = vmatprep.subr.mxu0 0.0
  %751 = vmatpush1.msra.mxu0 0.0
  %752 = vmatprep.subr.mxu0 0.0
  %753 = vmatpush1.msra.mxu0 0.0
  %754 = vmatprep.subr.mxu0 0.0
  %755 = vmatpush1.msra.mxu0 0.0
  %756 = vmatprep.subr.mxu0 0.0
  %757 = vmatpush1.msra.mxu0 0.0
  %758 = vmatprep.subr.mxu0 0.0
  %759 = vmatpush1.msra.mxu0 0.0
  %760 = vmatprep.subr.mxu0 0.0
  %761 = vmatpush1.msra.mxu0 0.0
  %762 = vmatprep.subr.mxu0 0.0
  %763 = vmatpush1.msra.mxu0 0.0
  %764 = vmatprep.subr.mxu0 0.0
  %765 = vmatpush1.msra.mxu0 0.0
  %766 = vmatprep.subr.mxu0 0.0
  %767 = vmatpush1.msra.mxu0 0.0
  %768 = vmatprep.subr.mxu0 0.0
  %769 = vmatpush1.msra.mxu0 0.0
  %770 = vmatprep.subr.mxu0 0.0
  %771 = vmatpush1.msra.mxu0 0.0
  %772 = vmatprep.subr.mxu0 0.0
  %773 = vmatpush1.msra.mxu0 0.0
  %774 = vmatprep.subr.mxu0 0.0
  %775 = vmatpush1.msra.mxu0 0.0
  %776 = vmatprep.subr.mxu0 0.0
  %777 = vmatpush1.msra.mxu0 0.0
  %778 = vmatprep.subr.mxu0 0.0
  %779 = vmatpush1.msra.mxu0 0.0
  %780 = vmatprep.subr.mxu0 0.0
  %781 = vmatpush1.msra.mxu0 0.0
  %782 = vmatprep.subr.mxu0 0.0
  %783 = vmatpush1.msra.mxu0 0.0
  %784 = vmatprep.subr.mxu0 0.0
  %785 = vmatpush1.msra.mxu0 0.0
  %786 = vmatprep.subr.mxu0 0.0
  %787 = vmatpush1.msra.mxu0 0.0
  %788 = vmatprep.subr.mxu0 0.0
  %789 = vmatpush1.msra.mxu0 0.0
  %790 = vmatprep.subr.mxu0 0.0
  %791 = vmatpush1.msra.mxu0 0.0
  %792 = vmatprep.subr.mxu0 0.0
  %793 = vmatpush1.msra.mxu0 0.0
  %794 = vmatprep.subr.mxu0 0.0
  %795 = vmatpush1.msra.mxu0 0.0
  %796 = vmatprep.subr.mxu0 0.0
  %797 = vmatpush1.msra.mxu0 0.0
  %798 = vmatprep.subr.mxu0 0.0
  %799 = vmatpush1.msra.mxu0 0.0
  %800 = vmatprep.mubr.f32.mxu0 0.0
  %801 = vmatmul.mubr.f32.gmra.mrb[0].mxu0 %v734
  %v802 = vpop.f32.mrb[0].mxu0
  %v803 = vadd.f32 %v176, %v802
  %v804 = vpop.f32.mrb[0].mxu0
  %805 = vdwg.mxu0
  %v807 = vrot.slane %v803, 7
  %v808 = vrot.slane %v803, 1
  %v809 = vrot.slane %v803, 2
  %v814 = vadd.f32 %v133, %v807
  %v815 = vadd.f32 %v139, %v803
  %v816 = vadd.f32 %v145, %v808
  %v817 = vadd.f32 %v151, %v809
  %v818 = vxor.u32 %v814, 2147483648
  %v819 = vxor.u32 %v815, 2147483648
  %v820 = vxor.u32 %v816, 2147483648
  %v821 = vxor.u32 %v817, 2147483648
  %v822 = vmul.f32 %v818, 1.442695
  %v823 = vpow.pop %v822
  %v824 = vmul.f32 %v819, 1.442695
  %v825 = vpow.pop %v824
  %v826 = vmul.f32 %v820, 1.442695
  %v827 = vpow.pop %v826
  %v828 = vmul.f32 %v821, 1.442695
  %v829 = vpow.pop %v828
  %v830 = vadd.f32 %v823, 1.0
  %v831 = vadd.f32 %v825, 1.0
  %v832 = vadd.f32 %v827, 1.0
  %v833 = vadd.f32 %v829, 1.0
  %v834 = vrcp.pop %v830
  %v835 = vmul.f32 1.0, %v834
  %v836 = vrcp.pop %v831
  %v837 = vmul.f32 1.0, %v836
  %v838 = vrcp.pop %v832
  %v839 = vmul.f32 1.0, %v838
  %v840 = vrcp.pop %v833
  %v841 = vmul.f32 1.0, %v840
  %842 = vrot.lane.b32.xlu0 %v807, 64
  %v843 = vpop.permute.xlu0 %842
  %844 = vrot.lane.b32.xlu0 %v803, 64
  %v845 = vpop.permute.xlu0 %844
  %846 = vrot.lane.b32.xlu0 %v808, 64
  %v847 = vpop.permute.xlu0 %846
  %848 = vrot.lane.b32.xlu0 %v809, 64
  %v849 = vpop.permute.xlu0 %848
  %v854 = vmul.f32 %v835, %v843
  %v855 = vmul.f32 %v837, %v845
  %v856 = vmul.f32 %v839, %v847
  %v857 = vmul.f32 %v841, %v849
  %862 = vrot.lane.b32.xlu0 %v854, 64
  %v863 = vpop.permute.xlu0 %862
  %864 = vrot.lane.b32.xlu0 %v855, 64
  %v865 = vpop.permute.xlu0 %864
  %866 = vrot.lane.b32.xlu0 %v856, 64
  %v867 = vpop.permute.xlu0 %866
  %868 = vrot.lane.b32.xlu0 %v857, 64
  %v869 = vpop.permute.xlu0 %868
  %v874 = vadd.f32 %v133, %v863
  %v875 = vadd.f32 %v139, %v865
  %v876 = vadd.f32 %v145, %v867
  %v877 = vadd.f32 %v151, %v869
  %v878 = vtanh.pop %v874
  %v879 = vtanh.pop %v875
  %v880 = vtanh.pop %v876
  %v881 = vtanh.pop %v877
  %v882 = vsub.f32 1.0, %v835
  %v883 = vsub.f32 1.0, %v837
  %v884 = vsub.f32 1.0, %v839
  %v885 = vsub.f32 1.0, %v841
  %890 = vrot.lane.b32.xlu0 %v878, 96
  %v891 = vpop.permute.xlu0 %890
  %892 = vrot.lane.b32.xlu0 %v879, 96
  %v893 = vpop.permute.xlu0 %892
  %894 = vrot.lane.b32.xlu0 %v880, 96
  %v895 = vpop.permute.xlu0 %894
  %896 = vrot.lane.b32.xlu0 %v881, 96
  %v897 = vpop.permute.xlu0 %896
  %v902 = vmul.f32 %v882, %v891
  %v903 = vmul.f32 %v883, %v893
  %v904 = vmul.f32 %v884, %v895
  %v905 = vmul.f32 %v885, %v897
  %v906 = vrot.slane %v388, 7
  %v907 = vrot.slane %v388, 1
  %v908 = vrot.slane %v388, 2
  %909 = vrot.lane.b32.xlu0 %v906, 32
  %v910 = vpop.permute.xlu0 %909
  %911 = vrot.lane.b32.xlu0 %v388, 32
  %v912 = vpop.permute.xlu0 %911
  %913 = vrot.lane.b32.xlu0 %v907, 32
  %v914 = vpop.permute.xlu0 %913
  %915 = vrot.lane.b32.xlu0 %v908, 32
  %v916 = vpop.permute.xlu0 %915
  %v921 = vmul.f32 %v835, %v910
  %v922 = vmul.f32 %v837, %v912
  %v923 = vmul.f32 %v839, %v914
  %v924 = vmul.f32 %v841, %v916
  %v925 = vadd.f32 %v902, %v921
  %v926 = vadd.f32 %v903, %v922
  %v927 = vadd.f32 %v904, %v923
  %v928 = vadd.f32 %v905, %v924
  %930 = vset.pattern.permute.xlu0 0
  %931 = vperm.xlu0 %930, %v730
  %v932 = vpop.permute.xlu0 %931
  %v938 = vrot.slane %v925, 1
  %v939 = vsel %vm369, %v926, %v938
  %v940 = vrot.slane %v927, 7
  %v941 = vsel %vm372, %v940, %v939
  %v942 = vrot.slane %v928, 6
  %v943 = vsel %vm375, %v942, %v941
  %944 = vrot.lane.b32.xlu0 %v943, 96
  %v945 = vpop.permute.xlu0 %944
  %v947 = vmul.f32 %v932, %v945
  %v948 = vsub.f32 1.0, %v730
  %950 = vset.pattern.permute.xlu0 0
  %951 = vperm.xlu0 %950, %v948
  %v952 = vpop.permute.xlu0 %951
  %v954 = vmul.f32 %v952, %v388
  %v955 = vadd.f32 %v947, %v954
  %v956 = vsel %vm53, %v635, 0
  %958 = vmatprep.subr.mxu0 0.0
  %959 = vmatpush1.msra.mxu0 %v161
  %960 = vmatprep.subr.mxu0 0.0
  %961 = vmatpush1.msra.mxu0 %v162
  %962 = vmatprep.subr.mxu0 0.0
  %963 = vmatpush1.msra.mxu0 %v163
  %964 = vmatprep.subr.mxu0 0.0
  %965 = vmatpush1.msra.mxu0 %v164
  %966 = vmatprep.subr.mxu0 0.0
  %967 = vmatpush1.msra.mxu0 0.0
  %968 = vmatprep.subr.mxu0 0.0
  %969 = vmatpush1.msra.mxu0 0.0
  %970 = vmatprep.subr.mxu0 0.0
  %971 = vmatpush1.msra.mxu0 0.0
  %972 = vmatprep.subr.mxu0 0.0
  %973 = vmatpush1.msra.mxu0 0.0
  %974 = vmatprep.subr.mxu0 0.0
  %975 = vmatpush1.msra.mxu0 0.0
  %976 = vmatprep.subr.mxu0 0.0
  %977 = vmatpush1.msra.mxu0 0.0
  %978 = vmatprep.subr.mxu0 0.0
  %979 = vmatpush1.msra.mxu0 0.0
  %980 = vmatprep.subr.mxu0 0.0
  %981 = vmatpush1.msra.mxu0 0.0
  %982 = vmatprep.subr.mxu0 0.0
  %983 = vmatpush1.msra.mxu0 0.0
  %984 = vmatprep.subr.mxu0 0.0
  %985 = vmatpush1.msra.mxu0 0.0
  %986 = vmatprep.subr.mxu0 0.0
  %987 = vmatpush1.msra.mxu0 0.0
  %988 = vmatprep.subr.mxu0 0.0
  %989 = vmatpush1.msra.mxu0 0.0
  %990 = vmatprep.subr.mxu0 0.0
  %991 = vmatpush1.msra.mxu0 0.0
  %992 = vmatprep.subr.mxu0 0.0
  %993 = vmatpush1.msra.mxu0 0.0
  %994 = vmatprep.subr.mxu0 0.0
  %995 = vmatpush1.msra.mxu0 0.0
  %996 = vmatprep.subr.mxu0 0.0
  %997 = vmatpush1.msra.mxu0 0.0
  %998 = vmatprep.subr.mxu0 0.0
  %999 = vmatpush1.msra.mxu0 0.0
  %1000 = vmatprep.subr.mxu0 0.0
  %1001 = vmatpush1.msra.mxu0 0.0
  %1002 = vmatprep.subr.mxu0 0.0
  %1003 = vmatpush1.msra.mxu0 0.0
  %1004 = vmatprep.subr.mxu0 0.0
  %1005 = vmatpush1.msra.mxu0 0.0
  %1006 = vmatprep.subr.mxu0 0.0
  %1007 = vmatpush1.msra.mxu0 0.0
  %1008 = vmatprep.subr.mxu0 0.0
  %1009 = vmatpush1.msra.mxu0 0.0
  %1010 = vmatprep.subr.mxu0 0.0
  %1011 = vmatpush1.msra.mxu0 0.0
  %1012 = vmatprep.subr.mxu0 0.0
  %1013 = vmatpush1.msra.mxu0 0.0
  %1014 = vmatprep.subr.mxu0 0.0
  %1015 = vmatpush1.msra.mxu0 0.0
  %1016 = vmatprep.subr.mxu0 0.0
  %1017 = vmatpush1.msra.mxu0 0.0
  %1018 = vmatprep.subr.mxu0 0.0
  %1019 = vmatpush1.msra.mxu0 0.0
  %1020 = vmatprep.subr.mxu0 0.0
  %1021 = vmatpush1.msra.mxu0 0.0
  %1022 = vmatprep.mubr.f32.mxu0 0.0
  %1023 = vmatmul.mubr.f32.gmra.mrb[0].mxu0 %v956
  %v1024 = vpop.f32.mrb[0].mxu0
  %v1025 = vadd.f32 %v393, %v1024
  %v1026 = vpop.f32.mrb[0].mxu0
  %1027 = vdwg.mxu0
  %v1029 = vrot.slane %v1025, 2
  %v1030 = vrot.slane %v1025, 3
  %v1031 = vrot.slane %v1025, 4
  %v1032 = vrot.slane %v1025, 5
  %1033 = vrot.lane.b32.xlu0 %v1029, 96
  %v1034 = vpop.permute.xlu0 %1033
  %1035 = vrot.lane.b32.xlu0 %v1030, 96
  %v1036 = vpop.permute.xlu0 %1035
  %1037 = vrot.lane.b32.xlu0 %v1031, 96
  %v1038 = vpop.permute.xlu0 %1037
  %1039 = vrot.lane.b32.xlu0 %v1032, 96
  %v1040 = vpop.permute.xlu0 %1039
  %v1045 = vadd.f32 %v133, %v1034
  %v1046 = vadd.f32 %v139, %v1036
  %v1047 = vadd.f32 %v145, %v1038
  %v1048 = vadd.f32 %v151, %v1040
  %v1049 = vxor.u32 %v1045, 2147483648
  %v1050 = vxor.u32 %v1046, 2147483648
  %v1051 = vxor.u32 %v1047, 2147483648
  %v1052 = vxor.u32 %v1048, 2147483648
  %v1053 = vmul.f32 %v1049, 1.442695
  %v1054 = vpow.pop %v1053
  %v1055 = vmul.f32 %v1050, 1.442695
  %v1056 = vpow.pop %v1055
  %v1057 = vmul.f32 %v1051, 1.442695
  %v1058 = vpow.pop %v1057
  %v1059 = vmul.f32 %v1052, 1.442695
  %v1060 = vpow.pop %v1059
  %v1061 = vadd.f32 %v1054, 1.0
  %v1062 = vadd.f32 %v1056, 1.0
  %v1063 = vadd.f32 %v1058, 1.0
  %v1064 = vadd.f32 %v1060, 1.0
  %v1065 = vrcp.pop %v1061
  %v1066 = vmul.f32 1.0, %v1065
  %v1067 = vrcp.pop %v1062
  %v1068 = vmul.f32 1.0, %v1067
  %v1069 = vrcp.pop %v1063
  %v1070 = vmul.f32 1.0, %v1069
  %v1071 = vrcp.pop %v1064
  %v1072 = vmul.f32 1.0, %v1071
  %v1073 = vadd.f32 %v135, %v1034
  %v1074 = vadd.f32 %v141, %v1036
  %v1075 = vadd.f32 %v147, %v1038
  %v1076 = vadd.f32 %v153, %v1040
  %v1077 = vxor.u32 %v1073, 2147483648
  %v1078 = vxor.u32 %v1074, 2147483648
  %v1079 = vxor.u32 %v1075, 2147483648
  %v1080 = vxor.u32 %v1076, 2147483648
  %v1081 = vmul.f32 %v1077, 1.442695
  %v1082 = vpow.pop %v1081
  %v1083 = vmul.f32 %v1078, 1.442695
  %v1084 = vpow.pop %v1083
  %v1085 = vmul.f32 %v1079, 1.442695
  %v1086 = vpow.pop %v1085
  %v1087 = vmul.f32 %v1080, 1.442695
  %v1088 = vpow.pop %v1087
  %v1089 = vadd.f32 %v1082, 1.0
  %v1090 = vadd.f32 %v1084, 1.0
  %v1091 = vadd.f32 %v1086, 1.0
  %v1092 = vadd.f32 %v1088, 1.0
  %v1093 = vrcp.pop %v1089
  %v1094 = vmul.f32 1.0, %v1093
  %v1095 = vrcp.pop %v1090
  %v1096 = vmul.f32 1.0, %v1095
  %v1097 = vrcp.pop %v1091
  %v1098 = vmul.f32 1.0, %v1097
  %v1099 = vrcp.pop %v1092
  %v1100 = vmul.f32 1.0, %v1099
  %1101 = vrot.lane.b32.xlu0 %v1029, 32
  %v1102 = vpop.permute.xlu0 %1101
  %1103 = vrot.lane.b32.xlu0 %v1030, 32
  %v1104 = vpop.permute.xlu0 %1103
  %1105 = vrot.lane.b32.xlu0 %v1031, 32
  %v1106 = vpop.permute.xlu0 %1105
  %1107 = vrot.lane.b32.xlu0 %v1032, 32
  %v1108 = vpop.permute.xlu0 %1107
  %v1113 = vmul.f32 %v1066, %v1102
  %v1114 = vmul.f32 %v1068, %v1104
  %v1115 = vmul.f32 %v1070, %v1106
  %v1116 = vmul.f32 %v1072, %v1108
  %1121 = vrot.lane.b32.xlu0 %v1113, 64
  %v1122 = vpop.permute.xlu0 %1121
  %1123 = vrot.lane.b32.xlu0 %v1114, 64
  %v1124 = vpop.permute.xlu0 %1123
  %1125 = vrot.lane.b32.xlu0 %v1115, 64
  %v1126 = vpop.permute.xlu0 %1125
  %1127 = vrot.lane.b32.xlu0 %v1116, 64
  %v1128 = vpop.permute.xlu0 %1127
  %v1133 = vadd.f32 %v135, %v1122
  %v1134 = vadd.f32 %v141, %v1124
  %v1135 = vadd.f32 %v147, %v1126
  %v1136 = vadd.f32 %v153, %v1128
  %v1137 = vtanh.pop %v1133
  %v1138 = vtanh.pop %v1134
  %v1139 = vtanh.pop %v1135
  %v1140 = vtanh.pop %v1136
  %v1141 = vsub.f32 1.0, %v1094
  %v1142 = vsub.f32 1.0, %v1096
  %v1143 = vsub.f32 1.0, %v1098
  %v1144 = vsub.f32 1.0, %v1100
  %1149 = vrot.lane.b32.xlu0 %v1137, 96
  %v1150 = vpop.permute.xlu0 %1149
  %1151 = vrot.lane.b32.xlu0 %v1138, 96
  %v1152 = vpop.permute.xlu0 %1151
  %1153 = vrot.lane.b32.xlu0 %v1139, 96
  %v1154 = vpop.permute.xlu0 %1153
  %1155 = vrot.lane.b32.xlu0 %v1140, 96
  %v1156 = vpop.permute.xlu0 %1155
  %v1161 = vmul.f32 %v1141, %v1150
  %v1162 = vmul.f32 %v1142, %v1152
  %v1163 = vmul.f32 %v1143, %v1154
  %v1164 = vmul.f32 %v1144, %v1156
  %v1165 = vrot.slane %v635, 2
  %v1166 = vrot.slane %v635, 3
  %v1167 = vrot.slane %v635, 4
  %v1168 = vrot.slane %v635, 5
  %v1173 = vmul.f32 %v1094, %v1165
  %v1174 = vmul.f32 %v1096, %v1166
  %v1175 = vmul.f32 %v1098, %v1167
  %v1176 = vmul.f32 %v1100, %v1168
  %v1177 = vadd.f32 %v1161, %v1173
  %v1178 = vadd.f32 %v1162, %v1174
  %v1179 = vadd.f32 %v1163, %v1175
  %v1180 = vadd.f32 %v1164, %v1176
  %1182 = vset.pattern.permute.xlu0 0
  %1183 = vperm.xlu0 %1182, %v733
  %v1184 = vpop.permute.xlu0 %1183
  %v1190 = vrot.slane %v1177, 6
  %v1191 = vrot.slane %v1178, 5
  %v1192 = vsel %vm369, %v1191, %v1190
  %v1193 = vrot.slane %v1179, 4
  %v1194 = vsel %vm372, %v1193, %v1192
  %v1195 = vrot.slane %v1180, 3
  %v1196 = vsel %vm375, %v1195, %v1194
  %v1198 = vmul.f32 %v1184, %v1196
  %v1199 = vsub.f32 1.0, %v733
  %1201 = vset.pattern.permute.xlu0 0
  %1202 = vperm.xlu0 %1201, %v1199
  %v1203 = vpop.permute.xlu0 %1202
  %v1205 = vmul.f32 %v1203, %v635
  %v1206 = vadd.f32 %v1198, %v1205
  %v1209 = vunpack.c.l.s4 1966171168
  %v1210 = vunpack.c.0.s8 %v1209
  %v1211 = vlaneseq
  %v1212 = vshrl.u32 %v1211, 7
  %v1213 = vsub.s32 %v1210, %v1212
  %v1214 = vrot.slane %v955, %v1213
  %v1215 = vcombine.high %v1214, %v1214
  %v1217 = vunpack.c.l.s4 1966171168
  %v1218 = vunpack.c.0.s8 %v1217
  %v1219 = vlaneseq
  %v1220 = vshrl.u32 %v1219, 7
  %v1221 = vsub.s32 %v1218, %v1220
  %v1222 = vrot.slane %v1214, %v1221
  %v1224 = vunpack.c.l.s4 1966171168
  %v1225 = vunpack.c.0.s8 %v1224
  %v1226 = vlaneseq
  %v1227 = vshrl.u32 %v1226, 7
  %v1228 = vsub.s32 %v1225, %v1227
  %v1229 = vrot.slane %v1215, %v1228
  %v1230 = vcombine.high %v1222, %v1222
  %v1231 = vcombine.high %v1229, %v1229
  %1236 = vst.msk [vmem:[%s8 + $0x1] sm:$0x1] %vm665, %v1222
  %1237 = vst.msk [vmem:[%s8 + $0x9] sm:$0x1] %vm665, %v1229
  %1238 = vst.msk [vmem:[%s8 + $0x11] sm:$0x1] %vm665, %v1230
  %1239 = vst.msk [vmem:[%s8 + $0x19] sm:$0x1] %vm665, %v1231
  %v1242 = vunpack.c.l.s4 1966171168
  %v1243 = vunpack.c.0.s8 %v1242
  %v1244 = vlaneseq
  %v1245 = vshrl.u32 %v1244, 7
  %v1246 = vsub.s32 %v1243, %v1245
  %v1247 = vrot.slane %v1206, %v1246
  %v1248 = vcombine.high %v1247, %v1247
  %v1250 = vunpack.c.l.s4 1966171168
  %v1251 = vunpack.c.0.s8 %v1250
  %v1252 = vlaneseq
  %v1253 = vshrl.u32 %v1252, 7
  %v1254 = vsub.s32 %v1251, %v1253
  %v1255 = vrot.slane %v1247, %v1254
  %v1257 = vunpack.c.l.s4 1966171168
  %v1258 = vunpack.c.0.s8 %v1257
  %v1259 = vlaneseq
  %v1260 = vshrl.u32 %v1259, 7
  %v1261 = vsub.s32 %v1258, %v1260
  %v1262 = vrot.slane %v1248, %v1261
  %v1263 = vcombine.high %v1255, %v1255
  %v1264 = vcombine.high %v1262, %v1262
  %v1265 = vlaneseq
  %v1266 = vshrl.u32 %v1265, 7
  %v1267 = vsub.s32 0, %v1266
  %v1268 = vrot.slane %v1255, %v1267
  %v1269 = vlaneseq
  %v1270 = vshrl.u32 %v1269, 7
  %v1271 = vsub.s32 0, %v1270
  %v1272 = vrot.slane %v1262, %v1271
  %v1273 = vlaneseq
  %v1274 = vshrl.u32 %v1273, 7
  %v1275 = vsub.s32 0, %v1274
  %v1276 = vrot.slane %v1263, %v1275
  %v1277 = vlaneseq
  %v1278 = vshrl.u32 %v1277, 7
  %v1279 = vsub.s32 0, %v1278
  %v1280 = vrot.slane %v1264, %v1279
  %1281 = vrot.lane.b32.xlu0 %v1268, 32
  %v1282 = vpop.permute.xlu0 %1281
  %1283 = vrot.lane.b32.xlu0 %v1272, 32
  %v1284 = vpop.permute.xlu0 %1283
  %1285 = vrot.lane.b32.xlu0 %v1276, 32
  %v1286 = vpop.permute.xlu0 %1285
  %1287 = vrot.lane.b32.xlu0 %v1280, 32
  %v1288 = vpop.permute.xlu0 %1287
  %1293 = vst.msk [vmem:[%s8 + $0x6] sm:$0x1] %vm723, %v1282
  %1294 = vst.msk [vmem:[%s8 + $0xe] sm:$0x1] %vm723, %v1284
  %1295 = vst.msk [vmem:[%s8 + $0x16] sm:$0x1] %vm723, %v1286
  %1296 = vst.msk [vmem:[%s8 + $0x1e] sm:$0x1] %vm723, %v1288
  %vm1297 = vcmp.gt.s32.totalorder %v155, 2
  %v1298 = vsel %vm1297, 1, 0
  %v1299 = vcvt.s32.f32 %v1298
  %vm1300 = vcmp.gt.s32.totalorder %v155, 5
  %v1301 = vsel %vm1300, 1, 0
  %v1302 = vcvt.s32.f32 %v1301
  %v1303 = vsel %vm53, %v955, 0
  %1305 = vmatprep.subr.mxu0 0.0
  %1306 = vmatpush1.msra.mxu0 %v156
  %1307 = vmatprep.subr.mxu0 0.0
  %1308 = vmatpush1.msra.mxu0 %v157
  %1309 = vmatprep.subr.mxu0 0.0
  %1310 = vmatpush1.msra.mxu0 %v158
  %1311 = vmatprep.subr.mxu0 0.0
  %1312 = vmatpush1.msra.mxu0 %v159
  %1313 = vmatprep.subr.mxu0 0.0
  %1314 = vmatpush1.msra.mxu0 0.0
  %1315 = vmatprep.subr.mxu0 0.0
  %1316 = vmatpush1.msra.mxu0 0.0
  %1317 = vmatprep.subr.mxu0 0.0
  %1318 = vmatpush1.msra.mxu0 0.0
  %1319 = vmatprep.subr.mxu0 0.0
  %1320 = vmatpush1.msra.mxu0 0.0
  %1321 = vmatprep.subr.mxu0 0.0
  %1322 = vmatpush1.msra.mxu0 0.0
  %1323 = vmatprep.subr.mxu0 0.0
  %1324 = vmatpush1.msra.mxu0 0.0
  %1325 = vmatprep.subr.mxu0 0.0
  %1326 = vmatpush1.msra.mxu0 0.0
  %1327 = vmatprep.subr.mxu0 0.0
  %1328 = vmatpush1.msra.mxu0 0.0
  %1329 = vmatprep.subr.mxu0 0.0
  %1330 = vmatpush1.msra.mxu0 0.0
  %1331 = vmatprep.subr.mxu0 0.0
  %1332 = vmatpush1.msra.mxu0 0.0
  %1333 = vmatprep.subr.mxu0 0.0
  %1334 = vmatpush1.msra.mxu0 0.0
  %1335 = vmatprep.subr.mxu0 0.0
  %1336 = vmatpush1.msra.mxu0 0.0
  %1337 = vmatprep.subr.mxu0 0.0
  %1338 = vmatpush1.msra.mxu0 0.0
  %1339 = vmatprep.subr.mxu0 0.0
  %1340 = vmatpush1.msra.mxu0 0.0
  %1341 = vmatprep.subr.mxu0 0.0
  %1342 = vmatpush1.msra.mxu0 0.0
  %1343 = vmatprep.subr.mxu0 0.0
  %1344 = vmatpush1.msra.mxu0 0.0
  %1345 = vmatprep.subr.mxu0 0.0
  %1346 = vmatpush1.msra.mxu0 0.0
  %1347 = vmatprep.subr.mxu0 0.0
  %1348 = vmatpush1.msra.mxu0 0.0
  %1349 = vmatprep.subr.mxu0 0.0
  %1350 = vmatpush1.msra.mxu0 0.0
  %1351 = vmatprep.subr.mxu0 0.0
  %1352 = vmatpush1.msra.mxu0 0.0
  %1353 = vmatprep.subr.mxu0 0.0
  %1354 = vmatpush1.msra.mxu0 0.0
  %1355 = vmatprep.subr.mxu0 0.0
  %1356 = vmatpush1.msra.mxu0 0.0
  %1357 = vmatprep.subr.mxu0 0.0
  %1358 = vmatpush1.msra.mxu0 0.0
  %1359 = vmatprep.subr.mxu0 0.0
  %1360 = vmatpush1.msra.mxu0 0.0
  %1361 = vmatprep.subr.mxu0 0.0
  %1362 = vmatpush1.msra.mxu0 0.0
  %1363 = vmatprep.subr.mxu0 0.0
  %1364 = vmatpush1.msra.mxu0 0.0
  %1365 = vmatprep.subr.mxu0 0.0
  %1366 = vmatpush1.msra.mxu0 0.0
  %1367 = vmatprep.subr.mxu0 0.0
  %1368 = vmatpush1.msra.mxu0 0.0
  %1369 = vmatprep.mubr.f32.mxu0 0.0
  %1370 = vmatmul.mubr.f32.gmra.mrb[0].mxu0 %v1303
  %v1371 = vpop.f32.mrb[0].mxu0
  %v1372 = vadd.f32 %v176, %v1371
  %v1373 = vpop.f32.mrb[0].mxu0
  %1374 = vdwg.mxu0
  %v1376 = vrot.slane %v1372, 6
  %v1377 = vrot.slane %v1372, 7
  %v1378 = vrot.slane %v1372, 1
  %v1383 = vadd.f32 %v133, %v1376
  %v1384 = vadd.f32 %v139, %v1377
  %v1385 = vadd.f32 %v145, %v1372
  %v1386 = vadd.f32 %v151, %v1378
  %v1387 = vxor.u32 %v1383, 2147483648
  %v1388 = vxor.u32 %v1384, 2147483648
  %v1389 = vxor.u32 %v1385, 2147483648
  %v1390 = vxor.u32 %v1386, 2147483648
  %v1391 = vmul.f32 %v1387, 1.442695
  %v1392 = vpow.pop %v1391
  %v1393 = vmul.f32 %v1388, 1.442695
  %v1394 = vpow.pop %v1393
  %v1395 = vmul.f32 %v1389, 1.442695
  %v1396 = vpow.pop %v1395
  %v1397 = vmul.f32 %v1390, 1.442695
  %v1398 = vpow.pop %v1397
  %v1399 = vadd.f32 %v1392, 1.0
  %v1400 = vadd.f32 %v1394, 1.0
  %v1401 = vadd.f32 %v1396, 1.0
  %v1402 = vadd.f32 %v1398, 1.0
  %v1403 = vrcp.pop %v1399
  %v1404 = vmul.f32 1.0, %v1403
  %v1405 = vrcp.pop %v1400
  %v1406 = vmul.f32 1.0, %v1405
  %v1407 = vrcp.pop %v1401
  %v1408 = vmul.f32 1.0, %v1407
  %v1409 = vrcp.pop %v1402
  %v1410 = vmul.f32 1.0, %v1409
  %1411 = vrot.lane.b32.xlu0 %v1376, 64
  %v1412 = vpop.permute.xlu0 %1411
  %1413 = vrot.lane.b32.xlu0 %v1377, 64
  %v1414 = vpop.permute.xlu0 %1413
  %1415 = vrot.lane.b32.xlu0 %v1372, 64
  %v1416 = vpop.permute.xlu0 %1415
  %1417 = vrot.lane.b32.xlu0 %v1378, 64
  %v1418 = vpop.permute.xlu0 %1417
  %v1423 = vmul.f32 %v1404, %v1412
  %v1424 = vmul.f32 %v1406, %v1414
  %v1425 = vmul.f32 %v1408, %v1416
  %v1426 = vmul.f32 %v1410, %v1418
  %1431 = vrot.lane.b32.xlu0 %v1423, 64
  %v1432 = vpop.permute.xlu0 %1431
  %1433 = vrot.lane.b32.xlu0 %v1424, 64
  %v1434 = vpop.permute.xlu0 %1433
  %1435 = vrot.lane.b32.xlu0 %v1425, 64
  %v1436 = vpop.permute.xlu0 %1435
  %1437 = vrot.lane.b32.xlu0 %v1426, 64
  %v1438 = vpop.permute.xlu0 %1437
  %v1443 = vadd.f32 %v133, %v1432
  %v1444 = vadd.f32 %v139, %v1434
  %v1445 = vadd.f32 %v145, %v1436
  %v1446 = vadd.f32 %v151, %v1438
  %v1447 = vtanh.pop %v1443
  %v1448 = vtanh.pop %v1444
  %v1449 = vtanh.pop %v1445
  %v1450 = vtanh.pop %v1446
  %v1451 = vsub.f32 1.0, %v1404
  %v1452 = vsub.f32 1.0, %v1406
  %v1453 = vsub.f32 1.0, %v1408
  %v1454 = vsub.f32 1.0, %v1410
  %1459 = vrot.lane.b32.xlu0 %v1447, 96
  %v1460 = vpop.permute.xlu0 %1459
  %1461 = vrot.lane.b32.xlu0 %v1448, 96
  %v1462 = vpop.permute.xlu0 %1461
  %1463 = vrot.lane.b32.xlu0 %v1449, 96
  %v1464 = vpop.permute.xlu0 %1463
  %1465 = vrot.lane.b32.xlu0 %v1450, 96
  %v1466 = vpop.permute.xlu0 %1465
  %v1471 = vmul.f32 %v1451, %v1460
  %v1472 = vmul.f32 %v1452, %v1462
  %v1473 = vmul.f32 %v1453, %v1464
  %v1474 = vmul.f32 %v1454, %v1466
  %v1475 = vrot.slane %v955, 6
  %v1476 = vrot.slane %v955, 7
  %v1477 = vrot.slane %v955, 1
  %1478 = vrot.lane.b32.xlu0 %v1475, 32
  %v1479 = vpop.permute.xlu0 %1478
  %1480 = vrot.lane.b32.xlu0 %v1476, 32
  %v1481 = vpop.permute.xlu0 %1480
  %1482 = vrot.lane.b32.xlu0 %v955, 32
  %v1483 = vpop.permute.xlu0 %1482
  %1484 = vrot.lane.b32.xlu0 %v1477, 32
  %v1485 = vpop.permute.xlu0 %1484
  %v1490 = vmul.f32 %v1404, %v1479
  %v1491 = vmul.f32 %v1406, %v1481
  %v1492 = vmul.f32 %v1408, %v1483
  %v1493 = vmul.f32 %v1410, %v1485
  %v1494 = vadd.f32 %v1471, %v1490
  %v1495 = vadd.f32 %v1472, %v1491
  %v1496 = vadd.f32 %v1473, %v1492
  %v1497 = vadd.f32 %v1474, %v1493
  %1499 = vset.pattern.permute.xlu0 0
  %1500 = vperm.xlu0 %1499, %v1299
  %v1501 = vpop.permute.xlu0 %1500
  %v1507 = vrot.slane %v1494, 2
  %v1508 = vrot.slane %v1495, 1
  %v1509 = vsel %vm369, %v1508, %v1507
  %v1510 = vsel %vm372, %v1496, %v1509
  %v1511 = vrot.slane %v1497, 7
  %v1512 = vsel %vm375, %v1511, %v1510
  %1513 = vrot.lane.b32.xlu0 %v1512, 96
  %v1514 = vpop.permute.xlu0 %1513
  %v1516 = vmul.f32 %v1501, %v1514
  %v1517 = vsub.f32 1.0, %v1299
  %1519 = vset.pattern.permute.xlu0 0
  %1520 = vperm.xlu0 %1519, %v1517
  %v1521 = vpop.permute.xlu0 %1520
  %v1523 = vmul.f32 %v1521, %v955
  %v1524 = vadd.f32 %v1516, %v1523
  %v1525 = vsel %vm53, %v1206, 0
  %1527 = vmatprep.subr.mxu0 0.0
  %1528 = vmatpush1.msra.mxu0 %v161
  %1529 = vmatprep.subr.mxu0 0.0
  %1530 = vmatpush1.msra.mxu0 %v162
  %1531 = vmatprep.subr.mxu0 0.0
  %1532 = vmatpush1.msra.mxu0 %v163
  %1533 = vmatprep.subr.mxu0 0.0
  %1534 = vmatpush1.msra.mxu0 %v164
  %1535 = vmatprep.subr.mxu0 0.0
  %1536 = vmatpush1.msra.mxu0 0.0
  %1537 = vmatprep.subr.mxu0 0.0
  %1538 = vmatpush1.msra.mxu0 0.0
  %1539 = vmatprep.subr.mxu0 0.0
  %1540 = vmatpush1.msra.mxu0 0.0
  %1541 = vmatprep.subr.mxu0 0.0
  %1542 = vmatpush1.msra.mxu0 0.0
  %1543 = vmatprep.subr.mxu0 0.0
  %1544 = vmatpush1.msra.mxu0 0.0
  %1545 = vmatprep.subr.mxu0 0.0
  %1546 = vmatpush1.msra.mxu0 0.0
  %1547 = vmatprep.subr.mxu0 0.0
  %1548 = vmatpush1.msra.mxu0 0.0
  %1549 = vmatprep.subr.mxu0 0.0
  %1550 = vmatpush1.msra.mxu0 0.0
  %1551 = vmatprep.subr.mxu0 0.0
  %1552 = vmatpush1.msra.mxu0 0.0
  %1553 = vmatprep.subr.mxu0 0.0
  %1554 = vmatpush1.msra.mxu0 0.0
  %1555 = vmatprep.subr.mxu0 0.0
  %1556 = vmatpush1.msra.mxu0 0.0
  %1557 = vmatprep.subr.mxu0 0.0
  %1558 = vmatpush1.msra.mxu0 0.0
  %1559 = vmatprep.subr.mxu0 0.0
  %1560 = vmatpush1.msra.mxu0 0.0
  %1561 = vmatprep.subr.mxu0 0.0
  %1562 = vmatpush1.msra.mxu0 0.0
  %1563 = vmatprep.subr.mxu0 0.0
  %1564 = vmatpush1.msra.mxu0 0.0
  %1565 = vmatprep.subr.mxu0 0.0
  %1566 = vmatpush1.msra.mxu0 0.0
  %1567 = vmatprep.subr.mxu0 0.0
  %1568 = vmatpush1.msra.mxu0 0.0
  %1569 = vmatprep.subr.mxu0 0.0
  %1570 = vmatpush1.msra.mxu0 0.0
  %1571 = vmatprep.subr.mxu0 0.0
  %1572 = vmatpush1.msra.mxu0 0.0
  %1573 = vmatprep.subr.mxu0 0.0
  %1574 = vmatpush1.msra.mxu0 0.0
  %1575 = vmatprep.subr.mxu0 0.0
  %1576 = vmatpush1.msra.mxu0 0.0
  %1577 = vmatprep.subr.mxu0 0.0
  %1578 = vmatpush1.msra.mxu0 0.0
  %1579 = vmatprep.subr.mxu0 0.0
  %1580 = vmatpush1.msra.mxu0 0.0
  %1581 = vmatprep.subr.mxu0 0.0
  %1582 = vmatpush1.msra.mxu0 0.0
  %1583 = vmatprep.subr.mxu0 0.0
  %1584 = vmatpush1.msra.mxu0 0.0
  %1585 = vmatprep.subr.mxu0 0.0
  %1586 = vmatpush1.msra.mxu0 0.0
  %1587 = vmatprep.subr.mxu0 0.0
  %1588 = vmatpush1.msra.mxu0 0.0
  %1589 = vmatprep.subr.mxu0 0.0
  %1590 = vmatpush1.msra.mxu0 0.0
  %1591 = vmatprep.mubr.f32.mxu0 0.0
  %1592 = vmatmul.mubr.f32.gmra.mrb[0].mxu0 %v1525
  %v1593 = vpop.f32.mrb[0].mxu0
  %v1594 = vadd.f32 %v393, %v1593
  %v1595 = vpop.f32.mrb[0].mxu0
  %1596 = vdwg.mxu0
  %v1598 = vrot.slane %v1594, 3
  %v1599 = vrot.slane %v1594, 4
  %v1600 = vrot.slane %v1594, 5
  %v1601 = vrot.slane %v1594, 6
  %1602 = vrot.lane.b32.xlu0 %v1598, 96
  %v1603 = vpop.permute.xlu0 %1602
  %1604 = vrot.lane.b32.xlu0 %v1599, 96
  %v1605 = vpop.permute.xlu0 %1604
  %1606 = vrot.lane.b32.xlu0 %v1600, 96
  %v1607 = vpop.permute.xlu0 %1606
  %1608 = vrot.lane.b32.xlu0 %v1601, 96
  %v1609 = vpop.permute.xlu0 %1608
  %v1614 = vadd.f32 %v133, %v1603
  %v1615 = vadd.f32 %v139, %v1605
  %v1616 = vadd.f32 %v145, %v1607
  %v1617 = vadd.f32 %v151, %v1609
  %v1618 = vxor.u32 %v1614, 2147483648
  %v1619 = vxor.u32 %v1615, 2147483648
  %v1620 = vxor.u32 %v1616, 2147483648
  %v1621 = vxor.u32 %v1617, 2147483648
  %v1622 = vmul.f32 %v1618, 1.442695
  %v1623 = vpow.pop %v1622
  %v1624 = vmul.f32 %v1619, 1.442695
  %v1625 = vpow.pop %v1624
  %v1626 = vmul.f32 %v1620, 1.442695
  %v1627 = vpow.pop %v1626
  %v1628 = vmul.f32 %v1621, 1.442695
  %v1629 = vpow.pop %v1628
  %v1630 = vadd.f32 %v1623, 1.0
  %v1631 = vadd.f32 %v1625, 1.0
  %v1632 = vadd.f32 %v1627, 1.0
  %v1633 = vadd.f32 %v1629, 1.0
  %v1634 = vrcp.pop %v1630
  %v1635 = vmul.f32 1.0, %v1634
  %v1636 = vrcp.pop %v1631
  %v1637 = vmul.f32 1.0, %v1636
  %v1638 = vrcp.pop %v1632
  %v1639 = vmul.f32 1.0, %v1638
  %v1640 = vrcp.pop %v1633
  %v1641 = vmul.f32 1.0, %v1640
  %v1642 = vadd.f32 %v135, %v1603
  %v1643 = vadd.f32 %v141, %v1605
  %v1644 = vadd.f32 %v147, %v1607
  %v1645 = vadd.f32 %v153, %v1609
  %v1646 = vxor.u32 %v1642, 2147483648
  %v1647 = vxor.u32 %v1643, 2147483648
  %v1648 = vxor.u32 %v1644, 2147483648
  %v1649 = vxor.u32 %v1645, 2147483648
  %v1650 = vmul.f32 %v1646, 1.442695
  %v1651 = vpow.pop %v1650
  %v1652 = vmul.f32 %v1647, 1.442695
  %v1653 = vpow.pop %v1652
  %v1654 = vmul.f32 %v1648, 1.442695
  %v1655 = vpow.pop %v1654
  %v1656 = vmul.f32 %v1649, 1.442695
  %v1657 = vpow.pop %v1656
  %v1658 = vadd.f32 %v1651, 1.0
  %v1659 = vadd.f32 %v1653, 1.0
  %v1660 = vadd.f32 %v1655, 1.0
  %v1661 = vadd.f32 %v1657, 1.0
  %v1662 = vrcp.pop %v1658
  %v1663 = vmul.f32 1.0, %v1662
  %v1664 = vrcp.pop %v1659
  %v1665 = vmul.f32 1.0, %v1664
  %v1666 = vrcp.pop %v1660
  %v1667 = vmul.f32 1.0, %v1666
  %v1668 = vrcp.pop %v1661
  %v1669 = vmul.f32 1.0, %v1668
  %1670 = vrot.lane.b32.xlu0 %v1598, 32
  %v1671 = vpop.permute.xlu0 %1670
  %1672 = vrot.lane.b32.xlu0 %v1599, 32
  %v1673 = vpop.permute.xlu0 %1672
  %1674 = vrot.lane.b32.xlu0 %v1600, 32
  %v1675 = vpop.permute.xlu0 %1674
  %1676 = vrot.lane.b32.xlu0 %v1601, 32
  %v1677 = vpop.permute.xlu0 %1676
  %v1682 = vmul.f32 %v1635, %v1671
  %v1683 = vmul.f32 %v1637, %v1673
  %v1684 = vmul.f32 %v1639, %v1675
  %v1685 = vmul.f32 %v1641, %v1677
  %1690 = vrot.lane.b32.xlu0 %v1682, 64
  %v1691 = vpop.permute.xlu0 %1690
  %1692 = vrot.lane.b32.xlu0 %v1683, 64
  %v1693 = vpop.permute.xlu0 %1692
  %1694 = vrot.lane.b32.xlu0 %v1684, 64
  %v1695 = vpop.permute.xlu0 %1694
  %1696 = vrot.lane.b32.xlu0 %v1685, 64
  %v1697 = vpop.permute.xlu0 %1696
  %v1702 = vadd.f32 %v135, %v1691
  %v1703 = vadd.f32 %v141, %v1693
  %v1704 = vadd.f32 %v147, %v1695
  %v1705 = vadd.f32 %v153, %v1697
  %v1706 = vtanh.pop %v1702
  %v1707 = vtanh.pop %v1703
  %v1708 = vtanh.pop %v1704
  %v1709 = vtanh.pop %v1705
  %v1710 = vsub.f32 1.0, %v1663
  %v1711 = vsub.f32 1.0, %v1665
  %v1712 = vsub.f32 1.0, %v1667
  %v1713 = vsub.f32 1.0, %v1669
  %1718 = vrot.lane.b32.xlu0 %v1706, 96
  %v1719 = vpop.permute.xlu0 %1718
  %1720 = vrot.lane.b32.xlu0 %v1707, 96
  %v1721 = vpop.permute.xlu0 %1720
  %1722 = vrot.lane.b32.xlu0 %v1708, 96
  %v1723 = vpop.permute.xlu0 %1722
  %1724 = vrot.lane.b32.xlu0 %v1709, 96
  %v1725 = vpop.permute.xlu0 %1724
  %v1730 = vmul.f32 %v1710, %v1719
  %v1731 = vmul.f32 %v1711, %v1721
  %v1732 = vmul.f32 %v1712, %v1723
  %v1733 = vmul.f32 %v1713, %v1725
  %v1734 = vrot.slane %v1206, 3
  %v1735 = vrot.slane %v1206, 4
  %v1736 = vrot.slane %v1206, 5
  %v1737 = vrot.slane %v1206, 6
  %v1742 = vmul.f32 %v1663, %v1734
  %v1743 = vmul.f32 %v1665, %v1735
  %v1744 = vmul.f32 %v1667, %v1736
  %v1745 = vmul.f32 %v1669, %v1737
  %v1746 = vadd.f32 %v1730, %v1742
  %v1747 = vadd.f32 %v1731, %v1743
  %v1748 = vadd.f32 %v1732, %v1744
  %v1749 = vadd.f32 %v1733, %v1745
  %1751 = vset.pattern.permute.xlu0 0
  %1752 = vperm.xlu0 %1751, %v1302
  %v1753 = vpop.permute.xlu0 %1752
  %v1759 = vrot.slane %v1746, 5
  %v1760 = vrot.slane %v1747, 4
  %v1761 = vsel %vm369, %v1760, %v1759
  %v1762 = vrot.slane %v1748, 3
  %v1763 = vsel %vm372, %v1762, %v1761
  %v1764 = vrot.slane %v1749, 2
  %v1765 = vsel %vm375, %v1764, %v1763
  %v1767 = vmul.f32 %v1753, %v1765
  %v1768 = vsub.f32 1.0, %v1302
  %1770 = vset.pattern.permute.xlu0 0
  %1771 = vperm.xlu0 %1770, %v1768
  %v1772 = vpop.permute.xlu0 %1771
  %v1774 = vmul.f32 %v1772, %v1206
  %v1775 = vadd.f32 %v1767, %v1774
  %v1778 = vunpack.c.l.s4 1966171168
  %v1779 = vunpack.c.0.s8 %v1778
  %v1780 = vlaneseq
  %v1781 = vshrl.u32 %v1780, 7
  %v1782 = vsub.s32 %v1779, %v1781
  %v1783 = vrot.slane %v1524, %v1782
  %v1784 = vcombine.high %v1783, %v1783
  %v1786 = vunpack.c.l.s4 1966171168
  %v1787 = vunpack.c.0.s8 %v1786
  %v1788 = vlaneseq
  %v1789 = vshrl.u32 %v1788, 7
  %v1790 = vsub.s32 %v1787, %v1789
  %v1791 = vrot.slane %v1783, %v1790
  %v1793 = vunpack.c.l.s4 1966171168
  %v1794 = vunpack.c.0.s8 %v1793
  %v1795 = vlaneseq
  %v1796 = vshrl.u32 %v1795, 7
  %v1797 = vsub.s32 %v1794, %v1796
  %v1798 = vrot.slane %v1784, %v1797
  %v1799 = vcombine.high %v1791, %v1791
  %v1800 = vcombine.high %v1798, %v1798
  %1805 = vst.msk [vmem:[%s8 + $0x2] sm:$0x1] %vm665, %v1791
  %1806 = vst.msk [vmem:[%s8 + $0xa] sm:$0x1] %vm665, %v1798
  %1807 = vst.msk [vmem:[%s8 + $0x12] sm:$0x1] %vm665, %v1799
  %1808 = vst.msk [vmem:[%s8 + $0x1a] sm:$0x1] %vm665, %v1800
  %v1811 = vunpack.c.l.s4 1966171168
  %v1812 = vunpack.c.0.s8 %v1811
  %v1813 = vlaneseq
  %v1814 = vshrl.u32 %v1813, 7
  %v1815 = vsub.s32 %v1812, %v1814
  %v1816 = vrot.slane %v1775, %v1815
  %v1817 = vcombine.high %v1816, %v1816
  %v1819 = vunpack.c.l.s4 1966171168
  %v1820 = vunpack.c.0.s8 %v1819
  %v1821 = vlaneseq
  %v1822 = vshrl.u32 %v1821, 7
  %v1823 = vsub.s32 %v1820, %v1822
  %v1824 = vrot.slane %v1816, %v1823
  %v1826 = vunpack.c.l.s4 1966171168
  %v1827 = vunpack.c.0.s8 %v1826
  %v1828 = vlaneseq
  %v1829 = vshrl.u32 %v1828, 7
  %v1830 = vsub.s32 %v1827, %v1829
  %v1831 = vrot.slane %v1817, %v1830
  %v1832 = vcombine.high %v1824, %v1824
  %v1833 = vcombine.high %v1831, %v1831
  %v1834 = vlaneseq
  %v1835 = vshrl.u32 %v1834, 7
  %v1836 = vsub.s32 0, %v1835
  %v1837 = vrot.slane %v1824, %v1836
  %v1838 = vlaneseq
  %v1839 = vshrl.u32 %v1838, 7
  %v1840 = vsub.s32 0, %v1839
  %v1841 = vrot.slane %v1831, %v1840
  %v1842 = vlaneseq
  %v1843 = vshrl.u32 %v1842, 7
  %v1844 = vsub.s32 0, %v1843
  %v1845 = vrot.slane %v1832, %v1844
  %v1846 = vlaneseq
  %v1847 = vshrl.u32 %v1846, 7
  %v1848 = vsub.s32 0, %v1847
  %v1849 = vrot.slane %v1833, %v1848
  %1850 = vrot.lane.b32.xlu0 %v1837, 32
  %v1851 = vpop.permute.xlu0 %1850
  %1852 = vrot.lane.b32.xlu0 %v1841, 32
  %v1853 = vpop.permute.xlu0 %1852
  %1854 = vrot.lane.b32.xlu0 %v1845, 32
  %v1855 = vpop.permute.xlu0 %1854
  %1856 = vrot.lane.b32.xlu0 %v1849, 32
  %v1857 = vpop.permute.xlu0 %1856
  %1862 = vst.msk [vmem:[%s8 + $0x5] sm:$0x1] %vm723, %v1851
  %1863 = vst.msk [vmem:[%s8 + $0xd] sm:$0x1] %vm723, %v1853
  %1864 = vst.msk [vmem:[%s8 + $0x15] sm:$0x1] %vm723, %v1855
  %1865 = vst.msk [vmem:[%s8 + $0x1d] sm:$0x1] %vm723, %v1857
  %vm1866 = vcmp.gt.s32.totalorder %v155, 3
  %v1867 = vsel %vm1866, 1, 0
  %v1868 = vcvt.s32.f32 %v1867
  %vm1869 = vcmp.gt.s32.totalorder %v155, 4
  %v1870 = vsel %vm1869, 1, 0
  %v1871 = vcvt.s32.f32 %v1870
  %v1872 = vsel %vm53, %v1524, 0
  %1874 = vmatprep.subr.mxu0 0.0
  %1875 = vmatpush1.msra.mxu0 %v156
  %1876 = vmatprep.subr.mxu0 0.0
  %1877 = vmatpush1.msra.mxu0 %v157
  %1878 = vmatprep.subr.mxu0 0.0
  %1879 = vmatpush1.msra.mxu0 %v158
  %1880 = vmatprep.subr.mxu0 0.0
  %1881 = vmatpush1.msra.mxu0 %v159
  %1882 = vmatprep.subr.mxu0 0.0
  %1883 = vmatpush1.msra.mxu0 0.0
  %1884 = vmatprep.subr.mxu0 0.0
  %1885 = vmatpush1.msra.mxu0 0.0
  %1886 = vmatprep.subr.mxu0 0.0
  %1887 = vmatpush1.msra.mxu0 0.0
  %1888 = vmatprep.subr.mxu0 0.0
  %1889 = vmatpush1.msra.mxu0 0.0
  %1890 = vmatprep.subr.mxu0 0.0
  %1891 = vmatpush1.msra.mxu0 0.0
  %1892 = vmatprep.subr.mxu0 0.0
  %1893 = vmatpush1.msra.mxu0 0.0
  %1894 = vmatprep.subr.mxu0 0.0
  %1895 = vmatpush1.msra.mxu0 0.0
  %1896 = vmatprep.subr.mxu0 0.0
  %1897 = vmatpush1.msra.mxu0 0.0
  %1898 = vmatprep.subr.mxu0 0.0
  %1899 = vmatpush1.msra.mxu0 0.0
  %1900 = vmatprep.subr.mxu0 0.0
  %1901 = vmatpush1.msra.mxu0 0.0
  %1902 = vmatprep.subr.mxu0 0.0
  %1903 = vmatpush1.msra.mxu0 0.0
  %1904 = vmatprep.subr.mxu0 0.0
  %1905 = vmatpush1.msra.mxu0 0.0
  %1906 = vmatprep.subr.mxu0 0.0
  %1907 = vmatpush1.msra.mxu0 0.0
  %1908 = vmatprep.subr.mxu0 0.0
  %1909 = vmatpush1.msra.mxu0 0.0
  %1910 = vmatprep.subr.mxu0 0.0
  %1911 = vmatpush1.msra.mxu0 0.0
  %1912 = vmatprep.subr.mxu0 0.0
  %1913 = vmatpush1.msra.mxu0 0.0
  %1914 = vmatprep.subr.mxu0 0.0
  %1915 = vmatpush1.msra.mxu0 0.0
  %1916 = vmatprep.subr.mxu0 0.0
  %1917 = vmatpush1.msra.mxu0 0.0
  %1918 = vmatprep.subr.mxu0 0.0
  %1919 = vmatpush1.msra.mxu0 0.0
  %1920 = vmatprep.subr.mxu0 0.0
  %1921 = vmatpush1.msra.mxu0 0.0
  %1922 = vmatprep.subr.mxu0 0.0
  %1923 = vmatpush1.msra.mxu0 0.0
  %1924 = vmatprep.subr.mxu0 0.0
  %1925 = vmatpush1.msra.mxu0 0.0
  %1926 = vmatprep.subr.mxu0 0.0
  %1927 = vmatpush1.msra.mxu0 0.0
  %1928 = vmatprep.subr.mxu0 0.0
  %1929 = vmatpush1.msra.mxu0 0.0
  %1930 = vmatprep.subr.mxu0 0.0
  %1931 = vmatpush1.msra.mxu0 0.0
  %1932 = vmatprep.subr.mxu0 0.0
  %1933 = vmatpush1.msra.mxu0 0.0
  %1934 = vmatprep.subr.mxu0 0.0
  %1935 = vmatpush1.msra.mxu0 0.0
  %1936 = vmatprep.subr.mxu0 0.0
  %1937 = vmatpush1.msra.mxu0 0.0
  %1938 = vmatprep.mubr.f32.mxu0 0.0
  %1939 = vmatmul.mubr.f32.gmra.mrb[0].mxu0 %v1872
  %v1940 = vpop.f32.mrb[0].mxu0
  %v1941 = vadd.f32 %v176, %v1940
  %v1942 = vpop.f32.mrb[0].mxu0
  %1943 = vdwg.mxu0
  %v1945 = vrot.slane %v1941, 5
  %v1946 = vrot.slane %v1941, 6
  %v1947 = vrot.slane %v1941, 7
  %v1952 = vadd.f32 %v133, %v1945
  %v1953 = vadd.f32 %v139, %v1946
  %v1954 = vadd.f32 %v145, %v1947
  %v1955 = vadd.f32 %v151, %v1941
  %v1956 = vxor.u32 %v1952, 2147483648
  %v1957 = vxor.u32 %v1953, 2147483648
  %v1958 = vxor.u32 %v1954, 2147483648
  %v1959 = vxor.u32 %v1955, 2147483648
  %v1960 = vmul.f32 %v1956, 1.442695
  %v1961 = vpow.pop %v1960
  %v1962 = vmul.f32 %v1957, 1.442695
  %v1963 = vpow.pop %v1962
  %v1964 = vmul.f32 %v1958, 1.442695
  %v1965 = vpow.pop %v1964
  %v1966 = vmul.f32 %v1959, 1.442695
  %v1967 = vpow.pop %v1966
  %v1968 = vadd.f32 %v1961, 1.0
  %v1969 = vadd.f32 %v1963, 1.0
  %v1970 = vadd.f32 %v1965, 1.0
  %v1971 = vadd.f32 %v1967, 1.0
  %v1972 = vrcp.pop %v1968
  %v1973 = vmul.f32 1.0, %v1972
  %v1974 = vrcp.pop %v1969
  %v1975 = vmul.f32 1.0, %v1974
  %v1976 = vrcp.pop %v1970
  %v1977 = vmul.f32 1.0, %v1976
  %v1978 = vrcp.pop %v1971
  %v1979 = vmul.f32 1.0, %v1978
  %1980 = vrot.lane.b32.xlu0 %v1945, 64
  %v1981 = vpop.permute.xlu0 %1980
  %1982 = vrot.lane.b32.xlu0 %v1946, 64
  %v1983 = vpop.permute.xlu0 %1982
  %1984 = vrot.lane.b32.xlu0 %v1947, 64
  %v1985 = vpop.permute.xlu0 %1984
  %1986 = vrot.lane.b32.xlu0 %v1941, 64
  %v1987 = vpop.permute.xlu0 %1986
  %v1992 = vmul.f32 %v1973, %v1981
  %v1993 = vmul.f32 %v1975, %v1983
  %v1994 = vmul.f32 %v1977, %v1985
  %v1995 = vmul.f32 %v1979, %v1987
  %2000 = vrot.lane.b32.xlu0 %v1992, 64
  %v2001 = vpop.permute.xlu0 %2000
  %2002 = vrot.lane.b32.xlu0 %v1993, 64
  %v2003 = vpop.permute.xlu0 %2002
  %2004 = vrot.lane.b32.xlu0 %v1994, 64
  %v2005 = vpop.permute.xlu0 %2004
  %2006 = vrot.lane.b32.xlu0 %v1995, 64
  %v2007 = vpop.permute.xlu0 %2006
  %v2012 = vadd.f32 %v133, %v2001
  %v2013 = vadd.f32 %v139, %v2003
  %v2014 = vadd.f32 %v145, %v2005
  %v2015 = vadd.f32 %v151, %v2007
  %v2016 = vtanh.pop %v2012
  %v2017 = vtanh.pop %v2013
  %v2018 = vtanh.pop %v2014
  %v2019 = vtanh.pop %v2015
  %v2020 = vsub.f32 1.0, %v1973
  %v2021 = vsub.f32 1.0, %v1975
  %v2022 = vsub.f32 1.0, %v1977
  %v2023 = vsub.f32 1.0, %v1979
  %2028 = vrot.lane.b32.xlu0 %v2016, 96
  %v2029 = vpop.permute.xlu0 %2028
  %2030 = vrot.lane.b32.xlu0 %v2017, 96
  %v2031 = vpop.permute.xlu0 %2030
  %2032 = vrot.lane.b32.xlu0 %v2018, 96
  %v2033 = vpop.permute.xlu0 %2032
  %2034 = vrot.lane.b32.xlu0 %v2019, 96
  %v2035 = vpop.permute.xlu0 %2034
  %v2040 = vmul.f32 %v2020, %v2029
  %v2041 = vmul.f32 %v2021, %v2031
  %v2042 = vmul.f32 %v2022, %v2033
  %v2043 = vmul.f32 %v2023, %v2035
  %v2044 = vrot.slane %v1524, 5
  %v2045 = vrot.slane %v1524, 6
  %v2046 = vrot.slane %v1524, 7
  %2047 = vrot.lane.b32.xlu0 %v2044, 32
  %v2048 = vpop.permute.xlu0 %2047
  %2049 = vrot.lane.b32.xlu0 %v2045, 32
  %v2050 = vpop.permute.xlu0 %2049
  %2051 = vrot.lane.b32.xlu0 %v2046, 32
  %v2052 = vpop.permute.xlu0 %2051
  %2053 = vrot.lane.b32.xlu0 %v1524, 32
  %v2054 = vpop.permute.xlu0 %2053
  %v2059 = vmul.f32 %v1973, %v2048
  %v2060 = vmul.f32 %v1975, %v2050
  %v2061 = vmul.f32 %v1977, %v2052
  %v2062 = vmul.f32 %v1979, %v2054
  %v2063 = vadd.f32 %v2040, %v2059
  %v2064 = vadd.f32 %v2041, %v2060
  %v2065 = vadd.f32 %v2042, %v2061
  %v2066 = vadd.f32 %v2043, %v2062
  %2068 = vset.pattern.permute.xlu0 0
  %2069 = vperm.xlu0 %2068, %v1868
  %v2070 = vpop.permute.xlu0 %2069
  %v2076 = vrot.slane %v2063, 3
  %v2077 = vrot.slane %v2064, 2
  %v2078 = vsel %vm369, %v2077, %v2076
  %v2079 = vrot.slane %v2065, 1
  %v2080 = vsel %vm372, %v2079, %v2078
  %v2081 = vsel %vm375, %v2066, %v2080
  %2082 = vrot.lane.b32.xlu0 %v2081, 96
  %v2083 = vpop.permute.xlu0 %2082
  %v2085 = vmul.f32 %v2070, %v2083
  %v2086 = vsub.f32 1.0, %v1868
  %2088 = vset.pattern.permute.xlu0 0
  %2089 = vperm.xlu0 %2088, %v2086
  %v2090 = vpop.permute.xlu0 %2089
  %v2092 = vmul.f32 %v2090, %v1524
  %v2093 = vadd.f32 %v2085, %v2092
  %v2094 = vsel %vm53, %v1775, 0
  %2096 = vmatprep.subr.mxu0 0.0
  %2097 = vmatpush1.msra.mxu0 %v161
  %2098 = vmatprep.subr.mxu0 0.0
  %2099 = vmatpush1.msra.mxu0 %v162
  %2100 = vmatprep.subr.mxu0 0.0
  %2101 = vmatpush1.msra.mxu0 %v163
  %2102 = vmatprep.subr.mxu0 0.0
  %2103 = vmatpush1.msra.mxu0 %v164
  %2104 = vmatprep.subr.mxu0 0.0
  %2105 = vmatpush1.msra.mxu0 0.0
  %2106 = vmatprep.subr.mxu0 0.0
  %2107 = vmatpush1.msra.mxu0 0.0
  %2108 = vmatprep.subr.mxu0 0.0
  %2109 = vmatpush1.msra.mxu0 0.0
  %2110 = vmatprep.subr.mxu0 0.0
  %2111 = vmatpush1.msra.mxu0 0.0
  %2112 = vmatprep.subr.mxu0 0.0
  %2113 = vmatpush1.msra.mxu0 0.0
  %2114 = vmatprep.subr.mxu0 0.0
  %2115 = vmatpush1.msra.mxu0 0.0
  %2116 = vmatprep.subr.mxu0 0.0
  %2117 = vmatpush1.msra.mxu0 0.0
  %2118 = vmatprep.subr.mxu0 0.0
  %2119 = vmatpush1.msra.mxu0 0.0
  %2120 = vmatprep.subr.mxu0 0.0
  %2121 = vmatpush1.msra.mxu0 0.0
  %2122 = vmatprep.subr.mxu0 0.0
  %2123 = vmatpush1.msra.mxu0 0.0
  %2124 = vmatprep.subr.mxu0 0.0
  %2125 = vmatpush1.msra.mxu0 0.0
  %2126 = vmatprep.subr.mxu0 0.0
  %2127 = vmatpush1.msra.mxu0 0.0
  %2128 = vmatprep.subr.mxu0 0.0
  %2129 = vmatpush1.msra.mxu0 0.0
  %2130 = vmatprep.subr.mxu0 0.0
  %2131 = vmatpush1.msra.mxu0 0.0
  %2132 = vmatprep.subr.mxu0 0.0
  %2133 = vmatpush1.msra.mxu0 0.0
  %2134 = vmatprep.subr.mxu0 0.0
  %2135 = vmatpush1.msra.mxu0 0.0
  %2136 = vmatprep.subr.mxu0 0.0
  %2137 = vmatpush1.msra.mxu0 0.0
  %2138 = vmatprep.subr.mxu0 0.0
  %2139 = vmatpush1.msra.mxu0 0.0
  %2140 = vmatprep.subr.mxu0 0.0
  %2141 = vmatpush1.msra.mxu0 0.0
  %2142 = vmatprep.subr.mxu0 0.0
  %2143 = vmatpush1.msra.mxu0 0.0
  %2144 = vmatprep.subr.mxu0 0.0
  %2145 = vmatpush1.msra.mxu0 0.0
  %2146 = vmatprep.subr.mxu0 0.0
  %2147 = vmatpush1.msra.mxu0 0.0
  %2148 = vmatprep.subr.mxu0 0.0
  %2149 = vmatpush1.msra.mxu0 0.0
  %2150 = vmatprep.subr.mxu0 0.0
  %2151 = vmatpush1.msra.mxu0 0.0
  %2152 = vmatprep.subr.mxu0 0.0
  %2153 = vmatpush1.msra.mxu0 0.0
  %2154 = vmatprep.subr.mxu0 0.0
  %2155 = vmatpush1.msra.mxu0 0.0
  %2156 = vmatprep.subr.mxu0 0.0
  %2157 = vmatpush1.msra.mxu0 0.0
  %2158 = vmatprep.subr.mxu0 0.0
  %2159 = vmatpush1.msra.mxu0 0.0
  %2160 = vmatprep.mubr.f32.mxu0 0.0
  %2161 = vmatmul.mubr.f32.gmra.mrb[0].mxu0 %v2094
  %v2162 = vpop.f32.mrb[0].mxu0
  %v2163 = vadd.f32 %v393, %v2162
  %v2164 = vpop.f32.mrb[0].mxu0
  %2165 = vdwg.mxu0
  %v2167 = vrot.slane %v2163, 4
  %v2168 = vrot.slane %v2163, 5
  %v2169 = vrot.slane %v2163, 6
  %v2170 = vrot.slane %v2163, 7
  %2171 = vrot.lane.b32.xlu0 %v2167, 96
  %v2172 = vpop.permute.xlu0 %2171
  %2173 = vrot.lane.b32.xlu0 %v2168, 96
  %v2174 = vpop.permute.xlu0 %2173
  %2175 = vrot.lane.b32.xlu0 %v2169, 96
  %v2176 = vpop.permute.xlu0 %2175
  %2177 = vrot.lane.b32.xlu0 %v2170, 96
  %v2178 = vpop.permute.xlu0 %2177
  %v2183 = vadd.f32 %v133, %v2172
  %v2184 = vadd.f32 %v139, %v2174
  %v2185 = vadd.f32 %v145, %v2176
  %v2186 = vadd.f32 %v151, %v2178
  %v2187 = vxor.u32 %v2183, 2147483648
  %v2188 = vxor.u32 %v2184, 2147483648
  %v2189 = vxor.u32 %v2185, 2147483648
  %v2190 = vxor.u32 %v2186, 2147483648
  %v2191 = vmul.f32 %v2187, 1.442695
  %v2192 = vpow.pop %v2191
  %v2193 = vmul.f32 %v2188, 1.442695
  %v2194 = vpow.pop %v2193
  %v2195 = vmul.f32 %v2189, 1.442695
  %v2196 = vpow.pop %v2195
  %v2197 = vmul.f32 %v2190, 1.442695
  %v2198 = vpow.pop %v2197
  %v2199 = vadd.f32 %v2192, 1.0
  %v2200 = vadd.f32 %v2194, 1.0
  %v2201 = vadd.f32 %v2196, 1.0
  %v2202 = vadd.f32 %v2198, 1.0
  %v2203 = vrcp.pop %v2199
  %v2204 = vmul.f32 1.0, %v2203
  %v2205 = vrcp.pop %v2200
  %v2206 = vmul.f32 1.0, %v2205
  %v2207 = vrcp.pop %v2201
  %v2208 = vmul.f32 1.0, %v2207
  %v2209 = vrcp.pop %v2202
  %v2210 = vmul.f32 1.0, %v2209
  %v2211 = vadd.f32 %v135, %v2172
  %v2212 = vadd.f32 %v141, %v2174
  %v2213 = vadd.f32 %v147, %v2176
  %v2214 = vadd.f32 %v153, %v2178
  %v2215 = vxor.u32 %v2211, 2147483648
  %v2216 = vxor.u32 %v2212, 2147483648
  %v2217 = vxor.u32 %v2213, 2147483648
  %v2218 = vxor.u32 %v2214, 2147483648
  %v2219 = vmul.f32 %v2215, 1.442695
  %v2220 = vpow.pop %v2219
  %v2221 = vmul.f32 %v2216, 1.442695
  %v2222 = vpow.pop %v2221
  %v2223 = vmul.f32 %v2217, 1.442695
  %v2224 = vpow.pop %v2223
  %v2225 = vmul.f32 %v2218, 1.442695
  %v2226 = vpow.pop %v2225
  %v2227 = vadd.f32 %v2220, 1.0
  %v2228 = vadd.f32 %v2222, 1.0
  %v2229 = vadd.f32 %v2224, 1.0
  %v2230 = vadd.f32 %v2226, 1.0
  %v2231 = vrcp.pop %v2227
  %v2232 = vmul.f32 1.0, %v2231
  %v2233 = vrcp.pop %v2228
  %v2234 = vmul.f32 1.0, %v2233
  %v2235 = vrcp.pop %v2229
  %v2236 = vmul.f32 1.0, %v2235
  %v2237 = vrcp.pop %v2230
  %v2238 = vmul.f32 1.0, %v2237
  %2239 = vrot.lane.b32.xlu0 %v2167, 32
  %v2240 = vpop.permute.xlu0 %2239
  %2241 = vrot.lane.b32.xlu0 %v2168, 32
  %v2242 = vpop.permute.xlu0 %2241
  %2243 = vrot.lane.b32.xlu0 %v2169, 32
  %v2244 = vpop.permute.xlu0 %2243
  %2245 = vrot.lane.b32.xlu0 %v2170, 32
  %v2246 = vpop.permute.xlu0 %2245
  %v2251 = vmul.f32 %v2204, %v2240
  %v2252 = vmul.f32 %v2206, %v2242
  %v2253 = vmul.f32 %v2208, %v2244
  %v2254 = vmul.f32 %v2210, %v2246
  %2259 = vrot.lane.b32.xlu0 %v2251, 64
  %v2260 = vpop.permute.xlu0 %2259
  %2261 = vrot.lane.b32.xlu0 %v2252, 64
  %v2262 = vpop.permute.xlu0 %2261
  %2263 = vrot.lane.b32.xlu0 %v2253, 64
  %v2264 = vpop.permute.xlu0 %2263
  %2265 = vrot.lane.b32.xlu0 %v2254, 64
  %v2266 = vpop.permute.xlu0 %2265
  %v2271 = vadd.f32 %v135, %v2260
  %v2272 = vadd.f32 %v141, %v2262
  %v2273 = vadd.f32 %v147, %v2264
  %v2274 = vadd.f32 %v153, %v2266
  %v2275 = vtanh.pop %v2271
  %v2276 = vtanh.pop %v2272
  %v2277 = vtanh.pop %v2273
  %v2278 = vtanh.pop %v2274
  %v2279 = vsub.f32 1.0, %v2232
  %v2280 = vsub.f32 1.0, %v2234
  %v2281 = vsub.f32 1.0, %v2236
  %v2282 = vsub.f32 1.0, %v2238
  %2287 = vrot.lane.b32.xlu0 %v2275, 96
  %v2288 = vpop.permute.xlu0 %2287
  %2289 = vrot.lane.b32.xlu0 %v2276, 96
  %v2290 = vpop.permute.xlu0 %2289
  %2291 = vrot.lane.b32.xlu0 %v2277, 96
  %v2292 = vpop.permute.xlu0 %2291
  %2293 = vrot.lane.b32.xlu0 %v2278, 96
  %v2294 = vpop.permute.xlu0 %2293
  %v2299 = vmul.f32 %v2279, %v2288
  %v2300 = vmul.f32 %v2280, %v2290
  %v2301 = vmul.f32 %v2281, %v2292
  %v2302 = vmul.f32 %v2282, %v2294
  %v2303 = vrot.slane %v1775, 4
  %v2304 = vrot.slane %v1775, 5
  %v2305 = vrot.slane %v1775, 6
  %v2306 = vrot.slane %v1775, 7
  %v2311 = vmul.f32 %v2232, %v2303
  %v2312 = vmul.f32 %v2234, %v2304
  %v2313 = vmul.f32 %v2236, %v2305
  %v2314 = vmul.f32 %v2238, %v2306
  %v2315 = vadd.f32 %v2299, %v2311
  %v2316 = vadd.f32 %v2300, %v2312
  %v2317 = vadd.f32 %v2301, %v2313
  %v2318 = vadd.f32 %v2302, %v2314
  %2320 = vset.pattern.permute.xlu0 0
  %2321 = vperm.xlu0 %2320, %v1871
  %v2322 = vpop.permute.xlu0 %2321
  %v2328 = vrot.slane %v2315, 4
  %v2329 = vrot.slane %v2316, 3
  %v2330 = vsel %vm369, %v2329, %v2328
  %v2331 = vrot.slane %v2317, 2
  %v2332 = vsel %vm372, %v2331, %v2330
  %v2333 = vrot.slane %v2318, 1
  %v2334 = vsel %vm375, %v2333, %v2332
  %v2336 = vmul.f32 %v2322, %v2334
  %v2337 = vsub.f32 1.0, %v1871
  %2339 = vset.pattern.permute.xlu0 0
  %2340 = vperm.xlu0 %2339, %v2337
  %v2341 = vpop.permute.xlu0 %2340
  %v2343 = vmul.f32 %v2341, %v1775
  %v2344 = vadd.f32 %v2336, %v2343
  %v2347 = vunpack.c.l.s4 1966171168
  %v2348 = vunpack.c.0.s8 %v2347
  %v2349 = vlaneseq
  %v2350 = vshrl.u32 %v2349, 7
  %v2351 = vsub.s32 %v2348, %v2350
  %v2352 = vrot.slane %v2093, %v2351
  %v2353 = vcombine.high %v2352, %v2352
  %v2355 = vunpack.c.l.s4 1966171168
  %v2356 = vunpack.c.0.s8 %v2355
  %v2357 = vlaneseq
  %v2358 = vshrl.u32 %v2357, 7
  %v2359 = vsub.s32 %v2356, %v2358
  %v2360 = vrot.slane %v2352, %v2359
  %v2362 = vunpack.c.l.s4 1966171168
  %v2363 = vunpack.c.0.s8 %v2362
  %v2364 = vlaneseq
  %v2365 = vshrl.u32 %v2364, 7
  %v2366 = vsub.s32 %v2363, %v2365
  %v2367 = vrot.slane %v2353, %v2366
  %v2368 = vcombine.high %v2360, %v2360
  %v2369 = vcombine.high %v2367, %v2367
  %2374 = vst.msk [vmem:[%s8 + $0x3] sm:$0x1] %vm665, %v2360
  %2375 = vst.msk [vmem:[%s8 + $0xb] sm:$0x1] %vm665, %v2367
  %2376 = vst.msk [vmem:[%s8 + $0x13] sm:$0x1] %vm665, %v2368
  %2377 = vst.msk [vmem:[%s8 + $0x1b] sm:$0x1] %vm665, %v2369
  %v2380 = vunpack.c.l.s4 1966171168
  %v2381 = vunpack.c.0.s8 %v2380
  %v2382 = vlaneseq
  %v2383 = vshrl.u32 %v2382, 7
  %v2384 = vsub.s32 %v2381, %v2383
  %v2385 = vrot.slane %v2344, %v2384
  %v2386 = vcombine.high %v2385, %v2385
  %v2388 = vunpack.c.l.s4 1966171168
  %v2389 = vunpack.c.0.s8 %v2388
  %v2390 = vlaneseq
  %v2391 = vshrl.u32 %v2390, 7
  %v2392 = vsub.s32 %v2389, %v2391
  %v2393 = vrot.slane %v2385, %v2392
  %v2395 = vunpack.c.l.s4 1966171168
  %v2396 = vunpack.c.0.s8 %v2395
  %v2397 = vlaneseq
  %v2398 = vshrl.u32 %v2397, 7
  %v2399 = vsub.s32 %v2396, %v2398
  %v2400 = vrot.slane %v2386, %v2399
  %v2401 = vcombine.high %v2393, %v2393
  %v2402 = vcombine.high %v2400, %v2400
  %v2403 = vlaneseq
  %v2404 = vshrl.u32 %v2403, 7
  %v2405 = vsub.s32 0, %v2404
  %v2406 = vrot.slane %v2393, %v2405
  %v2407 = vlaneseq
  %v2408 = vshrl.u32 %v2407, 7
  %v2409 = vsub.s32 0, %v2408
  %v2410 = vrot.slane %v2400, %v2409
  %v2411 = vlaneseq
  %v2412 = vshrl.u32 %v2411, 7
  %v2413 = vsub.s32 0, %v2412
  %v2414 = vrot.slane %v2401, %v2413
  %v2415 = vlaneseq
  %v2416 = vshrl.u32 %v2415, 7
  %v2417 = vsub.s32 0, %v2416
  %v2418 = vrot.slane %v2402, %v2417
  %2419 = vrot.lane.b32.xlu0 %v2406, 32
  %v2420 = vpop.permute.xlu0 %2419
  %2421 = vrot.lane.b32.xlu0 %v2410, 32
  %v2422 = vpop.permute.xlu0 %2421
  %2423 = vrot.lane.b32.xlu0 %v2414, 32
  %v2424 = vpop.permute.xlu0 %2423
  %2425 = vrot.lane.b32.xlu0 %v2418, 32
  %v2426 = vpop.permute.xlu0 %2425
  %2431 = vst.msk [vmem:[%s8 + $0x4] sm:$0x1] %vm723, %v2420
  %2432 = vst.msk [vmem:[%s8 + $0xc] sm:$0x1] %vm723, %v2422
  %2433 = vst.msk [vmem:[%s8 + $0x14] sm:$0x1] %vm723, %v2424
  %2434 = vst.msk [vmem:[%s8 + $0x1c] sm:$0x1] %vm723, %v2426
  %v2435 = vsel %vm53, %v2093, 0
  %2437 = vmatprep.subr.mxu0 0.0
  %2438 = vmatpush1.msra.mxu0 %v156
  %2439 = vmatprep.subr.mxu0 0.0
  %2440 = vmatpush1.msra.mxu0 %v157
  %2441 = vmatprep.subr.mxu0 0.0
  %2442 = vmatpush1.msra.mxu0 %v158
  %2443 = vmatprep.subr.mxu0 0.0
  %2444 = vmatpush1.msra.mxu0 %v159
  %2445 = vmatprep.subr.mxu0 0.0
  %2446 = vmatpush1.msra.mxu0 0.0
  %2447 = vmatprep.subr.mxu0 0.0
  %2448 = vmatpush1.msra.mxu0 0.0
  %2449 = vmatprep.subr.mxu0 0.0
  %2450 = vmatpush1.msra.mxu0 0.0
  %2451 = vmatprep.subr.mxu0 0.0
  %2452 = vmatpush1.msra.mxu0 0.0
  %2453 = vmatprep.subr.mxu0 0.0
  %2454 = vmatpush1.msra.mxu0 0.0
  %2455 = vmatprep.subr.mxu0 0.0
  %2456 = vmatpush1.msra.mxu0 0.0
  %2457 = vmatprep.subr.mxu0 0.0
  %2458 = vmatpush1.msra.mxu0 0.0
  %2459 = vmatprep.subr.mxu0 0.0
  %2460 = vmatpush1.msra.mxu0 0.0
  %2461 = vmatprep.subr.mxu0 0.0
  %2462 = vmatpush1.msra.mxu0 0.0
  %2463 = vmatprep.subr.mxu0 0.0
  %2464 = vmatpush1.msra.mxu0 0.0
  %2465 = vmatprep.subr.mxu0 0.0
  %2466 = vmatpush1.msra.mxu0 0.0
  %2467 = vmatprep.subr.mxu0 0.0
  %2468 = vmatpush1.msra.mxu0 0.0
  %2469 = vmatprep.subr.mxu0 0.0
  %2470 = vmatpush1.msra.mxu0 0.0
  %2471 = vmatprep.subr.mxu0 0.0
  %2472 = vmatpush1.msra.mxu0 0.0
  %2473 = vmatprep.subr.mxu0 0.0
  %2474 = vmatpush1.msra.mxu0 0.0
  %2475 = vmatprep.subr.mxu0 0.0
  %2476 = vmatpush1.msra.mxu0 0.0
  %2477 = vmatprep.subr.mxu0 0.0
  %2478 = vmatpush1.msra.mxu0 0.0
  %2479 = vmatprep.subr.mxu0 0.0
  %2480 = vmatpush1.msra.mxu0 0.0
  %2481 = vmatprep.subr.mxu0 0.0
  %2482 = vmatpush1.msra.mxu0 0.0
  %2483 = vmatprep.subr.mxu0 0.0
  %2484 = vmatpush1.msra.mxu0 0.0
  %2485 = vmatprep.subr.mxu0 0.0
  %2486 = vmatpush1.msra.mxu0 0.0
  %2487 = vmatprep.subr.mxu0 0.0
  %2488 = vmatpush1.msra.mxu0 0.0
  %2489 = vmatprep.subr.mxu0 0.0
  %2490 = vmatpush1.msra.mxu0 0.0
  %2491 = vmatprep.subr.mxu0 0.0
  %2492 = vmatpush1.msra.mxu0 0.0
  %2493 = vmatprep.subr.mxu0 0.0
  %2494 = vmatpush1.msra.mxu0 0.0
  %2495 = vmatprep.subr.mxu0 0.0
  %2496 = vmatpush1.msra.mxu0 0.0
  %2497 = vmatprep.subr.mxu0 0.0
  %2498 = vmatpush1.msra.mxu0 0.0
  %2499 = vmatprep.subr.mxu0 0.0
  %2500 = vmatpush1.msra.mxu0 0.0
  %2501 = vmatprep.mubr.f32.mxu0 0.0
  %2502 = vmatmul.mubr.f32.gmra.mrb[0].mxu0 %v2435
  %v2503 = vpop.f32.mrb[0].mxu0
  %v2504 = vadd.f32 %v176, %v2503
  %v2505 = vpop.f32.mrb[0].mxu0
  %2506 = vdwg.mxu0
  %v2508 = vrot.slane %v2504, 4
  %v2509 = vrot.slane %v2504, 5
  %v2510 = vrot.slane %v2504, 6
  %v2511 = vrot.slane %v2504, 7
  %v2516 = vadd.f32 %v133, %v2508
  %v2517 = vadd.f32 %v139, %v2509
  %v2518 = vadd.f32 %v145, %v2510
  %v2519 = vadd.f32 %v151, %v2511
  %v2520 = vxor.u32 %v2516, 2147483648
  %v2521 = vxor.u32 %v2517, 2147483648
  %v2522 = vxor.u32 %v2518, 2147483648
  %v2523 = vxor.u32 %v2519, 2147483648
  %v2524 = vmul.f32 %v2520, 1.442695
  %v2525 = vpow.pop %v2524
  %v2526 = vmul.f32 %v2521, 1.442695
  %v2527 = vpow.pop %v2526
  %v2528 = vmul.f32 %v2522, 1.442695
  %v2529 = vpow.pop %v2528
  %v2530 = vmul.f32 %v2523, 1.442695
  %v2531 = vpow.pop %v2530
  %v2532 = vadd.f32 %v2525, 1.0
  %v2533 = vadd.f32 %v2527, 1.0
  %v2534 = vadd.f32 %v2529, 1.0
  %v2535 = vadd.f32 %v2531, 1.0
  %v2536 = vrcp.pop %v2532
  %v2537 = vmul.f32 1.0, %v2536
  %v2538 = vrcp.pop %v2533
  %v2539 = vmul.f32 1.0, %v2538
  %v2540 = vrcp.pop %v2534
  %v2541 = vmul.f32 1.0, %v2540
  %v2542 = vrcp.pop %v2535
  %v2543 = vmul.f32 1.0, %v2542
  %2544 = vrot.lane.b32.xlu0 %v2508, 64
  %v2545 = vpop.permute.xlu0 %2544
  %2546 = vrot.lane.b32.xlu0 %v2509, 64
  %v2547 = vpop.permute.xlu0 %2546
  %2548 = vrot.lane.b32.xlu0 %v2510, 64
  %v2549 = vpop.permute.xlu0 %2548
  %2550 = vrot.lane.b32.xlu0 %v2511, 64
  %v2551 = vpop.permute.xlu0 %2550
  %v2556 = vmul.f32 %v2537, %v2545
  %v2557 = vmul.f32 %v2539, %v2547
  %v2558 = vmul.f32 %v2541, %v2549
  %v2559 = vmul.f32 %v2543, %v2551
  %2564 = vrot.lane.b32.xlu0 %v2556, 64
  %v2565 = vpop.permute.xlu0 %2564
  %2566 = vrot.lane.b32.xlu0 %v2557, 64
  %v2567 = vpop.permute.xlu0 %2566
  %2568 = vrot.lane.b32.xlu0 %v2558, 64
  %v2569 = vpop.permute.xlu0 %2568
  %2570 = vrot.lane.b32.xlu0 %v2559, 64
  %v2571 = vpop.permute.xlu0 %2570
  %v2576 = vadd.f32 %v133, %v2565
  %v2577 = vadd.f32 %v139, %v2567
  %v2578 = vadd.f32 %v145, %v2569
  %v2579 = vadd.f32 %v151, %v2571
  %v2580 = vtanh.pop %v2576
  %v2581 = vtanh.pop %v2577
  %v2582 = vtanh.pop %v2578
  %v2583 = vtanh.pop %v2579
  %v2584 = vsub.f32 1.0, %v2537
  %v2585 = vsub.f32 1.0, %v2539
  %v2586 = vsub.f32 1.0, %v2541
  %v2587 = vsub.f32 1.0, %v2543
  %2592 = vrot.lane.b32.xlu0 %v2580, 96
  %v2593 = vpop.permute.xlu0 %2592
  %2594 = vrot.lane.b32.xlu0 %v2581, 96
  %v2595 = vpop.permute.xlu0 %2594
  %2596 = vrot.lane.b32.xlu0 %v2582, 96
  %v2597 = vpop.permute.xlu0 %2596
  %2598 = vrot.lane.b32.xlu0 %v2583, 96
  %v2599 = vpop.permute.xlu0 %2598
  %v2604 = vmul.f32 %v2584, %v2593
  %v2605 = vmul.f32 %v2585, %v2595
  %v2606 = vmul.f32 %v2586, %v2597
  %v2607 = vmul.f32 %v2587, %v2599
  %v2608 = vrot.slane %v2093, 4
  %v2609 = vrot.slane %v2093, 5
  %v2610 = vrot.slane %v2093, 6
  %v2611 = vrot.slane %v2093, 7
  %2612 = vrot.lane.b32.xlu0 %v2608, 32
  %v2613 = vpop.permute.xlu0 %2612
  %2614 = vrot.lane.b32.xlu0 %v2609, 32
  %v2615 = vpop.permute.xlu0 %2614
  %2616 = vrot.lane.b32.xlu0 %v2610, 32
  %v2617 = vpop.permute.xlu0 %2616
  %2618 = vrot.lane.b32.xlu0 %v2611, 32
  %v2619 = vpop.permute.xlu0 %2618
  %v2624 = vmul.f32 %v2537, %v2613
  %v2625 = vmul.f32 %v2539, %v2615
  %v2626 = vmul.f32 %v2541, %v2617
  %v2627 = vmul.f32 %v2543, %v2619
  %v2628 = vadd.f32 %v2604, %v2624
  %v2629 = vadd.f32 %v2605, %v2625
  %v2630 = vadd.f32 %v2606, %v2626
  %v2631 = vadd.f32 %v2607, %v2627
  %v2636 = vrot.slane %v2628, 4
  %v2637 = vrot.slane %v2629, 3
  %v2638 = vsel %vm369, %v2637, %v2636
  %v2639 = vrot.slane %v2630, 2
  %v2640 = vsel %vm372, %v2639, %v2638
  %v2641 = vrot.slane %v2631, 1
  %v2642 = vsel %vm375, %v2641, %v2640
  %2643 = vrot.lane.b32.xlu0 %v2642, 96
  %v2644 = vpop.permute.xlu0 %2643
  %v2646 = vmul.f32 %v2322, %v2644
  %v2647 = vmul.f32 %v2341, %v2093
  %v2648 = vadd.f32 %v2646, %v2647
  %v2649 = vsel %vm53, %v2344, 0
  %2651 = vmatprep.subr.mxu0 0.0
  %2652 = vmatpush1.msra.mxu0 %v161
  %2653 = vmatprep.subr.mxu0 0.0
  %2654 = vmatpush1.msra.mxu0 %v162
  %2655 = vmatprep.subr.mxu0 0.0
  %2656 = vmatpush1.msra.mxu0 %v163
  %2657 = vmatprep.subr.mxu0 0.0
  %2658 = vmatpush1.msra.mxu0 %v164
  %2659 = vmatprep.subr.mxu0 0.0
  %2660 = vmatpush1.msra.mxu0 0.0
  %2661 = vmatprep.subr.mxu0 0.0
  %2662 = vmatpush1.msra.mxu0 0.0
  %2663 = vmatprep.subr.mxu0 0.0
  %2664 = vmatpush1.msra.mxu0 0.0
  %2665 = vmatprep.subr.mxu0 0.0
  %2666 = vmatpush1.msra.mxu0 0.0
  %2667 = vmatprep.subr.mxu0 0.0
  %2668 = vmatpush1.msra.mxu0 0.0
  %2669 = vmatprep.subr.mxu0 0.0
  %2670 = vmatpush1.msra.mxu0 0.0
  %2671 = vmatprep.subr.mxu0 0.0
  %2672 = vmatpush1.msra.mxu0 0.0
  %2673 = vmatprep.subr.mxu0 0.0
  %2674 = vmatpush1.msra.mxu0 0.0
  %2675 = vmatprep.subr.mxu0 0.0
  %2676 = vmatpush1.msra.mxu0 0.0
  %2677 = vmatprep.subr.mxu0 0.0
  %2678 = vmatpush1.msra.mxu0 0.0
  %2679 = vmatprep.subr.mxu0 0.0
  %2680 = vmatpush1.msra.mxu0 0.0
  %2681 = vmatprep.subr.mxu0 0.0
  %2682 = vmatpush1.msra.mxu0 0.0
  %2683 = vmatprep.subr.mxu0 0.0
  %2684 = vmatpush1.msra.mxu0 0.0
  %2685 = vmatprep.subr.mxu0 0.0
  %2686 = vmatpush1.msra.mxu0 0.0
  %2687 = vmatprep.subr.mxu0 0.0
  %2688 = vmatpush1.msra.mxu0 0.0
  %2689 = vmatprep.subr.mxu0 0.0
  %2690 = vmatpush1.msra.mxu0 0.0
  %2691 = vmatprep.subr.mxu0 0.0
  %2692 = vmatpush1.msra.mxu0 0.0
  %2693 = vmatprep.subr.mxu0 0.0
  %2694 = vmatpush1.msra.mxu0 0.0
  %2695 = vmatprep.subr.mxu0 0.0
  %2696 = vmatpush1.msra.mxu0 0.0
  %2697 = vmatprep.subr.mxu0 0.0
  %2698 = vmatpush1.msra.mxu0 0.0
  %2699 = vmatprep.subr.mxu0 0.0
  %2700 = vmatpush1.msra.mxu0 0.0
  %2701 = vmatprep.subr.mxu0 0.0
  %2702 = vmatpush1.msra.mxu0 0.0
  %2703 = vmatprep.subr.mxu0 0.0
  %2704 = vmatpush1.msra.mxu0 0.0
  %2705 = vmatprep.subr.mxu0 0.0
  %2706 = vmatpush1.msra.mxu0 0.0
  %2707 = vmatprep.subr.mxu0 0.0
  %2708 = vmatpush1.msra.mxu0 0.0
  %2709 = vmatprep.subr.mxu0 0.0
  %2710 = vmatpush1.msra.mxu0 0.0
  %2711 = vmatprep.subr.mxu0 0.0
  %2712 = vmatpush1.msra.mxu0 0.0
  %2713 = vmatprep.subr.mxu0 0.0
  %2714 = vmatpush1.msra.mxu0 0.0
  %2715 = vmatprep.mubr.f32.mxu0 0.0
  %2716 = vmatmul.mubr.f32.gmra.mrb[0].mxu0 %v2649
  %v2717 = vpop.f32.mrb[0].mxu0
  %v2718 = vadd.f32 %v393, %v2717
  %v2719 = vpop.f32.mrb[0].mxu0
  %2720 = vdwg.mxu0
  %v2722 = vrot.slane %v2718, 5
  %v2723 = vrot.slane %v2718, 6
  %v2724 = vrot.slane %v2718, 7
  %2725 = vrot.lane.b32.xlu0 %v2722, 96
  %v2726 = vpop.permute.xlu0 %2725
  %2727 = vrot.lane.b32.xlu0 %v2723, 96
  %v2728 = vpop.permute.xlu0 %2727
  %2729 = vrot.lane.b32.xlu0 %v2724, 96
  %v2730 = vpop.permute.xlu0 %2729
  %2731 = vrot.lane.b32.xlu0 %v2718, 96
  %v2732 = vpop.permute.xlu0 %2731
  %v2737 = vadd.f32 %v133, %v2726
  %v2738 = vadd.f32 %v139, %v2728
  %v2739 = vadd.f32 %v145, %v2730
  %v2740 = vadd.f32 %v151, %v2732
  %v2741 = vxor.u32 %v2737, 2147483648
  %v2742 = vxor.u32 %v2738, 2147483648
  %v2743 = vxor.u32 %v2739, 2147483648
  %v2744 = vxor.u32 %v2740, 2147483648
  %v2745 = vmul.f32 %v2741, 1.442695
  %v2746 = vpow.pop %v2745
  %v2747 = vmul.f32 %v2742, 1.442695
  %v2748 = vpow.pop %v2747
  %v2749 = vmul.f32 %v2743, 1.442695
  %v2750 = vpow.pop %v2749
  %v2751 = vmul.f32 %v2744, 1.442695
  %v2752 = vpow.pop %v2751
  %v2753 = vadd.f32 %v2746, 1.0
  %v2754 = vadd.f32 %v2748, 1.0
  %v2755 = vadd.f32 %v2750, 1.0
  %v2756 = vadd.f32 %v2752, 1.0
  %v2757 = vrcp.pop %v2753
  %v2758 = vmul.f32 1.0, %v2757
  %v2759 = vrcp.pop %v2754
  %v2760 = vmul.f32 1.0, %v2759
  %v2761 = vrcp.pop %v2755
  %v2762 = vmul.f32 1.0, %v2761
  %v2763 = vrcp.pop %v2756
  %v2764 = vmul.f32 1.0, %v2763
  %v2765 = vadd.f32 %v135, %v2726
  %v2766 = vadd.f32 %v141, %v2728
  %v2767 = vadd.f32 %v147, %v2730
  %v2768 = vadd.f32 %v153, %v2732
  %v2769 = vxor.u32 %v2765, 2147483648
  %v2770 = vxor.u32 %v2766, 2147483648
  %v2771 = vxor.u32 %v2767, 2147483648
  %v2772 = vxor.u32 %v2768, 2147483648
  %v2773 = vmul.f32 %v2769, 1.442695
  %v2774 = vpow.pop %v2773
  %v2775 = vmul.f32 %v2770, 1.442695
  %v2776 = vpow.pop %v2775
  %v2777 = vmul.f32 %v2771, 1.442695
  %v2778 = vpow.pop %v2777
  %v2779 = vmul.f32 %v2772, 1.442695
  %v2780 = vpow.pop %v2779
  %v2781 = vadd.f32 %v2774, 1.0
  %v2782 = vadd.f32 %v2776, 1.0
  %v2783 = vadd.f32 %v2778, 1.0
  %v2784 = vadd.f32 %v2780, 1.0
  %v2785 = vrcp.pop %v2781
  %v2786 = vmul.f32 1.0, %v2785
  %v2787 = vrcp.pop %v2782
  %v2788 = vmul.f32 1.0, %v2787
  %v2789 = vrcp.pop %v2783
  %v2790 = vmul.f32 1.0, %v2789
  %v2791 = vrcp.pop %v2784
  %v2792 = vmul.f32 1.0, %v2791
  %2793 = vrot.lane.b32.xlu0 %v2722, 32
  %v2794 = vpop.permute.xlu0 %2793
  %2795 = vrot.lane.b32.xlu0 %v2723, 32
  %v2796 = vpop.permute.xlu0 %2795
  %2797 = vrot.lane.b32.xlu0 %v2724, 32
  %v2798 = vpop.permute.xlu0 %2797
  %2799 = vrot.lane.b32.xlu0 %v2718, 32
  %v2800 = vpop.permute.xlu0 %2799
  %v2805 = vmul.f32 %v2758, %v2794
  %v2806 = vmul.f32 %v2760, %v2796
  %v2807 = vmul.f32 %v2762, %v2798
  %v2808 = vmul.f32 %v2764, %v2800
  %2813 = vrot.lane.b32.xlu0 %v2805, 64
  %v2814 = vpop.permute.xlu0 %2813
  %2815 = vrot.lane.b32.xlu0 %v2806, 64
  %v2816 = vpop.permute.xlu0 %2815
  %2817 = vrot.lane.b32.xlu0 %v2807, 64
  %v2818 = vpop.permute.xlu0 %2817
  %2819 = vrot.lane.b32.xlu0 %v2808, 64
  %v2820 = vpop.permute.xlu0 %2819
  %v2825 = vadd.f32 %v135, %v2814
  %v2826 = vadd.f32 %v141, %v2816
  %v2827 = vadd.f32 %v147, %v2818
  %v2828 = vadd.f32 %v153, %v2820
  %v2829 = vtanh.pop %v2825
  %v2830 = vtanh.pop %v2826
  %v2831 = vtanh.pop %v2827
  %v2832 = vtanh.pop %v2828
  %v2833 = vsub.f32 1.0, %v2786
  %v2834 = vsub.f32 1.0, %v2788
  %v2835 = vsub.f32 1.0, %v2790
  %v2836 = vsub.f32 1.0, %v2792
  %2841 = vrot.lane.b32.xlu0 %v2829, 96
  %v2842 = vpop.permute.xlu0 %2841
  %2843 = vrot.lane.b32.xlu0 %v2830, 96
  %v2844 = vpop.permute.xlu0 %2843
  %2845 = vrot.lane.b32.xlu0 %v2831, 96
  %v2846 = vpop.permute.xlu0 %2845
  %2847 = vrot.lane.b32.xlu0 %v2832, 96
  %v2848 = vpop.permute.xlu0 %2847
  %v2853 = vmul.f32 %v2833, %v2842
  %v2854 = vmul.f32 %v2834, %v2844
  %v2855 = vmul.f32 %v2835, %v2846
  %v2856 = vmul.f32 %v2836, %v2848
  %v2857 = vrot.slane %v2344, 5
  %v2858 = vrot.slane %v2344, 6
  %v2859 = vrot.slane %v2344, 7
  %v2864 = vmul.f32 %v2786, %v2857
  %v2865 = vmul.f32 %v2788, %v2858
  %v2866 = vmul.f32 %v2790, %v2859
  %v2867 = vmul.f32 %v2792, %v2344
  %v2868 = vadd.f32 %v2853, %v2864
  %v2869 = vadd.f32 %v2854, %v2865
  %v2870 = vadd.f32 %v2855, %v2866
  %v2871 = vadd.f32 %v2856, %v2867
  %v2876 = vrot.slane %v2868, 3
  %v2877 = vrot.slane %v2869, 2
  %v2878 = vsel %vm369, %v2877, %v2876
  %v2879 = vrot.slane %v2870, 1
  %v2880 = vsel %vm372, %v2879, %v2878
  %v2881 = vsel %vm375, %v2871, %v2880
  %v2883 = vmul.f32 %v2070, %v2881
  %v2884 = vmul.f32 %v2090, %v2344
  %v2885 = vadd.f32 %v2883, %v2884
  %v2888 = vunpack.c.l.s4 1966171168
  %v2889 = vunpack.c.0.s8 %v2888
  %v2890 = vlaneseq
  %v2891 = vshrl.u32 %v2890, 7
  %v2892 = vsub.s32 %v2889, %v2891
  %v2893 = vrot.slane %v2648, %v2892
  %v2894 = vcombine.high %v2893, %v2893
  %v2896 = vunpack.c.l.s4 1966171168
  %v2897 = vunpack.c.0.s8 %v2896
  %v2898 = vlaneseq
  %v2899 = vshrl.u32 %v2898, 7
  %v2900 = vsub.s32 %v2897, %v2899
  %v2901 = vrot.slane %v2893, %v2900
  %v2903 = vunpack.c.l.s4 1966171168
  %v2904 = vunpack.c.0.s8 %v2903
  %v2905 = vlaneseq
  %v2906 = vshrl.u32 %v2905, 7
  %v2907 = vsub.s32 %v2904, %v2906
  %v2908 = vrot.slane %v2894, %v2907
  %v2909 = vcombine.high %v2901, %v2901
  %v2910 = vcombine.high %v2908, %v2908
  %2915 = vst.msk [vmem:[%s8 + $0x4] sm:$0x1] %vm665, %v2901
  %2916 = vst.msk [vmem:[%s8 + $0xc] sm:$0x1] %vm665, %v2908
  %2917 = vst.msk [vmem:[%s8 + $0x14] sm:$0x1] %vm665, %v2909
  %2918 = vst.msk [vmem:[%s8 + $0x1c] sm:$0x1] %vm665, %v2910
  %v2921 = vunpack.c.l.s4 1966171168
  %v2922 = vunpack.c.0.s8 %v2921
  %v2923 = vlaneseq
  %v2924 = vshrl.u32 %v2923, 7
  %v2925 = vsub.s32 %v2922, %v2924
  %v2926 = vrot.slane %v2885, %v2925
  %v2927 = vcombine.high %v2926, %v2926
  %v2929 = vunpack.c.l.s4 1966171168
  %v2930 = vunpack.c.0.s8 %v2929
  %v2931 = vlaneseq
  %v2932 = vshrl.u32 %v2931, 7
  %v2933 = vsub.s32 %v2930, %v2932
  %v2934 = vrot.slane %v2926, %v2933
  %v2936 = vunpack.c.l.s4 1966171168
  %v2937 = vunpack.c.0.s8 %v2936
  %v2938 = vlaneseq
  %v2939 = vshrl.u32 %v2938, 7
  %v2940 = vsub.s32 %v2937, %v2939
  %v2941 = vrot.slane %v2927, %v2940
  %v2942 = vcombine.high %v2934, %v2934
  %v2943 = vcombine.high %v2941, %v2941
  %v2944 = vlaneseq
  %v2945 = vshrl.u32 %v2944, 7
  %v2946 = vsub.s32 0, %v2945
  %v2947 = vrot.slane %v2934, %v2946
  %v2948 = vlaneseq
  %v2949 = vshrl.u32 %v2948, 7
  %v2950 = vsub.s32 0, %v2949
  %v2951 = vrot.slane %v2941, %v2950
  %v2952 = vlaneseq
  %v2953 = vshrl.u32 %v2952, 7
  %v2954 = vsub.s32 0, %v2953
  %v2955 = vrot.slane %v2942, %v2954
  %v2956 = vlaneseq
  %v2957 = vshrl.u32 %v2956, 7
  %v2958 = vsub.s32 0, %v2957
  %v2959 = vrot.slane %v2943, %v2958
  %2960 = vrot.lane.b32.xlu0 %v2947, 32
  %v2961 = vpop.permute.xlu0 %2960
  %2962 = vrot.lane.b32.xlu0 %v2951, 32
  %v2963 = vpop.permute.xlu0 %2962
  %2964 = vrot.lane.b32.xlu0 %v2955, 32
  %v2965 = vpop.permute.xlu0 %2964
  %2966 = vrot.lane.b32.xlu0 %v2959, 32
  %v2967 = vpop.permute.xlu0 %2966
  %2972 = vst.msk [vmem:[%s8 + $0x3] sm:$0x1] %vm723, %v2961
  %2973 = vst.msk [vmem:[%s8 + $0xb] sm:$0x1] %vm723, %v2963
  %2974 = vst.msk [vmem:[%s8 + $0x13] sm:$0x1] %vm723, %v2965
  %2975 = vst.msk [vmem:[%s8 + $0x1b] sm:$0x1] %vm723, %v2967
  %v2976 = vsel %vm53, %v2648, 0
  %2978 = vmatprep.subr.mxu0 0.0
  %2979 = vmatpush1.msra.mxu0 %v156
  %2980 = vmatprep.subr.mxu0 0.0
  %2981 = vmatpush1.msra.mxu0 %v157
  %2982 = vmatprep.subr.mxu0 0.0
  %2983 = vmatpush1.msra.mxu0 %v158
  %2984 = vmatprep.subr.mxu0 0.0
  %2985 = vmatpush1.msra.mxu0 %v159
  %2986 = vmatprep.subr.mxu0 0.0
  %2987 = vmatpush1.msra.mxu0 0.0
  %2988 = vmatprep.subr.mxu0 0.0
  %2989 = vmatpush1.msra.mxu0 0.0
  %2990 = vmatprep.subr.mxu0 0.0
  %2991 = vmatpush1.msra.mxu0 0.0
  %2992 = vmatprep.subr.mxu0 0.0
  %2993 = vmatpush1.msra.mxu0 0.0
  %2994 = vmatprep.subr.mxu0 0.0
  %2995 = vmatpush1.msra.mxu0 0.0
  %2996 = vmatprep.subr.mxu0 0.0
  %2997 = vmatpush1.msra.mxu0 0.0
  %2998 = vmatprep.subr.mxu0 0.0
  %2999 = vmatpush1.msra.mxu0 0.0
  %3000 = vmatprep.subr.mxu0 0.0
  %3001 = vmatpush1.msra.mxu0 0.0
  %3002 = vmatprep.subr.mxu0 0.0
  %3003 = vmatpush1.msra.mxu0 0.0
  %3004 = vmatprep.subr.mxu0 0.0
  %3005 = vmatpush1.msra.mxu0 0.0
  %3006 = vmatprep.subr.mxu0 0.0
  %3007 = vmatpush1.msra.mxu0 0.0
  %3008 = vmatprep.subr.mxu0 0.0
  %3009 = vmatpush1.msra.mxu0 0.0
  %3010 = vmatprep.subr.mxu0 0.0
  %3011 = vmatpush1.msra.mxu0 0.0
  %3012 = vmatprep.subr.mxu0 0.0
  %3013 = vmatpush1.msra.mxu0 0.0
  %3014 = vmatprep.subr.mxu0 0.0
  %3015 = vmatpush1.msra.mxu0 0.0
  %3016 = vmatprep.subr.mxu0 0.0
  %3017 = vmatpush1.msra.mxu0 0.0
  %3018 = vmatprep.subr.mxu0 0.0
  %3019 = vmatpush1.msra.mxu0 0.0
  %3020 = vmatprep.subr.mxu0 0.0
  %3021 = vmatpush1.msra.mxu0 0.0
  %3022 = vmatprep.subr.mxu0 0.0
  %3023 = vmatpush1.msra.mxu0 0.0
  %3024 = vmatprep.subr.mxu0 0.0
  %3025 = vmatpush1.msra.mxu0 0.0
  %3026 = vmatprep.subr.mxu0 0.0
  %3027 = vmatpush1.msra.mxu0 0.0
  %3028 = vmatprep.subr.mxu0 0.0
  %3029 = vmatpush1.msra.mxu0 0.0
  %3030 = vmatprep.subr.mxu0 0.0
  %3031 = vmatpush1.msra.mxu0 0.0
  %3032 = vmatprep.subr.mxu0 0.0
  %3033 = vmatpush1.msra.mxu0 0.0
  %3034 = vmatprep.subr.mxu0 0.0
  %3035 = vmatpush1.msra.mxu0 0.0
  %3036 = vmatprep.subr.mxu0 0.0
  %3037 = vmatpush1.msra.mxu0 0.0
  %3038 = vmatprep.subr.mxu0 0.0
  %3039 = vmatpush1.msra.mxu0 0.0
  %3040 = vmatprep.subr.mxu0 0.0
  %3041 = vmatpush1.msra.mxu0 0.0
  %3042 = vmatprep.mubr.f32.mxu0 0.0
  %3043 = vmatmul.mubr.f32.gmra.mrb[0].mxu0 %v2976
  %v3044 = vpop.f32.mrb[0].mxu0
  %v3045 = vadd.f32 %v176, %v3044
  %v3046 = vpop.f32.mrb[0].mxu0
  %3047 = vdwg.mxu0
  %v3049 = vrot.slane %v3045, 3
  %v3050 = vrot.slane %v3045, 4
  %v3051 = vrot.slane %v3045, 5
  %v3052 = vrot.slane %v3045, 6
  %v3057 = vadd.f32 %v133, %v3049
  %v3058 = vadd.f32 %v139, %v3050
  %v3059 = vadd.f32 %v145, %v3051
  %v3060 = vadd.f32 %v151, %v3052
  %v3061 = vxor.u32 %v3057, 2147483648
  %v3062 = vxor.u32 %v3058, 2147483648
  %v3063 = vxor.u32 %v3059, 2147483648
  %v3064 = vxor.u32 %v3060, 2147483648
  %v3065 = vmul.f32 %v3061, 1.442695
  %v3066 = vpow.pop %v3065
  %v3067 = vmul.f32 %v3062, 1.442695
  %v3068 = vpow.pop %v3067
  %v3069 = vmul.f32 %v3063, 1.442695
  %v3070 = vpow.pop %v3069
  %v3071 = vmul.f32 %v3064, 1.442695
  %v3072 = vpow.pop %v3071
  %v3073 = vadd.f32 %v3066, 1.0
  %v3074 = vadd.f32 %v3068, 1.0
  %v3075 = vadd.f32 %v3070, 1.0
  %v3076 = vadd.f32 %v3072, 1.0
  %v3077 = vrcp.pop %v3073
  %v3078 = vmul.f32 1.0, %v3077
  %v3079 = vrcp.pop %v3074
  %v3080 = vmul.f32 1.0, %v3079
  %v3081 = vrcp.pop %v3075
  %v3082 = vmul.f32 1.0, %v3081
  %v3083 = vrcp.pop %v3076
  %v3084 = vmul.f32 1.0, %v3083
  %3085 = vrot.lane.b32.xlu0 %v3049, 64
  %v3086 = vpop.permute.xlu0 %3085
  %3087 = vrot.lane.b32.xlu0 %v3050, 64
  %v3088 = vpop.permute.xlu0 %3087
  %3089 = vrot.lane.b32.xlu0 %v3051, 64
  %v3090 = vpop.permute.xlu0 %3089
  %3091 = vrot.lane.b32.xlu0 %v3052, 64
  %v3092 = vpop.permute.xlu0 %3091
  %v3097 = vmul.f32 %v3078, %v3086
  %v3098 = vmul.f32 %v3080, %v3088
  %v3099 = vmul.f32 %v3082, %v3090
  %v3100 = vmul.f32 %v3084, %v3092
  %3105 = vrot.lane.b32.xlu0 %v3097, 64
  %v3106 = vpop.permute.xlu0 %3105
  %3107 = vrot.lane.b32.xlu0 %v3098, 64
  %v3108 = vpop.permute.xlu0 %3107
  %3109 = vrot.lane.b32.xlu0 %v3099, 64
  %v3110 = vpop.permute.xlu0 %3109
  %3111 = vrot.lane.b32.xlu0 %v3100, 64
  %v3112 = vpop.permute.xlu0 %3111
  %v3117 = vadd.f32 %v133, %v3106
  %v3118 = vadd.f32 %v139, %v3108
  %v3119 = vadd.f32 %v145, %v3110
  %v3120 = vadd.f32 %v151, %v3112
  %v3121 = vtanh.pop %v3117
  %v3122 = vtanh.pop %v3118
  %v3123 = vtanh.pop %v3119
  %v3124 = vtanh.pop %v3120
  %v3125 = vsub.f32 1.0, %v3078
  %v3126 = vsub.f32 1.0, %v3080
  %v3127 = vsub.f32 1.0, %v3082
  %v3128 = vsub.f32 1.0, %v3084
  %3133 = vrot.lane.b32.xlu0 %v3121, 96
  %v3134 = vpop.permute.xlu0 %3133
  %3135 = vrot.lane.b32.xlu0 %v3122, 96
  %v3136 = vpop.permute.xlu0 %3135
  %3137 = vrot.lane.b32.xlu0 %v3123, 96
  %v3138 = vpop.permute.xlu0 %3137
  %3139 = vrot.lane.b32.xlu0 %v3124, 96
  %v3140 = vpop.permute.xlu0 %3139
  %v3145 = vmul.f32 %v3125, %v3134
  %v3146 = vmul.f32 %v3126, %v3136
  %v3147 = vmul.f32 %v3127, %v3138
  %v3148 = vmul.f32 %v3128, %v3140
  %v3149 = vrot.slane %v2648, 3
  %v3150 = vrot.slane %v2648, 4
  %v3151 = vrot.slane %v2648, 5
  %v3152 = vrot.slane %v2648, 6
  %3153 = vrot.lane.b32.xlu0 %v3149, 32
  %v3154 = vpop.permute.xlu0 %3153
  %3155 = vrot.lane.b32.xlu0 %v3150, 32
  %v3156 = vpop.permute.xlu0 %3155
  %3157 = vrot.lane.b32.xlu0 %v3151, 32
  %v3158 = vpop.permute.xlu0 %3157
  %3159 = vrot.lane.b32.xlu0 %v3152, 32
  %v3160 = vpop.permute.xlu0 %3159
  %v3165 = vmul.f32 %v3078, %v3154
  %v3166 = vmul.f32 %v3080, %v3156
  %v3167 = vmul.f32 %v3082, %v3158
  %v3168 = vmul.f32 %v3084, %v3160
  %v3169 = vadd.f32 %v3145, %v3165
  %v3170 = vadd.f32 %v3146, %v3166
  %v3171 = vadd.f32 %v3147, %v3167
  %v3172 = vadd.f32 %v3148, %v3168
  %v3177 = vrot.slane %v3169, 5
  %v3178 = vrot.slane %v3170, 4
  %v3179 = vsel %vm369, %v3178, %v3177
  %v3180 = vrot.slane %v3171, 3
  %v3181 = vsel %vm372, %v3180, %v3179
  %v3182 = vrot.slane %v3172, 2
  %v3183 = vsel %vm375, %v3182, %v3181
  %3184 = vrot.lane.b32.xlu0 %v3183, 96
  %v3185 = vpop.permute.xlu0 %3184
  %v3187 = vmul.f32 %v1753, %v3185
  %v3188 = vmul.f32 %v1772, %v2648
  %v3189 = vadd.f32 %v3187, %v3188
  %v3190 = vsel %vm53, %v2885, 0
  %3192 = vmatprep.subr.mxu0 0.0
  %3193 = vmatpush1.msra.mxu0 %v161
  %3194 = vmatprep.subr.mxu0 0.0
  %3195 = vmatpush1.msra.mxu0 %v162
  %3196 = vmatprep.subr.mxu0 0.0
  %3197 = vmatpush1.msra.mxu0 %v163
  %3198 = vmatprep.subr.mxu0 0.0
  %3199 = vmatpush1.msra.mxu0 %v164
  %3200 = vmatprep.subr.mxu0 0.0
  %3201 = vmatpush1.msra.mxu0 0.0
  %3202 = vmatprep.subr.mxu0 0.0
  %3203 = vmatpush1.msra.mxu0 0.0
  %3204 = vmatprep.subr.mxu0 0.0
  %3205 = vmatpush1.msra.mxu0 0.0
  %3206 = vmatprep.subr.mxu0 0.0
  %3207 = vmatpush1.msra.mxu0 0.0
  %3208 = vmatprep.subr.mxu0 0.0
  %3209 = vmatpush1.msra.mxu0 0.0
  %3210 = vmatprep.subr.mxu0 0.0
  %3211 = vmatpush1.msra.mxu0 0.0
  %3212 = vmatprep.subr.mxu0 0.0
  %3213 = vmatpush1.msra.mxu0 0.0
  %3214 = vmatprep.subr.mxu0 0.0
  %3215 = vmatpush1.msra.mxu0 0.0
  %3216 = vmatprep.subr.mxu0 0.0
  %3217 = vmatpush1.msra.mxu0 0.0
  %3218 = vmatprep.subr.mxu0 0.0
  %3219 = vmatpush1.msra.mxu0 0.0
  %3220 = vmatprep.subr.mxu0 0.0
  %3221 = vmatpush1.msra.mxu0 0.0
  %3222 = vmatprep.subr.mxu0 0.0
  %3223 = vmatpush1.msra.mxu0 0.0
  %3224 = vmatprep.subr.mxu0 0.0
  %3225 = vmatpush1.msra.mxu0 0.0
  %3226 = vmatprep.subr.mxu0 0.0
  %3227 = vmatpush1.msra.mxu0 0.0
  %3228 = vmatprep.subr.mxu0 0.0
  %3229 = vmatpush1.msra.mxu0 0.0
  %3230 = vmatprep.subr.mxu0 0.0
  %3231 = vmatpush1.msra.mxu0 0.0
  %3232 = vmatprep.subr.mxu0 0.0
  %3233 = vmatpush1.msra.mxu0 0.0
  %3234 = vmatprep.subr.mxu0 0.0
  %3235 = vmatpush1.msra.mxu0 0.0
  %3236 = vmatprep.subr.mxu0 0.0
  %3237 = vmatpush1.msra.mxu0 0.0
  %3238 = vmatprep.subr.mxu0 0.0
  %3239 = vmatpush1.msra.mxu0 0.0
  %3240 = vmatprep.subr.mxu0 0.0
  %3241 = vmatpush1.msra.mxu0 0.0
  %3242 = vmatprep.subr.mxu0 0.0
  %3243 = vmatpush1.msra.mxu0 0.0
  %3244 = vmatprep.subr.mxu0 0.0
  %3245 = vmatpush1.msra.mxu0 0.0
  %3246 = vmatprep.subr.mxu0 0.0
  %3247 = vmatpush1.msra.mxu0 0.0
  %3248 = vmatprep.subr.mxu0 0.0
  %3249 = vmatpush1.msra.mxu0 0.0
  %3250 = vmatprep.subr.mxu0 0.0
  %3251 = vmatpush1.msra.mxu0 0.0
  %3252 = vmatprep.subr.mxu0 0.0
  %3253 = vmatpush1.msra.mxu0 0.0
  %3254 = vmatprep.subr.mxu0 0.0
  %3255 = vmatpush1.msra.mxu0 0.0
  %3256 = vmatprep.mubr.f32.mxu0 0.0
  %3257 = vmatmul.mubr.f32.gmra.mrb[0].mxu0 %v3190
  %v3258 = vpop.f32.mrb[0].mxu0
  %v3259 = vadd.f32 %v393, %v3258
  %v3260 = vpop.f32.mrb[0].mxu0
  %3261 = vdwg.mxu0
  %v3263 = vrot.slane %v3259, 6
  %v3264 = vrot.slane %v3259, 7
  %v3265 = vrot.slane %v3259, 1
  %3266 = vrot.lane.b32.xlu0 %v3263, 96
  %v3267 = vpop.permute.xlu0 %3266
  %3268 = vrot.lane.b32.xlu0 %v3264, 96
  %v3269 = vpop.permute.xlu0 %3268
  %3270 = vrot.lane.b32.xlu0 %v3259, 96
  %v3271 = vpop.permute.xlu0 %3270
  %3272 = vrot.lane.b32.xlu0 %v3265, 96
  %v3273 = vpop.permute.xlu0 %3272
  %v3278 = vadd.f32 %v133, %v3267
  %v3279 = vadd.f32 %v139, %v3269
  %v3280 = vadd.f32 %v145, %v3271
  %v3281 = vadd.f32 %v151, %v3273
  %v3282 = vxor.u32 %v3278, 2147483648
  %v3283 = vxor.u32 %v3279, 2147483648
  %v3284 = vxor.u32 %v3280, 2147483648
  %v3285 = vxor.u32 %v3281, 2147483648
  %v3286 = vmul.f32 %v3282, 1.442695
  %v3287 = vpow.pop %v3286
  %v3288 = vmul.f32 %v3283, 1.442695
  %v3289 = vpow.pop %v3288
  %v3290 = vmul.f32 %v3284, 1.442695
  %v3291 = vpow.pop %v3290
  %v3292 = vmul.f32 %v3285, 1.442695
  %v3293 = vpow.pop %v3292
  %v3294 = vadd.f32 %v3287, 1.0
  %v3295 = vadd.f32 %v3289, 1.0
  %v3296 = vadd.f32 %v3291, 1.0
  %v3297 = vadd.f32 %v3293, 1.0
  %v3298 = vrcp.pop %v3294
  %v3299 = vmul.f32 1.0, %v3298
  %v3300 = vrcp.pop %v3295
  %v3301 = vmul.f32 1.0, %v3300
  %v3302 = vrcp.pop %v3296
  %v3303 = vmul.f32 1.0, %v3302
  %v3304 = vrcp.pop %v3297
  %v3305 = vmul.f32 1.0, %v3304
  %v3306 = vadd.f32 %v135, %v3267
  %v3307 = vadd.f32 %v141, %v3269
  %v3308 = vadd.f32 %v147, %v3271
  %v3309 = vadd.f32 %v153, %v3273
  %v3310 = vxor.u32 %v3306, 2147483648
  %v3311 = vxor.u32 %v3307, 2147483648
  %v3312 = vxor.u32 %v3308, 2147483648
  %v3313 = vxor.u32 %v3309, 2147483648
  %v3314 = vmul.f32 %v3310, 1.442695
  %v3315 = vpow.pop %v3314
  %v3316 = vmul.f32 %v3311, 1.442695
  %v3317 = vpow.pop %v3316
  %v3318 = vmul.f32 %v3312, 1.442695
  %v3319 = vpow.pop %v3318
  %v3320 = vmul.f32 %v3313, 1.442695
  %v3321 = vpow.pop %v3320
  %v3322 = vadd.f32 %v3315, 1.0
  %v3323 = vadd.f32 %v3317, 1.0
  %v3324 = vadd.f32 %v3319, 1.0
  %v3325 = vadd.f32 %v3321, 1.0
  %v3326 = vrcp.pop %v3322
  %v3327 = vmul.f32 1.0, %v3326
  %v3328 = vrcp.pop %v3323
  %v3329 = vmul.f32 1.0, %v3328
  %v3330 = vrcp.pop %v3324
  %v3331 = vmul.f32 1.0, %v3330
  %v3332 = vrcp.pop %v3325
  %v3333 = vmul.f32 1.0, %v3332
  %3334 = vrot.lane.b32.xlu0 %v3263, 32
  %v3335 = vpop.permute.xlu0 %3334
  %3336 = vrot.lane.b32.xlu0 %v3264, 32
  %v3337 = vpop.permute.xlu0 %3336
  %3338 = vrot.lane.b32.xlu0 %v3259, 32
  %v3339 = vpop.permute.xlu0 %3338
  %3340 = vrot.lane.b32.xlu0 %v3265, 32
  %v3341 = vpop.permute.xlu0 %3340
  %v3346 = vmul.f32 %v3299, %v3335
  %v3347 = vmul.f32 %v3301, %v3337
  %v3348 = vmul.f32 %v3303, %v3339
  %v3349 = vmul.f32 %v3305, %v3341
  %3354 = vrot.lane.b32.xlu0 %v3346, 64
  %v3355 = vpop.permute.xlu0 %3354
  %3356 = vrot.lane.b32.xlu0 %v3347, 64
  %v3357 = vpop.permute.xlu0 %3356
  %3358 = vrot.lane.b32.xlu0 %v3348, 64
  %v3359 = vpop.permute.xlu0 %3358
  %3360 = vrot.lane.b32.xlu0 %v3349, 64
  %v3361 = vpop.permute.xlu0 %3360
  %v3366 = vadd.f32 %v135, %v3355
  %v3367 = vadd.f32 %v141, %v3357
  %v3368 = vadd.f32 %v147, %v3359
  %v3369 = vadd.f32 %v153, %v3361
  %v3370 = vtanh.pop %v3366
  %v3371 = vtanh.pop %v3367
  %v3372 = vtanh.pop %v3368
  %v3373 = vtanh.pop %v3369
  %v3374 = vsub.f32 1.0, %v3327
  %v3375 = vsub.f32 1.0, %v3329
  %v3376 = vsub.f32 1.0, %v3331
  %v3377 = vsub.f32 1.0, %v3333
  %3382 = vrot.lane.b32.xlu0 %v3370, 96
  %v3383 = vpop.permute.xlu0 %3382
  %3384 = vrot.lane.b32.xlu0 %v3371, 96
  %v3385 = vpop.permute.xlu0 %3384
  %3386 = vrot.lane.b32.xlu0 %v3372, 96
  %v3387 = vpop.permute.xlu0 %3386
  %3388 = vrot.lane.b32.xlu0 %v3373, 96
  %v3389 = vpop.permute.xlu0 %3388
  %v3394 = vmul.f32 %v3374, %v3383
  %v3395 = vmul.f32 %v3375, %v3385
  %v3396 = vmul.f32 %v3376, %v3387
  %v3397 = vmul.f32 %v3377, %v3389
  %v3398 = vrot.slane %v2885, 6
  %v3399 = vrot.slane %v2885, 7
  %v3400 = vrot.slane %v2885, 1
  %v3405 = vmul.f32 %v3327, %v3398
  %v3406 = vmul.f32 %v3329, %v3399
  %v3407 = vmul.f32 %v3331, %v2885
  %v3408 = vmul.f32 %v3333, %v3400
  %v3409 = vadd.f32 %v3394, %v3405
  %v3410 = vadd.f32 %v3395, %v3406
  %v3411 = vadd.f32 %v3396, %v3407
  %v3412 = vadd.f32 %v3397, %v3408
  %v3417 = vrot.slane %v3409, 2
  %v3418 = vrot.slane %v3410, 1
  %v3419 = vsel %vm369, %v3418, %v3417
  %v3420 = vsel %vm372, %v3411, %v3419
  %v3421 = vrot.slane %v3412, 7
  %v3422 = vsel %vm375, %v3421, %v3420
  %v3424 = vmul.f32 %v1501, %v3422
  %v3425 = vmul.f32 %v1521, %v2885
  %v3426 = vadd.f32 %v3424, %v3425
  %v3429 = vunpack.c.l.s4 1966171168
  %v3430 = vunpack.c.0.s8 %v3429
  %v3431 = vlaneseq
  %v3432 = vshrl.u32 %v3431, 7
  %v3433 = vsub.s32 %v3430, %v3432
  %v3434 = vrot.slane %v3189, %v3433
  %v3435 = vcombine.high %v3434, %v3434
  %v3437 = vunpack.c.l.s4 1966171168
  %v3438 = vunpack.c.0.s8 %v3437
  %v3439 = vlaneseq
  %v3440 = vshrl.u32 %v3439, 7
  %v3441 = vsub.s32 %v3438, %v3440
  %v3442 = vrot.slane %v3434, %v3441
  %v3444 = vunpack.c.l.s4 1966171168
  %v3445 = vunpack.c.0.s8 %v3444
  %v3446 = vlaneseq
  %v3447 = vshrl.u32 %v3446, 7
  %v3448 = vsub.s32 %v3445, %v3447
  %v3449 = vrot.slane %v3435, %v3448
  %v3450 = vcombine.high %v3442, %v3442
  %v3451 = vcombine.high %v3449, %v3449
  %3456 = vst.msk [vmem:[%s8 + $0x5] sm:$0x1] %vm665, %v3442
  %3457 = vst.msk [vmem:[%s8 + $0xd] sm:$0x1] %vm665, %v3449
  %3458 = vst.msk [vmem:[%s8 + $0x15] sm:$0x1] %vm665, %v3450
  %3459 = vst.msk [vmem:[%s8 + $0x1d] sm:$0x1] %vm665, %v3451
  %v3462 = vunpack.c.l.s4 1966171168
  %v3463 = vunpack.c.0.s8 %v3462
  %v3464 = vlaneseq
  %v3465 = vshrl.u32 %v3464, 7
  %v3466 = vsub.s32 %v3463, %v3465
  %v3467 = vrot.slane %v3426, %v3466
  %v3468 = vcombine.high %v3467, %v3467
  %v3470 = vunpack.c.l.s4 1966171168
  %v3471 = vunpack.c.0.s8 %v3470
  %v3472 = vlaneseq
  %v3473 = vshrl.u32 %v3472, 7
  %v3474 = vsub.s32 %v3471, %v3473
  %v3475 = vrot.slane %v3467, %v3474
  %v3477 = vunpack.c.l.s4 1966171168
  %v3478 = vunpack.c.0.s8 %v3477
  %v3479 = vlaneseq
  %v3480 = vshrl.u32 %v3479, 7
  %v3481 = vsub.s32 %v3478, %v3480
  %v3482 = vrot.slane %v3468, %v3481
  %v3483 = vcombine.high %v3475, %v3475
  %v3484 = vcombine.high %v3482, %v3482
  %v3485 = vlaneseq
  %v3486 = vshrl.u32 %v3485, 7
  %v3487 = vsub.s32 0, %v3486
  %v3488 = vrot.slane %v3475, %v3487
  %v3489 = vlaneseq
  %v3490 = vshrl.u32 %v3489, 7
  %v3491 = vsub.s32 0, %v3490
  %v3492 = vrot.slane %v3482, %v3491
  %v3493 = vlaneseq
  %v3494 = vshrl.u32 %v3493, 7
  %v3495 = vsub.s32 0, %v3494
  %v3496 = vrot.slane %v3483, %v3495
  %v3497 = vlaneseq
  %v3498 = vshrl.u32 %v3497, 7
  %v3499 = vsub.s32 0, %v3498
  %v3500 = vrot.slane %v3484, %v3499
  %3501 = vrot.lane.b32.xlu0 %v3488, 32
  %v3502 = vpop.permute.xlu0 %3501
  %3503 = vrot.lane.b32.xlu0 %v3492, 32
  %v3504 = vpop.permute.xlu0 %3503
  %3505 = vrot.lane.b32.xlu0 %v3496, 32
  %v3506 = vpop.permute.xlu0 %3505
  %3507 = vrot.lane.b32.xlu0 %v3500, 32
  %v3508 = vpop.permute.xlu0 %3507
  %3513 = vst.msk [vmem:[%s8 + $0x2] sm:$0x1] %vm723, %v3502
  %3514 = vst.msk [vmem:[%s8 + $0xa] sm:$0x1] %vm723, %v3504
  %3515 = vst.msk [vmem:[%s8 + $0x12] sm:$0x1] %vm723, %v3506
  %3516 = vst.msk [vmem:[%s8 + $0x1a] sm:$0x1] %vm723, %v3508
  %v3517 = vsel %vm53, %v3189, 0
  %3519 = vmatprep.subr.mxu0 0.0
  %3520 = vmatpush1.msra.mxu0 %v156
  %3521 = vmatprep.subr.mxu0 0.0
  %3522 = vmatpush1.msra.mxu0 %v157
  %3523 = vmatprep.subr.mxu0 0.0
  %3524 = vmatpush1.msra.mxu0 %v158
  %3525 = vmatprep.subr.mxu0 0.0
  %3526 = vmatpush1.msra.mxu0 %v159
  %3527 = vmatprep.subr.mxu0 0.0
  %3528 = vmatpush1.msra.mxu0 0.0
  %3529 = vmatprep.subr.mxu0 0.0
  %3530 = vmatpush1.msra.mxu0 0.0
  %3531 = vmatprep.subr.mxu0 0.0
  %3532 = vmatpush1.msra.mxu0 0.0
  %3533 = vmatprep.subr.mxu0 0.0
  %3534 = vmatpush1.msra.mxu0 0.0
  %3535 = vmatprep.subr.mxu0 0.0
  %3536 = vmatpush1.msra.mxu0 0.0
  %3537 = vmatprep.subr.mxu0 0.0
  %3538 = vmatpush1.msra.mxu0 0.0
  %3539 = vmatprep.subr.mxu0 0.0
  %3540 = vmatpush1.msra.mxu0 0.0
  %3541 = vmatprep.subr.mxu0 0.0
  %3542 = vmatpush1.msra.mxu0 0.0
  %3543 = vmatprep.subr.mxu0 0.0
  %3544 = vmatpush1.msra.mxu0 0.0
  %3545 = vmatprep.subr.mxu0 0.0
  %3546 = vmatpush1.msra.mxu0 0.0
  %3547 = vmatprep.subr.mxu0 0.0
  %3548 = vmatpush1.msra.mxu0 0.0
  %3549 = vmatprep.subr.mxu0 0.0
  %3550 = vmatpush1.msra.mxu0 0.0
  %3551 = vmatprep.subr.mxu0 0.0
  %3552 = vmatpush1.msra.mxu0 0.0
  %3553 = vmatprep.subr.mxu0 0.0
  %3554 = vmatpush1.msra.mxu0 0.0
  %3555 = vmatprep.subr.mxu0 0.0
  %3556 = vmatpush1.msra.mxu0 0.0
  %3557 = vmatprep.subr.mxu0 0.0
  %3558 = vmatpush1.msra.mxu0 0.0
  %3559 = vmatprep.subr.mxu0 0.0
  %3560 = vmatpush1.msra.mxu0 0.0
  %3561 = vmatprep.subr.mxu0 0.0
  %3562 = vmatpush1.msra.mxu0 0.0
  %3563 = vmatprep.subr.mxu0 0.0
  %3564 = vmatpush1.msra.mxu0 0.0
  %3565 = vmatprep.subr.mxu0 0.0
  %3566 = vmatpush1.msra.mxu0 0.0
  %3567 = vmatprep.subr.mxu0 0.0
  %3568 = vmatpush1.msra.mxu0 0.0
  %3569 = vmatprep.subr.mxu0 0.0
  %3570 = vmatpush1.msra.mxu0 0.0
  %3571 = vmatprep.subr.mxu0 0.0
  %3572 = vmatpush1.msra.mxu0 0.0
  %3573 = vmatprep.subr.mxu0 0.0
  %3574 = vmatpush1.msra.mxu0 0.0
  %3575 = vmatprep.subr.mxu0 0.0
  %3576 = vmatpush1.msra.mxu0 0.0
  %3577 = vmatprep.subr.mxu0 0.0
  %3578 = vmatpush1.msra.mxu0 0.0
  %3579 = vmatprep.subr.mxu0 0.0
  %3580 = vmatpush1.msra.mxu0 0.0
  %3581 = vmatprep.subr.mxu0 0.0
  %3582 = vmatpush1.msra.mxu0 0.0
  %3583 = vmatprep.mubr.f32.mxu0 0.0
  %3584 = vmatmul.mubr.f32.gmra.mrb[0].mxu0 %v3517
  %v3585 = vpop.f32.mrb[0].mxu0
  %v3586 = vadd.f32 %v176, %v3585
  %v3587 = vpop.f32.mrb[0].mxu0
  %3588 = vdwg.mxu0
  %v3590 = vrot.slane %v3586, 2
  %v3591 = vrot.slane %v3586, 3
  %v3592 = vrot.slane %v3586, 4
  %v3593 = vrot.slane %v3586, 5
  %v3598 = vadd.f32 %v133, %v3590
  %v3599 = vadd.f32 %v139, %v3591
  %v3600 = vadd.f32 %v145, %v3592
  %v3601 = vadd.f32 %v151, %v3593
  %v3602 = vxor.u32 %v3598, 2147483648
  %v3603 = vxor.u32 %v3599, 2147483648
  %v3604 = vxor.u32 %v3600, 2147483648
  %v3605 = vxor.u32 %v3601, 2147483648
  %v3606 = vmul.f32 %v3602, 1.442695
  %v3607 = vpow.pop %v3606
  %v3608 = vmul.f32 %v3603, 1.442695
  %v3609 = vpow.pop %v3608
  %v3610 = vmul.f32 %v3604, 1.442695
  %v3611 = vpow.pop %v3610
  %v3612 = vmul.f32 %v3605, 1.442695
  %v3613 = vpow.pop %v3612
  %v3614 = vadd.f32 %v3607, 1.0
  %v3615 = vadd.f32 %v3609, 1.0
  %v3616 = vadd.f32 %v3611, 1.0
  %v3617 = vadd.f32 %v3613, 1.0
  %v3618 = vrcp.pop %v3614
  %v3619 = vmul.f32 1.0, %v3618
  %v3620 = vrcp.pop %v3615
  %v3621 = vmul.f32 1.0, %v3620
  %v3622 = vrcp.pop %v3616
  %v3623 = vmul.f32 1.0, %v3622
  %v3624 = vrcp.pop %v3617
  %v3625 = vmul.f32 1.0, %v3624
  %3626 = vrot.lane.b32.xlu0 %v3590, 64
  %v3627 = vpop.permute.xlu0 %3626
  %3628 = vrot.lane.b32.xlu0 %v3591, 64
  %v3629 = vpop.permute.xlu0 %3628
  %3630 = vrot.lane.b32.xlu0 %v3592, 64
  %v3631 = vpop.permute.xlu0 %3630
  %3632 = vrot.lane.b32.xlu0 %v3593, 64
  %v3633 = vpop.permute.xlu0 %3632
  %v3638 = vmul.f32 %v3619, %v3627
  %v3639 = vmul.f32 %v3621, %v3629
  %v3640 = vmul.f32 %v3623, %v3631
  %v3641 = vmul.f32 %v3625, %v3633
  %3646 = vrot.lane.b32.xlu0 %v3638, 64
  %v3647 = vpop.permute.xlu0 %3646
  %3648 = vrot.lane.b32.xlu0 %v3639, 64
  %v3649 = vpop.permute.xlu0 %3648
  %3650 = vrot.lane.b32.xlu0 %v3640, 64
  %v3651 = vpop.permute.xlu0 %3650
  %3652 = vrot.lane.b32.xlu0 %v3641, 64
  %v3653 = vpop.permute.xlu0 %3652
  %v3658 = vadd.f32 %v133, %v3647
  %v3659 = vadd.f32 %v139, %v3649
  %v3660 = vadd.f32 %v145, %v3651
  %v3661 = vadd.f32 %v151, %v3653
  %v3662 = vtanh.pop %v3658
  %v3663 = vtanh.pop %v3659
  %v3664 = vtanh.pop %v3660
  %v3665 = vtanh.pop %v3661
  %v3666 = vsub.f32 1.0, %v3619
  %v3667 = vsub.f32 1.0, %v3621
  %v3668 = vsub.f32 1.0, %v3623
  %v3669 = vsub.f32 1.0, %v3625
  %3674 = vrot.lane.b32.xlu0 %v3662, 96
  %v3675 = vpop.permute.xlu0 %3674
  %3676 = vrot.lane.b32.xlu0 %v3663, 96
  %v3677 = vpop.permute.xlu0 %3676
  %3678 = vrot.lane.b32.xlu0 %v3664, 96
  %v3679 = vpop.permute.xlu0 %3678
  %3680 = vrot.lane.b32.xlu0 %v3665, 96
  %v3681 = vpop.permute.xlu0 %3680
  %v3686 = vmul.f32 %v3666, %v3675
  %v3687 = vmul.f32 %v3667, %v3677
  %v3688 = vmul.f32 %v3668, %v3679
  %v3689 = vmul.f32 %v3669, %v3681
  %v3690 = vrot.slane %v3189, 2
  %v3691 = vrot.slane %v3189, 3
  %v3692 = vrot.slane %v3189, 4
  %v3693 = vrot.slane %v3189, 5
  %3694 = vrot.lane.b32.xlu0 %v3690, 32
  %v3695 = vpop.permute.xlu0 %3694
  %3696 = vrot.lane.b32.xlu0 %v3691, 32
  %v3697 = vpop.permute.xlu0 %3696
  %3698 = vrot.lane.b32.xlu0 %v3692, 32
  %v3699 = vpop.permute.xlu0 %3698
  %3700 = vrot.lane.b32.xlu0 %v3693, 32
  %v3701 = vpop.permute.xlu0 %3700
  %v3706 = vmul.f32 %v3619, %v3695
  %v3707 = vmul.f32 %v3621, %v3697
  %v3708 = vmul.f32 %v3623, %v3699
  %v3709 = vmul.f32 %v3625, %v3701
  %v3710 = vadd.f32 %v3686, %v3706
  %v3711 = vadd.f32 %v3687, %v3707
  %v3712 = vadd.f32 %v3688, %v3708
  %v3713 = vadd.f32 %v3689, %v3709
  %v3718 = vrot.slane %v3710, 6
  %v3719 = vrot.slane %v3711, 5
  %v3720 = vsel %vm369, %v3719, %v3718
  %v3721 = vrot.slane %v3712, 4
  %v3722 = vsel %vm372, %v3721, %v3720
  %v3723 = vrot.slane %v3713, 3
  %v3724 = vsel %vm375, %v3723, %v3722
  %3725 = vrot.lane.b32.xlu0 %v3724, 96
  %v3726 = vpop.permute.xlu0 %3725
  %v3728 = vmul.f32 %v1184, %v3726
  %v3729 = vmul.f32 %v1203, %v3189
  %v3730 = vadd.f32 %v3728, %v3729
  %v3731 = vsel %vm53, %v3426, 0
  %3733 = vmatprep.subr.mxu0 0.0
  %3734 = vmatpush1.msra.mxu0 %v161
  %3735 = vmatprep.subr.mxu0 0.0
  %3736 = vmatpush1.msra.mxu0 %v162
  %3737 = vmatprep.subr.mxu0 0.0
  %3738 = vmatpush1.msra.mxu0 %v163
  %3739 = vmatprep.subr.mxu0 0.0
  %3740 = vmatpush1.msra.mxu0 %v164
  %3741 = vmatprep.subr.mxu0 0.0
  %3742 = vmatpush1.msra.mxu0 0.0
  %3743 = vmatprep.subr.mxu0 0.0
  %3744 = vmatpush1.msra.mxu0 0.0
  %3745 = vmatprep.subr.mxu0 0.0
  %3746 = vmatpush1.msra.mxu0 0.0
  %3747 = vmatprep.subr.mxu0 0.0
  %3748 = vmatpush1.msra.mxu0 0.0
  %3749 = vmatprep.subr.mxu0 0.0
  %3750 = vmatpush1.msra.mxu0 0.0
  %3751 = vmatprep.subr.mxu0 0.0
  %3752 = vmatpush1.msra.mxu0 0.0
  %3753 = vmatprep.subr.mxu0 0.0
  %3754 = vmatpush1.msra.mxu0 0.0
  %3755 = vmatprep.subr.mxu0 0.0
  %3756 = vmatpush1.msra.mxu0 0.0
  %3757 = vmatprep.subr.mxu0 0.0
  %3758 = vmatpush1.msra.mxu0 0.0
  %3759 = vmatprep.subr.mxu0 0.0
  %3760 = vmatpush1.msra.mxu0 0.0
  %3761 = vmatprep.subr.mxu0 0.0
  %3762 = vmatpush1.msra.mxu0 0.0
  %3763 = vmatprep.subr.mxu0 0.0
  %3764 = vmatpush1.msra.mxu0 0.0
  %3765 = vmatprep.subr.mxu0 0.0
  %3766 = vmatpush1.msra.mxu0 0.0
  %3767 = vmatprep.subr.mxu0 0.0
  %3768 = vmatpush1.msra.mxu0 0.0
  %3769 = vmatprep.subr.mxu0 0.0
  %3770 = vmatpush1.msra.mxu0 0.0
  %3771 = vmatprep.subr.mxu0 0.0
  %3772 = vmatpush1.msra.mxu0 0.0
  %3773 = vmatprep.subr.mxu0 0.0
  %3774 = vmatpush1.msra.mxu0 0.0
  %3775 = vmatprep.subr.mxu0 0.0
  %3776 = vmatpush1.msra.mxu0 0.0
  %3777 = vmatprep.subr.mxu0 0.0
  %3778 = vmatpush1.msra.mxu0 0.0
  %3779 = vmatprep.subr.mxu0 0.0
  %3780 = vmatpush1.msra.mxu0 0.0
  %3781 = vmatprep.subr.mxu0 0.0
  %3782 = vmatpush1.msra.mxu0 0.0
  %3783 = vmatprep.subr.mxu0 0.0
  %3784 = vmatpush1.msra.mxu0 0.0
  %3785 = vmatprep.subr.mxu0 0.0
  %3786 = vmatpush1.msra.mxu0 0.0
  %3787 = vmatprep.subr.mxu0 0.0
  %3788 = vmatpush1.msra.mxu0 0.0
  %3789 = vmatprep.subr.mxu0 0.0
  %3790 = vmatpush1.msra.mxu0 0.0
  %3791 = vmatprep.subr.mxu0 0.0
  %3792 = vmatpush1.msra.mxu0 0.0
  %3793 = vmatprep.subr.mxu0 0.0
  %3794 = vmatpush1.msra.mxu0 0.0
  %3795 = vmatprep.subr.mxu0 0.0
  %3796 = vmatpush1.msra.mxu0 0.0
  %3797 = vmatprep.mubr.f32.mxu0 0.0
  %3798 = vmatmul.mubr.f32.gmra.mrb[0].mxu0 %v3731
  %v3799 = vpop.f32.mrb[0].mxu0
  %v3800 = vadd.f32 %v393, %v3799
  %v3801 = vpop.f32.mrb[0].mxu0
  %3802 = vdwg.mxu0
  %v3804 = vrot.slane %v3800, 7
  %v3805 = vrot.slane %v3800, 1
  %v3806 = vrot.slane %v3800, 2
  %3807 = vrot.lane.b32.xlu0 %v3804, 96
  %v3808 = vpop.permute.xlu0 %3807
  %3809 = vrot.lane.b32.xlu0 %v3800, 96
  %v3810 = vpop.permute.xlu0 %3809
  %3811 = vrot.lane.b32.xlu0 %v3805, 96
  %v3812 = vpop.permute.xlu0 %3811
  %3813 = vrot.lane.b32.xlu0 %v3806, 96
  %v3814 = vpop.permute.xlu0 %3813
  %v3819 = vadd.f32 %v133, %v3808
  %v3820 = vadd.f32 %v139, %v3810
  %v3821 = vadd.f32 %v145, %v3812
  %v3822 = vadd.f32 %v151, %v3814
  %v3823 = vxor.u32 %v3819, 2147483648
  %v3824 = vxor.u32 %v3820, 2147483648
  %v3825 = vxor.u32 %v3821, 2147483648
  %v3826 = vxor.u32 %v3822, 2147483648
  %v3827 = vmul.f32 %v3823, 1.442695
  %v3828 = vpow.pop %v3827
  %v3829 = vmul.f32 %v3824, 1.442695
  %v3830 = vpow.pop %v3829
  %v3831 = vmul.f32 %v3825, 1.442695
  %v3832 = vpow.pop %v3831
  %v3833 = vmul.f32 %v3826, 1.442695
  %v3834 = vpow.pop %v3833
  %v3835 = vadd.f32 %v3828, 1.0
  %v3836 = vadd.f32 %v3830, 1.0
  %v3837 = vadd.f32 %v3832, 1.0
  %v3838 = vadd.f32 %v3834, 1.0
  %v3839 = vrcp.pop %v3835
  %v3840 = vmul.f32 1.0, %v3839
  %v3841 = vrcp.pop %v3836
  %v3842 = vmul.f32 1.0, %v3841
  %v3843 = vrcp.pop %v3837
  %v3844 = vmul.f32 1.0, %v3843
  %v3845 = vrcp.pop %v3838
  %v3846 = vmul.f32 1.0, %v3845
  %v3847 = vadd.f32 %v135, %v3808
  %v3848 = vadd.f32 %v141, %v3810
  %v3849 = vadd.f32 %v147, %v3812
  %v3850 = vadd.f32 %v153, %v3814
  %v3851 = vxor.u32 %v3847, 2147483648
  %v3852 = vxor.u32 %v3848, 2147483648
  %v3853 = vxor.u32 %v3849, 2147483648
  %v3854 = vxor.u32 %v3850, 2147483648
  %v3855 = vmul.f32 %v3851, 1.442695
  %v3856 = vpow.pop %v3855
  %v3857 = vmul.f32 %v3852, 1.442695
  %v3858 = vpow.pop %v3857
  %v3859 = vmul.f32 %v3853, 1.442695
  %v3860 = vpow.pop %v3859
  %v3861 = vmul.f32 %v3854, 1.442695
  %v3862 = vpow.pop %v3861
  %v3863 = vadd.f32 %v3856, 1.0
  %v3864 = vadd.f32 %v3858, 1.0
  %v3865 = vadd.f32 %v3860, 1.0
  %v3866 = vadd.f32 %v3862, 1.0
  %v3867 = vrcp.pop %v3863
  %v3868 = vmul.f32 1.0, %v3867
  %v3869 = vrcp.pop %v3864
  %v3870 = vmul.f32 1.0, %v3869
  %v3871 = vrcp.pop %v3865
  %v3872 = vmul.f32 1.0, %v3871
  %v3873 = vrcp.pop %v3866
  %v3874 = vmul.f32 1.0, %v3873
  %3875 = vrot.lane.b32.xlu0 %v3804, 32
  %v3876 = vpop.permute.xlu0 %3875
  %3877 = vrot.lane.b32.xlu0 %v3800, 32
  %v3878 = vpop.permute.xlu0 %3877
  %3879 = vrot.lane.b32.xlu0 %v3805, 32
  %v3880 = vpop.permute.xlu0 %3879
  %3881 = vrot.lane.b32.xlu0 %v3806, 32
  %v3882 = vpop.permute.xlu0 %3881
  %v3887 = vmul.f32 %v3840, %v3876
  %v3888 = vmul.f32 %v3842, %v3878
  %v3889 = vmul.f32 %v3844, %v3880
  %v3890 = vmul.f32 %v3846, %v3882
  %3895 = vrot.lane.b32.xlu0 %v3887, 64
  %v3896 = vpop.permute.xlu0 %3895
  %3897 = vrot.lane.b32.xlu0 %v3888, 64
  %v3898 = vpop.permute.xlu0 %3897
  %3899 = vrot.lane.b32.xlu0 %v3889, 64
  %v3900 = vpop.permute.xlu0 %3899
  %3901 = vrot.lane.b32.xlu0 %v3890, 64
  %v3902 = vpop.permute.xlu0 %3901
  %v3907 = vadd.f32 %v135, %v3896
  %v3908 = vadd.f32 %v141, %v3898
  %v3909 = vadd.f32 %v147, %v3900
  %v3910 = vadd.f32 %v153, %v3902
  %v3911 = vtanh.pop %v3907
  %v3912 = vtanh.pop %v3908
  %v3913 = vtanh.pop %v3909
  %v3914 = vtanh.pop %v3910
  %v3915 = vsub.f32 1.0, %v3868
  %v3916 = vsub.f32 1.0, %v3870
  %v3917 = vsub.f32 1.0, %v3872
  %v3918 = vsub.f32 1.0, %v3874
  %3923 = vrot.lane.b32.xlu0 %v3911, 96
  %v3924 = vpop.permute.xlu0 %3923
  %3925 = vrot.lane.b32.xlu0 %v3912, 96
  %v3926 = vpop.permute.xlu0 %3925
  %3927 = vrot.lane.b32.xlu0 %v3913, 96
  %v3928 = vpop.permute.xlu0 %3927
  %3929 = vrot.lane.b32.xlu0 %v3914, 96
  %v3930 = vpop.permute.xlu0 %3929
  %v3935 = vmul.f32 %v3915, %v3924
  %v3936 = vmul.f32 %v3916, %v3926
  %v3937 = vmul.f32 %v3917, %v3928
  %v3938 = vmul.f32 %v3918, %v3930
  %v3939 = vrot.slane %v3426, 7
  %v3940 = vrot.slane %v3426, 1
  %v3941 = vrot.slane %v3426, 2
  %v3946 = vmul.f32 %v3868, %v3939
  %v3947 = vmul.f32 %v3870, %v3426
  %v3948 = vmul.f32 %v3872, %v3940
  %v3949 = vmul.f32 %v3874, %v3941
  %v3950 = vadd.f32 %v3935, %v3946
  %v3951 = vadd.f32 %v3936, %v3947
  %v3952 = vadd.f32 %v3937, %v3948
  %v3953 = vadd.f32 %v3938, %v3949
  %v3958 = vrot.slane %v3950, 1
  %v3959 = vsel %vm369, %v3951, %v3958
  %v3960 = vrot.slane %v3952, 7
  %v3961 = vsel %vm372, %v3960, %v3959
  %v3962 = vrot.slane %v3953, 6
  %v3963 = vsel %vm375, %v3962, %v3961
  %v3965 = vmul.f32 %v932, %v3963
  %v3966 = vmul.f32 %v952, %v3426
  %v3967 = vadd.f32 %v3965, %v3966
  %v3970 = vunpack.c.l.s4 1966171168
  %v3971 = vunpack.c.0.s8 %v3970
  %v3972 = vlaneseq
  %v3973 = vshrl.u32 %v3972, 7
  %v3974 = vsub.s32 %v3971, %v3973
  %v3975 = vrot.slane %v3730, %v3974
  %v3976 = vcombine.high %v3975, %v3975
  %v3978 = vunpack.c.l.s4 1966171168
  %v3979 = vunpack.c.0.s8 %v3978
  %v3980 = vlaneseq
  %v3981 = vshrl.u32 %v3980, 7
  %v3982 = vsub.s32 %v3979, %v3981
  %v3983 = vrot.slane %v3975, %v3982
  %v3985 = vunpack.c.l.s4 1966171168
  %v3986 = vunpack.c.0.s8 %v3985
  %v3987 = vlaneseq
  %v3988 = vshrl.u32 %v3987, 7
  %v3989 = vsub.s32 %v3986, %v3988
  %v3990 = vrot.slane %v3976, %v3989
  %v3991 = vcombine.high %v3983, %v3983
  %v3992 = vcombine.high %v3990, %v3990
  %3997 = vst.msk [vmem:[%s8 + $0x6] sm:$0x1] %vm665, %v3983
  %3998 = vst.msk [vmem:[%s8 + $0xe] sm:$0x1] %vm665, %v3990
  %3999 = vst.msk [vmem:[%s8 + $0x16] sm:$0x1] %vm665, %v3991
  %4000 = vst.msk [vmem:[%s8 + $0x1e] sm:$0x1] %vm665, %v3992
  %v4003 = vunpack.c.l.s4 1966171168
  %v4004 = vunpack.c.0.s8 %v4003
  %v4005 = vlaneseq
  %v4006 = vshrl.u32 %v4005, 7
  %v4007 = vsub.s32 %v4004, %v4006
  %v4008 = vrot.slane %v3967, %v4007
  %v4009 = vcombine.high %v4008, %v4008
  %v4011 = vunpack.c.l.s4 1966171168
  %v4012 = vunpack.c.0.s8 %v4011
  %v4013 = vlaneseq
  %v4014 = vshrl.u32 %v4013, 7
  %v4015 = vsub.s32 %v4012, %v4014
  %v4016 = vrot.slane %v4008, %v4015
  %v4018 = vunpack.c.l.s4 1966171168
  %v4019 = vunpack.c.0.s8 %v4018
  %v4020 = vlaneseq
  %v4021 = vshrl.u32 %v4020, 7
  %v4022 = vsub.s32 %v4019, %v4021
  %v4023 = vrot.slane %v4009, %v4022
  %v4024 = vcombine.high %v4016, %v4016
  %v4025 = vcombine.high %v4023, %v4023
  %v4026 = vlaneseq
  %v4027 = vshrl.u32 %v4026, 7
  %v4028 = vsub.s32 0, %v4027
  %v4029 = vrot.slane %v4016, %v4028
  %v4030 = vlaneseq
  %v4031 = vshrl.u32 %v4030, 7
  %v4032 = vsub.s32 0, %v4031
  %v4033 = vrot.slane %v4023, %v4032
  %v4034 = vlaneseq
  %v4035 = vshrl.u32 %v4034, 7
  %v4036 = vsub.s32 0, %v4035
  %v4037 = vrot.slane %v4024, %v4036
  %v4038 = vlaneseq
  %v4039 = vshrl.u32 %v4038, 7
  %v4040 = vsub.s32 0, %v4039
  %v4041 = vrot.slane %v4025, %v4040
  %4042 = vrot.lane.b32.xlu0 %v4029, 32
  %v4043 = vpop.permute.xlu0 %4042
  %4044 = vrot.lane.b32.xlu0 %v4033, 32
  %v4045 = vpop.permute.xlu0 %4044
  %4046 = vrot.lane.b32.xlu0 %v4037, 32
  %v4047 = vpop.permute.xlu0 %4046
  %4048 = vrot.lane.b32.xlu0 %v4041, 32
  %v4049 = vpop.permute.xlu0 %4048
  %4054 = vst.msk [vmem:[%s8 + $0x1] sm:$0x1] %vm723, %v4043
  %4055 = vst.msk [vmem:[%s8 + $0x9] sm:$0x1] %vm723, %v4045
  %4056 = vst.msk [vmem:[%s8 + $0x11] sm:$0x1] %vm723, %v4047
  %4057 = vst.msk [vmem:[%s8 + $0x19] sm:$0x1] %vm723, %v4049
  %v4058 = vsel %vm53, %v3730, 0
  %4060 = vmatprep.subr.mxu0 0.0
  %4061 = vmatpush1.msra.mxu0 %v156
  %4062 = vmatprep.subr.mxu0 0.0
  %4063 = vmatpush1.msra.mxu0 %v157
  %4064 = vmatprep.subr.mxu0 0.0
  %4065 = vmatpush1.msra.mxu0 %v158
  %4066 = vmatprep.subr.mxu0 0.0
  %4067 = vmatpush1.msra.mxu0 %v159
  %4068 = vmatprep.subr.mxu0 0.0
  %4069 = vmatpush1.msra.mxu0 0.0
  %4070 = vmatprep.subr.mxu0 0.0
  %4071 = vmatpush1.msra.mxu0 0.0
  %4072 = vmatprep.subr.mxu0 0.0
  %4073 = vmatpush1.msra.mxu0 0.0
  %4074 = vmatprep.subr.mxu0 0.0
  %4075 = vmatpush1.msra.mxu0 0.0
  %4076 = vmatprep.subr.mxu0 0.0
  %4077 = vmatpush1.msra.mxu0 0.0
  %4078 = vmatprep.subr.mxu0 0.0
  %4079 = vmatpush1.msra.mxu0 0.0
  %4080 = vmatprep.subr.mxu0 0.0
  %4081 = vmatpush1.msra.mxu0 0.0
  %4082 = vmatprep.subr.mxu0 0.0
  %4083 = vmatpush1.msra.mxu0 0.0
  %4084 = vmatprep.subr.mxu0 0.0
  %4085 = vmatpush1.msra.mxu0 0.0
  %4086 = vmatprep.subr.mxu0 0.0
  %4087 = vmatpush1.msra.mxu0 0.0
  %4088 = vmatprep.subr.mxu0 0.0
  %4089 = vmatpush1.msra.mxu0 0.0
  %4090 = vmatprep.subr.mxu0 0.0
  %4091 = vmatpush1.msra.mxu0 0.0
  %4092 = vmatprep.subr.mxu0 0.0
  %4093 = vmatpush1.msra.mxu0 0.0
  %4094 = vmatprep.subr.mxu0 0.0
  %4095 = vmatpush1.msra.mxu0 0.0
  %4096 = vmatprep.subr.mxu0 0.0
  %4097 = vmatpush1.msra.mxu0 0.0
  %4098 = vmatprep.subr.mxu0 0.0
  %4099 = vmatpush1.msra.mxu0 0.0
  %4100 = vmatprep.subr.mxu0 0.0
  %4101 = vmatpush1.msra.mxu0 0.0
  %4102 = vmatprep.subr.mxu0 0.0
  %4103 = vmatpush1.msra.mxu0 0.0
  %4104 = vmatprep.subr.mxu0 0.0
  %4105 = vmatpush1.msra.mxu0 0.0
  %4106 = vmatprep.subr.mxu0 0.0
  %4107 = vmatpush1.msra.mxu0 0.0
  %4108 = vmatprep.subr.mxu0 0.0
  %4109 = vmatpush1.msra.mxu0 0.0
  %4110 = vmatprep.subr.mxu0 0.0
  %4111 = vmatpush1.msra.mxu0 0.0
  %4112 = vmatprep.subr.mxu0 0.0
  %4113 = vmatpush1.msra.mxu0 0.0
  %4114 = vmatprep.subr.mxu0 0.0
  %4115 = vmatpush1.msra.mxu0 0.0
  %4116 = vmatprep.subr.mxu0 0.0
  %4117 = vmatpush1.msra.mxu0 0.0
  %4118 = vmatprep.subr.mxu0 0.0
  %4119 = vmatpush1.msra.mxu0 0.0
  %4120 = vmatprep.subr.mxu0 0.0
  %4121 = vmatpush1.msra.mxu0 0.0
  %4122 = vmatprep.subr.mxu0 0.0
  %4123 = vmatpush1.msra.mxu0 0.0
  %4124 = vmatprep.mubr.f32.mxu0 0.0
  %4125 = vmatmul.mubr.f32.gmra.mrb[0].mxu0 %v4058
  %v4126 = vpop.f32.mrb[0].mxu0
  %v4127 = vadd.f32 %v176, %v4126
  %v4128 = vpop.f32.mrb[0].mxu0
  %4129 = vdwg.mxu0
  %v4131 = vrot.slane %v4127, 1
  %v4132 = vrot.slane %v4127, 2
  %v4133 = vrot.slane %v4127, 3
  %v4134 = vrot.slane %v4127, 4
  %v4139 = vadd.f32 %v133, %v4131
  %v4140 = vadd.f32 %v139, %v4132
  %v4141 = vadd.f32 %v145, %v4133
  %v4142 = vadd.f32 %v151, %v4134
  %v4143 = vxor.u32 %v4139, 2147483648
  %v4144 = vxor.u32 %v4140, 2147483648
  %v4145 = vxor.u32 %v4141, 2147483648
  %v4146 = vxor.u32 %v4142, 2147483648
  %v4147 = vmul.f32 %v4143, 1.442695
  %v4148 = vpow.pop %v4147
  %v4149 = vmul.f32 %v4144, 1.442695
  %v4150 = vpow.pop %v4149
  %v4151 = vmul.f32 %v4145, 1.442695
  %v4152 = vpow.pop %v4151
  %v4153 = vmul.f32 %v4146, 1.442695
  %v4154 = vpow.pop %v4153
  %v4155 = vadd.f32 %v4148, 1.0
  %v4156 = vadd.f32 %v4150, 1.0
  %v4157 = vadd.f32 %v4152, 1.0
  %v4158 = vadd.f32 %v4154, 1.0
  %v4159 = vrcp.pop %v4155
  %v4160 = vmul.f32 1.0, %v4159
  %v4161 = vrcp.pop %v4156
  %v4162 = vmul.f32 1.0, %v4161
  %v4163 = vrcp.pop %v4157
  %v4164 = vmul.f32 1.0, %v4163
  %v4165 = vrcp.pop %v4158
  %v4166 = vmul.f32 1.0, %v4165
  %4167 = vrot.lane.b32.xlu0 %v4131, 64
  %v4168 = vpop.permute.xlu0 %4167
  %4169 = vrot.lane.b32.xlu0 %v4132, 64
  %v4170 = vpop.permute.xlu0 %4169
  %4171 = vrot.lane.b32.xlu0 %v4133, 64
  %v4172 = vpop.permute.xlu0 %4171
  %4173 = vrot.lane.b32.xlu0 %v4134, 64
  %v4174 = vpop.permute.xlu0 %4173
  %v4179 = vmul.f32 %v4160, %v4168
  %v4180 = vmul.f32 %v4162, %v4170
  %v4181 = vmul.f32 %v4164, %v4172
  %v4182 = vmul.f32 %v4166, %v4174
  %4187 = vrot.lane.b32.xlu0 %v4179, 64
  %v4188 = vpop.permute.xlu0 %4187
  %4189 = vrot.lane.b32.xlu0 %v4180, 64
  %v4190 = vpop.permute.xlu0 %4189
  %4191 = vrot.lane.b32.xlu0 %v4181, 64
  %v4192 = vpop.permute.xlu0 %4191
  %4193 = vrot.lane.b32.xlu0 %v4182, 64
  %v4194 = vpop.permute.xlu0 %4193
  %v4199 = vadd.f32 %v133, %v4188
  %v4200 = vadd.f32 %v139, %v4190
  %v4201 = vadd.f32 %v145, %v4192
  %v4202 = vadd.f32 %v151, %v4194
  %v4203 = vtanh.pop %v4199
  %v4204 = vtanh.pop %v4200
  %v4205 = vtanh.pop %v4201
  %v4206 = vtanh.pop %v4202
  %v4207 = vsub.f32 1.0, %v4160
  %v4208 = vsub.f32 1.0, %v4162
  %v4209 = vsub.f32 1.0, %v4164
  %v4210 = vsub.f32 1.0, %v4166
  %4215 = vrot.lane.b32.xlu0 %v4203, 96
  %v4216 = vpop.permute.xlu0 %4215
  %4217 = vrot.lane.b32.xlu0 %v4204, 96
  %v4218 = vpop.permute.xlu0 %4217
  %4219 = vrot.lane.b32.xlu0 %v4205, 96
  %v4220 = vpop.permute.xlu0 %4219
  %4221 = vrot.lane.b32.xlu0 %v4206, 96
  %v4222 = vpop.permute.xlu0 %4221
  %v4227 = vmul.f32 %v4207, %v4216
  %v4228 = vmul.f32 %v4208, %v4218
  %v4229 = vmul.f32 %v4209, %v4220
  %v4230 = vmul.f32 %v4210, %v4222
  %v4231 = vrot.slane %v3730, 1
  %v4232 = vrot.slane %v3730, 2
  %v4233 = vrot.slane %v3730, 3
  %v4234 = vrot.slane %v3730, 4
  %4235 = vrot.lane.b32.xlu0 %v4231, 32
  %v4236 = vpop.permute.xlu0 %4235
  %4237 = vrot.lane.b32.xlu0 %v4232, 32
  %v4238 = vpop.permute.xlu0 %4237
  %4239 = vrot.lane.b32.xlu0 %v4233, 32
  %v4240 = vpop.permute.xlu0 %4239
  %4241 = vrot.lane.b32.xlu0 %v4234, 32
  %v4242 = vpop.permute.xlu0 %4241
  %v4247 = vmul.f32 %v4160, %v4236
  %v4248 = vmul.f32 %v4162, %v4238
  %v4249 = vmul.f32 %v4164, %v4240
  %v4250 = vmul.f32 %v4166, %v4242
  %v4251 = vadd.f32 %v4227, %v4247
  %v4252 = vadd.f32 %v4228, %v4248
  %v4253 = vadd.f32 %v4229, %v4249
  %v4254 = vadd.f32 %v4230, %v4250
  %v4259 = vrot.slane %v4251, 7
  %v4260 = vrot.slane %v4252, 6
  %v4261 = vsel %vm369, %v4260, %v4259
  %v4262 = vrot.slane %v4253, 5
  %v4263 = vsel %vm372, %v4262, %v4261
  %v4264 = vrot.slane %v4254, 4
  %v4265 = vsel %vm375, %v4264, %v4263
  %4266 = vrot.lane.b32.xlu0 %v4265, 96
  %v4267 = vpop.permute.xlu0 %4266
  %v4269 = vmul.f32 %v613, %v4267
  %v4270 = vmul.f32 %v632, %v3730
  %v4271 = vadd.f32 %v4269, %v4270
  %v4272 = vsel %vm53, %v3967, 0
  %4274 = vmatprep.subr.mxu0 0.0
  %4275 = vmatpush1.msra.mxu0 %v161
  %4276 = vmatprep.subr.mxu0 0.0
  %4277 = vmatpush1.msra.mxu0 %v162
  %4278 = vmatprep.subr.mxu0 0.0
  %4279 = vmatpush1.msra.mxu0 %v163
  %4280 = vmatprep.subr.mxu0 0.0
  %4281 = vmatpush1.msra.mxu0 %v164
  %4282 = vmatprep.subr.mxu0 0.0
  %4283 = vmatpush1.msra.mxu0 0.0
  %4284 = vmatprep.subr.mxu0 0.0
  %4285 = vmatpush1.msra.mxu0 0.0
  %4286 = vmatprep.subr.mxu0 0.0
  %4287 = vmatpush1.msra.mxu0 0.0
  %4288 = vmatprep.subr.mxu0 0.0
  %4289 = vmatpush1.msra.mxu0 0.0
  %4290 = vmatprep.subr.mxu0 0.0
  %4291 = vmatpush1.msra.mxu0 0.0
  %4292 = vmatprep.subr.mxu0 0.0
  %4293 = vmatpush1.msra.mxu0 0.0
  %4294 = vmatprep.subr.mxu0 0.0
  %4295 = vmatpush1.msra.mxu0 0.0
  %4296 = vmatprep.subr.mxu0 0.0
  %4297 = vmatpush1.msra.mxu0 0.0
  %4298 = vmatprep.subr.mxu0 0.0
  %4299 = vmatpush1.msra.mxu0 0.0
  %4300 = vmatprep.subr.mxu0 0.0
  %4301 = vmatpush1.msra.mxu0 0.0
  %4302 = vmatprep.subr.mxu0 0.0
  %4303 = vmatpush1.msra.mxu0 0.0
  %4304 = vmatprep.subr.mxu0 0.0
  %4305 = vmatpush1.msra.mxu0 0.0
  %4306 = vmatprep.subr.mxu0 0.0
  %4307 = vmatpush1.msra.mxu0 0.0
  %4308 = vmatprep.subr.mxu0 0.0
  %4309 = vmatpush1.msra.mxu0 0.0
  %4310 = vmatprep.subr.mxu0 0.0
  %4311 = vmatpush1.msra.mxu0 0.0
  %4312 = vmatprep.subr.mxu0 0.0
  %4313 = vmatpush1.msra.mxu0 0.0
  %4314 = vmatprep.subr.mxu0 0.0
  %4315 = vmatpush1.msra.mxu0 0.0
  %4316 = vmatprep.subr.mxu0 0.0
  %4317 = vmatpush1.msra.mxu0 0.0
  %4318 = vmatprep.subr.mxu0 0.0
  %4319 = vmatpush1.msra.mxu0 0.0
  %4320 = vmatprep.subr.mxu0 0.0
  %4321 = vmatpush1.msra.mxu0 0.0
  %4322 = vmatprep.subr.mxu0 0.0
  %4323 = vmatpush1.msra.mxu0 0.0
  %4324 = vmatprep.subr.mxu0 0.0
  %4325 = vmatpush1.msra.mxu0 0.0
  %4326 = vmatprep.subr.mxu0 0.0
  %4327 = vmatpush1.msra.mxu0 0.0
  %4328 = vmatprep.subr.mxu0 0.0
  %4329 = vmatpush1.msra.mxu0 0.0
  %4330 = vmatprep.subr.mxu0 0.0
  %4331 = vmatpush1.msra.mxu0 0.0
  %4332 = vmatprep.subr.mxu0 0.0
  %4333 = vmatpush1.msra.mxu0 0.0
  %4334 = vmatprep.subr.mxu0 0.0
  %4335 = vmatpush1.msra.mxu0 0.0
  %4336 = vmatprep.subr.mxu0 0.0
  %4337 = vmatpush1.msra.mxu0 0.0
  %4338 = vmatprep.mubr.f32.mxu0 0.0
  %4339 = vmatmul.mubr.f32.gmra.mrb[0].mxu0 %v4272
  %v4340 = vpop.f32.mrb[0].mxu0
  %v4341 = vadd.f32 %v393, %v4340
  %v4342 = vpop.f32.mrb[0].mxu0
  %4343 = vdwg.mxu0
  %v4345 = vrot.slane %v4341, 1
  %v4346 = vrot.slane %v4341, 2
  %v4347 = vrot.slane %v4341, 3
  %4348 = vrot.lane.b32.xlu0 %v4341, 96
  %v4349 = vpop.permute.xlu0 %4348
  %4350 = vrot.lane.b32.xlu0 %v4345, 96
  %v4351 = vpop.permute.xlu0 %4350
  %4352 = vrot.lane.b32.xlu0 %v4346, 96
  %v4353 = vpop.permute.xlu0 %4352
  %4354 = vrot.lane.b32.xlu0 %v4347, 96
  %v4355 = vpop.permute.xlu0 %4354
  %v4360 = vadd.f32 %v133, %v4349
  %v4361 = vadd.f32 %v139, %v4351
  %v4362 = vadd.f32 %v145, %v4353
  %v4363 = vadd.f32 %v151, %v4355
  %v4364 = vxor.u32 %v4360, 2147483648
  %v4365 = vxor.u32 %v4361, 2147483648
  %v4366 = vxor.u32 %v4362, 2147483648
  %v4367 = vxor.u32 %v4363, 2147483648
  %v4368 = vmul.f32 %v4364, 1.442695
  %v4369 = vpow.pop %v4368
  %v4370 = vmul.f32 %v4365, 1.442695
  %v4371 = vpow.pop %v4370
  %v4372 = vmul.f32 %v4366, 1.442695
  %v4373 = vpow.pop %v4372
  %v4374 = vmul.f32 %v4367, 1.442695
  %v4375 = vpow.pop %v4374
  %v4376 = vadd.f32 %v4369, 1.0
  %v4377 = vadd.f32 %v4371, 1.0
  %v4378 = vadd.f32 %v4373, 1.0
  %v4379 = vadd.f32 %v4375, 1.0
  %v4380 = vrcp.pop %v4376
  %v4381 = vmul.f32 1.0, %v4380
  %v4382 = vrcp.pop %v4377
  %v4383 = vmul.f32 1.0, %v4382
  %v4384 = vrcp.pop %v4378
  %v4385 = vmul.f32 1.0, %v4384
  %v4386 = vrcp.pop %v4379
  %v4387 = vmul.f32 1.0, %v4386
  %v4388 = vadd.f32 %v135, %v4349
  %v4389 = vadd.f32 %v141, %v4351
  %v4390 = vadd.f32 %v147, %v4353
  %v4391 = vadd.f32 %v153, %v4355
  %v4392 = vxor.u32 %v4388, 2147483648
  %v4393 = vxor.u32 %v4389, 2147483648
  %v4394 = vxor.u32 %v4390, 2147483648
  %v4395 = vxor.u32 %v4391, 2147483648
  %v4396 = vmul.f32 %v4392, 1.442695
  %v4397 = vpow.pop %v4396
  %v4398 = vmul.f32 %v4393, 1.442695
  %v4399 = vpow.pop %v4398
  %v4400 = vmul.f32 %v4394, 1.442695
  %v4401 = vpow.pop %v4400
  %v4402 = vmul.f32 %v4395, 1.442695
  %v4403 = vpow.pop %v4402
  %v4404 = vadd.f32 %v4397, 1.0
  %v4405 = vadd.f32 %v4399, 1.0
  %v4406 = vadd.f32 %v4401, 1.0
  %v4407 = vadd.f32 %v4403, 1.0
  %v4408 = vrcp.pop %v4404
  %v4409 = vmul.f32 1.0, %v4408
  %v4410 = vrcp.pop %v4405
  %v4411 = vmul.f32 1.0, %v4410
  %v4412 = vrcp.pop %v4406
  %v4413 = vmul.f32 1.0, %v4412
  %v4414 = vrcp.pop %v4407
  %v4415 = vmul.f32 1.0, %v4414
  %4416 = vrot.lane.b32.xlu0 %v4341, 32
  %v4417 = vpop.permute.xlu0 %4416
  %4418 = vrot.lane.b32.xlu0 %v4345, 32
  %v4419 = vpop.permute.xlu0 %4418
  %4420 = vrot.lane.b32.xlu0 %v4346, 32
  %v4421 = vpop.permute.xlu0 %4420
  %4422 = vrot.lane.b32.xlu0 %v4347, 32
  %v4423 = vpop.permute.xlu0 %4422
  %v4428 = vmul.f32 %v4381, %v4417
  %v4429 = vmul.f32 %v4383, %v4419
  %v4430 = vmul.f32 %v4385, %v4421
  %v4431 = vmul.f32 %v4387, %v4423
  %4436 = vrot.lane.b32.xlu0 %v4428, 64
  %v4437 = vpop.permute.xlu0 %4436
  %4438 = vrot.lane.b32.xlu0 %v4429, 64
  %v4439 = vpop.permute.xlu0 %4438
  %4440 = vrot.lane.b32.xlu0 %v4430, 64
  %v4441 = vpop.permute.xlu0 %4440
  %4442 = vrot.lane.b32.xlu0 %v4431, 64
  %v4443 = vpop.permute.xlu0 %4442
  %v4448 = vadd.f32 %v135, %v4437
  %v4449 = vadd.f32 %v141, %v4439
  %v4450 = vadd.f32 %v147, %v4441
  %v4451 = vadd.f32 %v153, %v4443
  %v4452 = vtanh.pop %v4448
  %v4453 = vtanh.pop %v4449
  %v4454 = vtanh.pop %v4450
  %v4455 = vtanh.pop %v4451
  %v4456 = vsub.f32 1.0, %v4409
  %v4457 = vsub.f32 1.0, %v4411
  %v4458 = vsub.f32 1.0, %v4413
  %v4459 = vsub.f32 1.0, %v4415
  %4464 = vrot.lane.b32.xlu0 %v4452, 96
  %v4465 = vpop.permute.xlu0 %4464
  %4466 = vrot.lane.b32.xlu0 %v4453, 96
  %v4467 = vpop.permute.xlu0 %4466
  %4468 = vrot.lane.b32.xlu0 %v4454, 96
  %v4469 = vpop.permute.xlu0 %4468
  %4470 = vrot.lane.b32.xlu0 %v4455, 96
  %v4471 = vpop.permute.xlu0 %4470
  %v4476 = vmul.f32 %v4456, %v4465
  %v4477 = vmul.f32 %v4457, %v4467
  %v4478 = vmul.f32 %v4458, %v4469
  %v4479 = vmul.f32 %v4459, %v4471
  %v4480 = vrot.slane %v3967, 1
  %v4481 = vrot.slane %v3967, 2
  %v4482 = vrot.slane %v3967, 3
  %v4487 = vmul.f32 %v4409, %v3967
  %v4488 = vmul.f32 %v4411, %v4480
  %v4489 = vmul.f32 %v4413, %v4481
  %v4490 = vmul.f32 %v4415, %v4482
  %v4491 = vadd.f32 %v4476, %v4487
  %v4492 = vadd.f32 %v4477, %v4488
  %v4493 = vadd.f32 %v4478, %v4489
  %v4494 = vadd.f32 %v4479, %v4490
  %v4499 = vrot.slane %v4492, 7
  %v4500 = vsel %vm369, %v4499, %v4491
  %v4501 = vrot.slane %v4493, 6
  %v4502 = vsel %vm372, %v4501, %v4500
  %v4503 = vrot.slane %v4494, 5
  %v4504 = vsel %vm375, %v4503, %v4502
  %v4506 = vmul.f32 %v362, %v4504
  %v4507 = vmul.f32 %v385, %v3967
  %v4508 = vadd.f32 %v4506, %v4507
  %v4511 = vunpack.c.l.s4 1966171168
  %v4512 = vunpack.c.0.s8 %v4511
  %v4513 = vlaneseq
  %v4514 = vshrl.u32 %v4513, 7
  %v4515 = vsub.s32 %v4512, %v4514
  %v4516 = vrot.slane %v4271, %v4515
  %v4517 = vcombine.high %v4516, %v4516
  %v4519 = vunpack.c.l.s4 1966171168
  %v4520 = vunpack.c.0.s8 %v4519
  %v4521 = vlaneseq
  %v4522 = vshrl.u32 %v4521, 7
  %v4523 = vsub.s32 %v4520, %v4522
  %v4524 = vrot.slane %v4516, %v4523
  %v4526 = vunpack.c.l.s4 1966171168
  %v4527 = vunpack.c.0.s8 %v4526
  %v4528 = vlaneseq
  %v4529 = vshrl.u32 %v4528, 7
  %v4530 = vsub.s32 %v4527, %v4529
  %v4531 = vrot.slane %v4517, %v4530
  %v4532 = vcombine.high %v4524, %v4524
  %v4533 = vcombine.high %v4531, %v4531
  %4538 = vst.msk [vmem:[%s8 + $0x7] sm:$0x1] %vm665, %v4524
  %4539 = vst.msk [vmem:[%s8 + $0xf] sm:$0x1] %vm665, %v4531
  %4540 = vst.msk [vmem:[%s8 + $0x17] sm:$0x1] %vm665, %v4532
  %4541 = vst.msk [vmem:[%s8 + $0x1f] sm:$0x1] %vm665, %v4533
  %v4544 = vunpack.c.l.s4 1966171168
  %v4545 = vunpack.c.0.s8 %v4544
  %v4546 = vlaneseq
  %v4547 = vshrl.u32 %v4546, 7
  %v4548 = vsub.s32 %v4545, %v4547
  %v4549 = vrot.slane %v4508, %v4548
  %v4550 = vcombine.high %v4549, %v4549
  %v4552 = vunpack.c.l.s4 1966171168
  %v4553 = vunpack.c.0.s8 %v4552
  %v4554 = vlaneseq
  %v4555 = vshrl.u32 %v4554, 7
  %v4556 = vsub.s32 %v4553, %v4555
  %v4557 = vrot.slane %v4549, %v4556
  %v4559 = vunpack.c.l.s4 1966171168
  %v4560 = vunpack.c.0.s8 %v4559
  %v4561 = vlaneseq
  %v4562 = vshrl.u32 %v4561, 7
  %v4563 = vsub.s32 %v4560, %v4562
  %v4564 = vrot.slane %v4550, %v4563
  %v4565 = vcombine.high %v4557, %v4557
  %v4566 = vcombine.high %v4564, %v4564
  %v4567 = vlaneseq
  %v4568 = vshrl.u32 %v4567, 7
  %v4569 = vsub.s32 0, %v4568
  %v4570 = vrot.slane %v4557, %v4569
  %v4571 = vlaneseq
  %v4572 = vshrl.u32 %v4571, 7
  %v4573 = vsub.s32 0, %v4572
  %v4574 = vrot.slane %v4564, %v4573
  %v4575 = vlaneseq
  %v4576 = vshrl.u32 %v4575, 7
  %v4577 = vsub.s32 0, %v4576
  %v4578 = vrot.slane %v4565, %v4577
  %v4579 = vlaneseq
  %v4580 = vshrl.u32 %v4579, 7
  %v4581 = vsub.s32 0, %v4580
  %v4582 = vrot.slane %v4566, %v4581
  %4583 = vrot.lane.b32.xlu0 %v4570, 32
  %v4584 = vpop.permute.xlu0 %4583
  %4585 = vrot.lane.b32.xlu0 %v4574, 32
  %v4586 = vpop.permute.xlu0 %4585
  %4587 = vrot.lane.b32.xlu0 %v4578, 32
  %v4588 = vpop.permute.xlu0 %4587
  %4589 = vrot.lane.b32.xlu0 %v4582, 32
  %v4590 = vpop.permute.xlu0 %4589
  %4595 = vst.msk [vmem:[%s8] sm:$0x1] %vm723, %v4584
  %4596 = vst.msk [vmem:[%s8 + $0x8] sm:$0x1] %vm723, %v4586
  %4597 = vst.msk [vmem:[%s8 + $0x10] sm:$0x1] %vm723, %v4588
  %4598 = vst.msk [vmem:[%s8 + $0x18] sm:$0x1] %vm723, %v4590
  // Predicated region
  $region34: #{word_attention_forward.3} parent=0 // pred_check
    _
  $region35: #{word_attention_forward.3} parent=0 // pred_check_branch
    %4600 = sbr.rel (0) target = $region37
  $region36: #{word_attention_forward.3} parent=0 // pred_region
    _
  $region37: #{word_attention_forward.3} parent=0 // pred_fallthru
    _
  // Predicated region
  $region38: #{word_attention_forward.3} parent=0 // pred_check
    _
  $region39: #{word_attention_forward.3} parent=0 // pred_check_branch
    %4602 = sbr.rel (0) target = $region41
  $region40: #{word_attention_forward.3} parent=0 // pred_region
    _
  $region41: #{word_attention_forward.3} parent=0 // pred_fallthru
    _

</llo_original>
